<compile_context>
chip_gen: v7x
topology: tpu7x:2x2x1
jax: 0.10.0
libtpu: 0.0.40
codegen_flags: <defaults>
</compile_context>

<pallas_src>
import jax
import jax.numpy as jnp
from jax.experimental import pallas as pl
from jax.experimental.pallas import tpu as pltpu


# ----------------------------------------------------------------------------
# In-kernel helpers
# ----------------------------------------------------------------------------
def _conv3x3(src_ref, w_ref, ho, wo):
    """3x3 / pad-1 / stride-1 conv as nine accumulated MXU matmuls.

    src_ref: (n, ho+2, wo+2, cin) zero-padded activation (f32 VMEM ref)
    w_ref:   (9*cin, cout) bf16 im2col weight matrix (BN scale folded in)
    returns: (n*ho*wo, cout) f32 accumulator value
    """
    n = src_ref.shape[0]
    cin = w_ref.shape[0] // 9
    cout = w_ref.shape[1]
    rows = n * ho * wo
    acc = jnp.zeros((rows, cout), jnp.float32)
    for kh in range(3):
        for kw in range(3):
            t = kh * 3 + kw
            patch = src_ref[:, kh:kh + ho, kw:kw + wo, :]       # (n, ho, wo, cin)
            lhs = patch.reshape(rows, cin).astype(jnp.bfloat16)  # bf16 MXU feed
            acc = acc + jnp.dot(lhs, w_ref[t * cin:(t + 1) * cin, :],
                                preferred_element_type=jnp.float32)
    return acc


# ----------------------------------------------------------------------------
# Kernel A: stem (conv+BN+ReLU) + BasicBlock 0 (16 -> 16, stride 1)
# Grid: one program per batch image ("parallel" -> megacore on v7x).
# ----------------------------------------------------------------------------
def _stage_a_kernel(xpad_ref, w0_ref, s0_ref, w1_ref, s1_ref, w2_ref, s2_ref,
                    out_ref, pad_ref, res_ref):
    h = xpad_ref.shape[1] - 2
    w = xpad_ref.shape[2] - 2
    c = w0_ref.shape[1]                       # 16 channels after the stem

    # stem: conv3x3(3->16) (channels pre-padded to 8) + folded BN + ReLU
    a0 = jnp.maximum(_conv3x3(xpad_ref, w0_ref, h, w) + s0_ref[...], 0.0)
    res_ref[...] = a0                         # keep residual in VMEM scratch

    # block 0, conv1 + BN + ReLU  (padded activation lives in VMEM scratch)
    pad_ref[...] = jnp.zeros_like(pad_ref)
    pad_ref[:, 1:h + 1, 1:w + 1, :] = a0.reshape(1, h, w, c)
    a1 = jnp.maximum(_conv3x3(pad_ref, w1_ref, h, w) + s1_ref[...], 0.0)

    # block 0, conv2 + BN + residual + ReLU
    pad_ref[:, 1:h + 1, 1:w + 1, :] = a1.reshape(1, h, w, c)
    a2 = jnp.maximum(
        _conv3x3(pad_ref, w2_ref, h, w) + s2_ref[...] + res_ref[...], 0.0)

    out_ref[...] = a2.reshape(1, h * w, c).astype(out_ref.dtype)


# ----------------------------------------------------------------------------
# Kernel B: BasicBlock 1 (16 -> 32, stride 2, downsample) + avg-pool + fc
# ----------------------------------------------------------------------------
def _stage_b_kernel(cols_ref, wcat_ref, scat_ref, w2_ref, s2_ref, wfc_ref,
                    bfc_ref, out_ref, pad_ref):
    n = pad_ref.shape[0]
    ho = pad_ref.shape[1] - 2
    wo = pad_ref.shape[2] - 2
    c = w2_ref.shape[1]                       # 32

    # merged [conv1 | downsample] on the stride-2 patch matrix (one MXU matmul)
    y = jnp.dot(cols_ref[...], wcat_ref[...], preferred_element_type=jnp.float32)
    y = y + scat_ref[...]
    c1 = jnp.maximum(y[:, :c], 0.0)           # conv1 + BN + ReLU branch
    down = y[:, c:]                           # downsample + BN branch (no ReLU)

    # conv2 (stride 1) in-kernel on a padded VMEM scratch
    pad_ref[...] = jnp.zeros_like(pad_ref)
    pad_ref[:, 1:ho + 1, 1:wo + 1, :] = c1.reshape(n, ho, wo, c)
    a = _conv3x3(pad_ref, w2_ref, ho, wo)
    a = jnp.maximum(a + s2_ref[...] + down, 0.0)          # (n*ho*wo, c)

    # AdaptiveAvgPool2d((1,1)) + flatten + Linear as an epilogue
    pooled = jnp.mean(a.reshape(n, ho * wo, c), axis=1)    # (n, c)
    logits = jnp.dot(pooled.astype(jnp.bfloat16), wfc_ref[...],
                     preferred_element_type=jnp.float32) + bfc_ref[...]
    out_ref[...] = logits.astype(out_ref.dtype)


# ----------------------------------------------------------------------------
# Forward pass wrapper
# ----------------------------------------------------------------------------
def resnet_forward(x_nchw, kp):
    n, _, h, w = x_nchw.shape
    c0 = 16                                   # stem / layer-0 channels
    c1 = 32                                   # layer-1 channels
    ncls = kp["bfc"].shape[1]

    # NCHW -> NHWC, pad channels 3->8 (sublane alignment), spatial halo pad of 1
    x = jnp.transpose(x_nchw, (0, 2, 3, 1)).astype(jnp.float32)
    xpad = jnp.pad(x, ((0, 0), (1, 1), (1, 1), (0, 8 - x.shape[3])))

    cp_a = pltpu.CompilerParams(dimension_semantics=("parallel",),
                                vmem_limit_bytes=32 * 1024 * 1024)
    a2_flat = pl.pallas_call(
        _stage_a_kernel,
        grid=(n,),
        in_specs=[
            pl.BlockSpec((1, h + 2, w + 2, 8), lambda i: (i, 0, 0, 0)),
            pl.BlockSpec((9 * 8, c0), lambda i: (0, 0)),
            pl.BlockSpec((1, c0), lambda i: (0, 0)),
            pl.BlockSpec((9 * c0, c0), lambda i: (0, 0)),
            pl.BlockSpec((1, c0), lambda i: (0, 0)),
            pl.BlockSpec((9 * c0, c0), lambda i: (0, 0)),
            pl.BlockSpec((1, c0), lambda i: (0, 0)),
        ],
        out_specs=pl.BlockSpec((1, h * w, c0), lambda i: (i, 0, 0)),
        out_shape=jax.ShapeDtypeStruct((n, h * w, c0), jnp.bfloat16),
        scratch_shapes=[pltpu.VMEM((1, h + 2, w + 2, c0), jnp.float32),
                        pltpu.VMEM((h * w, c0), jnp.float32)],
        compiler_params=cp_a,
    )(xpad, kp["w0"], kp["s0"], kp["w1"], kp["s1"], kp["w2"], kp["s2"])

    # stride-2 im2col of the block-0 output (tiny plain-JAX glue, (n*64, 144) bf16)
    ho, wo = h // 2, w // 2
    a2 = a2_flat.reshape(n, h, w, c0)
    xp = jnp.pad(a2, ((0, 0), (1, 1), (1, 1), (0, 0)))
    taps = [xp[:, kh:kh + 2 * ho - 1:2, kw:kw + 2 * wo - 1:2, :]
            for kh in range(3) for kw in range(3)]
    cols1 = jnp.stack(taps, axis=3).reshape(n * ho * wo, 9 * c0)

    cp_b = pltpu.CompilerParams(dimension_semantics=("arbitrary",),
                                vmem_limit_bytes=32 * 1024 * 1024)
    logits = pl.pallas_call(
        _stage_b_kernel,
        grid=(1,),
        in_specs=[
            pl.BlockSpec(cols1.shape, lambda i: (0, 0)),
            pl.BlockSpec(kp["wcat"].shape, lambda i: (0, 0)),
            pl.BlockSpec(kp["scat"].shape, lambda i: (0, 0)),
            pl.BlockSpec(kp["w2b"].shape, lambda i: (0, 0)),
            pl.BlockSpec(kp["s2b"].shape, lambda i: (0, 0)),
            pl.BlockSpec(kp["wfc"].shape, lambda i: (0, 0)),
            pl.BlockSpec(kp["bfc"].shape, lambda i: (0, 0)),
        ],
        out_specs=pl.BlockSpec((n, ncls), lambda i: (0, 0)),
        out_shape=jax.ShapeDtypeStruct((n, ncls), jnp.float32),
        scratch_shapes=[pltpu.VMEM((n, ho + 2, wo + 2, c1), jnp.float32)],
        compiler_params=cp_b,
    )(cols1, kp["wcat"], kp["scat"], kp["w2b"], kp["s2b"], kp["wfc"], kp["bfc"])
    return logits


# ----------------------------------------------------------------------------
# Parameter init (deterministic, synthetic) + one-time prep (BN fold, bf16 cast)
# ----------------------------------------------------------------------------
_EPS = 1e-5


def _bn_fold(key, c):
    k1, k2 = jax.random.split(key)
    gamma = 1.0 + 0.1 * jax.random.normal(k1, (c,), jnp.float32)
    beta = 0.1 * jax.random.normal(k2, (c,), jnp.float32)
    running_mean = jnp.zeros((c,), jnp.float32)
    running_var = jnp.ones((c,), jnp.float32)
    scale = gamma / jnp.sqrt(running_var + _EPS)
    shift = beta - running_mean * scale
    return scale, shift


def _conv_w(key, c_out, c_in):
    return 0.1 * jax.random.normal(key, (c_out, c_in, 3, 3), jnp.float32)


def init_params(key):
    ks = jax.random.split(key, 16)
    p = {}
    p["conv0_w"] = _conv_w(ks[0], 16, 3)
    p["bn0_s"], p["bn0_b"] = _bn_fold(ks[1], 16)
    p["b0_conv1_w"] = _conv_w(ks[2], 16, 16)
    p["b0_bn1_s"], p["b0_bn1_b"] = _bn_fold(ks[3], 16)
    p["b0_conv2_w"] = _conv_w(ks[4], 16, 16)
    p["b0_bn2_s"], p["b0_bn2_b"] = _bn_fold(ks[5], 16)
    p["b1_conv1_w"] = _conv_w(ks[6], 32, 16)
    p["b1_bn1_s"], p["b1_bn1_b"] = _bn_fold(ks[7], 32)
    p["b1_conv2_w"] = _conv_w(ks[8], 32, 32)
    p["b1_bn2_s"], p["b1_bn2_b"] = _bn_fold(ks[9], 32)
    p["b1_down_w"] = _conv_w(ks[10], 32, 16)
    p["b1_dbn_s"], p["b1_dbn_b"] = _bn_fold(ks[11], 32)
    p["fc_w"] = 0.1 * jax.random.normal(ks[12], (10, 32), jnp.float32)
    p["fc_b"] = 0.1 * jax.random.normal(ks[13], (10,), jnp.float32)
    return p


def _conv_mat(w_oihw, bn_scale, cin_pad=None):
    """(Cout, Cin, 3, 3) -> (9*Cin, Cout) im2col matrix, BN scale folded, bf16."""
    cout, cin = w_oihw.shape[0], w_oihw.shape[1]
    m = jnp.transpose(w_oihw, (2, 3, 1, 0))           # (3, 3, Cin, Cout)
    if cin_pad is not None and cin_pad > cin:
        m = jnp.pad(m, ((0, 0), (0, 0), (0, cin_pad - cin), (0, 0)))
        cin = cin_pad
    m = m.reshape(9 * cin, cout) * bn_scale[None, :]
    return m.astype(jnp.bfloat16)


def prepare_params(p):
    """Fold BN scale into bf16 weight matrices once; shifts stay f32 (1, C)."""
    return {
        "w0": _conv_mat(p["conv0_w"], p["bn0_s"], cin_pad=8),
        "s0": p["bn0_b"].reshape(1, -1).astype(jnp.float32),
        "w1": _conv_mat(p["b0_conv1_w"], p["b0_bn1_s"]),
        "s1": p["b0_bn1_b"].reshape(1, -1).astype(jnp.float32),
        "w2": _conv_mat(p["b0_conv2_w"], p["b0_bn2_s"]),
        "s2": p["b0_bn2_b"].reshape(1, -1).astype(jnp.float32),
        # block-1 conv1 and downsample share one matmul (concat on output dim)
        "wcat": jnp.concatenate([_conv_mat(p["b1_conv1_w"], p["b1_bn1_s"]),
                                 _conv_mat(p["b1_down_w"], p["b1_dbn_s"])], axis=1),
        "scat": jnp.concatenate([p["b1_bn1_b"], p["b1_dbn_b"]]
                                ).reshape(1, -1).astype(jnp.float32),
        "w2b": _conv_mat(p["b1_conv2_w"], p["b1_bn2_s"]),
        "s2b": p["b1_bn2_b"].reshape(1, -1).astype(jnp.float32),
        "wfc": p["fc_w"].T.astype(jnp.bfloat16),
        "bfc": p["fc_b"].reshape(1, -1).astype(jnp.float32),
    }


# ----------------------------------------------------------------------------
if __name__ == "__main__":
    key = jax.random.PRNGKey(0)
    k_x, k_p = jax.random.split(key)
    raw_params = init_params(k_p)
    kparams = prepare_params(raw_params)           # one-time BN fold + bf16 cast

    x = jax.random.normal(k_x, (2, 3, 16, 16), jnp.float32)   # NCHW like PyTorch

    fwd = jax.jit(resnet_forward)
    logits = jax.block_until_ready(fwd(x, kparams))

    assert logits.shape == (2, 10), logits.shape
    assert bool(jnp.all(jnp.isfinite(logits)))
    print("KERNEL_OK")
</pallas_src>

<mosaic_0001>
module attributes {stable_mosaic.version = 11 : i64} {
  func.func @_stage_a_kernel(%arg0: i32, %arg1: memref<1x18x18x8xf32, #tpu.memory_space<vmem>>, %arg2: memref<72x16xbf16, #tpu.memory_space<vmem>>, %arg3: memref<1x16xf32, #tpu.memory_space<vmem>>, %arg4: memref<144x16xbf16, #tpu.memory_space<vmem>>, %arg5: memref<1x16xf32, #tpu.memory_space<vmem>>, %arg6: memref<144x16xbf16, #tpu.memory_space<vmem>>, %arg7: memref<1x16xf32, #tpu.memory_space<vmem>>, %arg8: memref<1x256x16xbf16, #tpu.memory_space<vmem>>, %arg9: memref<1x18x18x16xf32, #tpu.memory_space<vmem>>, %arg10: memref<256x16xf32, #tpu.memory_space<vmem>>) attributes {dimension_semantics = [#tpu.dimension_semantics<parallel>], iteration_bounds = array<i64: 2>, scalar_prefetch = 0 : i64, scratch_operands = 2 : i64, tpu.core_type = #tpu.core_type<tc>, window_params = [{transform_indices = @transform_0, window_bounds = array<i64: 1, 18, 18, 8>}, {pipeline_mode = #tpu.pipeline_mode<synchronous>, transform_indices = @transform_1, window_bounds = array<i64: 72, 16>}, {pipeline_mode = #tpu.pipeline_mode<synchronous>, transform_indices = @transform_2, window_bounds = array<i64: 1, 16>}, {pipeline_mode = #tpu.pipeline_mode<synchronous>, transform_indices = @transform_3, window_bounds = array<i64: 144, 16>}, {pipeline_mode = #tpu.pipeline_mode<synchronous>, transform_indices = @transform_4, window_bounds = array<i64: 1, 16>}, {pipeline_mode = #tpu.pipeline_mode<synchronous>, transform_indices = @transform_5, window_bounds = array<i64: 144, 16>}, {pipeline_mode = #tpu.pipeline_mode<synchronous>, transform_indices = @transform_6, window_bounds = array<i64: 1, 16>}, {transform_indices = @transform_7, window_bounds = array<i64: 1, 256, 16>}]} {
    %cst = arith.constant 0.000000e+00 : f32
    %0 = vector.broadcast %cst : f32 to vector<256x16xf32>
    %c0 = arith.constant 0 : index
    %c0_0 = arith.constant 0 : index
    %c0_1 = arith.constant 0 : index
    %c0_2 = arith.constant 0 : index
    %1 = vector.load %arg1[%c0, %c0_0, %c0_1, %c0_2] : memref<1x18x18x8xf32, #tpu.memory_space<vmem>>, vector<1x16x16x8xf32>
    %2 = vector.shape_cast %1 : vector<1x16x16x8xf32> to vector<256x8xf32>
    %3 = arith.truncf %2 : vector<256x8xf32> to vector<256x8xbf16>
    %c0_3 = arith.constant 0 : index
    %c0_4 = arith.constant 0 : index
    %4 = vector.load %arg2[%c0_3, %c0_4] : memref<72x16xbf16, #tpu.memory_space<vmem>>, vector<8x16xbf16>
    %cst_5 = arith.constant dense<0.000000e+00> : vector<256x16xf32>
    %5 = tpu.matmul %3, %4, %cst_5 {dimension_numbers = #tpu.dot_dimension_numbers<[1], [0], [0], [1], [0, 0, 1, 1], [], []>} : vector<256x8xbf16>, vector<8x16xbf16>, vector<256x16xf32> -> vector<256x16xf32>
    %6 = arith.addf %0, %5 : vector<256x16xf32>
    %c0_6 = arith.constant 0 : index
    %c0_7 = arith.constant 0 : index
    %c1 = arith.constant 1 : index
    %c0_8 = arith.constant 0 : index
    %7 = vector.load %arg1[%c0_6, %c0_7, %c1, %c0_8] : memref<1x18x18x8xf32, #tpu.memory_space<vmem>>, vector<1x16x16x8xf32>
    %8 = vector.shape_cast %7 : vector<1x16x16x8xf32> to vector<256x8xf32>
    %9 = arith.truncf %8 : vector<256x8xf32> to vector<256x8xbf16>
    %c8 = arith.constant 8 : index
    %c0_9 = arith.constant 0 : index
    %10 = vector.load %arg2[%c8, %c0_9] : memref<72x16xbf16, #tpu.memory_space<vmem>>, vector<8x16xbf16>
    %cst_10 = arith.constant dense<0.000000e+00> : vector<256x16xf32>
    %11 = tpu.matmul %9, %10, %cst_10 {dimension_numbers = #tpu.dot_dimension_numbers<[1], [0], [0], [1], [0, 0, 1, 1], [], []>} : vector<256x8xbf16>, vector<8x16xbf16>, vector<256x16xf32> -> vector<256x16xf32>
    %12 = arith.addf %6, %11 : vector<256x16xf32>
    %c0_11 = arith.constant 0 : index
    %c0_12 = arith.constant 0 : index
    %c2 = arith.constant 2 : index
    %c0_13 = arith.constant 0 : index
    %13 = vector.load %arg1[%c0_11, %c0_12, %c2, %c0_13] : memref<1x18x18x8xf32, #tpu.memory_space<vmem>>, vector<1x16x16x8xf32>
    %14 = vector.shape_cast %13 : vector<1x16x16x8xf32> to vector<256x8xf32>
    %15 = arith.truncf %14 : vector<256x8xf32> to vector<256x8xbf16>
    %c16 = arith.constant 16 : index
    %c0_14 = arith.constant 0 : index
    %16 = vector.load %arg2[%c16, %c0_14] : memref<72x16xbf16, #tpu.memory_space<vmem>>, vector<8x16xbf16>
    %cst_15 = arith.constant dense<0.000000e+00> : vector<256x16xf32>
    %17 = tpu.matmul %15, %16, %cst_15 {dimension_numbers = #tpu.dot_dimension_numbers<[1], [0], [0], [1], [0, 0, 1, 1], [], []>} : vector<256x8xbf16>, vector<8x16xbf16>, vector<256x16xf32> -> vector<256x16xf32>
    %18 = arith.addf %12, %17 : vector<256x16xf32>
    %c0_16 = arith.constant 0 : index
    %c1_17 = arith.constant 1 : index
    %c0_18 = arith.constant 0 : index
    %c0_19 = arith.constant 0 : index
    %19 = vector.load %arg1[%c0_16, %c1_17, %c0_18, %c0_19] : memref<1x18x18x8xf32, #tpu.memory_space<vmem>>, vector<1x16x16x8xf32>
    %20 = vector.shape_cast %19 : vector<1x16x16x8xf32> to vector<256x8xf32>
    %21 = arith.truncf %20 : vector<256x8xf32> to vector<256x8xbf16>
    %c24 = arith.constant 24 : index
    %c0_20 = arith.constant 0 : index
    %22 = vector.load %arg2[%c24, %c0_20] : memref<72x16xbf16, #tpu.memory_space<vmem>>, vector<8x16xbf16>
    %cst_21 = arith.constant dense<0.000000e+00> : vector<256x16xf32>
    %23 = tpu.matmul %21, %22, %cst_21 {dimension_numbers = #tpu.dot_dimension_numbers<[1], [0], [0], [1], [0, 0, 1, 1], [], []>} : vector<256x8xbf16>, vector<8x16xbf16>, vector<256x16xf32> -> vector<256x16xf32>
    %24 = arith.addf %18, %23 : vector<256x16xf32>
    %c0_22 = arith.constant 0 : index
    %c1_23 = arith.constant 1 : index
    %c1_24 = arith.constant 1 : index
    %c0_25 = arith.constant 0 : index
    %25 = vector.load %arg1[%c0_22, %c1_23, %c1_24, %c0_25] : memref<1x18x18x8xf32, #tpu.memory_space<vmem>>, vector<1x16x16x8xf32>
    %26 = vector.shape_cast %25 : vector<1x16x16x8xf32> to vector<256x8xf32>
    %27 = arith.truncf %26 : vector<256x8xf32> to vector<256x8xbf16>
    %c32 = arith.constant 32 : index
    %c0_26 = arith.constant 0 : index
    %28 = vector.load %arg2[%c32, %c0_26] : memref<72x16xbf16, #tpu.memory_space<vmem>>, vector<8x16xbf16>
    %cst_27 = arith.constant dense<0.000000e+00> : vector<256x16xf32>
    %29 = tpu.matmul %27, %28, %cst_27 {dimension_numbers = #tpu.dot_dimension_numbers<[1], [0], [0], [1], [0, 0, 1, 1], [], []>} : vector<256x8xbf16>, vector<8x16xbf16>, vector<256x16xf32> -> vector<256x16xf32>
    %30 = arith.addf %24, %29 : vector<256x16xf32>
    %c0_28 = arith.constant 0 : index
    %c1_29 = arith.constant 1 : index
    %c2_30 = arith.constant 2 : index
    %c0_31 = arith.constant 0 : index
    %31 = vector.load %arg1[%c0_28, %c1_29, %c2_30, %c0_31] : memref<1x18x18x8xf32, #tpu.memory_space<vmem>>, vector<1x16x16x8xf32>
    %32 = vector.shape_cast %31 : vector<1x16x16x8xf32> to vector<256x8xf32>
    %33 = arith.truncf %32 : vector<256x8xf32> to vector<256x8xbf16>
    %c40 = arith.constant 40 : index
    %c0_32 = arith.constant 0 : index
    %34 = vector.load %arg2[%c40, %c0_32] : memref<72x16xbf16, #tpu.memory_space<vmem>>, vector<8x16xbf16>
    %cst_33 = arith.constant dense<0.000000e+00> : vector<256x16xf32>
    %35 = tpu.matmul %33, %34, %cst_33 {dimension_numbers = #tpu.dot_dimension_numbers<[1], [0], [0], [1], [0, 0, 1, 1], [], []>} : vector<256x8xbf16>, vector<8x16xbf16>, vector<256x16xf32> -> vector<256x16xf32>
    %36 = arith.addf %30, %35 : vector<256x16xf32>
    %c0_34 = arith.constant 0 : index
    %c2_35 = arith.constant 2 : index
    %c0_36 = arith.constant 0 : index
    %c0_37 = arith.constant 0 : index
    %37 = vector.load %arg1[%c0_34, %c2_35, %c0_36, %c0_37] : memref<1x18x18x8xf32, #tpu.memory_space<vmem>>, vector<1x16x16x8xf32>
    %38 = vector.shape_cast %37 : vector<1x16x16x8xf32> to vector<256x8xf32>
    %39 = arith.truncf %38 : vector<256x8xf32> to vector<256x8xbf16>
    %c48 = arith.constant 48 : index
    %c0_38 = arith.constant 0 : index
    %40 = vector.load %arg2[%c48, %c0_38] : memref<72x16xbf16, #tpu.memory_space<vmem>>, vector<8x16xbf16>
    %cst_39 = arith.constant dense<0.000000e+00> : vector<256x16xf32>
    %41 = tpu.matmul %39, %40, %cst_39 {dimension_numbers = #tpu.dot_dimension_numbers<[1], [0], [0], [1], [0, 0, 1, 1], [], []>} : vector<256x8xbf16>, vector<8x16xbf16>, vector<256x16xf32> -> vector<256x16xf32>
    %42 = arith.addf %36, %41 : vector<256x16xf32>
    %c0_40 = arith.constant 0 : index
    %c2_41 = arith.constant 2 : index
    %c1_42 = arith.constant 1 : index
    %c0_43 = arith.constant 0 : index
    %43 = vector.load %arg1[%c0_40, %c2_41, %c1_42, %c0_43] : memref<1x18x18x8xf32, #tpu.memory_space<vmem>>, vector<1x16x16x8xf32>
    %44 = vector.shape_cast %43 : vector<1x16x16x8xf32> to vector<256x8xf32>
    %45 = arith.truncf %44 : vector<256x8xf32> to vector<256x8xbf16>
    %c56 = arith.constant 56 : index
    %c0_44 = arith.constant 0 : index
    %46 = vector.load %arg2[%c56, %c0_44] : memref<72x16xbf16, #tpu.memory_space<vmem>>, vector<8x16xbf16>
    %cst_45 = arith.constant dense<0.000000e+00> : vector<256x16xf32>
    %47 = tpu.matmul %45, %46, %cst_45 {dimension_numbers = #tpu.dot_dimension_numbers<[1], [0], [0], [1], [0, 0, 1, 1], [], []>} : vector<256x8xbf16>, vector<8x16xbf16>, vector<256x16xf32> -> vector<256x16xf32>
    %48 = arith.addf %42, %47 : vector<256x16xf32>
    %c0_46 = arith.constant 0 : index
    %c2_47 = arith.constant 2 : index
    %c2_48 = arith.constant 2 : index
    %c0_49 = arith.constant 0 : index
    %49 = vector.load %arg1[%c0_46, %c2_47, %c2_48, %c0_49] : memref<1x18x18x8xf32, #tpu.memory_space<vmem>>, vector<1x16x16x8xf32>
    %50 = vector.shape_cast %49 : vector<1x16x16x8xf32> to vector<256x8xf32>
    %51 = arith.truncf %50 : vector<256x8xf32> to vector<256x8xbf16>
    %c64 = arith.constant 64 : index
    %c0_50 = arith.constant 0 : index
    %52 = vector.load %arg2[%c64, %c0_50] : memref<72x16xbf16, #tpu.memory_space<vmem>>, vector<8x16xbf16>
    %cst_51 = arith.constant dense<0.000000e+00> : vector<256x16xf32>
    %53 = tpu.matmul %51, %52, %cst_51 {dimension_numbers = #tpu.dot_dimension_numbers<[1], [0], [0], [1], [0, 0, 1, 1], [], []>} : vector<256x8xbf16>, vector<8x16xbf16>, vector<256x16xf32> -> vector<256x16xf32>
    %54 = arith.addf %48, %53 : vector<256x16xf32>
    %c0_52 = arith.constant 0 : index
    %c0_53 = arith.constant 0 : index
    %55 = vector.load %arg3[%c0_52, %c0_53] : memref<1x16xf32, #tpu.memory_space<vmem>>, vector<1x16xf32>
    %56 = vector.broadcast %55 : vector<1x16xf32> to vector<256x16xf32>
    %57 = arith.addf %54, %56 : vector<256x16xf32>
    %cst_54 = arith.constant 0.000000e+00 : f32
    %58 = vector.broadcast %cst_54 : f32 to vector<256x16xf32>
    %59 = arith.maximumf %57, %58 : vector<256x16xf32>
    %c0_55 = arith.constant 0 : index
    %c0_56 = arith.constant 0 : index
    %60 = vector.load %arg10[%c0_55, %c0_56] : memref<256x16xf32, #tpu.memory_space<vmem>>, vector<256x16xf32>
    tpu.vector_store %arg10[%c0_55, %c0_56], %59 {strides = array<i32>} : memref<256x16xf32, #tpu.memory_space<vmem>>, vector<256x16xf32>,
    %cst_57 = arith.constant 0.000000e+00 : f32
    %61 = vector.broadcast %cst_57 : f32 to vector<1x18x18x16xf32>
    %c0_58 = arith.constant 0 : index
    %c0_59 = arith.constant 0 : index
    %c0_60 = arith.constant 0 : index
    %c0_61 = arith.constant 0 : index
    %62 = vector.load %arg9[%c0_58, %c0_59, %c0_60, %c0_61] : memref<1x18x18x16xf32, #tpu.memory_space<vmem>>, vector<1x18x18x16xf32>
    tpu.vector_store %arg9[%c0_58, %c0_59, %c0_60, %c0_61], %61 {strides = array<i32>} : memref<1x18x18x16xf32, #tpu.memory_space<vmem>>, vector<1x18x18x16xf32>,
    %63 = vector.shape_cast %59 : vector<256x16xf32> to vector<1x16x16x16xf32>
    %c0_62 = arith.constant 0 : index
    %c1_63 = arith.constant 1 : index
    %c1_64 = arith.constant 1 : index
    %c0_65 = arith.constant 0 : index
    %64 = vector.load %arg9[%c0_62, %c1_63, %c1_64, %c0_65] : memref<1x18x18x16xf32, #tpu.memory_space<vmem>>, vector<1x16x16x16xf32>
    tpu.vector_store %arg9[%c0_62, %c1_63, %c1_64, %c0_65], %63 {strides = array<i32>} : memref<1x18x18x16xf32, #tpu.memory_space<vmem>>, vector<1x16x16x16xf32>,
    %cst_66 = arith.constant 0.000000e+00 : f32
    %65 = vector.broadcast %cst_66 : f32 to vector<256x16xf32>
    %c0_67 = arith.constant 0 : index
    %c0_68 = arith.constant 0 : index
    %c0_69 = arith.constant 0 : index
    %c0_70 = arith.constant 0 : index
    %66 = vector.load %arg9[%c0_67, %c0_68, %c0_69, %c0_70] : memref<1x18x18x16xf32, #tpu.memory_space<vmem>>, vector<1x16x16x16xf32>
    %67 = vector.shape_cast %66 : vector<1x16x16x16xf32> to vector<256x16xf32>
    %68 = arith.truncf %67 : vector<256x16xf32> to vector<256x16xbf16>
    %c0_71 = arith.constant 0 : index
    %c0_72 = arith.constant 0 : index
    %69 = vector.load %arg4[%c0_71, %c0_72] : memref<144x16xbf16, #tpu.memory_space<vmem>>, vector<16x16xbf16>
    %cst_73 = arith.constant dense<0.000000e+00> : vector<256x16xf32>
    %70 = tpu.matmul %68, %69, %cst_73 {dimension_numbers = #tpu.dot_dimension_numbers<[1], [0], [0], [1], [0, 0, 1, 1], [], []>} : vector<256x16xbf16>, vector<16x16xbf16>, vector<256x16xf32> -> vector<256x16xf32>
    %71 = arith.addf %65, %70 : vector<256x16xf32>
    %c0_74 = arith.constant 0 : index
    %c0_75 = arith.constant 0 : index
    %c1_76 = arith.constant 1 : index
    %c0_77 = arith.constant 0 : index
    %72 = vector.load %arg9[%c0_74, %c0_75, %c1_76, %c0_77] : memref<1x18x18x16xf32, #tpu.memory_space<vmem>>, vector<1x16x16x16xf32>
    %73 = vector.shape_cast %72 : vector<1x16x16x16xf32> to vector<256x16xf32>
    %74 = arith.truncf %73 : vector<256x16xf32> to vector<256x16xbf16>
    %c16_78 = arith.constant 16 : index
    %c0_79 = arith.constant 0 : index
    %75 = vector.load %arg4[%c16_78, %c0_79] : memref<144x16xbf16, #tpu.memory_space<vmem>>, vector<16x16xbf16>
    %cst_80 = arith.constant dense<0.000000e+00> : vector<256x16xf32>
    %76 = tpu.matmul %74, %75, %cst_80 {dimension_numbers = #tpu.dot_dimension_numbers<[1], [0], [0], [1], [0, 0, 1, 1], [], []>} : vector<256x16xbf16>, vector<16x16xbf16>, vector<256x16xf32> -> vector<256x16xf32>
    %77 = arith.addf %71, %76 : vector<256x16xf32>
    %c0_81 = arith.constant 0 : index
    %c0_82 = arith.constant 0 : index
    %c2_83 = arith.constant 2 : index
    %c0_84 = arith.constant 0 : index
    %78 = vector.load %arg9[%c0_81, %c0_82, %c2_83, %c0_84] : memref<1x18x18x16xf32, #tpu.memory_space<vmem>>, vector<1x16x16x16xf32>
    %79 = vector.shape_cast %78 : vector<1x16x16x16xf32> to vector<256x16xf32>
    %80 = arith.truncf %79 : vector<256x16xf32> to vector<256x16xbf16>
    %c32_85 = arith.constant 32 : index
    %c0_86 = arith.constant 0 : index
    %81 = vector.load %arg4[%c32_85, %c0_86] : memref<144x16xbf16, #tpu.memory_space<vmem>>, vector<16x16xbf16>
    %cst_87 = arith.constant dense<0.000000e+00> : vector<256x16xf32>
    %82 = tpu.matmul %80, %81, %cst_87 {dimension_numbers = #tpu.dot_dimension_numbers<[1], [0], [0], [1], [0, 0, 1, 1], [], []>} : vector<256x16xbf16>, vector<16x16xbf16>, vector<256x16xf32> -> vector<256x16xf32>
    %83 = arith.addf %77, %82 : vector<256x16xf32>
    %c0_88 = arith.constant 0 : index
    %c1_89 = arith.constant 1 : index
    %c0_90 = arith.constant 0 : index
    %c0_91 = arith.constant 0 : index
    %84 = vector.load %arg9[%c0_88, %c1_89, %c0_90, %c0_91] : memref<1x18x18x16xf32, #tpu.memory_space<vmem>>, vector<1x16x16x16xf32>
    %85 = vector.shape_cast %84 : vector<1x16x16x16xf32> to vector<256x16xf32>
    %86 = arith.truncf %85 : vector<256x16xf32> to vector<256x16xbf16>
    %c48_92 = arith.constant 48 : index
    %c0_93 = arith.constant 0 : index
    %87 = vector.load %arg4[%c48_92, %c0_93] : memref<144x16xbf16, #tpu.memory_space<vmem>>, vector<16x16xbf16>
    %cst_94 = arith.constant dense<0.000000e+00> : vector<256x16xf32>
    %88 = tpu.matmul %86, %87, %cst_94 {dimension_numbers = #tpu.dot_dimension_numbers<[1], [0], [0], [1], [0, 0, 1, 1], [], []>} : vector<256x16xbf16>, vector<16x16xbf16>, vector<256x16xf32> -> vector<256x16xf32>
    %89 = arith.addf %83, %88 : vector<256x16xf32>
    %c0_95 = arith.constant 0 : index
    %c1_96 = arith.constant 1 : index
    %c1_97 = arith.constant 1 : index
    %c0_98 = arith.constant 0 : index
    %90 = vector.load %arg9[%c0_95, %c1_96, %c1_97, %c0_98] : memref<1x18x18x16xf32, #tpu.memory_space<vmem>>, vector<1x16x16x16xf32>
    %91 = vector.shape_cast %90 : vector<1x16x16x16xf32> to vector<256x16xf32>
    %92 = arith.truncf %91 : vector<256x16xf32> to vector<256x16xbf16>
    %c64_99 = arith.constant 64 : index
    %c0_100 = arith.constant 0 : index
    %93 = vector.load %arg4[%c64_99, %c0_100] : memref<144x16xbf16, #tpu.memory_space<vmem>>, vector<16x16xbf16>
    %cst_101 = arith.constant dense<0.000000e+00> : vector<256x16xf32>
    %94 = tpu.matmul %92, %93, %cst_101 {dimension_numbers = #tpu.dot_dimension_numbers<[1], [0], [0], [1], [0, 0, 1, 1], [], []>} : vector<256x16xbf16>, vector<16x16xbf16>, vector<256x16xf32> -> vector<256x16xf32>
    %95 = arith.addf %89, %94 : vector<256x16xf32>
    %c0_102 = arith.constant 0 : index
    %c1_103 = arith.constant 1 : index
    %c2_104 = arith.constant 2 : index
    %c0_105 = arith.constant 0 : index
    %96 = vector.load %arg9[%c0_102, %c1_103, %c2_104, %c0_105] : memref<1x18x18x16xf32, #tpu.memory_space<vmem>>, vector<1x16x16x16xf32>
    %97 = vector.shape_cast %96 : vector<1x16x16x16xf32> to vector<256x16xf32>
    %98 = arith.truncf %97 : vector<256x16xf32> to vector<256x16xbf16>
    %c80 = arith.constant 80 : index
    %c0_106 = arith.constant 0 : index
    %99 = vector.load %arg4[%c80, %c0_106] : memref<144x16xbf16, #tpu.memory_space<vmem>>, vector<16x16xbf16>
    %cst_107 = arith.constant dense<0.000000e+00> : vector<256x16xf32>
    %100 = tpu.matmul %98, %99, %cst_107 {dimension_numbers = #tpu.dot_dimension_numbers<[1], [0], [0], [1], [0, 0, 1, 1], [], []>} : vector<256x16xbf16>, vector<16x16xbf16>, vector<256x16xf32> -> vector<256x16xf32>
    %101 = arith.addf %95, %100 : vector<256x16xf32>
    %c0_108 = arith.constant 0 : index
    %c2_109 = arith.constant 2 : index
    %c0_110 = arith.constant 0 : index
    %c0_111 = arith.constant 0 : index
    %102 = vector.load %arg9[%c0_108, %c2_109, %c0_110, %c0_111] : memref<1x18x18x16xf32, #tpu.memory_space<vmem>>, vector<1x16x16x16xf32>
    %103 = vector.shape_cast %102 : vector<1x16x16x16xf32> to vector<256x16xf32>
    %104 = arith.truncf %103 : vector<256x16xf32> to vector<256x16xbf16>
    %c96 = arith.constant 96 : index
    %c0_112 = arith.constant 0 : index
    %105 = vector.load %arg4[%c96, %c0_112] : memref<144x16xbf16, #tpu.memory_space<vmem>>, vector<16x16xbf16>
    %cst_113 = arith.constant dense<0.000000e+00> : vector<256x16xf32>
    %106 = tpu.matmul %104, %105, %cst_113 {dimension_numbers = #tpu.dot_dimension_numbers<[1], [0], [0], [1], [0, 0, 1, 1], [], []>} : vector<256x16xbf16>, vector<16x16xbf16>, vector<256x16xf32> -> vector<256x16xf32>
    %107 = arith.addf %101, %106 : vector<256x16xf32>
    %c0_114 = arith.constant 0 : index
    %c2_115 = arith.constant 2 : index
    %c1_116 = arith.constant 1 : index
    %c0_117 = arith.constant 0 : index
    %108 = vector.load %arg9[%c0_114, %c2_115, %c1_116, %c0_117] : memref<1x18x18x16xf32, #tpu.memory_space<vmem>>, vector<1x16x16x16xf32>
    %109 = vector.shape_cast %108 : vector<1x16x16x16xf32> to vector<256x16xf32>
    %110 = arith.truncf %109 : vector<256x16xf32> to vector<256x16xbf16>
    %c112 = arith.constant 112 : index
    %c0_118 = arith.constant 0 : index
    %111 = vector.load %arg4[%c112, %c0_118] : memref<144x16xbf16, #tpu.memory_space<vmem>>, vector<16x16xbf16>
    %cst_119 = arith.constant dense<0.000000e+00> : vector<256x16xf32>
    %112 = tpu.matmul %110, %111, %cst_119 {dimension_numbers = #tpu.dot_dimension_numbers<[1], [0], [0], [1], [0, 0, 1, 1], [], []>} : vector<256x16xbf16>, vector<16x16xbf16>, vector<256x16xf32> -> vector<256x16xf32>
    %113 = arith.addf %107, %112 : vector<256x16xf32>
    %c0_120 = arith.constant 0 : index
    %c2_121 = arith.constant 2 : index
    %c2_122 = arith.constant 2 : index
    %c0_123 = arith.constant 0 : index
    %114 = vector.load %arg9[%c0_120, %c2_121, %c2_122, %c0_123] : memref<1x18x18x16xf32, #tpu.memory_space<vmem>>, vector<1x16x16x16xf32>
    %115 = vector.shape_cast %114 : vector<1x16x16x16xf32> to vector<256x16xf32>
    %116 = arith.truncf %115 : vector<256x16xf32> to vector<256x16xbf16>
    %c128 = arith.constant 128 : index
    %c0_124 = arith.constant 0 : index
    %117 = vector.load %arg4[%c128, %c0_124] : memref<144x16xbf16, #tpu.memory_space<vmem>>, vector<16x16xbf16>
    %cst_125 = arith.constant dense<0.000000e+00> : vector<256x16xf32>
    %118 = tpu.matmul %116, %117, %cst_125 {dimension_numbers = #tpu.dot_dimension_numbers<[1], [0], [0], [1], [0, 0, 1, 1], [], []>} : vector<256x16xbf16>, vector<16x16xbf16>, vector<256x16xf32> -> vector<256x16xf32>
    %119 = arith.addf %113, %118 : vector<256x16xf32>
    %c0_126 = arith.constant 0 : index
    %c0_127 = arith.constant 0 : index
    %120 = vector.load %arg5[%c0_126, %c0_127] : memref<1x16xf32, #tpu.memory_space<vmem>>, vector<1x16xf32>
    %121 = vector.broadcast %120 : vector<1x16xf32> to vector<256x16xf32>
    %122 = arith.addf %119, %121 : vector<256x16xf32>
    %cst_128 = arith.constant 0.000000e+00 : f32
    %123 = vector.broadcast %cst_128 : f32 to vector<256x16xf32>
    %124 = arith.maximumf %122, %123 : vector<256x16xf32>
    %125 = vector.shape_cast %124 : vector<256x16xf32> to vector<1x16x16x16xf32>
    %c0_129 = arith.constant 0 : index
    %c1_130 = arith.constant 1 : index
    %c1_131 = arith.constant 1 : index
    %c0_132 = arith.constant 0 : index
    %126 = vector.load %arg9[%c0_129, %c1_130, %c1_131, %c0_132] : memref<1x18x18x16xf32, #tpu.memory_space<vmem>>, vector<1x16x16x16xf32>
    tpu.vector_store %arg9[%c0_129, %c1_130, %c1_131, %c0_132], %125 {strides = array<i32>} : memref<1x18x18x16xf32, #tpu.memory_space<vmem>>, vector<1x16x16x16xf32>,
    %cst_133 = arith.constant 0.000000e+00 : f32
    %127 = vector.broadcast %cst_133 : f32 to vector<256x16xf32>
    %c0_134 = arith.constant 0 : index
    %c0_135 = arith.constant 0 : index
    %c0_136 = arith.constant 0 : index
    %c0_137 = arith.constant 0 : index
    %128 = vector.load %arg9[%c0_134, %c0_135, %c0_136, %c0_137] : memref<1x18x18x16xf32, #tpu.memory_space<vmem>>, vector<1x16x16x16xf32>
    %129 = vector.shape_cast %128 : vector<1x16x16x16xf32> to vector<256x16xf32>
    %130 = arith.truncf %129 : vector<256x16xf32> to vector<256x16xbf16>
    %c0_138 = arith.constant 0 : index
    %c0_139 = arith.constant 0 : index
    %131 = vector.load %arg6[%c0_138, %c0_139] : memref<144x16xbf16, #tpu.memory_space<vmem>>, vector<16x16xbf16>
    %cst_140 = arith.constant dense<0.000000e+00> : vector<256x16xf32>
    %132 = tpu.matmul %130, %131, %cst_140 {dimension_numbers = #tpu.dot_dimension_numbers<[1], [0], [0], [1], [0, 0, 1, 1], [], []>} : vector<256x16xbf16>, vector<16x16xbf16>, vector<256x16xf32> -> vector<256x16xf32>
    %133 = arith.addf %127, %132 : vector<256x16xf32>
    %c0_141 = arith.constant 0 : index
    %c0_142 = arith.constant 0 : index
    %c1_143 = arith.constant 1 : index
    %c0_144 = arith.constant 0 : index
    %134 = vector.load %arg9[%c0_141, %c0_142, %c1_143, %c0_144] : memref<1x18x18x16xf32, #tpu.memory_space<vmem>>, vector<1x16x16x16xf32>
    %135 = vector.shape_cast %134 : vector<1x16x16x16xf32> to vector<256x16xf32>
    %136 = arith.truncf %135 : vector<256x16xf32> to vector<256x16xbf16>
    %c16_145 = arith.constant 16 : index
    %c0_146 = arith.constant 0 : index
    %137 = vector.load %arg6[%c16_145, %c0_146] : memref<144x16xbf16, #tpu.memory_space<vmem>>, vector<16x16xbf16>
    %cst_147 = arith.constant dense<0.000000e+00> : vector<256x16xf32>
    %138 = tpu.matmul %136, %137, %cst_147 {dimension_numbers = #tpu.dot_dimension_numbers<[1], [0], [0], [1], [0, 0, 1, 1], [], []>} : vector<256x16xbf16>, vector<16x16xbf16>, vector<256x16xf32> -> vector<256x16xf32>
    %139 = arith.addf %133, %138 : vector<256x16xf32>
    %c0_148 = arith.constant 0 : index
    %c0_149 = arith.constant 0 : index
    %c2_150 = arith.constant 2 : index
    %c0_151 = arith.constant 0 : index
    %140 = vector.load %arg9[%c0_148, %c0_149, %c2_150, %c0_151] : memref<1x18x18x16xf32, #tpu.memory_space<vmem>>, vector<1x16x16x16xf32>
    %141 = vector.shape_cast %140 : vector<1x16x16x16xf32> to vector<256x16xf32>
    %142 = arith.truncf %141 : vector<256x16xf32> to vector<256x16xbf16>
    %c32_152 = arith.constant 32 : index
    %c0_153 = arith.constant 0 : index
    %143 = vector.load %arg6[%c32_152, %c0_153] : memref<144x16xbf16, #tpu.memory_space<vmem>>, vector<16x16xbf16>
    %cst_154 = arith.constant dense<0.000000e+00> : vector<256x16xf32>
    %144 = tpu.matmul %142, %143, %cst_154 {dimension_numbers = #tpu.dot_dimension_numbers<[1], [0], [0], [1], [0, 0, 1, 1], [], []>} : vector<256x16xbf16>, vector<16x16xbf16>, vector<256x16xf32> -> vector<256x16xf32>
    %145 = arith.addf %139, %144 : vector<256x16xf32>
    %c0_155 = arith.constant 0 : index
    %c1_156 = arith.constant 1 : index
    %c0_157 = arith.constant 0 : index
    %c0_158 = arith.constant 0 : index
    %146 = vector.load %arg9[%c0_155, %c1_156, %c0_157, %c0_158] : memref<1x18x18x16xf32, #tpu.memory_space<vmem>>, vector<1x16x16x16xf32>
    %147 = vector.shape_cast %146 : vector<1x16x16x16xf32> to vector<256x16xf32>
    %148 = arith.truncf %147 : vector<256x16xf32> to vector<256x16xbf16>
    %c48_159 = arith.constant 48 : index
    %c0_160 = arith.constant 0 : index
    %149 = vector.load %arg6[%c48_159, %c0_160] : memref<144x16xbf16, #tpu.memory_space<vmem>>, vector<16x16xbf16>
    %cst_161 = arith.constant dense<0.000000e+00> : vector<256x16xf32>
    %150 = tpu.matmul %148, %149, %cst_161 {dimension_numbers = #tpu.dot_dimension_numbers<[1], [0], [0], [1], [0, 0, 1, 1], [], []>} : vector<256x16xbf16>, vector<16x16xbf16>, vector<256x16xf32> -> vector<256x16xf32>
    %151 = arith.addf %145, %150 : vector<256x16xf32>
    %c0_162 = arith.constant 0 : index
    %c1_163 = arith.constant 1 : index
    %c1_164 = arith.constant 1 : index
    %c0_165 = arith.constant 0 : index
    %152 = vector.load %arg9[%c0_162, %c1_163, %c1_164, %c0_165] : memref<1x18x18x16xf32, #tpu.memory_space<vmem>>, vector<1x16x16x16xf32>
    %153 = vector.shape_cast %152 : vector<1x16x16x16xf32> to vector<256x16xf32>
    %154 = arith.truncf %153 : vector<256x16xf32> to vector<256x16xbf16>
    %c64_166 = arith.constant 64 : index
    %c0_167 = arith.constant 0 : index
    %155 = vector.load %arg6[%c64_166, %c0_167] : memref<144x16xbf16, #tpu.memory_space<vmem>>, vector<16x16xbf16>
    %cst_168 = arith.constant dense<0.000000e+00> : vector<256x16xf32>
    %156 = tpu.matmul %154, %155, %cst_168 {dimension_numbers = #tpu.dot_dimension_numbers<[1], [0], [0], [1], [0, 0, 1, 1], [], []>} : vector<256x16xbf16>, vector<16x16xbf16>, vector<256x16xf32> -> vector<256x16xf32>
    %157 = arith.addf %151, %156 : vector<256x16xf32>
    %c0_169 = arith.constant 0 : index
    %c1_170 = arith.constant 1 : index
    %c2_171 = arith.constant 2 : index
    %c0_172 = arith.constant 0 : index
    %158 = vector.load %arg9[%c0_169, %c1_170, %c2_171, %c0_172] : memref<1x18x18x16xf32, #tpu.memory_space<vmem>>, vector<1x16x16x16xf32>
    %159 = vector.shape_cast %158 : vector<1x16x16x16xf32> to vector<256x16xf32>
    %160 = arith.truncf %159 : vector<256x16xf32> to vector<256x16xbf16>
    %c80_173 = arith.constant 80 : index
    %c0_174 = arith.constant 0 : index
    %161 = vector.load %arg6[%c80_173, %c0_174] : memref<144x16xbf16, #tpu.memory_space<vmem>>, vector<16x16xbf16>
    %cst_175 = arith.constant dense<0.000000e+00> : vector<256x16xf32>
    %162 = tpu.matmul %160, %161, %cst_175 {dimension_numbers = #tpu.dot_dimension_numbers<[1], [0], [0], [1], [0, 0, 1, 1], [], []>} : vector<256x16xbf16>, vector<16x16xbf16>, vector<256x16xf32> -> vector<256x16xf32>
    %163 = arith.addf %157, %162 : vector<256x16xf32>
    %c0_176 = arith.constant 0 : index
    %c2_177 = arith.constant 2 : index
    %c0_178 = arith.constant 0 : index
    %c0_179 = arith.constant 0 : index
    %164 = vector.load %arg9[%c0_176, %c2_177, %c0_178, %c0_179] : memref<1x18x18x16xf32, #tpu.memory_space<vmem>>, vector<1x16x16x16xf32>
    %165 = vector.shape_cast %164 : vector<1x16x16x16xf32> to vector<256x16xf32>
    %166 = arith.truncf %165 : vector<256x16xf32> to vector<256x16xbf16>
    %c96_180 = arith.constant 96 : index
    %c0_181 = arith.constant 0 : index
    %167 = vector.load %arg6[%c96_180, %c0_181] : memref<144x16xbf16, #tpu.memory_space<vmem>>, vector<16x16xbf16>
    %cst_182 = arith.constant dense<0.000000e+00> : vector<256x16xf32>
    %168 = tpu.matmul %166, %167, %cst_182 {dimension_numbers = #tpu.dot_dimension_numbers<[1], [0], [0], [1], [0, 0, 1, 1], [], []>} : vector<256x16xbf16>, vector<16x16xbf16>, vector<256x16xf32> -> vector<256x16xf32>
    %169 = arith.addf %163, %168 : vector<256x16xf32>
    %c0_183 = arith.constant 0 : index
    %c2_184 = arith.constant 2 : index
    %c1_185 = arith.constant 1 : index
    %c0_186 = arith.constant 0 : index
    %170 = vector.load %arg9[%c0_183, %c2_184, %c1_185, %c0_186] : memref<1x18x18x16xf32, #tpu.memory_space<vmem>>, vector<1x16x16x16xf32>
    %171 = vector.shape_cast %170 : vector<1x16x16x16xf32> to vector<256x16xf32>
    %172 = arith.truncf %171 : vector<256x16xf32> to vector<256x16xbf16>
    %c112_187 = arith.constant 112 : index
    %c0_188 = arith.constant 0 : index
    %173 = vector.load %arg6[%c112_187, %c0_188] : memref<144x16xbf16, #tpu.memory_space<vmem>>, vector<16x16xbf16>
    %cst_189 = arith.constant dense<0.000000e+00> : vector<256x16xf32>
    %174 = tpu.matmul %172, %173, %cst_189 {dimension_numbers = #tpu.dot_dimension_numbers<[1], [0], [0], [1], [0, 0, 1, 1], [], []>} : vector<256x16xbf16>, vector<16x16xbf16>, vector<256x16xf32> -> vector<256x16xf32>
    %175 = arith.addf %169, %174 : vector<256x16xf32>
    %c0_190 = arith.constant 0 : index
    %c2_191 = arith.constant 2 : index
    %c2_192 = arith.constant 2 : index
    %c0_193 = arith.constant 0 : index
    %176 = vector.load %arg9[%c0_190, %c2_191, %c2_192, %c0_193] : memref<1x18x18x16xf32, #tpu.memory_space<vmem>>, vector<1x16x16x16xf32>
    %177 = vector.shape_cast %176 : vector<1x16x16x16xf32> to vector<256x16xf32>
    %178 = arith.truncf %177 : vector<256x16xf32> to vector<256x16xbf16>
    %c128_194 = arith.constant 128 : index
    %c0_195 = arith.constant 0 : index
    %179 = vector.load %arg6[%c128_194, %c0_195] : memref<144x16xbf16, #tpu.memory_space<vmem>>, vector<16x16xbf16>
    %cst_196 = arith.constant dense<0.000000e+00> : vector<256x16xf32>
    %180 = tpu.matmul %178, %179, %cst_196 {dimension_numbers = #tpu.dot_dimension_numbers<[1], [0], [0], [1], [0, 0, 1, 1], [], []>} : vector<256x16xbf16>, vector<16x16xbf16>, vector<256x16xf32> -> vector<256x16xf32>
    %181 = arith.addf %175, %180 : vector<256x16xf32>
    %c0_197 = arith.constant 0 : index
    %c0_198 = arith.constant 0 : index
    %182 = vector.load %arg7[%c0_197, %c0_198] : memref<1x16xf32, #tpu.memory_space<vmem>>, vector<1x16xf32>
    %183 = vector.broadcast %182 : vector<1x16xf32> to vector<256x16xf32>
    %184 = arith.addf %181, %183 : vector<256x16xf32>
    %c0_199 = arith.constant 0 : index
    %c0_200 = arith.constant 0 : index
    %185 = vector.load %arg10[%c0_199, %c0_200] : memref<256x16xf32, #tpu.memory_space<vmem>>, vector<256x16xf32>
    %186 = arith.addf %184, %185 : vector<256x16xf32>
    %cst_201 = arith.constant 0.000000e+00 : f32
    %187 = vector.broadcast %cst_201 : f32 to vector<256x16xf32>
    %188 = arith.maximumf %186, %187 : vector<256x16xf32>
    %189 = vector.shape_cast %188 : vector<256x16xf32> to vector<1x256x16xf32>
    %190 = arith.truncf %189 : vector<1x256x16xf32> to vector<1x256x16xbf16>
    %c0_202 = arith.constant 0 : index
    %c0_203 = arith.constant 0 : index
    %c0_204 = arith.constant 0 : index
    %191 = vector.load %arg8[%c0_202, %c0_203, %c0_204] : memref<1x256x16xbf16, #tpu.memory_space<vmem>>, vector<1x256x16xbf16>
    tpu.vector_store %arg8[%c0_202, %c0_203, %c0_204], %190 {strides = array<i32>} : memref<1x256x16xbf16, #tpu.memory_space<vmem>>, vector<1x256x16xbf16>,
    return
  }
  func.func @transform_0(%arg0: i32) -> (i32, i32, i32, i32) {
    %c0_i32 = arith.constant 0 : i32
    %c0_i32_0 = arith.constant 0 : i32
    %c0_i32_1 = arith.constant 0 : i32
    %c0_i32_2 = arith.constant 0 : i32
    return %arg0, %c0_i32, %c0_i32_0, %c0_i32_1 : i32, i32, i32, i32
  }
  func.func @transform_1(%arg0: i32) -> (i32, i32) {
    %c0_i32 = arith.constant 0 : i32
    %c0_i32_0 = arith.constant 0 : i32
    %c0_i32_1 = arith.constant 0 : i32
    return %c0_i32, %c0_i32_0 : i32, i32
  }
  func.func @transform_2(%arg0: i32) -> (i32, i32) {
    %c0_i32 = arith.constant 0 : i32
    %c0_i32_0 = arith.constant 0 : i32
    %c0_i32_1 = arith.constant 0 : i32
    return %c0_i32, %c0_i32_0 : i32, i32
  }
  func.func @transform_3(%arg0: i32) -> (i32, i32) {
    %c0_i32 = arith.constant 0 : i32
    %c0_i32_0 = arith.constant 0 : i32
    %c0_i32_1 = arith.constant 0 : i32
    return %c0_i32, %c0_i32_0 : i32, i32
  }
  func.func @transform_4(%arg0: i32) -> (i32, i32) {
    %c0_i32 = arith.constant 0 : i32
    %c0_i32_0 = arith.constant 0 : i32
    %c0_i32_1 = arith.constant 0 : i32
    return %c0_i32, %c0_i32_0 : i32, i32
  }
  func.func @transform_5(%arg0: i32) -> (i32, i32) {
    %c0_i32 = arith.constant 0 : i32
    %c0_i32_0 = arith.constant 0 : i32
    %c0_i32_1 = arith.constant 0 : i32
    return %c0_i32, %c0_i32_0 : i32, i32
  }
  func.func @transform_6(%arg0: i32) -> (i32, i32) {
    %c0_i32 = arith.constant 0 : i32
    %c0_i32_0 = arith.constant 0 : i32
    %c0_i32_1 = arith.constant 0 : i32
    return %c0_i32, %c0_i32_0 : i32, i32
  }
  func.func @transform_7(%arg0: i32) -> (i32, i32, i32) {
    %c0_i32 = arith.constant 0 : i32
    %c0_i32_0 = arith.constant 0 : i32
    %c0_i32_1 = arith.constant 0 : i32
    return %arg0, %c0_i32, %c0_i32_0 : i32, i32, i32
  }
}

module attributes {stable_mosaic.version = 11 : i64} {
  func.func @_stage_b_kernel(%arg0: i32, %arg1: memref<128x144xbf16, #tpu.memory_space<vmem>>, %arg2: memref<144x64xbf16, #tpu.memory_space<vmem>>, %arg3: memref<1x64xf32, #tpu.memory_space<vmem>>, %arg4: memref<288x32xbf16, #tpu.memory_space<vmem>>, %arg5: memref<1x32xf32, #tpu.memory_space<vmem>>, %arg6: memref<32x10xbf16, #tpu.memory_space<vmem>>, %arg7: memref<1x10xf32, #tpu.memory_space<vmem>>, %arg8: memref<2x10xf32, #tpu.memory_space<vmem>>, %arg9: memref<2x10x10x32xf32, #tpu.memory_space<vmem>>) attributes {dimension_semantics = [#tpu.dimension_semantics<arbitrary>], iteration_bounds = array<i64: 1>, scalar_prefetch = 0 : i64, scratch_operands = 1 : i64, tpu.core_type = #tpu.core_type<tc>, window_params = [{pipeline_mode = #tpu.pipeline_mode<synchronous>, transform_indices = @transform_0, window_bounds = array<i64: 128, 144>}, {pipeline_mode = #tpu.pipeline_mode<synchronous>, transform_indices = @transform_1, window_bounds = array<i64: 144, 64>}, {pipeline_mode = #tpu.pipeline_mode<synchronous>, transform_indices = @transform_2, window_bounds = array<i64: 1, 64>}, {pipeline_mode = #tpu.pipeline_mode<synchronous>, transform_indices = @transform_3, window_bounds = array<i64: 288, 32>}, {pipeline_mode = #tpu.pipeline_mode<synchronous>, transform_indices = @transform_4, window_bounds = array<i64: 1, 32>}, {pipeline_mode = #tpu.pipeline_mode<synchronous>, transform_indices = @transform_5, window_bounds = array<i64: 32, 10>}, {pipeline_mode = #tpu.pipeline_mode<synchronous>, transform_indices = @transform_6, window_bounds = array<i64: 1, 10>}, {pipeline_mode = #tpu.pipeline_mode<synchronous>, transform_indices = @transform_7, window_bounds = array<i64: 2, 10>}]} {
    %c0 = arith.constant 0 : index
    %c0_0 = arith.constant 0 : index
    %0 = vector.load %arg1[%c0, %c0_0] : memref<128x144xbf16, #tpu.memory_space<vmem>>, vector<128x144xbf16>
    %c0_1 = arith.constant 0 : index
    %c0_2 = arith.constant 0 : index
    %1 = vector.load %arg2[%c0_1, %c0_2] : memref<144x64xbf16, #tpu.memory_space<vmem>>, vector<144x64xbf16>
    %cst = arith.constant dense<0.000000e+00> : vector<128x64xf32>
    %2 = tpu.matmul %0, %1, %cst {dimension_numbers = #tpu.dot_dimension_numbers<[1], [0], [0], [1], [0, 0, 1, 1], [], []>} : vector<128x144xbf16>, vector<144x64xbf16>, vector<128x64xf32> -> vector<128x64xf32>
    %c0_3 = arith.constant 0 : index
    %c0_4 = arith.constant 0 : index
    %3 = vector.load %arg3[%c0_3, %c0_4] : memref<1x64xf32, #tpu.memory_space<vmem>>, vector<1x64xf32>
    %4 = vector.broadcast %3 : vector<1x64xf32> to vector<128x64xf32>
    %5 = arith.addf %2, %4 : vector<128x64xf32>
    %6 = vector.extract_strided_slice %5 {offsets = [0, 0], sizes = [128, 32], strides = [1, 1]} : vector<128x64xf32> to vector<128x32xf32>
    %cst_5 = arith.constant 0.000000e+00 : f32
    %7 = vector.broadcast %cst_5 : f32 to vector<128x32xf32>
    %8 = arith.maximumf %6, %7 : vector<128x32xf32>
    %9 = vector.extract_strided_slice %5 {offsets = [0, 32], sizes = [128, 32], strides = [1, 1]} : vector<128x64xf32> to vector<128x32xf32>
    %cst_6 = arith.constant 0.000000e+00 : f32
    %10 = vector.broadcast %cst_6 : f32 to vector<2x10x10x32xf32>
    %c0_7 = arith.constant 0 : index
    %c0_8 = arith.constant 0 : index
    %c0_9 = arith.constant 0 : index
    %c0_10 = arith.constant 0 : index
    %11 = vector.load %arg9[%c0_7, %c0_8, %c0_9, %c0_10] : memref<2x10x10x32xf32, #tpu.memory_space<vmem>>, vector<2x10x10x32xf32>
    tpu.vector_store %arg9[%c0_7, %c0_8, %c0_9, %c0_10], %10 {strides = array<i32>} : memref<2x10x10x32xf32, #tpu.memory_space<vmem>>, vector<2x10x10x32xf32>,
    %12 = vector.shape_cast %8 : vector<128x32xf32> to vector<2x8x8x32xf32>
    %c0_11 = arith.constant 0 : index
    %c1 = arith.constant 1 : index
    %c1_12 = arith.constant 1 : index
    %c0_13 = arith.constant 0 : index
    %13 = vector.load %arg9[%c0_11, %c1, %c1_12, %c0_13] : memref<2x10x10x32xf32, #tpu.memory_space<vmem>>, vector<2x8x8x32xf32>
    tpu.vector_store %arg9[%c0_11, %c1, %c1_12, %c0_13], %12 {strides = array<i32>} : memref<2x10x10x32xf32, #tpu.memory_space<vmem>>, vector<2x8x8x32xf32>,
    %cst_14 = arith.constant 0.000000e+00 : f32
    %14 = vector.broadcast %cst_14 : f32 to vector<128x32xf32>
    %c0_15 = arith.constant 0 : index
    %c0_16 = arith.constant 0 : index
    %c0_17 = arith.constant 0 : index
    %c0_18 = arith.constant 0 : index
    %15 = vector.load %arg9[%c0_15, %c0_16, %c0_17, %c0_18] : memref<2x10x10x32xf32, #tpu.memory_space<vmem>>, vector<2x8x8x32xf32>
    %16 = vector.shape_cast %15 : vector<2x8x8x32xf32> to vector<128x32xf32>
    %17 = arith.truncf %16 : vector<128x32xf32> to vector<128x32xbf16>
    %c0_19 = arith.constant 0 : index
    %c0_20 = arith.constant 0 : index
    %18 = vector.load %arg4[%c0_19, %c0_20] : memref<288x32xbf16, #tpu.memory_space<vmem>>, vector<32x32xbf16>
    %cst_21 = arith.constant dense<0.000000e+00> : vector<128x32xf32>
    %19 = tpu.matmul %17, %18, %cst_21 {dimension_numbers = #tpu.dot_dimension_numbers<[1], [0], [0], [1], [0, 0, 1, 1], [], []>} : vector<128x32xbf16>, vector<32x32xbf16>, vector<128x32xf32> -> vector<128x32xf32>
    %20 = arith.addf %14, %19 : vector<128x32xf32>
    %c0_22 = arith.constant 0 : index
    %c0_23 = arith.constant 0 : index
    %c1_24 = arith.constant 1 : index
    %c0_25 = arith.constant 0 : index
    %21 = vector.load %arg9[%c0_22, %c0_23, %c1_24, %c0_25] : memref<2x10x10x32xf32, #tpu.memory_space<vmem>>, vector<2x8x8x32xf32>
    %22 = vector.shape_cast %21 : vector<2x8x8x32xf32> to vector<128x32xf32>
    %23 = arith.truncf %22 : vector<128x32xf32> to vector<128x32xbf16>
    %c32 = arith.constant 32 : index
    %c0_26 = arith.constant 0 : index
    %24 = vector.load %arg4[%c32, %c0_26] : memref<288x32xbf16, #tpu.memory_space<vmem>>, vector<32x32xbf16>
    %cst_27 = arith.constant dense<0.000000e+00> : vector<128x32xf32>
    %25 = tpu.matmul %23, %24, %cst_27 {dimension_numbers = #tpu.dot_dimension_numbers<[1], [0], [0], [1], [0, 0, 1, 1], [], []>} : vector<128x32xbf16>, vector<32x32xbf16>, vector<128x32xf32> -> vector<128x32xf32>
    %26 = arith.addf %20, %25 : vector<128x32xf32>
    %c0_28 = arith.constant 0 : index
    %c0_29 = arith.constant 0 : index
    %c2 = arith.constant 2 : index
    %c0_30 = arith.constant 0 : index
    %27 = vector.load %arg9[%c0_28, %c0_29, %c2, %c0_30] : memref<2x10x10x32xf32, #tpu.memory_space<vmem>>, vector<2x8x8x32xf32>
    %28 = vector.shape_cast %27 : vector<2x8x8x32xf32> to vector<128x32xf32>
    %29 = arith.truncf %28 : vector<128x32xf32> to vector<128x32xbf16>
    %c64 = arith.constant 64 : index
    %c0_31 = arith.constant 0 : index
    %30 = vector.load %arg4[%c64, %c0_31] : memref<288x32xbf16, #tpu.memory_space<vmem>>, vector<32x32xbf16>
    %cst_32 = arith.constant dense<0.000000e+00> : vector<128x32xf32>
    %31 = tpu.matmul %29, %30, %cst_32 {dimension_numbers = #tpu.dot_dimension_numbers<[1], [0], [0], [1], [0, 0, 1, 1], [], []>} : vector<128x32xbf16>, vector<32x32xbf16>, vector<128x32xf32> -> vector<128x32xf32>
    %32 = arith.addf %26, %31 : vector<128x32xf32>
    %c0_33 = arith.constant 0 : index
    %c1_34 = arith.constant 1 : index
    %c0_35 = arith.constant 0 : index
    %c0_36 = arith.constant 0 : index
    %33 = vector.load %arg9[%c0_33, %c1_34, %c0_35, %c0_36] : memref<2x10x10x32xf32, #tpu.memory_space<vmem>>, vector<2x8x8x32xf32>
    %34 = vector.shape_cast %33 : vector<2x8x8x32xf32> to vector<128x32xf32>
    %35 = arith.truncf %34 : vector<128x32xf32> to vector<128x32xbf16>
    %c96 = arith.constant 96 : index
    %c0_37 = arith.constant 0 : index
    %36 = vector.load %arg4[%c96, %c0_37] : memref<288x32xbf16, #tpu.memory_space<vmem>>, vector<32x32xbf16>
    %cst_38 = arith.constant dense<0.000000e+00> : vector<128x32xf32>
    %37 = tpu.matmul %35, %36, %cst_38 {dimension_numbers = #tpu.dot_dimension_numbers<[1], [0], [0], [1], [0, 0, 1, 1], [], []>} : vector<128x32xbf16>, vector<32x32xbf16>, vector<128x32xf32> -> vector<128x32xf32>
    %38 = arith.addf %32, %37 : vector<128x32xf32>
    %c0_39 = arith.constant 0 : index
    %c1_40 = arith.constant 1 : index
    %c1_41 = arith.constant 1 : index
    %c0_42 = arith.constant 0 : index
    %39 = vector.load %arg9[%c0_39, %c1_40, %c1_41, %c0_42] : memref<2x10x10x32xf32, #tpu.memory_space<vmem>>, vector<2x8x8x32xf32>
    %40 = vector.shape_cast %39 : vector<2x8x8x32xf32> to vector<128x32xf32>
    %41 = arith.truncf %40 : vector<128x32xf32> to vector<128x32xbf16>
    %c128 = arith.constant 128 : index
    %c0_43 = arith.constant 0 : index
    %42 = vector.load %arg4[%c128, %c0_43] : memref<288x32xbf16, #tpu.memory_space<vmem>>, vector<32x32xbf16>
    %cst_44 = arith.constant dense<0.000000e+00> : vector<128x32xf32>
    %43 = tpu.matmul %41, %42, %cst_44 {dimension_numbers = #tpu.dot_dimension_numbers<[1], [0], [0], [1], [0, 0, 1, 1], [], []>} : vector<128x32xbf16>, vector<32x32xbf16>, vector<128x32xf32> -> vector<128x32xf32>
    %44 = arith.addf %38, %43 : vector<128x32xf32>
    %c0_45 = arith.constant 0 : index
    %c1_46 = arith.constant 1 : index
    %c2_47 = arith.constant 2 : index
    %c0_48 = arith.constant 0 : index
    %45 = vector.load %arg9[%c0_45, %c1_46, %c2_47, %c0_48] : memref<2x10x10x32xf32, #tpu.memory_space<vmem>>, vector<2x8x8x32xf32>
    %46 = vector.shape_cast %45 : vector<2x8x8x32xf32> to vector<128x32xf32>
    %47 = arith.truncf %46 : vector<128x32xf32> to vector<128x32xbf16>
    %c160 = arith.constant 160 : index
    %c0_49 = arith.constant 0 : index
    %48 = vector.load %arg4[%c160, %c0_49] : memref<288x32xbf16, #tpu.memory_space<vmem>>, vector<32x32xbf16>
    %cst_50 = arith.constant dense<0.000000e+00> : vector<128x32xf32>
    %49 = tpu.matmul %47, %48, %cst_50 {dimension_numbers = #tpu.dot_dimension_numbers<[1], [0], [0], [1], [0, 0, 1, 1], [], []>} : vector<128x32xbf16>, vector<32x32xbf16>, vector<128x32xf32> -> vector<128x32xf32>
    %50 = arith.addf %44, %49 : vector<128x32xf32>
    %c0_51 = arith.constant 0 : index
    %c2_52 = arith.constant 2 : index
    %c0_53 = arith.constant 0 : index
    %c0_54 = arith.constant 0 : index
    %51 = vector.load %arg9[%c0_51, %c2_52, %c0_53, %c0_54] : memref<2x10x10x32xf32, #tpu.memory_space<vmem>>, vector<2x8x8x32xf32>
    %52 = vector.shape_cast %51 : vector<2x8x8x32xf32> to vector<128x32xf32>
    %53 = arith.truncf %52 : vector<128x32xf32> to vector<128x32xbf16>
    %c192 = arith.constant 192 : index
    %c0_55 = arith.constant 0 : index
    %54 = vector.load %arg4[%c192, %c0_55] : memref<288x32xbf16, #tpu.memory_space<vmem>>, vector<32x32xbf16>
    %cst_56 = arith.constant dense<0.000000e+00> : vector<128x32xf32>
    %55 = tpu.matmul %53, %54, %cst_56 {dimension_numbers = #tpu.dot_dimension_numbers<[1], [0], [0], [1], [0, 0, 1, 1], [], []>} : vector<128x32xbf16>, vector<32x32xbf16>, vector<128x32xf32> -> vector<128x32xf32>
    %56 = arith.addf %50, %55 : vector<128x32xf32>
    %c0_57 = arith.constant 0 : index
    %c2_58 = arith.constant 2 : index
    %c1_59 = arith.constant 1 : index
    %c0_60 = arith.constant 0 : index
    %57 = vector.load %arg9[%c0_57, %c2_58, %c1_59, %c0_60] : memref<2x10x10x32xf32, #tpu.memory_space<vmem>>, vector<2x8x8x32xf32>
    %58 = vector.shape_cast %57 : vector<2x8x8x32xf32> to vector<128x32xf32>
    %59 = arith.truncf %58 : vector<128x32xf32> to vector<128x32xbf16>
    %c224 = arith.constant 224 : index
    %c0_61 = arith.constant 0 : index
    %60 = vector.load %arg4[%c224, %c0_61] : memref<288x32xbf16, #tpu.memory_space<vmem>>, vector<32x32xbf16>
    %cst_62 = arith.constant dense<0.000000e+00> : vector<128x32xf32>
    %61 = tpu.matmul %59, %60, %cst_62 {dimension_numbers = #tpu.dot_dimension_numbers<[1], [0], [0], [1], [0, 0, 1, 1], [], []>} : vector<128x32xbf16>, vector<32x32xbf16>, vector<128x32xf32> -> vector<128x32xf32>
    %62 = arith.addf %56, %61 : vector<128x32xf32>
    %c0_63 = arith.constant 0 : index
    %c2_64 = arith.constant 2 : index
    %c2_65 = arith.constant 2 : index
    %c0_66 = arith.constant 0 : index
    %63 = vector.load %arg9[%c0_63, %c2_64, %c2_65, %c0_66] : memref<2x10x10x32xf32, #tpu.memory_space<vmem>>, vector<2x8x8x32xf32>
    %64 = vector.shape_cast %63 : vector<2x8x8x32xf32> to vector<128x32xf32>
    %65 = arith.truncf %64 : vector<128x32xf32> to vector<128x32xbf16>
    %c256 = arith.constant 256 : index
    %c0_67 = arith.constant 0 : index
    %66 = vector.load %arg4[%c256, %c0_67] : memref<288x32xbf16, #tpu.memory_space<vmem>>, vector<32x32xbf16>
    %cst_68 = arith.constant dense<0.000000e+00> : vector<128x32xf32>
    %67 = tpu.matmul %65, %66, %cst_68 {dimension_numbers = #tpu.dot_dimension_numbers<[1], [0], [0], [1], [0, 0, 1, 1], [], []>} : vector<128x32xbf16>, vector<32x32xbf16>, vector<128x32xf32> -> vector<128x32xf32>
    %68 = arith.addf %62, %67 : vector<128x32xf32>
    %c0_69 = arith.constant 0 : index
    %c0_70 = arith.constant 0 : index
    %69 = vector.load %arg5[%c0_69, %c0_70] : memref<1x32xf32, #tpu.memory_space<vmem>>, vector<1x32xf32>
    %70 = vector.broadcast %69 : vector<1x32xf32> to vector<128x32xf32>
    %71 = arith.addf %68, %70 : vector<128x32xf32>
    %72 = arith.addf %71, %9 : vector<128x32xf32>
    %cst_71 = arith.constant 0.000000e+00 : f32
    %73 = vector.broadcast %cst_71 : f32 to vector<128x32xf32>
    %74 = arith.maximumf %72, %73 : vector<128x32xf32>
    %75 = vector.shape_cast %74 : vector<128x32xf32> to vector<2x64x32xf32>
    %cst_72 = arith.constant dense<0.000000e+00> : vector<2x32xf32>
    %76 = vector.multi_reduction <add>, %75, %cst_72 [1] : vector<2x64x32xf32> to vector<2x32xf32>
    %cst_73 = arith.constant 6.400000e+01 : f32
    %77 = vector.broadcast %cst_73 : f32 to vector<2x32xf32>
    %78 = arith.divf %76, %77 : vector<2x32xf32>
    %79 = arith.truncf %78 : vector<2x32xf32> to vector<2x32xbf16>
    %c0_74 = arith.constant 0 : index
    %c0_75 = arith.constant 0 : index
    %80 = vector.load %arg6[%c0_74, %c0_75] : memref<32x10xbf16, #tpu.memory_space<vmem>>, vector<32x10xbf16>
    %cst_76 = arith.constant dense<0.000000e+00> : vector<2x10xf32>
    %81 = tpu.matmul %79, %80, %cst_76 {dimension_numbers = #tpu.dot_dimension_numbers<[1], [0], [0], [1], [0, 0, 1, 1], [], []>} : vector<2x32xbf16>, vector<32x10xbf16>, vector<2x10xf32> -> vector<2x10xf32>
    %c0_77 = arith.constant 0 : index
    %c0_78 = arith.constant 0 : index
    %82 = vector.load %arg7[%c0_77, %c0_78] : memref<1x10xf32, #tpu.memory_space<vmem>>, vector<1x10xf32>
    %83 = vector.broadcast %82 : vector<1x10xf32> to vector<2x10xf32>
    %84 = arith.addf %81, %83 : vector<2x10xf32>
    %c0_79 = arith.constant 0 : index
    %c0_80 = arith.constant 0 : index
    %85 = vector.load %arg8[%c0_79, %c0_80] : memref<2x10xf32, #tpu.memory_space<vmem>>, vector<2x10xf32>
    tpu.vector_store %arg8[%c0_79, %c0_80], %84 {strides = array<i32>} : memref<2x10xf32, #tpu.memory_space<vmem>>, vector<2x10xf32>,
    return
  }
  func.func @transform_0(%arg0: i32) -> (i32, i32) {
    %c0_i32 = arith.constant 0 : i32
    %c0_i32_0 = arith.constant 0 : i32
    %c0_i32_1 = arith.constant 0 : i32
    return %c0_i32, %c0_i32_0 : i32, i32
  }
  func.func @transform_1(%arg0: i32) -> (i32, i32) {
    %c0_i32 = arith.constant 0 : i32
    %c0_i32_0 = arith.constant 0 : i32
    %c0_i32_1 = arith.constant 0 : i32
    return %c0_i32, %c0_i32_0 : i32, i32
  }
  func.func @transform_2(%arg0: i32) -> (i32, i32) {
    %c0_i32 = arith.constant 0 : i32
    %c0_i32_0 = arith.constant 0 : i32
    %c0_i32_1 = arith.constant 0 : i32
    return %c0_i32, %c0_i32_0 : i32, i32
  }
  func.func @transform_3(%arg0: i32) -> (i32, i32) {
    %c0_i32 = arith.constant 0 : i32
    %c0_i32_0 = arith.constant 0 : i32
    %c0_i32_1 = arith.constant 0 : i32
    return %c0_i32, %c0_i32_0 : i32, i32
  }
  func.func @transform_4(%arg0: i32) -> (i32, i32) {
    %c0_i32 = arith.constant 0 : i32
    %c0_i32_0 = arith.constant 0 : i32
    %c0_i32_1 = arith.constant 0 : i32
    return %c0_i32, %c0_i32_0 : i32, i32
  }
  func.func @transform_5(%arg0: i32) -> (i32, i32) {
    %c0_i32 = arith.constant 0 : i32
    %c0_i32_0 = arith.constant 0 : i32
    %c0_i32_1 = arith.constant 0 : i32
    return %c0_i32, %c0_i32_0 : i32, i32
  }
  func.func @transform_6(%arg0: i32) -> (i32, i32) {
    %c0_i32 = arith.constant 0 : i32
    %c0_i32_0 = arith.constant 0 : i32
    %c0_i32_1 = arith.constant 0 : i32
    return %c0_i32, %c0_i32_0 : i32, i32
  }
  func.func @transform_7(%arg0: i32) -> (i32, i32) {
    %c0_i32 = arith.constant 0 : i32
    %c0_i32_0 = arith.constant 0 : i32
    %c0_i32_1 = arith.constant 0 : i32
    return %c0_i32, %c0_i32_0 : i32, i32
  }
}

</mosaic_0001>

<llo_original>
// kernel: resnet_forward.3
$region0: #{resnet_forward.3}
  #allocation0 [shape = 'u32[]', space=smem, size = 0x4, offset = 0x4, fixed_abs, tag = 'smem constant byte address 0x4 - core index']
  #allocation1 [shape = 'u32[144,128]{1,0:T(1,128)}', space=vmem, size = 0x12000, scoped, tag = 'internal scratch']
  #allocation2 [shape = 'f32[2,10,10,32]{3,2,1,0:T(8,128)}', space=vmem, size = 0x28000, scoped, tag = 'scratch operand']
  %s0 = inlined_call_operand.vmem [shape: bf16[128,144], index: 0, kind: input, shape index: {}]
  %s1 = inlined_call_operand.vmem [shape: bf16[144,64], index: 1, kind: input, shape index: {}]
  %s2 = inlined_call_operand.vmem [shape: f32[1,64], index: 2, kind: input, shape index: {}]
  %s3 = inlined_call_operand.vmem [shape: bf16[288,32], index: 3, kind: input, shape index: {}]
  %s4 = inlined_call_operand.vmem [shape: f32[1,32], index: 4, kind: input, shape index: {}]
  %s5 = inlined_call_operand.vmem [shape: bf16[32,10], index: 5, kind: input, shape index: {}]
  %s6 = inlined_call_operand.vmem [shape: f32[1,10], index: 6, kind: input, shape index: {}]
  %s7 = inlined_call_operand.hbm [shape: f32[2,10], index: 7, kind: output, shape index: {}]
  %s8 = sld [smem:[#allocation0]]
  $region38: #{resnet_forward.3} parent=0
    _
  %s10 = ssub.s32 1, %s8
  %s11 = scalar_select 0, %s10, %s8
  $region1: #{resnet_forward.3} parent=0
    #allocation3 [shape = 'u8[1024]{0}', space=vmem, size = 0x400, scoped, tag = 'output window, operand 0, single buffered']
    #allocation4 [shape = 's32[1]{0}', space=sflag, size = 0x4, scoped, tag = 'scoped memory for resnet_forward.3']
    %12 = vsyncpa [#allocation4], 0
    // Predicated region
    $region2: #{resnet_forward.3} parent=1 // pred_check
      _
    $region3: #{resnet_forward.3} parent=1 // pred_check_branch
      %14 = sbr.rel (0) target = $region5
    $region4: #{resnet_forward.3} parent=1 // pred_region
      _
    $region5: #{resnet_forward.3} parent=1 // pred_fallthru
      _
    // Predicated region
    $region6: #{resnet_forward.3} parent=1 // pred_check
      _
    $region7: #{resnet_forward.3} parent=1 // pred_check_branch
      %16 = sbr.rel (0) target = $region9
    $region8: #{resnet_forward.3} parent=1 // pred_region
      _
    $region9: #{resnet_forward.3} parent=1 // pred_fallthru
      _
    // Predicated region
    $region10: #{resnet_forward.3} parent=1 // pred_check
      _
    $region11: #{resnet_forward.3} parent=1 // pred_check_branch
      %18 = sbr.rel (0) target = $region13
    $region12: #{resnet_forward.3} parent=1 // pred_region
      _
    $region13: #{resnet_forward.3} parent=1 // pred_fallthru
      _
    // Predicated region
    $region14: #{resnet_forward.3} parent=1 // pred_check
      _
    $region15: #{resnet_forward.3} parent=1 // pred_check_branch
      %20 = sbr.rel (0) target = $region17
    $region16: #{resnet_forward.3} parent=1 // pred_region
      _
    $region17: #{resnet_forward.3} parent=1 // pred_fallthru
      _
    // Predicated region
    $region18: #{resnet_forward.3} parent=1 // pred_check
      _
    $region19: #{resnet_forward.3} parent=1 // pred_check_branch
      %22 = sbr.rel (0) target = $region21
    $region20: #{resnet_forward.3} parent=1 // pred_region
      _
    $region21: #{resnet_forward.3} parent=1 // pred_fallthru
      _
    // Predicated region
    $region22: #{resnet_forward.3} parent=1 // pred_check
      _
    $region23: #{resnet_forward.3} parent=1 // pred_check_branch
      %24 = sbr.rel (0) target = $region25
    $region24: #{resnet_forward.3} parent=1 // pred_region
      _
    $region25: #{resnet_forward.3} parent=1 // pred_fallthru
      _
    // Predicated region
    $region26: #{resnet_forward.3} parent=1 // pred_check
      _
    $region27: #{resnet_forward.3} parent=1 // pred_check_branch
      %26 = sbr.rel (0) target = $region29
    $region28: #{resnet_forward.3} parent=1 // pred_region
      _
    $region29: #{resnet_forward.3} parent=1 // pred_fallthru
      _
    %v28 = vld [vmem:[%s0] sm:$0xff]
    %v29 = vld [vmem:[%s0 + $0x8] sm:$0xff]
    %v30 = vld [vmem:[%s0 + $0x10] sm:$0xff]
    %v31 = vld [vmem:[%s0 + $0x18] sm:$0xff]
    %v32 = vld [vmem:[%s0 + $0x20] sm:$0xff]
    %v33 = vld [vmem:[%s0 + $0x28] sm:$0xff]
    %v34 = vld [vmem:[%s0 + $0x30] sm:$0xff]
    %v35 = vld [vmem:[%s0 + $0x38] sm:$0xff]
    %v36 = vld [vmem:[%s0 + $0x40] sm:$0xff]
    %v37 = vld [vmem:[%s0 + $0x48] sm:$0xff]
    %v38 = vld [vmem:[%s0 + $0x50] sm:$0xff]
    %v39 = vld [vmem:[%s0 + $0x58] sm:$0xff]
    %v40 = vld [vmem:[%s0 + $0x60] sm:$0xff]
    %v41 = vld [vmem:[%s0 + $0x68] sm:$0xff]
    %v42 = vld [vmem:[%s0 + $0x70] sm:$0xff]
    %v43 = vld [vmem:[%s0 + $0x78] sm:$0xff]
    %v44 = vld [vmem:[%s1] sm:$0xf]
    %v45 = vld [vmem:[%s1 + $0x4] sm:$0xf]
    %v46 = vld [vmem:[%s1 + $0x8] sm:$0xf]
    %v47 = vld [vmem:[%s1 + $0xc] sm:$0xf]
    %v48 = vld [vmem:[%s1 + $0x10] sm:$0xf]
    %v49 = vld [vmem:[%s1 + $0x14] sm:$0xf]
    %v50 = vld [vmem:[%s1 + $0x18] sm:$0xf]
    %v51 = vld [vmem:[%s1 + $0x1c] sm:$0xf]
    %v52 = vld [vmem:[%s1 + $0x20] sm:$0xf]
    %v53 = vld [vmem:[%s1 + $0x24] sm:$0xf]
    %v54 = vld [vmem:[%s1 + $0x28] sm:$0xf]
    %v55 = vld [vmem:[%s1 + $0x2c] sm:$0xf]
    %v56 = vld [vmem:[%s1 + $0x30] sm:$0xf]
    %v57 = vld [vmem:[%s1 + $0x34] sm:$0xf]
    %v58 = vld [vmem:[%s1 + $0x38] sm:$0xf]
    %v59 = vld [vmem:[%s1 + $0x3c] sm:$0xf]
    %v60 = vld [vmem:[%s1 + $0x40] sm:$0xf]
    %v61 = vld [vmem:[%s1 + $0x44] sm:$0xf]
    %v62 = vld [vmem:[%s2] sm:$0x1]
    %v64 = vlaneseq
    %v65 = vshrl.u32 %v64, 7
    %v66 = vsub.s32 0, %v65
    %v67 = vrot.slane %v62, %v66
    %v85 = vunpack.c.l.b16 %v28
    %v86 = vunpack.c.h.b16 %v28
    %v87 = vunpack.c.l.b16 %v29
    %v88 = vunpack.c.h.b16 %v29
    %v89 = vunpack.c.l.b16 %v30
    %v90 = vunpack.c.h.b16 %v30
    %v91 = vunpack.c.l.b16 %v31
    %v92 = vunpack.c.h.b16 %v31
    %v93 = vunpack.c.l.b16 %v32
    %v94 = vunpack.c.h.b16 %v32
    %v95 = vunpack.c.l.b16 %v33
    %v96 = vunpack.c.h.b16 %v33
    %v97 = vunpack.c.l.b16 %v34
    %v98 = vunpack.c.h.b16 %v34
    %v99 = vunpack.c.l.b16 %v35
    %v100 = vunpack.c.h.b16 %v35
    %v101 = vunpack.c.l.b16 %v36
    %v102 = vunpack.c.h.b16 %v36
    %v103 = vunpack.c.l.b16 %v37
    %v104 = vunpack.c.h.b16 %v37
    %v105 = vunpack.c.l.b16 %v38
    %v106 = vunpack.c.h.b16 %v38
    %v107 = vunpack.c.l.b16 %v39
    %v108 = vunpack.c.h.b16 %v39
    %v109 = vunpack.c.l.b16 %v40
    %v110 = vunpack.c.h.b16 %v40
    %v111 = vunpack.c.l.b16 %v41
    %v112 = vunpack.c.h.b16 %v41
    %v113 = vunpack.c.l.b16 %v42
    %v114 = vunpack.c.h.b16 %v42
    %v115 = vunpack.c.l.b16 %v43
    %v116 = vunpack.c.h.b16 %v43
    %v117 = vpack.c.b16 %v87, %v85
    %v118 = vpack.c.b16 %v88, %v86
    %v119 = vpack.c.b16 %v91, %v89
    %v120 = vpack.c.b16 %v92, %v90
    %v121 = vpack.c.b16 %v95, %v93
    %v122 = vpack.c.b16 %v96, %v94
    %v123 = vpack.c.b16 %v99, %v97
    %v124 = vpack.c.b16 %v100, %v98
    %v125 = vpack.c.b16 %v103, %v101
    %v126 = vpack.c.b16 %v104, %v102
    %v127 = vpack.c.b16 %v107, %v105
    %v128 = vpack.c.b16 %v108, %v106
    %v129 = vpack.c.b16 %v111, %v109
    %v130 = vpack.c.b16 %v112, %v110
    %v131 = vpack.c.b16 %v115, %v113
    %v132 = vpack.c.b16 %v116, %v114
    %v159 = vunpack.c.l.b16 %v44
    %v160 = vunpack.c.l.b16 %v45
    %v161 = vunpack.c.l.b16 %v46
    %v162 = vunpack.c.l.b16 %v47
    %v163 = vunpack.c.l.b16 %v48
    %v164 = vunpack.c.l.b16 %v49
    %v165 = vunpack.c.l.b16 %v50
    %v166 = vunpack.c.l.b16 %v51
    %v167 = vunpack.c.l.b16 %v52
    %v168 = vunpack.c.l.b16 %v53
    %v169 = vunpack.c.l.b16 %v54
    %v170 = vunpack.c.l.b16 %v55
    %v171 = vunpack.c.l.b16 %v56
    %v172 = vunpack.c.l.b16 %v57
    %v173 = vunpack.c.l.b16 %v58
    %v174 = vunpack.c.l.b16 %v59
    %v175 = vunpack.c.l.b16 %v60
    %v176 = vunpack.c.l.b16 %v61
    %v177 = vpack.c.b16 %v160, %v159
    %v178 = vpack.c.b16 %v162, %v161
    %v179 = vpack.c.b16 %v164, %v163
    %v180 = vpack.c.b16 %v166, %v165
    %v181 = vpack.c.b16 %v168, %v167
    %v182 = vpack.c.b16 %v170, %v169
    %v183 = vpack.c.b16 %v172, %v171
    %v184 = vpack.c.b16 %v174, %v173
    %v185 = vpack.c.b16 %v176, %v175
    %vm195 = vcmask 130048
    %v197 = vsel %vm195, %v118, 0
    %v200 = vsel %vm195, %v120, 0
    %v203 = vsel %vm195, %v122, 0
    %v206 = vsel %vm195, %v124, 0
    %v209 = vsel %vm195, %v126, 0
    %v212 = vsel %vm195, %v128, 0
    %v215 = vsel %vm195, %v130, 0
    %v218 = vsel %vm195, %v132, 0
    %220 = vmatprep.subr.bf16.mxu0 0
    %221 = vmatpush1.bf16.msra.mxu0 %v177
    %222 = vmatprep.subr.bf16.mxu0 0
    %223 = vmatpush1.bf16.msra.mxu0 %v178
    %224 = vmatprep.subr.bf16.mxu0 0
    %225 = vmatpush1.bf16.msra.mxu0 %v179
    %226 = vmatprep.subr.bf16.mxu0 0
    %227 = vmatpush1.bf16.msra.mxu0 %v180
    %228 = vmatprep.subr.bf16.mxu0 0
    %229 = vmatpush1.bf16.msra.mxu0 %v181
    %230 = vmatprep.subr.bf16.mxu0 0
    %231 = vmatpush1.bf16.msra.mxu0 %v182
    %232 = vmatprep.subr.bf16.mxu0 0
    %233 = vmatpush1.bf16.msra.mxu0 %v183
    %234 = vmatprep.subr.bf16.mxu0 0
    %235 = vmatpush1.bf16.msra.mxu0 %v184
    %236 = vmatprep.subr.bf16.mxu0 0
    %237 = vmatpush1.bf16.msra.mxu0 %v185
    %238 = vmatprep.subr.bf16.mxu0 0
    %239 = vmatpush1.bf16.msra.mxu0 0
    %240 = vmatprep.subr.bf16.mxu0 0
    %241 = vmatpush1.bf16.msra.mxu0 0
    %242 = vmatprep.subr.bf16.mxu0 0
    %243 = vmatpush1.bf16.msra.mxu0 0
    %244 = vmatprep.subr.bf16.mxu0 0
    %245 = vmatpush1.bf16.msra.mxu0 0
    %246 = vmatprep.subr.bf16.mxu0 0
    %247 = vmatpush1.bf16.msra.mxu0 0
    %248 = vmatprep.subr.bf16.mxu0 0
    %249 = vmatpush1.bf16.msra.mxu0 0
    %250 = vmatprep.subr.bf16.mxu0 0
    %251 = vmatpush1.bf16.msra.mxu0 0
    %252 = vmatprep.mubr.bf16.mxu0 %v197
    %253 = vmatmul.mubr.bf16.gmra.mrb[0].mxu0 %v117
    %v254 = vpop.f32.mrb[0].mxu0
    %v255 = vadd.f32 %v67, %v254
    %v256 = vpop.f32.mrb[0].mxu0
    %v257 = vpop.f32.mrb[0].mxu0
    %v258 = vadd.f32 %v67, %v257
    %v259 = vpop.f32.mrb[0].mxu0
    %260 = vmatprep.mubr.bf16.mxu0 %v200
    %261 = vmatmul.mubr.bf16.gmra.mrb[0].mxu0 %v119
    %v262 = vpop.f32.mrb[0].mxu0
    %v263 = vadd.f32 %v67, %v262
    %v264 = vpop.f32.mrb[0].mxu0
    %v265 = vpop.f32.mrb[0].mxu0
    %v266 = vadd.f32 %v67, %v265
    %v267 = vpop.f32.mrb[0].mxu0
    %268 = vmatprep.mubr.bf16.mxu0 %v203
    %269 = vmatmul.mubr.bf16.gmra.mrb[0].mxu0 %v121
    %v270 = vpop.f32.mrb[0].mxu0
    %v271 = vadd.f32 %v67, %v270
    %v272 = vpop.f32.mrb[0].mxu0
    %v273 = vpop.f32.mrb[0].mxu0
    %v274 = vadd.f32 %v67, %v273
    %v275 = vpop.f32.mrb[0].mxu0
    %276 = vmatprep.mubr.bf16.mxu0 %v206
    %277 = vmatmul.mubr.bf16.gmra.mrb[0].mxu0 %v123
    %v278 = vpop.f32.mrb[0].mxu0
    %v279 = vadd.f32 %v67, %v278
    %v280 = vpop.f32.mrb[0].mxu0
    %v281 = vpop.f32.mrb[0].mxu0
    %v282 = vadd.f32 %v67, %v281
    %v283 = vpop.f32.mrb[0].mxu0
    %284 = vmatprep.mubr.bf16.mxu0 %v209
    %285 = vmatmul.mubr.bf16.gmra.mrb[0].mxu0 %v125
    %v286 = vpop.f32.mrb[0].mxu0
    %v287 = vadd.f32 %v67, %v286
    %v288 = vpop.f32.mrb[0].mxu0
    %v289 = vpop.f32.mrb[0].mxu0
    %v290 = vadd.f32 %v67, %v289
    %v291 = vpop.f32.mrb[0].mxu0
    %292 = vmatprep.mubr.bf16.mxu0 %v212
    %293 = vmatmul.mubr.bf16.gmra.mrb[0].mxu0 %v127
    %v294 = vpop.f32.mrb[0].mxu0
    %v295 = vadd.f32 %v67, %v294
    %v296 = vpop.f32.mrb[0].mxu0
    %v297 = vpop.f32.mrb[0].mxu0
    %v298 = vadd.f32 %v67, %v297
    %v299 = vpop.f32.mrb[0].mxu0
    %300 = vmatprep.mubr.bf16.mxu0 %v215
    %301 = vmatmul.mubr.bf16.gmra.mrb[0].mxu0 %v129
    %v302 = vpop.f32.mrb[0].mxu0
    %v303 = vadd.f32 %v67, %v302
    %v304 = vpop.f32.mrb[0].mxu0
    %v305 = vpop.f32.mrb[0].mxu0
    %v306 = vadd.f32 %v67, %v305
    %v307 = vpop.f32.mrb[0].mxu0
    %308 = vmatprep.mubr.bf16.mxu0 %v218
    %309 = vmatmul.mubr.bf16.gmra.mrb[0].mxu0 %v131
    %v310 = vpop.f32.mrb[0].mxu0
    %v311 = vadd.f32 %v67, %v310
    %v312 = vpop.f32.mrb[0].mxu0
    %v313 = vpop.f32.mrb[0].mxu0
    %v314 = vadd.f32 %v67, %v313
    %v315 = vpop.f32.mrb[0].mxu0
    %316 = vdwg.mxu0
    %v317 = vmax.f32 %v255, 0.0
    %v318 = vmax.f32 %v258, 0.0
    %v319 = vmax.f32 %v263, 0.0
    %v320 = vmax.f32 %v266, 0.0
    %v321 = vmax.f32 %v271, 0.0
    %v322 = vmax.f32 %v274, 0.0
    %v323 = vmax.f32 %v279, 0.0
    %v324 = vmax.f32 %v282, 0.0
    %v325 = vmax.f32 %v287, 0.0
    %v326 = vmax.f32 %v290, 0.0
    %v327 = vmax.f32 %v295, 0.0
    %v328 = vmax.f32 %v298, 0.0
    %v329 = vmax.f32 %v303, 0.0
    %v330 = vmax.f32 %v306, 0.0
    %v331 = vmax.f32 %v311, 0.0
    %v332 = vmax.f32 %v314, 0.0
    %vm333 = vcmask 261120
    %334 = vst.msk [vmem:[#allocation2] sm:$0xff] %vm333, 0.0
    %vm335 = vcmask 254976
    %336 = vst.msk [vmem:[#allocation2 + $0x8] sm:$0x3] %vm335, 0.0
    %337 = vst.msk [vmem:[#allocation2 + $0x10] sm:$0xff] %vm333, 0.0
    %338 = vst.msk [vmem:[#allocation2 + $0x18] sm:$0x3] %vm335, 0.0
    %339 = vst.msk [vmem:[#allocation2 + $0x20] sm:$0xff] %vm333, 0.0
    %340 = vst.msk [vmem:[#allocation2 + $0x28] sm:$0x3] %vm335, 0.0
    %341 = vst.msk [vmem:[#allocation2 + $0x30] sm:$0xff] %vm333, 0.0
    %342 = vst.msk [vmem:[#allocation2 + $0x38] sm:$0x3] %vm335, 0.0
    %343 = vst.msk [vmem:[#allocation2 + $0x40] sm:$0xff] %vm333, 0.0
    %344 = vst.msk [vmem:[#allocation2 + $0x48] sm:$0x3] %vm335, 0.0
    %345 = vst.msk [vmem:[#allocation2 + $0x50] sm:$0xff] %vm333, 0.0
    %346 = vst.msk [vmem:[#allocation2 + $0x58] sm:$0x3] %vm335, 0.0
    %347 = vst.msk [vmem:[#allocation2 + $0x60] sm:$0xff] %vm333, 0.0
    %348 = vst.msk [vmem:[#allocation2 + $0x68] sm:$0x3] %vm335, 0.0
    %349 = vst.msk [vmem:[#allocation2 + $0x70] sm:$0xff] %vm333, 0.0
    %350 = vst.msk [vmem:[#allocation2 + $0x78] sm:$0x3] %vm335, 0.0
    %351 = vst.msk [vmem:[#allocation2 + $0x80] sm:$0xff] %vm333, 0.0
    %352 = vst.msk [vmem:[#allocation2 + $0x88] sm:$0x3] %vm335, 0.0
    %353 = vst.msk [vmem:[#allocation2 + $0x90] sm:$0xff] %vm333, 0.0
    %354 = vst.msk [vmem:[#allocation2 + $0x98] sm:$0x3] %vm335, 0.0
    %355 = vst.msk [vmem:[#allocation2 + $0xa0] sm:$0xff] %vm333, 0.0
    %356 = vst.msk [vmem:[#allocation2 + $0xa8] sm:$0x3] %vm335, 0.0
    %357 = vst.msk [vmem:[#allocation2 + $0xb0] sm:$0xff] %vm333, 0.0
    %358 = vst.msk [vmem:[#allocation2 + $0xb8] sm:$0x3] %vm335, 0.0
    %359 = vst.msk [vmem:[#allocation2 + $0xc0] sm:$0xff] %vm333, 0.0
    %360 = vst.msk [vmem:[#allocation2 + $0xc8] sm:$0x3] %vm335, 0.0
    %361 = vst.msk [vmem:[#allocation2 + $0xd0] sm:$0xff] %vm333, 0.0
    %362 = vst.msk [vmem:[#allocation2 + $0xd8] sm:$0x3] %vm335, 0.0
    %363 = vst.msk [vmem:[#allocation2 + $0xe0] sm:$0xff] %vm333, 0.0
    %364 = vst.msk [vmem:[#allocation2 + $0xe8] sm:$0x3] %vm335, 0.0
    %365 = vst.msk [vmem:[#allocation2 + $0xf0] sm:$0xff] %vm333, 0.0
    %366 = vst.msk [vmem:[#allocation2 + $0xf8] sm:$0x3] %vm335, 0.0
    %367 = vst.msk [vmem:[#allocation2 + $0x100] sm:$0xff] %vm333, 0.0
    %368 = vst.msk [vmem:[#allocation2 + $0x108] sm:$0x3] %vm335, 0.0
    %369 = vst.msk [vmem:[#allocation2 + $0x110] sm:$0xff] %vm333, 0.0
    %370 = vst.msk [vmem:[#allocation2 + $0x118] sm:$0x3] %vm335, 0.0
    %371 = vst.msk [vmem:[#allocation2 + $0x120] sm:$0xff] %vm333, 0.0
    %372 = vst.msk [vmem:[#allocation2 + $0x128] sm:$0x3] %vm335, 0.0
    %373 = vst.msk [vmem:[#allocation2 + $0x130] sm:$0xff] %vm333, 0.0
    %374 = vst.msk [vmem:[#allocation2 + $0x138] sm:$0x3] %vm335, 0.0
    %s375 = scalar_lea.vmem [#allocation2], 16
    %376 = vst.msk [vmem:[%s375 + $0x1] sm:$0xff] %vm333, %v317
    %377 = vst.msk [vmem:[%s375 + $0x11] sm:$0xff] %vm333, %v318
    %378 = vst.msk [vmem:[%s375 + $0x21] sm:$0xff] %vm333, %v319
    %379 = vst.msk [vmem:[%s375 + $0x31] sm:$0xff] %vm333, %v320
    %380 = vst.msk [vmem:[%s375 + $0x41] sm:$0xff] %vm333, %v321
    %381 = vst.msk [vmem:[%s375 + $0x51] sm:$0xff] %vm333, %v322
    %382 = vst.msk [vmem:[%s375 + $0x61] sm:$0xff] %vm333, %v323
    %383 = vst.msk [vmem:[%s375 + $0x71] sm:$0xff] %vm333, %v324
    %384 = vst.msk [vmem:[%s375 + $0xa1] sm:$0xff] %vm333, %v325
    %385 = vst.msk [vmem:[%s375 + $0xb1] sm:$0xff] %vm333, %v326
    %386 = vst.msk [vmem:[%s375 + $0xc1] sm:$0xff] %vm333, %v327
    %387 = vst.msk [vmem:[%s375 + $0xd1] sm:$0xff] %vm333, %v328
    %388 = vst.msk [vmem:[%s375 + $0xe1] sm:$0xff] %vm333, %v329
    %389 = vst.msk [vmem:[%s375 + $0xf1] sm:$0xff] %vm333, %v330
    %390 = vst.msk [vmem:[%s375 + $0x101] sm:$0xff] %vm333, %v331
    %391 = vst.msk [vmem:[%s375 + $0x111] sm:$0xff] %vm333, %v332
    %v392 = vld [vmem:[#allocation2] sm:$0xff]
    %v393 = vld [vmem:[#allocation2 + $0x10] sm:$0xff]
    %v394 = vld [vmem:[#allocation2 + $0x20] sm:$0xff]
    %v395 = vld [vmem:[#allocation2 + $0x30] sm:$0xff]
    %v396 = vld [vmem:[#allocation2 + $0x40] sm:$0xff]
    %v397 = vld [vmem:[#allocation2 + $0x50] sm:$0xff]
    %v398 = vld [vmem:[#allocation2 + $0x60] sm:$0xff]
    %v399 = vld [vmem:[#allocation2 + $0x70] sm:$0xff]
    %v400 = vld [vmem:[#allocation2 + $0xa0] sm:$0xff]
    %v401 = vld [vmem:[#allocation2 + $0xb0] sm:$0xff]
    %v402 = vld [vmem:[#allocation2 + $0xc0] sm:$0xff]
    %v403 = vld [vmem:[#allocation2 + $0xd0] sm:$0xff]
    %v404 = vld [vmem:[#allocation2 + $0xe0] sm:$0xff]
    %v405 = vld [vmem:[#allocation2 + $0xf0] sm:$0xff]
    %v406 = vld [vmem:[#allocation2 + $0x100] sm:$0xff]
    %v407 = vld [vmem:[#allocation2 + $0x110] sm:$0xff]
    %v408 = vpack.c.bf16 %v393, %v392
    %v409 = vpack.c.bf16 %v395, %v394
    %v410 = vpack.c.bf16 %v397, %v396
    %v411 = vpack.c.bf16 %v399, %v398
    %v412 = vpack.c.bf16 %v401, %v400
    %v413 = vpack.c.bf16 %v403, %v402
    %v414 = vpack.c.bf16 %v405, %v404
    %v415 = vpack.c.bf16 %v407, %v406
    %v416 = vld [vmem:[%s3] sm:$0xf]
    %v417 = vld [vmem:[%s3 + $0x4] sm:$0xf]
    %v418 = vld [vmem:[%s3 + $0x8] sm:$0xf]
    %v419 = vld [vmem:[%s3 + $0xc] sm:$0xf]
    %v420 = vld [vmem:[#allocation2 + $0x1] sm:$0xff]
    %v421 = vld [vmem:[#allocation2 + $0x11] sm:$0xff]
    %v422 = vld [vmem:[#allocation2 + $0x21] sm:$0xff]
    %v423 = vld [vmem:[#allocation2 + $0x31] sm:$0xff]
    %v424 = vld [vmem:[#allocation2 + $0x41] sm:$0xff]
    %v425 = vld [vmem:[#allocation2 + $0x51] sm:$0xff]
    %v426 = vld [vmem:[#allocation2 + $0x61] sm:$0xff]
    %v427 = vld [vmem:[#allocation2 + $0x71] sm:$0xff]
    %v428 = vld [vmem:[#allocation2 + $0xa1] sm:$0xff]
    %v429 = vld [vmem:[#allocation2 + $0xb1] sm:$0xff]
    %v430 = vld [vmem:[#allocation2 + $0xc1] sm:$0xff]
    %v431 = vld [vmem:[#allocation2 + $0xd1] sm:$0xff]
    %v432 = vld [vmem:[#allocation2 + $0xe1] sm:$0xff]
    %v433 = vld [vmem:[#allocation2 + $0xf1] sm:$0xff]
    %v434 = vld [vmem:[#allocation2 + $0x101] sm:$0xff]
    %v435 = vld [vmem:[#allocation2 + $0x111] sm:$0xff]
    %v436 = vpack.c.bf16 %v421, %v420
    %v437 = vpack.c.bf16 %v423, %v422
    %v438 = vpack.c.bf16 %v425, %v424
    %v439 = vpack.c.bf16 %v427, %v426
    %v440 = vpack.c.bf16 %v429, %v428
    %v441 = vpack.c.bf16 %v431, %v430
    %v442 = vpack.c.bf16 %v433, %v432
    %v443 = vpack.c.bf16 %v435, %v434
    %v444 = vld [vmem:[%s3 + $0x10] sm:$0xf]
    %v445 = vld [vmem:[%s3 + $0x14] sm:$0xf]
    %v446 = vld [vmem:[%s3 + $0x18] sm:$0xf]
    %v447 = vld [vmem:[%s3 + $0x1c] sm:$0xf]
    %v452 = vunpack.c.l.b16 %v444
    %v453 = vunpack.c.l.b16 %v445
    %v454 = vunpack.c.l.b16 %v446
    %v455 = vunpack.c.l.b16 %v447
    %v456 = vpack.c.b16 %v453, %v452
    %v457 = vpack.c.b16 %v455, %v454
    %v461 = vsel %vm333, %v436, 0
    %v464 = vsel %vm333, %v437, 0
    %v467 = vsel %vm333, %v438, 0
    %v470 = vsel %vm333, %v439, 0
    %v473 = vsel %vm333, %v440, 0
    %v476 = vsel %vm333, %v441, 0
    %v479 = vsel %vm333, %v442, 0
    %v482 = vsel %vm333, %v443, 0
    %484 = vmatprep.subr.bf16.mxu0 0
    %485 = vmatpush1.bf16.msra.mxu0 %v456
    %486 = vmatprep.subr.bf16.mxu0 0
    %487 = vmatpush1.bf16.msra.mxu0 %v457
    %488 = vmatprep.subr.bf16.mxu0 0
    %489 = vmatpush1.bf16.msra.mxu0 0
    %490 = vmatprep.subr.bf16.mxu0 0
    %491 = vmatpush1.bf16.msra.mxu0 0
    %492 = vmatprep.subr.bf16.mxu0 0
    %493 = vmatpush1.bf16.msra.mxu0 0
    %494 = vmatprep.subr.bf16.mxu0 0
    %495 = vmatpush1.bf16.msra.mxu0 0
    %496 = vmatprep.subr.bf16.mxu0 0
    %497 = vmatpush1.bf16.msra.mxu0 0
    %498 = vmatprep.subr.bf16.mxu0 0
    %499 = vmatpush1.bf16.msra.mxu0 0
    %500 = vmatprep.subr.bf16.mxu0 0
    %501 = vmatpush1.bf16.msra.mxu0 0
    %502 = vmatprep.subr.bf16.mxu0 0
    %503 = vmatpush1.bf16.msra.mxu0 0
    %504 = vmatprep.subr.bf16.mxu0 0
    %505 = vmatpush1.bf16.msra.mxu0 0
    %506 = vmatprep.subr.bf16.mxu0 0
    %507 = vmatpush1.bf16.msra.mxu0 0
    %508 = vmatprep.subr.bf16.mxu0 0
    %509 = vmatpush1.bf16.msra.mxu0 0
    %510 = vmatprep.subr.bf16.mxu0 0
    %511 = vmatpush1.bf16.msra.mxu0 0
    %512 = vmatprep.subr.bf16.mxu0 0
    %513 = vmatpush1.bf16.msra.mxu0 0
    %514 = vmatprep.subr.bf16.mxu0 0
    %515 = vmatpush1.bf16.msra.mxu0 0
    %516 = vmatprep.mubr.bf16.mxu0 0
    %517 = vmatmul.mubr.bf16.gmra.mrb[0].mxu0 %v461
    %v518 = vpop.f32.mrb[0].mxu0
    %v519 = vadd.f32 0.0, %v518
    %v520 = vpop.f32.mrb[0].mxu0
    %v521 = vpop.f32.mrb[0].mxu0
    %v522 = vadd.f32 0.0, %v521
    %v523 = vpop.f32.mrb[0].mxu0
    %524 = vmatprep.mubr.bf16.mxu0 0
    %525 = vmatmul.mubr.bf16.gmra.mrb[0].mxu0 %v464
    %v526 = vpop.f32.mrb[0].mxu0
    %v527 = vadd.f32 0.0, %v526
    %v528 = vpop.f32.mrb[0].mxu0
    %v529 = vpop.f32.mrb[0].mxu0
    %v530 = vadd.f32 0.0, %v529
    %v531 = vpop.f32.mrb[0].mxu0
    %532 = vmatprep.mubr.bf16.mxu0 0
    %533 = vmatmul.mubr.bf16.gmra.mrb[0].mxu0 %v467
    %v534 = vpop.f32.mrb[0].mxu0
    %v535 = vadd.f32 0.0, %v534
    %v536 = vpop.f32.mrb[0].mxu0
    %v537 = vpop.f32.mrb[0].mxu0
    %v538 = vadd.f32 0.0, %v537
    %v539 = vpop.f32.mrb[0].mxu0
    %540 = vmatprep.mubr.bf16.mxu0 0
    %541 = vmatmul.mubr.bf16.gmra.mrb[0].mxu0 %v470
    %v542 = vpop.f32.mrb[0].mxu0
    %v543 = vadd.f32 0.0, %v542
    %v544 = vpop.f32.mrb[0].mxu0
    %v545 = vpop.f32.mrb[0].mxu0
    %v546 = vadd.f32 0.0, %v545
    %v547 = vpop.f32.mrb[0].mxu0
    %548 = vmatprep.mubr.bf16.mxu0 0
    %549 = vmatmul.mubr.bf16.gmra.mrb[0].mxu0 %v473
    %v550 = vpop.f32.mrb[0].mxu0
    %v551 = vadd.f32 0.0, %v550
    %v552 = vpop.f32.mrb[0].mxu0
    %v553 = vpop.f32.mrb[0].mxu0
    %v554 = vadd.f32 0.0, %v553
    %v555 = vpop.f32.mrb[0].mxu0
    %556 = vmatprep.mubr.bf16.mxu0 0
    %557 = vmatmul.mubr.bf16.gmra.mrb[0].mxu0 %v476
    %v558 = vpop.f32.mrb[0].mxu0
    %v559 = vadd.f32 0.0, %v558
    %v560 = vpop.f32.mrb[0].mxu0
    %v561 = vpop.f32.mrb[0].mxu0
    %v562 = vadd.f32 0.0, %v561
    %v563 = vpop.f32.mrb[0].mxu0
    %564 = vmatprep.mubr.bf16.mxu0 0
    %565 = vmatmul.mubr.bf16.gmra.mrb[0].mxu0 %v479
    %v566 = vpop.f32.mrb[0].mxu0
    %v567 = vadd.f32 0.0, %v566
    %v568 = vpop.f32.mrb[0].mxu0
    %v569 = vpop.f32.mrb[0].mxu0
    %v570 = vadd.f32 0.0, %v569
    %v571 = vpop.f32.mrb[0].mxu0
    %572 = vmatprep.mubr.bf16.mxu0 0
    %573 = vmatmul.mubr.bf16.gmra.mrb[0].mxu0 %v482
    %v574 = vpop.f32.mrb[0].mxu0
    %v575 = vadd.f32 0.0, %v574
    %v576 = vpop.f32.mrb[0].mxu0
    %v577 = vpop.f32.mrb[0].mxu0
    %v578 = vadd.f32 0.0, %v577
    %v579 = vpop.f32.mrb[0].mxu0
    %580 = vdwg.mxu0
    %v585 = vunpack.c.l.b16 %v416
    %v586 = vunpack.c.l.b16 %v417
    %v587 = vunpack.c.l.b16 %v418
    %v588 = vunpack.c.l.b16 %v419
    %v589 = vpack.c.b16 %v586, %v585
    %v590 = vpack.c.b16 %v588, %v587
    %v594 = vsel %vm333, %v408, 0
    %v597 = vsel %vm333, %v409, 0
    %v600 = vsel %vm333, %v410, 0
    %v603 = vsel %vm333, %v411, 0
    %v606 = vsel %vm333, %v412, 0
    %v609 = vsel %vm333, %v413, 0
    %v612 = vsel %vm333, %v414, 0
    %v615 = vsel %vm333, %v415, 0
    %617 = vmatprep.subr.bf16.mxu0 0
    %618 = vmatpush1.bf16.msra.mxu0 %v589
    %619 = vmatprep.subr.bf16.mxu0 0
    %620 = vmatpush1.bf16.msra.mxu0 %v590
    %621 = vmatprep.subr.bf16.mxu0 0
    %622 = vmatpush1.bf16.msra.mxu0 0
    %623 = vmatprep.subr.bf16.mxu0 0
    %624 = vmatpush1.bf16.msra.mxu0 0
    %625 = vmatprep.subr.bf16.mxu0 0
    %626 = vmatpush1.bf16.msra.mxu0 0
    %627 = vmatprep.subr.bf16.mxu0 0
    %628 = vmatpush1.bf16.msra.mxu0 0
    %629 = vmatprep.subr.bf16.mxu0 0
    %630 = vmatpush1.bf16.msra.mxu0 0
    %631 = vmatprep.subr.bf16.mxu0 0
    %632 = vmatpush1.bf16.msra.mxu0 0
    %633 = vmatprep.subr.bf16.mxu0 0
    %634 = vmatpush1.bf16.msra.mxu0 0
    %635 = vmatprep.subr.bf16.mxu0 0
    %636 = vmatpush1.bf16.msra.mxu0 0
    %637 = vmatprep.subr.bf16.mxu0 0
    %638 = vmatpush1.bf16.msra.mxu0 0
    %639 = vmatprep.subr.bf16.mxu0 0
    %640 = vmatpush1.bf16.msra.mxu0 0
    %641 = vmatprep.subr.bf16.mxu0 0
    %642 = vmatpush1.bf16.msra.mxu0 0
    %643 = vmatprep.subr.bf16.mxu0 0
    %644 = vmatpush1.bf16.msra.mxu0 0
    %645 = vmatprep.subr.bf16.mxu0 0
    %646 = vmatpush1.bf16.msra.mxu0 0
    %647 = vmatprep.subr.bf16.mxu0 0
    %648 = vmatpush1.bf16.msra.mxu0 0
    %649 = vmatprep.mubr.bf16.mxu0 0
    %650 = vmatmul.mubr.bf16.gmra.mrb[0].mxu0 %v594
    %v651 = vpop.f32.mrb[0].mxu0
    %v652 = vadd.f32 %v519, %v651
    %v653 = vpop.f32.mrb[0].mxu0
    %v654 = vpop.f32.mrb[0].mxu0
    %v655 = vadd.f32 %v522, %v654
    %v656 = vpop.f32.mrb[0].mxu0
    %657 = vmatprep.mubr.bf16.mxu0 0
    %658 = vmatmul.mubr.bf16.gmra.mrb[0].mxu0 %v597
    %v659 = vpop.f32.mrb[0].mxu0
    %v660 = vadd.f32 %v527, %v659
    %v661 = vpop.f32.mrb[0].mxu0
    %v662 = vpop.f32.mrb[0].mxu0
    %v663 = vadd.f32 %v530, %v662
    %v664 = vpop.f32.mrb[0].mxu0
    %665 = vmatprep.mubr.bf16.mxu0 0
    %666 = vmatmul.mubr.bf16.gmra.mrb[0].mxu0 %v600
    %v667 = vpop.f32.mrb[0].mxu0
    %v668 = vadd.f32 %v535, %v667
    %v669 = vpop.f32.mrb[0].mxu0
    %v670 = vpop.f32.mrb[0].mxu0
    %v671 = vadd.f32 %v538, %v670
    %v672 = vpop.f32.mrb[0].mxu0
    %673 = vmatprep.mubr.bf16.mxu0 0
    %674 = vmatmul.mubr.bf16.gmra.mrb[0].mxu0 %v603
    %v675 = vpop.f32.mrb[0].mxu0
    %v676 = vadd.f32 %v543, %v675
    %v677 = vpop.f32.mrb[0].mxu0
    %v678 = vpop.f32.mrb[0].mxu0
    %v679 = vadd.f32 %v546, %v678
    %v680 = vpop.f32.mrb[0].mxu0
    %681 = vmatprep.mubr.bf16.mxu0 0
    %682 = vmatmul.mubr.bf16.gmra.mrb[0].mxu0 %v606
    %v683 = vpop.f32.mrb[0].mxu0
    %v684 = vadd.f32 %v551, %v683
    %v685 = vpop.f32.mrb[0].mxu0
    %v686 = vpop.f32.mrb[0].mxu0
    %v687 = vadd.f32 %v554, %v686
    %v688 = vpop.f32.mrb[0].mxu0
    %689 = vmatprep.mubr.bf16.mxu0 0
    %690 = vmatmul.mubr.bf16.gmra.mrb[0].mxu0 %v609
    %v691 = vpop.f32.mrb[0].mxu0
    %v692 = vadd.f32 %v559, %v691
    %v693 = vpop.f32.mrb[0].mxu0
    %v694 = vpop.f32.mrb[0].mxu0
    %v695 = vadd.f32 %v562, %v694
    %v696 = vpop.f32.mrb[0].mxu0
    %697 = vmatprep.mubr.bf16.mxu0 0
    %698 = vmatmul.mubr.bf16.gmra.mrb[0].mxu0 %v612
    %v699 = vpop.f32.mrb[0].mxu0
    %v700 = vadd.f32 %v567, %v699
    %v701 = vpop.f32.mrb[0].mxu0
    %v702 = vpop.f32.mrb[0].mxu0
    %v703 = vadd.f32 %v570, %v702
    %v704 = vpop.f32.mrb[0].mxu0
    %705 = vmatprep.mubr.bf16.mxu0 0
    %706 = vmatmul.mubr.bf16.gmra.mrb[0].mxu0 %v615
    %v707 = vpop.f32.mrb[0].mxu0
    %v708 = vadd.f32 %v575, %v707
    %v709 = vpop.f32.mrb[0].mxu0
    %v710 = vpop.f32.mrb[0].mxu0
    %v711 = vadd.f32 %v578, %v710
    %v712 = vpop.f32.mrb[0].mxu0
    %713 = vdwg.mxu0
    %v714 = vld [vmem:[#allocation2 + $0x2] sm:$0xff]
    %v715 = vld [vmem:[#allocation2 + $0x12] sm:$0xff]
    %v716 = vld [vmem:[#allocation2 + $0x22] sm:$0xff]
    %v717 = vld [vmem:[#allocation2 + $0x32] sm:$0xff]
    %v718 = vld [vmem:[#allocation2 + $0x42] sm:$0xff]
    %v719 = vld [vmem:[#allocation2 + $0x52] sm:$0xff]
    %v720 = vld [vmem:[#allocation2 + $0x62] sm:$0xff]
    %v721 = vld [vmem:[#allocation2 + $0x72] sm:$0xff]
    %v722 = vld [vmem:[#allocation2 + $0xa2] sm:$0xff]
    %v723 = vld [vmem:[#allocation2 + $0xb2] sm:$0xff]
    %v724 = vld [vmem:[#allocation2 + $0xc2] sm:$0xff]
    %v725 = vld [vmem:[#allocation2 + $0xd2] sm:$0xff]
    %v726 = vld [vmem:[#allocation2 + $0xe2] sm:$0xff]
    %v727 = vld [vmem:[#allocation2 + $0xf2] sm:$0xff]
    %v728 = vld [vmem:[#allocation2 + $0x102] sm:$0xff]
    %v729 = vld [vmem:[#allocation2 + $0x112] sm:$0xff]
    %v730 = vpack.c.bf16 %v715, %v714
    %v731 = vpack.c.bf16 %v717, %v716
    %v732 = vpack.c.bf16 %v719, %v718
    %v733 = vpack.c.bf16 %v721, %v720
    %v734 = vpack.c.bf16 %v723, %v722
    %v735 = vpack.c.bf16 %v725, %v724
    %v736 = vpack.c.bf16 %v727, %v726
    %v737 = vpack.c.bf16 %v729, %v728
    %v738 = vld [vmem:[%s3 + $0x20] sm:$0xf]
    %v739 = vld [vmem:[%s3 + $0x24] sm:$0xf]
    %v740 = vld [vmem:[%s3 + $0x28] sm:$0xf]
    %v741 = vld [vmem:[%s3 + $0x2c] sm:$0xf]
    %v746 = vunpack.c.l.b16 %v738
    %v747 = vunpack.c.l.b16 %v739
    %v748 = vunpack.c.l.b16 %v740
    %v749 = vunpack.c.l.b16 %v741
    %v750 = vpack.c.b16 %v747, %v746
    %v751 = vpack.c.b16 %v749, %v748
    %v755 = vsel %vm333, %v730, 0
    %v758 = vsel %vm333, %v731, 0
    %v761 = vsel %vm333, %v732, 0
    %v764 = vsel %vm333, %v733, 0
    %v767 = vsel %vm333, %v734, 0
    %v770 = vsel %vm333, %v735, 0
    %v773 = vsel %vm333, %v736, 0
    %v776 = vsel %vm333, %v737, 0
    %778 = vmatprep.subr.bf16.mxu0 0
    %779 = vmatpush1.bf16.msra.mxu0 %v750
    %780 = vmatprep.subr.bf16.mxu0 0
    %781 = vmatpush1.bf16.msra.mxu0 %v751
    %782 = vmatprep.subr.bf16.mxu0 0
    %783 = vmatpush1.bf16.msra.mxu0 0
    %784 = vmatprep.subr.bf16.mxu0 0
    %785 = vmatpush1.bf16.msra.mxu0 0
    %786 = vmatprep.subr.bf16.mxu0 0
    %787 = vmatpush1.bf16.msra.mxu0 0
    %788 = vmatprep.subr.bf16.mxu0 0
    %789 = vmatpush1.bf16.msra.mxu0 0
    %790 = vmatprep.subr.bf16.mxu0 0
    %791 = vmatpush1.bf16.msra.mxu0 0
    %792 = vmatprep.subr.bf16.mxu0 0
    %793 = vmatpush1.bf16.msra.mxu0 0
    %794 = vmatprep.subr.bf16.mxu0 0
    %795 = vmatpush1.bf16.msra.mxu0 0
    %796 = vmatprep.subr.bf16.mxu0 0
    %797 = vmatpush1.bf16.msra.mxu0 0
    %798 = vmatprep.subr.bf16.mxu0 0
    %799 = vmatpush1.bf16.msra.mxu0 0
    %800 = vmatprep.subr.bf16.mxu0 0
    %801 = vmatpush1.bf16.msra.mxu0 0
    %802 = vmatprep.subr.bf16.mxu0 0
    %803 = vmatpush1.bf16.msra.mxu0 0
    %804 = vmatprep.subr.bf16.mxu0 0
    %805 = vmatpush1.bf16.msra.mxu0 0
    %806 = vmatprep.subr.bf16.mxu0 0
    %807 = vmatpush1.bf16.msra.mxu0 0
    %808 = vmatprep.subr.bf16.mxu0 0
    %809 = vmatpush1.bf16.msra.mxu0 0
    %810 = vmatprep.mubr.bf16.mxu0 0
    %811 = vmatmul.mubr.bf16.gmra.mrb[0].mxu0 %v755
    %v812 = vpop.f32.mrb[0].mxu0
    %v813 = vadd.f32 0.0, %v812
    %v814 = vpop.f32.mrb[0].mxu0
    %v815 = vpop.f32.mrb[0].mxu0
    %v816 = vadd.f32 0.0, %v815
    %v817 = vpop.f32.mrb[0].mxu0
    %818 = vmatprep.mubr.bf16.mxu0 0
    %819 = vmatmul.mubr.bf16.gmra.mrb[0].mxu0 %v758
    %v820 = vpop.f32.mrb[0].mxu0
    %v821 = vadd.f32 0.0, %v820
    %v822 = vpop.f32.mrb[0].mxu0
    %v823 = vpop.f32.mrb[0].mxu0
    %v824 = vadd.f32 0.0, %v823
    %v825 = vpop.f32.mrb[0].mxu0
    %826 = vmatprep.mubr.bf16.mxu0 0
    %827 = vmatmul.mubr.bf16.gmra.mrb[0].mxu0 %v761
    %v828 = vpop.f32.mrb[0].mxu0
    %v829 = vadd.f32 0.0, %v828
    %v830 = vpop.f32.mrb[0].mxu0
    %v831 = vpop.f32.mrb[0].mxu0
    %v832 = vadd.f32 0.0, %v831
    %v833 = vpop.f32.mrb[0].mxu0
    %834 = vmatprep.mubr.bf16.mxu0 0
    %835 = vmatmul.mubr.bf16.gmra.mrb[0].mxu0 %v764
    %v836 = vpop.f32.mrb[0].mxu0
    %v837 = vadd.f32 0.0, %v836
    %v838 = vpop.f32.mrb[0].mxu0
    %v839 = vpop.f32.mrb[0].mxu0
    %v840 = vadd.f32 0.0, %v839
    %v841 = vpop.f32.mrb[0].mxu0
    %842 = vmatprep.mubr.bf16.mxu0 0
    %843 = vmatmul.mubr.bf16.gmra.mrb[0].mxu0 %v767
    %v844 = vpop.f32.mrb[0].mxu0
    %v845 = vadd.f32 0.0, %v844
    %v846 = vpop.f32.mrb[0].mxu0
    %v847 = vpop.f32.mrb[0].mxu0
    %v848 = vadd.f32 0.0, %v847
    %v849 = vpop.f32.mrb[0].mxu0
    %850 = vmatprep.mubr.bf16.mxu0 0
    %851 = vmatmul.mubr.bf16.gmra.mrb[0].mxu0 %v770
    %v852 = vpop.f32.mrb[0].mxu0
    %v853 = vadd.f32 0.0, %v852
    %v854 = vpop.f32.mrb[0].mxu0
    %v855 = vpop.f32.mrb[0].mxu0
    %v856 = vadd.f32 0.0, %v855
    %v857 = vpop.f32.mrb[0].mxu0
    %858 = vmatprep.mubr.bf16.mxu0 0
    %859 = vmatmul.mubr.bf16.gmra.mrb[0].mxu0 %v773
    %v860 = vpop.f32.mrb[0].mxu0
    %v861 = vadd.f32 0.0, %v860
    %v862 = vpop.f32.mrb[0].mxu0
    %v863 = vpop.f32.mrb[0].mxu0
    %v864 = vadd.f32 0.0, %v863
    %v865 = vpop.f32.mrb[0].mxu0
    %866 = vmatprep.mubr.bf16.mxu0 0
    %867 = vmatmul.mubr.bf16.gmra.mrb[0].mxu0 %v776
    %v868 = vpop.f32.mrb[0].mxu0
    %v869 = vadd.f32 0.0, %v868
    %v870 = vpop.f32.mrb[0].mxu0
    %v871 = vpop.f32.mrb[0].mxu0
    %v872 = vadd.f32 0.0, %v871
    %v873 = vpop.f32.mrb[0].mxu0
    %874 = vdwg.mxu0
    %v875 = vadd.f32 %v652, %v813
    %v876 = vadd.f32 %v655, %v816
    %v877 = vadd.f32 %v660, %v821
    %v878 = vadd.f32 %v663, %v824
    %v879 = vadd.f32 %v668, %v829
    %v880 = vadd.f32 %v671, %v832
    %v881 = vadd.f32 %v676, %v837
    %v882 = vadd.f32 %v679, %v840
    %v883 = vadd.f32 %v684, %v845
    %v884 = vadd.f32 %v687, %v848
    %v885 = vadd.f32 %v692, %v853
    %v886 = vadd.f32 %v695, %v856
    %v887 = vadd.f32 %v700, %v861
    %v888 = vadd.f32 %v703, %v864
    %v889 = vadd.f32 %v708, %v869
    %v890 = vadd.f32 %v711, %v872
    %v891 = vld [vmem:[%s375] sm:$0xff]
    %v892 = vld [vmem:[%s375 + $0x10] sm:$0xff]
    %v893 = vld [vmem:[%s375 + $0x20] sm:$0xff]
    %v894 = vld [vmem:[%s375 + $0x30] sm:$0xff]
    %v895 = vld [vmem:[%s375 + $0x40] sm:$0xff]
    %v896 = vld [vmem:[%s375 + $0x50] sm:$0xff]
    %v897 = vld [vmem:[%s375 + $0x60] sm:$0xff]
    %v898 = vld [vmem:[%s375 + $0x70] sm:$0xff]
    %v899 = vld [vmem:[%s375 + $0xa0] sm:$0xff]
    %v900 = vld [vmem:[%s375 + $0xb0] sm:$0xff]
    %v901 = vld [vmem:[%s375 + $0xc0] sm:$0xff]
    %v902 = vld [vmem:[%s375 + $0xd0] sm:$0xff]
    %v903 = vld [vmem:[%s375 + $0xe0] sm:$0xff]
    %v904 = vld [vmem:[%s375 + $0xf0] sm:$0xff]
    %v905 = vld [vmem:[%s375 + $0x100] sm:$0xff]
    %v906 = vld [vmem:[%s375 + $0x110] sm:$0xff]
    %v907 = vpack.c.bf16 %v892, %v891
    %v908 = vpack.c.bf16 %v894, %v893
    %v909 = vpack.c.bf16 %v896, %v895
    %v910 = vpack.c.bf16 %v898, %v897
    %v911 = vpack.c.bf16 %v900, %v899
    %v912 = vpack.c.bf16 %v902, %v901
    %v913 = vpack.c.bf16 %v904, %v903
    %v914 = vpack.c.bf16 %v906, %v905
    %v915 = vld [vmem:[%s3 + $0x30] sm:$0xf]
    %v916 = vld [vmem:[%s3 + $0x34] sm:$0xf]
    %v917 = vld [vmem:[%s3 + $0x38] sm:$0xf]
    %v918 = vld [vmem:[%s3 + $0x3c] sm:$0xf]
    %v923 = vunpack.c.l.b16 %v915
    %v924 = vunpack.c.l.b16 %v916
    %v925 = vunpack.c.l.b16 %v917
    %v926 = vunpack.c.l.b16 %v918
    %v927 = vpack.c.b16 %v924, %v923
    %v928 = vpack.c.b16 %v926, %v925
    %v932 = vsel %vm333, %v907, 0
    %v935 = vsel %vm333, %v908, 0
    %v938 = vsel %vm333, %v909, 0
    %v941 = vsel %vm333, %v910, 0
    %v944 = vsel %vm333, %v911, 0
    %v947 = vsel %vm333, %v912, 0
    %v950 = vsel %vm333, %v913, 0
    %v953 = vsel %vm333, %v914, 0
    %955 = vmatprep.subr.bf16.mxu0 0
    %956 = vmatpush1.bf16.msra.mxu0 %v927
    %957 = vmatprep.subr.bf16.mxu0 0
    %958 = vmatpush1.bf16.msra.mxu0 %v928
    %959 = vmatprep.subr.bf16.mxu0 0
    %960 = vmatpush1.bf16.msra.mxu0 0
    %961 = vmatprep.subr.bf16.mxu0 0
    %962 = vmatpush1.bf16.msra.mxu0 0
    %963 = vmatprep.subr.bf16.mxu0 0
    %964 = vmatpush1.bf16.msra.mxu0 0
    %965 = vmatprep.subr.bf16.mxu0 0
    %966 = vmatpush1.bf16.msra.mxu0 0
    %967 = vmatprep.subr.bf16.mxu0 0
    %968 = vmatpush1.bf16.msra.mxu0 0
    %969 = vmatprep.subr.bf16.mxu0 0
    %970 = vmatpush1.bf16.msra.mxu0 0
    %971 = vmatprep.subr.bf16.mxu0 0
    %972 = vmatpush1.bf16.msra.mxu0 0
    %973 = vmatprep.subr.bf16.mxu0 0
    %974 = vmatpush1.bf16.msra.mxu0 0
    %975 = vmatprep.subr.bf16.mxu0 0
    %976 = vmatpush1.bf16.msra.mxu0 0
    %977 = vmatprep.subr.bf16.mxu0 0
    %978 = vmatpush1.bf16.msra.mxu0 0
    %979 = vmatprep.subr.bf16.mxu0 0
    %980 = vmatpush1.bf16.msra.mxu0 0
    %981 = vmatprep.subr.bf16.mxu0 0
    %982 = vmatpush1.bf16.msra.mxu0 0
    %983 = vmatprep.subr.bf16.mxu0 0
    %984 = vmatpush1.bf16.msra.mxu0 0
    %985 = vmatprep.subr.bf16.mxu0 0
    %986 = vmatpush1.bf16.msra.mxu0 0
    %987 = vmatprep.mubr.bf16.mxu0 0
    %988 = vmatmul.mubr.bf16.gmra.mrb[0].mxu0 %v932
    %v989 = vpop.f32.mrb[0].mxu0
    %v990 = vadd.f32 0.0, %v989
    %v991 = vpop.f32.mrb[0].mxu0
    %v992 = vpop.f32.mrb[0].mxu0
    %v993 = vadd.f32 0.0, %v992
    %v994 = vpop.f32.mrb[0].mxu0
    %995 = vmatprep.mubr.bf16.mxu0 0
    %996 = vmatmul.mubr.bf16.gmra.mrb[0].mxu0 %v935
    %v997 = vpop.f32.mrb[0].mxu0
    %v998 = vadd.f32 0.0, %v997
    %v999 = vpop.f32.mrb[0].mxu0
    %v1000 = vpop.f32.mrb[0].mxu0
    %v1001 = vadd.f32 0.0, %v1000
    %v1002 = vpop.f32.mrb[0].mxu0
    %1003 = vmatprep.mubr.bf16.mxu0 0
    %1004 = vmatmul.mubr.bf16.gmra.mrb[0].mxu0 %v938
    %v1005 = vpop.f32.mrb[0].mxu0
    %v1006 = vadd.f32 0.0, %v1005
    %v1007 = vpop.f32.mrb[0].mxu0
    %v1008 = vpop.f32.mrb[0].mxu0
    %v1009 = vadd.f32 0.0, %v1008
    %v1010 = vpop.f32.mrb[0].mxu0
    %1011 = vmatprep.mubr.bf16.mxu0 0
    %1012 = vmatmul.mubr.bf16.gmra.mrb[0].mxu0 %v941
    %v1013 = vpop.f32.mrb[0].mxu0
    %v1014 = vadd.f32 0.0, %v1013
    %v1015 = vpop.f32.mrb[0].mxu0
    %v1016 = vpop.f32.mrb[0].mxu0
    %v1017 = vadd.f32 0.0, %v1016
    %v1018 = vpop.f32.mrb[0].mxu0
    %1019 = vmatprep.mubr.bf16.mxu0 0
    %1020 = vmatmul.mubr.bf16.gmra.mrb[0].mxu0 %v944
    %v1021 = vpop.f32.mrb[0].mxu0
    %v1022 = vadd.f32 0.0, %v1021
    %v1023 = vpop.f32.mrb[0].mxu0
    %v1024 = vpop.f32.mrb[0].mxu0
    %v1025 = vadd.f32 0.0, %v1024
    %v1026 = vpop.f32.mrb[0].mxu0
    %1027 = vmatprep.mubr.bf16.mxu0 0
    %1028 = vmatmul.mubr.bf16.gmra.mrb[0].mxu0 %v947
    %v1029 = vpop.f32.mrb[0].mxu0
    %v1030 = vadd.f32 0.0, %v1029
    %v1031 = vpop.f32.mrb[0].mxu0
    %v1032 = vpop.f32.mrb[0].mxu0
    %v1033 = vadd.f32 0.0, %v1032
    %v1034 = vpop.f32.mrb[0].mxu0
    %1035 = vmatprep.mubr.bf16.mxu0 0
    %1036 = vmatmul.mubr.bf16.gmra.mrb[0].mxu0 %v950
    %v1037 = vpop.f32.mrb[0].mxu0
    %v1038 = vadd.f32 0.0, %v1037
    %v1039 = vpop.f32.mrb[0].mxu0
    %v1040 = vpop.f32.mrb[0].mxu0
    %v1041 = vadd.f32 0.0, %v1040
    %v1042 = vpop.f32.mrb[0].mxu0
    %1043 = vmatprep.mubr.bf16.mxu0 0
    %1044 = vmatmul.mubr.bf16.gmra.mrb[0].mxu0 %v953
    %v1045 = vpop.f32.mrb[0].mxu0
    %v1046 = vadd.f32 0.0, %v1045
    %v1047 = vpop.f32.mrb[0].mxu0
    %v1048 = vpop.f32.mrb[0].mxu0
    %v1049 = vadd.f32 0.0, %v1048
    %v1050 = vpop.f32.mrb[0].mxu0
    %1051 = vdwg.mxu0
    %v1052 = vadd.f32 %v875, %v990
    %v1053 = vadd.f32 %v876, %v993
    %v1054 = vadd.f32 %v877, %v998
    %v1055 = vadd.f32 %v878, %v1001
    %v1056 = vadd.f32 %v879, %v1006
    %v1057 = vadd.f32 %v880, %v1009
    %v1058 = vadd.f32 %v881, %v1014
    %v1059 = vadd.f32 %v882, %v1017
    %v1060 = vadd.f32 %v883, %v1022
    %v1061 = vadd.f32 %v884, %v1025
    %v1062 = vadd.f32 %v885, %v1030
    %v1063 = vadd.f32 %v886, %v1033
    %v1064 = vadd.f32 %v887, %v1038
    %v1065 = vadd.f32 %v888, %v1041
    %v1066 = vadd.f32 %v889, %v1046
    %v1067 = vadd.f32 %v890, %v1049
    %v1068 = vld [vmem:[%s375 + $0x1] sm:$0xff]
    %v1069 = vld [vmem:[%s375 + $0x11] sm:$0xff]
    %v1070 = vld [vmem:[%s375 + $0x21] sm:$0xff]
    %v1071 = vld [vmem:[%s375 + $0x31] sm:$0xff]
    %v1072 = vld [vmem:[%s375 + $0x41] sm:$0xff]
    %v1073 = vld [vmem:[%s375 + $0x51] sm:$0xff]
    %v1074 = vld [vmem:[%s375 + $0x61] sm:$0xff]
    %v1075 = vld [vmem:[%s375 + $0x71] sm:$0xff]
    %v1076 = vld [vmem:[%s375 + $0xa1] sm:$0xff]
    %v1077 = vld [vmem:[%s375 + $0xb1] sm:$0xff]
    %v1078 = vld [vmem:[%s375 + $0xc1] sm:$0xff]
    %v1079 = vld [vmem:[%s375 + $0xd1] sm:$0xff]
    %v1080 = vld [vmem:[%s375 + $0xe1] sm:$0xff]
    %v1081 = vld [vmem:[%s375 + $0xf1] sm:$0xff]
    %v1082 = vld [vmem:[%s375 + $0x101] sm:$0xff]
    %v1083 = vld [vmem:[%s375 + $0x111] sm:$0xff]
    %v1084 = vpack.c.bf16 %v1069, %v1068
    %v1085 = vpack.c.bf16 %v1071, %v1070
    %v1086 = vpack.c.bf16 %v1073, %v1072
    %v1087 = vpack.c.bf16 %v1075, %v1074
    %v1088 = vpack.c.bf16 %v1077, %v1076
    %v1089 = vpack.c.bf16 %v1079, %v1078
    %v1090 = vpack.c.bf16 %v1081, %v1080
    %v1091 = vpack.c.bf16 %v1083, %v1082
    %v1092 = vld [vmem:[%s3 + $0x40] sm:$0xf]
    %v1093 = vld [vmem:[%s3 + $0x44] sm:$0xf]
    %v1094 = vld [vmem:[%s3 + $0x48] sm:$0xf]
    %v1095 = vld [vmem:[%s3 + $0x4c] sm:$0xf]
    %v1100 = vunpack.c.l.b16 %v1092
    %v1101 = vunpack.c.l.b16 %v1093
    %v1102 = vunpack.c.l.b16 %v1094
    %v1103 = vunpack.c.l.b16 %v1095
    %v1104 = vpack.c.b16 %v1101, %v1100
    %v1105 = vpack.c.b16 %v1103, %v1102
    %v1109 = vsel %vm333, %v1084, 0
    %v1112 = vsel %vm333, %v1085, 0
    %v1115 = vsel %vm333, %v1086, 0
    %v1118 = vsel %vm333, %v1087, 0
    %v1121 = vsel %vm333, %v1088, 0
    %v1124 = vsel %vm333, %v1089, 0
    %v1127 = vsel %vm333, %v1090, 0
    %v1130 = vsel %vm333, %v1091, 0
    %1132 = vmatprep.subr.bf16.mxu0 0
    %1133 = vmatpush1.bf16.msra.mxu0 %v1104
    %1134 = vmatprep.subr.bf16.mxu0 0
    %1135 = vmatpush1.bf16.msra.mxu0 %v1105
    %1136 = vmatprep.subr.bf16.mxu0 0
    %1137 = vmatpush1.bf16.msra.mxu0 0
    %1138 = vmatprep.subr.bf16.mxu0 0
    %1139 = vmatpush1.bf16.msra.mxu0 0
    %1140 = vmatprep.subr.bf16.mxu0 0
    %1141 = vmatpush1.bf16.msra.mxu0 0
    %1142 = vmatprep.subr.bf16.mxu0 0
    %1143 = vmatpush1.bf16.msra.mxu0 0
    %1144 = vmatprep.subr.bf16.mxu0 0
    %1145 = vmatpush1.bf16.msra.mxu0 0
    %1146 = vmatprep.subr.bf16.mxu0 0
    %1147 = vmatpush1.bf16.msra.mxu0 0
    %1148 = vmatprep.subr.bf16.mxu0 0
    %1149 = vmatpush1.bf16.msra.mxu0 0
    %1150 = vmatprep.subr.bf16.mxu0 0
    %1151 = vmatpush1.bf16.msra.mxu0 0
    %1152 = vmatprep.subr.bf16.mxu0 0
    %1153 = vmatpush1.bf16.msra.mxu0 0
    %1154 = vmatprep.subr.bf16.mxu0 0
    %1155 = vmatpush1.bf16.msra.mxu0 0
    %1156 = vmatprep.subr.bf16.mxu0 0
    %1157 = vmatpush1.bf16.msra.mxu0 0
    %1158 = vmatprep.subr.bf16.mxu0 0
    %1159 = vmatpush1.bf16.msra.mxu0 0
    %1160 = vmatprep.subr.bf16.mxu0 0
    %1161 = vmatpush1.bf16.msra.mxu0 0
    %1162 = vmatprep.subr.bf16.mxu0 0
    %1163 = vmatpush1.bf16.msra.mxu0 0
    %1164 = vmatprep.mubr.bf16.mxu0 0
    %1165 = vmatmul.mubr.bf16.gmra.mrb[0].mxu0 %v1109
    %v1166 = vpop.f32.mrb[0].mxu0
    %v1167 = vadd.f32 0.0, %v1166
    %v1168 = vpop.f32.mrb[0].mxu0
    %v1169 = vpop.f32.mrb[0].mxu0
    %v1170 = vadd.f32 0.0, %v1169
    %v1171 = vpop.f32.mrb[0].mxu0
    %1172 = vmatprep.mubr.bf16.mxu0 0
    %1173 = vmatmul.mubr.bf16.gmra.mrb[0].mxu0 %v1112
    %v1174 = vpop.f32.mrb[0].mxu0
    %v1175 = vadd.f32 0.0, %v1174
    %v1176 = vpop.f32.mrb[0].mxu0
    %v1177 = vpop.f32.mrb[0].mxu0
    %v1178 = vadd.f32 0.0, %v1177
    %v1179 = vpop.f32.mrb[0].mxu0
    %1180 = vmatprep.mubr.bf16.mxu0 0
    %1181 = vmatmul.mubr.bf16.gmra.mrb[0].mxu0 %v1115
    %v1182 = vpop.f32.mrb[0].mxu0
    %v1183 = vadd.f32 0.0, %v1182
    %v1184 = vpop.f32.mrb[0].mxu0
    %v1185 = vpop.f32.mrb[0].mxu0
    %v1186 = vadd.f32 0.0, %v1185
    %v1187 = vpop.f32.mrb[0].mxu0
    %1188 = vmatprep.mubr.bf16.mxu0 0
    %1189 = vmatmul.mubr.bf16.gmra.mrb[0].mxu0 %v1118
    %v1190 = vpop.f32.mrb[0].mxu0
    %v1191 = vadd.f32 0.0, %v1190
    %v1192 = vpop.f32.mrb[0].mxu0
    %v1193 = vpop.f32.mrb[0].mxu0
    %v1194 = vadd.f32 0.0, %v1193
    %v1195 = vpop.f32.mrb[0].mxu0
    %1196 = vmatprep.mubr.bf16.mxu0 0
    %1197 = vmatmul.mubr.bf16.gmra.mrb[0].mxu0 %v1121
    %v1198 = vpop.f32.mrb[0].mxu0
    %v1199 = vadd.f32 0.0, %v1198
    %v1200 = vpop.f32.mrb[0].mxu0
    %v1201 = vpop.f32.mrb[0].mxu0
    %v1202 = vadd.f32 0.0, %v1201
    %v1203 = vpop.f32.mrb[0].mxu0
    %1204 = vmatprep.mubr.bf16.mxu0 0
    %1205 = vmatmul.mubr.bf16.gmra.mrb[0].mxu0 %v1124
    %v1206 = vpop.f32.mrb[0].mxu0
    %v1207 = vadd.f32 0.0, %v1206
    %v1208 = vpop.f32.mrb[0].mxu0
    %v1209 = vpop.f32.mrb[0].mxu0
    %v1210 = vadd.f32 0.0, %v1209
    %v1211 = vpop.f32.mrb[0].mxu0
    %1212 = vmatprep.mubr.bf16.mxu0 0
    %1213 = vmatmul.mubr.bf16.gmra.mrb[0].mxu0 %v1127
    %v1214 = vpop.f32.mrb[0].mxu0
    %v1215 = vadd.f32 0.0, %v1214
    %v1216 = vpop.f32.mrb[0].mxu0
    %v1217 = vpop.f32.mrb[0].mxu0
    %v1218 = vadd.f32 0.0, %v1217
    %v1219 = vpop.f32.mrb[0].mxu0
    %1220 = vmatprep.mubr.bf16.mxu0 0
    %1221 = vmatmul.mubr.bf16.gmra.mrb[0].mxu0 %v1130
    %v1222 = vpop.f32.mrb[0].mxu0
    %v1223 = vadd.f32 0.0, %v1222
    %v1224 = vpop.f32.mrb[0].mxu0
    %v1225 = vpop.f32.mrb[0].mxu0
    %v1226 = vadd.f32 0.0, %v1225
    %v1227 = vpop.f32.mrb[0].mxu0
    %1228 = vdwg.mxu0
    %v1229 = vadd.f32 %v1052, %v1167
    %v1230 = vadd.f32 %v1053, %v1170
    %v1231 = vadd.f32 %v1054, %v1175
    %v1232 = vadd.f32 %v1055, %v1178
    %v1233 = vadd.f32 %v1056, %v1183
    %v1234 = vadd.f32 %v1057, %v1186
    %v1235 = vadd.f32 %v1058, %v1191
    %v1236 = vadd.f32 %v1059, %v1194
    %v1237 = vadd.f32 %v1060, %v1199
    %v1238 = vadd.f32 %v1061, %v1202
    %v1239 = vadd.f32 %v1062, %v1207
    %v1240 = vadd.f32 %v1063, %v1210
    %v1241 = vadd.f32 %v1064, %v1215
    %v1242 = vadd.f32 %v1065, %v1218
    %v1243 = vadd.f32 %v1066, %v1223
    %v1244 = vadd.f32 %v1067, %v1226
    %v1245 = vld [vmem:[%s375 + $0x2] sm:$0xff]
    %v1246 = vld [vmem:[%s375 + $0x12] sm:$0xff]
    %v1247 = vld [vmem:[%s375 + $0x22] sm:$0xff]
    %v1248 = vld [vmem:[%s375 + $0x32] sm:$0xff]
    %v1249 = vld [vmem:[%s375 + $0x42] sm:$0xff]
    %v1250 = vld [vmem:[%s375 + $0x52] sm:$0xff]
    %v1251 = vld [vmem:[%s375 + $0x62] sm:$0xff]
    %v1252 = vld [vmem:[%s375 + $0x72] sm:$0xff]
    %v1253 = vld [vmem:[%s375 + $0xa2] sm:$0xff]
    %v1254 = vld [vmem:[%s375 + $0xb2] sm:$0xff]
    %v1255 = vld [vmem:[%s375 + $0xc2] sm:$0xff]
    %v1256 = vld [vmem:[%s375 + $0xd2] sm:$0xff]
    %v1257 = vld [vmem:[%s375 + $0xe2] sm:$0xff]
    %v1258 = vld [vmem:[%s375 + $0xf2] sm:$0xff]
    %v1259 = vld [vmem:[%s375 + $0x102] sm:$0xff]
    %v1260 = vld [vmem:[%s375 + $0x112] sm:$0xff]
    %v1261 = vpack.c.bf16 %v1246, %v1245
    %v1262 = vpack.c.bf16 %v1248, %v1247
    %v1263 = vpack.c.bf16 %v1250, %v1249
    %v1264 = vpack.c.bf16 %v1252, %v1251
    %v1265 = vpack.c.bf16 %v1254, %v1253
    %v1266 = vpack.c.bf16 %v1256, %v1255
    %v1267 = vpack.c.bf16 %v1258, %v1257
    %v1268 = vpack.c.bf16 %v1260, %v1259
    %v1269 = vld [vmem:[%s3 + $0x50] sm:$0xf]
    %v1270 = vld [vmem:[%s3 + $0x54] sm:$0xf]
    %v1271 = vld [vmem:[%s3 + $0x58] sm:$0xf]
    %v1272 = vld [vmem:[%s3 + $0x5c] sm:$0xf]
    %v1277 = vunpack.c.l.b16 %v1269
    %v1278 = vunpack.c.l.b16 %v1270
    %v1279 = vunpack.c.l.b16 %v1271
    %v1280 = vunpack.c.l.b16 %v1272
    %v1281 = vpack.c.b16 %v1278, %v1277
    %v1282 = vpack.c.b16 %v1280, %v1279
    %v1286 = vsel %vm333, %v1261, 0
    %v1289 = vsel %vm333, %v1262, 0
    %v1292 = vsel %vm333, %v1263, 0
    %v1295 = vsel %vm333, %v1264, 0
    %v1298 = vsel %vm333, %v1265, 0
    %v1301 = vsel %vm333, %v1266, 0
    %v1304 = vsel %vm333, %v1267, 0
    %v1307 = vsel %vm333, %v1268, 0
    %1309 = vmatprep.subr.bf16.mxu0 0
    %1310 = vmatpush1.bf16.msra.mxu0 %v1281
    %1311 = vmatprep.subr.bf16.mxu0 0
    %1312 = vmatpush1.bf16.msra.mxu0 %v1282
    %1313 = vmatprep.subr.bf16.mxu0 0
    %1314 = vmatpush1.bf16.msra.mxu0 0
    %1315 = vmatprep.subr.bf16.mxu0 0
    %1316 = vmatpush1.bf16.msra.mxu0 0
    %1317 = vmatprep.subr.bf16.mxu0 0
    %1318 = vmatpush1.bf16.msra.mxu0 0
    %1319 = vmatprep.subr.bf16.mxu0 0
    %1320 = vmatpush1.bf16.msra.mxu0 0
    %1321 = vmatprep.subr.bf16.mxu0 0
    %1322 = vmatpush1.bf16.msra.mxu0 0
    %1323 = vmatprep.subr.bf16.mxu0 0
    %1324 = vmatpush1.bf16.msra.mxu0 0
    %1325 = vmatprep.subr.bf16.mxu0 0
    %1326 = vmatpush1.bf16.msra.mxu0 0
    %1327 = vmatprep.subr.bf16.mxu0 0
    %1328 = vmatpush1.bf16.msra.mxu0 0
    %1329 = vmatprep.subr.bf16.mxu0 0
    %1330 = vmatpush1.bf16.msra.mxu0 0
    %1331 = vmatprep.subr.bf16.mxu0 0
    %1332 = vmatpush1.bf16.msra.mxu0 0
    %1333 = vmatprep.subr.bf16.mxu0 0
    %1334 = vmatpush1.bf16.msra.mxu0 0
    %1335 = vmatprep.subr.bf16.mxu0 0
    %1336 = vmatpush1.bf16.msra.mxu0 0
    %1337 = vmatprep.subr.bf16.mxu0 0
    %1338 = vmatpush1.bf16.msra.mxu0 0
    %1339 = vmatprep.subr.bf16.mxu0 0
    %1340 = vmatpush1.bf16.msra.mxu0 0
    %1341 = vmatprep.mubr.bf16.mxu0 0
    %1342 = vmatmul.mubr.bf16.gmra.mrb[0].mxu0 %v1286
    %v1343 = vpop.f32.mrb[0].mxu0
    %v1344 = vadd.f32 0.0, %v1343
    %v1345 = vpop.f32.mrb[0].mxu0
    %v1346 = vpop.f32.mrb[0].mxu0
    %v1347 = vadd.f32 0.0, %v1346
    %v1348 = vpop.f32.mrb[0].mxu0
    %1349 = vmatprep.mubr.bf16.mxu0 0
    %1350 = vmatmul.mubr.bf16.gmra.mrb[0].mxu0 %v1289
    %v1351 = vpop.f32.mrb[0].mxu0
    %v1352 = vadd.f32 0.0, %v1351
    %v1353 = vpop.f32.mrb[0].mxu0
    %v1354 = vpop.f32.mrb[0].mxu0
    %v1355 = vadd.f32 0.0, %v1354
    %v1356 = vpop.f32.mrb[0].mxu0
    %1357 = vmatprep.mubr.bf16.mxu0 0
    %1358 = vmatmul.mubr.bf16.gmra.mrb[0].mxu0 %v1292
    %v1359 = vpop.f32.mrb[0].mxu0
    %v1360 = vadd.f32 0.0, %v1359
    %v1361 = vpop.f32.mrb[0].mxu0
    %v1362 = vpop.f32.mrb[0].mxu0
    %v1363 = vadd.f32 0.0, %v1362
    %v1364 = vpop.f32.mrb[0].mxu0
    %1365 = vmatprep.mubr.bf16.mxu0 0
    %1366 = vmatmul.mubr.bf16.gmra.mrb[0].mxu0 %v1295
    %v1367 = vpop.f32.mrb[0].mxu0
    %v1368 = vadd.f32 0.0, %v1367
    %v1369 = vpop.f32.mrb[0].mxu0
    %v1370 = vpop.f32.mrb[0].mxu0
    %v1371 = vadd.f32 0.0, %v1370
    %v1372 = vpop.f32.mrb[0].mxu0
    %1373 = vmatprep.mubr.bf16.mxu0 0
    %1374 = vmatmul.mubr.bf16.gmra.mrb[0].mxu0 %v1298
    %v1375 = vpop.f32.mrb[0].mxu0
    %v1376 = vadd.f32 0.0, %v1375
    %v1377 = vpop.f32.mrb[0].mxu0
    %v1378 = vpop.f32.mrb[0].mxu0
    %v1379 = vadd.f32 0.0, %v1378
    %v1380 = vpop.f32.mrb[0].mxu0
    %1381 = vmatprep.mubr.bf16.mxu0 0
    %1382 = vmatmul.mubr.bf16.gmra.mrb[0].mxu0 %v1301
    %v1383 = vpop.f32.mrb[0].mxu0
    %v1384 = vadd.f32 0.0, %v1383
    %v1385 = vpop.f32.mrb[0].mxu0
    %v1386 = vpop.f32.mrb[0].mxu0
    %v1387 = vadd.f32 0.0, %v1386
    %v1388 = vpop.f32.mrb[0].mxu0
    %1389 = vmatprep.mubr.bf16.mxu0 0
    %1390 = vmatmul.mubr.bf16.gmra.mrb[0].mxu0 %v1304
    %v1391 = vpop.f32.mrb[0].mxu0
    %v1392 = vadd.f32 0.0, %v1391
    %v1393 = vpop.f32.mrb[0].mxu0
    %v1394 = vpop.f32.mrb[0].mxu0
    %v1395 = vadd.f32 0.0, %v1394
    %v1396 = vpop.f32.mrb[0].mxu0
    %1397 = vmatprep.mubr.bf16.mxu0 0
    %1398 = vmatmul.mubr.bf16.gmra.mrb[0].mxu0 %v1307
    %v1399 = vpop.f32.mrb[0].mxu0
    %v1400 = vadd.f32 0.0, %v1399
    %v1401 = vpop.f32.mrb[0].mxu0
    %v1402 = vpop.f32.mrb[0].mxu0
    %v1403 = vadd.f32 0.0, %v1402
    %v1404 = vpop.f32.mrb[0].mxu0
    %1405 = vdwg.mxu0
    %v1406 = vadd.f32 %v1229, %v1344
    %v1407 = vadd.f32 %v1230, %v1347
    %v1408 = vadd.f32 %v1231, %v1352
    %v1409 = vadd.f32 %v1232, %v1355
    %v1410 = vadd.f32 %v1233, %v1360
    %v1411 = vadd.f32 %v1234, %v1363
    %v1412 = vadd.f32 %v1235, %v1368
    %v1413 = vadd.f32 %v1236, %v1371
    %v1414 = vadd.f32 %v1237, %v1376
    %v1415 = vadd.f32 %v1238, %v1379
    %v1416 = vadd.f32 %v1239, %v1384
    %v1417 = vadd.f32 %v1240, %v1387
    %v1418 = vadd.f32 %v1241, %v1392
    %v1419 = vadd.f32 %v1242, %v1395
    %v1420 = vadd.f32 %v1243, %v1400
    %v1421 = vadd.f32 %v1244, %v1403
    %s1422 = scalar_lea.vmem [#allocation2], 32
    %v1423 = vld [vmem:[%s1422] sm:$0xff]
    %v1424 = vld [vmem:[%s1422 + $0x10] sm:$0xff]
    %v1425 = vld [vmem:[%s1422 + $0x20] sm:$0xff]
    %v1426 = vld [vmem:[%s1422 + $0x30] sm:$0xff]
    %v1427 = vld [vmem:[%s1422 + $0x40] sm:$0xff]
    %v1428 = vld [vmem:[%s1422 + $0x50] sm:$0xff]
    %v1429 = vld [vmem:[%s1422 + $0x60] sm:$0xff]
    %v1430 = vld [vmem:[%s1422 + $0x70] sm:$0xff]
    %v1431 = vld [vmem:[%s1422 + $0xa0] sm:$0xff]
    %v1432 = vld [vmem:[%s1422 + $0xb0] sm:$0xff]
    %v1433 = vld [vmem:[%s1422 + $0xc0] sm:$0xff]
    %v1434 = vld [vmem:[%s1422 + $0xd0] sm:$0xff]
    %v1435 = vld [vmem:[%s1422 + $0xe0] sm:$0xff]
    %v1436 = vld [vmem:[%s1422 + $0xf0] sm:$0xff]
    %v1437 = vld [vmem:[%s1422 + $0x100] sm:$0xff]
    %v1438 = vld [vmem:[%s1422 + $0x110] sm:$0xff]
    %v1439 = vpack.c.bf16 %v1424, %v1423
    %v1440 = vpack.c.bf16 %v1426, %v1425
    %v1441 = vpack.c.bf16 %v1428, %v1427
    %v1442 = vpack.c.bf16 %v1430, %v1429
    %v1443 = vpack.c.bf16 %v1432, %v1431
    %v1444 = vpack.c.bf16 %v1434, %v1433
    %v1445 = vpack.c.bf16 %v1436, %v1435
    %v1446 = vpack.c.bf16 %v1438, %v1437
    %v1447 = vld [vmem:[%s3 + $0x60] sm:$0xf]
    %v1448 = vld [vmem:[%s3 + $0x64] sm:$0xf]
    %v1449 = vld [vmem:[%s3 + $0x68] sm:$0xf]
    %v1450 = vld [vmem:[%s3 + $0x6c] sm:$0xf]
    %v1455 = vunpack.c.l.b16 %v1447
    %v1456 = vunpack.c.l.b16 %v1448
    %v1457 = vunpack.c.l.b16 %v1449
    %v1458 = vunpack.c.l.b16 %v1450
    %v1459 = vpack.c.b16 %v1456, %v1455
    %v1460 = vpack.c.b16 %v1458, %v1457
    %v1464 = vsel %vm333, %v1439, 0
    %v1467 = vsel %vm333, %v1440, 0
    %v1470 = vsel %vm333, %v1441, 0
    %v1473 = vsel %vm333, %v1442, 0
    %v1476 = vsel %vm333, %v1443, 0
    %v1479 = vsel %vm333, %v1444, 0
    %v1482 = vsel %vm333, %v1445, 0
    %v1485 = vsel %vm333, %v1446, 0
    %1487 = vmatprep.subr.bf16.mxu0 0
    %1488 = vmatpush1.bf16.msra.mxu0 %v1459
    %1489 = vmatprep.subr.bf16.mxu0 0
    %1490 = vmatpush1.bf16.msra.mxu0 %v1460
    %1491 = vmatprep.subr.bf16.mxu0 0
    %1492 = vmatpush1.bf16.msra.mxu0 0
    %1493 = vmatprep.subr.bf16.mxu0 0
    %1494 = vmatpush1.bf16.msra.mxu0 0
    %1495 = vmatprep.subr.bf16.mxu0 0
    %1496 = vmatpush1.bf16.msra.mxu0 0
    %1497 = vmatprep.subr.bf16.mxu0 0
    %1498 = vmatpush1.bf16.msra.mxu0 0
    %1499 = vmatprep.subr.bf16.mxu0 0
    %1500 = vmatpush1.bf16.msra.mxu0 0
    %1501 = vmatprep.subr.bf16.mxu0 0
    %1502 = vmatpush1.bf16.msra.mxu0 0
    %1503 = vmatprep.subr.bf16.mxu0 0
    %1504 = vmatpush1.bf16.msra.mxu0 0
    %1505 = vmatprep.subr.bf16.mxu0 0
    %1506 = vmatpush1.bf16.msra.mxu0 0
    %1507 = vmatprep.subr.bf16.mxu0 0
    %1508 = vmatpush1.bf16.msra.mxu0 0
    %1509 = vmatprep.subr.bf16.mxu0 0
    %1510 = vmatpush1.bf16.msra.mxu0 0
    %1511 = vmatprep.subr.bf16.mxu0 0
    %1512 = vmatpush1.bf16.msra.mxu0 0
    %1513 = vmatprep.subr.bf16.mxu0 0
    %1514 = vmatpush1.bf16.msra.mxu0 0
    %1515 = vmatprep.subr.bf16.mxu0 0
    %1516 = vmatpush1.bf16.msra.mxu0 0
    %1517 = vmatprep.subr.bf16.mxu0 0
    %1518 = vmatpush1.bf16.msra.mxu0 0
    %1519 = vmatprep.mubr.bf16.mxu0 0
    %1520 = vmatmul.mubr.bf16.gmra.mrb[0].mxu0 %v1464
    %v1521 = vpop.f32.mrb[0].mxu0
    %v1522 = vadd.f32 0.0, %v1521
    %v1523 = vpop.f32.mrb[0].mxu0
    %v1524 = vpop.f32.mrb[0].mxu0
    %v1525 = vadd.f32 0.0, %v1524
    %v1526 = vpop.f32.mrb[0].mxu0
    %1527 = vmatprep.mubr.bf16.mxu0 0
    %1528 = vmatmul.mubr.bf16.gmra.mrb[0].mxu0 %v1467
    %v1529 = vpop.f32.mrb[0].mxu0
    %v1530 = vadd.f32 0.0, %v1529
    %v1531 = vpop.f32.mrb[0].mxu0
    %v1532 = vpop.f32.mrb[0].mxu0
    %v1533 = vadd.f32 0.0, %v1532
    %v1534 = vpop.f32.mrb[0].mxu0
    %1535 = vmatprep.mubr.bf16.mxu0 0
    %1536 = vmatmul.mubr.bf16.gmra.mrb[0].mxu0 %v1470
    %v1537 = vpop.f32.mrb[0].mxu0
    %v1538 = vadd.f32 0.0, %v1537
    %v1539 = vpop.f32.mrb[0].mxu0
    %v1540 = vpop.f32.mrb[0].mxu0
    %v1541 = vadd.f32 0.0, %v1540
    %v1542 = vpop.f32.mrb[0].mxu0
    %1543 = vmatprep.mubr.bf16.mxu0 0
    %1544 = vmatmul.mubr.bf16.gmra.mrb[0].mxu0 %v1473
    %v1545 = vpop.f32.mrb[0].mxu0
    %v1546 = vadd.f32 0.0, %v1545
    %v1547 = vpop.f32.mrb[0].mxu0
    %v1548 = vpop.f32.mrb[0].mxu0
    %v1549 = vadd.f32 0.0, %v1548
    %v1550 = vpop.f32.mrb[0].mxu0
    %1551 = vmatprep.mubr.bf16.mxu0 0
    %1552 = vmatmul.mubr.bf16.gmra.mrb[0].mxu0 %v1476
    %v1553 = vpop.f32.mrb[0].mxu0
    %v1554 = vadd.f32 0.0, %v1553
    %v1555 = vpop.f32.mrb[0].mxu0
    %v1556 = vpop.f32.mrb[0].mxu0
    %v1557 = vadd.f32 0.0, %v1556
    %v1558 = vpop.f32.mrb[0].mxu0
    %1559 = vmatprep.mubr.bf16.mxu0 0
    %1560 = vmatmul.mubr.bf16.gmra.mrb[0].mxu0 %v1479
    %v1561 = vpop.f32.mrb[0].mxu0
    %v1562 = vadd.f32 0.0, %v1561
    %v1563 = vpop.f32.mrb[0].mxu0
    %v1564 = vpop.f32.mrb[0].mxu0
    %v1565 = vadd.f32 0.0, %v1564
    %v1566 = vpop.f32.mrb[0].mxu0
    %1567 = vmatprep.mubr.bf16.mxu0 0
    %1568 = vmatmul.mubr.bf16.gmra.mrb[0].mxu0 %v1482
    %v1569 = vpop.f32.mrb[0].mxu0
    %v1570 = vadd.f32 0.0, %v1569
    %v1571 = vpop.f32.mrb[0].mxu0
    %v1572 = vpop.f32.mrb[0].mxu0
    %v1573 = vadd.f32 0.0, %v1572
    %v1574 = vpop.f32.mrb[0].mxu0
    %1575 = vmatprep.mubr.bf16.mxu0 0
    %1576 = vmatmul.mubr.bf16.gmra.mrb[0].mxu0 %v1485
    %v1577 = vpop.f32.mrb[0].mxu0
    %v1578 = vadd.f32 0.0, %v1577
    %v1579 = vpop.f32.mrb[0].mxu0
    %v1580 = vpop.f32.mrb[0].mxu0
    %v1581 = vadd.f32 0.0, %v1580
    %v1582 = vpop.f32.mrb[0].mxu0
    %1583 = vdwg.mxu0
    %v1584 = vadd.f32 %v1406, %v1522
    %v1585 = vadd.f32 %v1407, %v1525
    %v1586 = vadd.f32 %v1408, %v1530
    %v1587 = vadd.f32 %v1409, %v1533
    %v1588 = vadd.f32 %v1410, %v1538
    %v1589 = vadd.f32 %v1411, %v1541
    %v1590 = vadd.f32 %v1412, %v1546
    %v1591 = vadd.f32 %v1413, %v1549
    %v1592 = vadd.f32 %v1414, %v1554
    %v1593 = vadd.f32 %v1415, %v1557
    %v1594 = vadd.f32 %v1416, %v1562
    %v1595 = vadd.f32 %v1417, %v1565
    %v1596 = vadd.f32 %v1418, %v1570
    %v1597 = vadd.f32 %v1419, %v1573
    %v1598 = vadd.f32 %v1420, %v1578
    %v1599 = vadd.f32 %v1421, %v1581
    %v1600 = vld [vmem:[%s1422 + $0x1] sm:$0xff]
    %v1601 = vld [vmem:[%s1422 + $0x11] sm:$0xff]
    %v1602 = vld [vmem:[%s1422 + $0x21] sm:$0xff]
    %v1603 = vld [vmem:[%s1422 + $0x31] sm:$0xff]
    %v1604 = vld [vmem:[%s1422 + $0x41] sm:$0xff]
    %v1605 = vld [vmem:[%s1422 + $0x51] sm:$0xff]
    %v1606 = vld [vmem:[%s1422 + $0x61] sm:$0xff]
    %v1607 = vld [vmem:[%s1422 + $0x71] sm:$0xff]
    %v1608 = vld [vmem:[%s1422 + $0xa1] sm:$0xff]
    %v1609 = vld [vmem:[%s1422 + $0xb1] sm:$0xff]
    %v1610 = vld [vmem:[%s1422 + $0xc1] sm:$0xff]
    %v1611 = vld [vmem:[%s1422 + $0xd1] sm:$0xff]
    %v1612 = vld [vmem:[%s1422 + $0xe1] sm:$0xff]
    %v1613 = vld [vmem:[%s1422 + $0xf1] sm:$0xff]
    %v1614 = vld [vmem:[%s1422 + $0x101] sm:$0xff]
    %v1615 = vld [vmem:[%s1422 + $0x111] sm:$0xff]
    %v1616 = vpack.c.bf16 %v1601, %v1600
    %v1617 = vpack.c.bf16 %v1603, %v1602
    %v1618 = vpack.c.bf16 %v1605, %v1604
    %v1619 = vpack.c.bf16 %v1607, %v1606
    %v1620 = vpack.c.bf16 %v1609, %v1608
    %v1621 = vpack.c.bf16 %v1611, %v1610
    %v1622 = vpack.c.bf16 %v1613, %v1612
    %v1623 = vpack.c.bf16 %v1615, %v1614
    %v1624 = vld [vmem:[%s3 + $0x70] sm:$0xf]
    %v1625 = vld [vmem:[%s3 + $0x74] sm:$0xf]
    %v1626 = vld [vmem:[%s3 + $0x78] sm:$0xf]
    %v1627 = vld [vmem:[%s3 + $0x7c] sm:$0xf]
    %v1632 = vunpack.c.l.b16 %v1624
    %v1633 = vunpack.c.l.b16 %v1625
    %v1634 = vunpack.c.l.b16 %v1626
    %v1635 = vunpack.c.l.b16 %v1627
    %v1636 = vpack.c.b16 %v1633, %v1632
    %v1637 = vpack.c.b16 %v1635, %v1634
    %v1641 = vsel %vm333, %v1616, 0
    %v1644 = vsel %vm333, %v1617, 0
    %v1647 = vsel %vm333, %v1618, 0
    %v1650 = vsel %vm333, %v1619, 0
    %v1653 = vsel %vm333, %v1620, 0
    %v1656 = vsel %vm333, %v1621, 0
    %v1659 = vsel %vm333, %v1622, 0
    %v1662 = vsel %vm333, %v1623, 0
    %1664 = vmatprep.subr.bf16.mxu0 0
    %1665 = vmatpush1.bf16.msra.mxu0 %v1636
    %1666 = vmatprep.subr.bf16.mxu0 0
    %1667 = vmatpush1.bf16.msra.mxu0 %v1637
    %1668 = vmatprep.subr.bf16.mxu0 0
    %1669 = vmatpush1.bf16.msra.mxu0 0
    %1670 = vmatprep.subr.bf16.mxu0 0
    %1671 = vmatpush1.bf16.msra.mxu0 0
    %1672 = vmatprep.subr.bf16.mxu0 0
    %1673 = vmatpush1.bf16.msra.mxu0 0
    %1674 = vmatprep.subr.bf16.mxu0 0
    %1675 = vmatpush1.bf16.msra.mxu0 0
    %1676 = vmatprep.subr.bf16.mxu0 0
    %1677 = vmatpush1.bf16.msra.mxu0 0
    %1678 = vmatprep.subr.bf16.mxu0 0
    %1679 = vmatpush1.bf16.msra.mxu0 0
    %1680 = vmatprep.subr.bf16.mxu0 0
    %1681 = vmatpush1.bf16.msra.mxu0 0
    %1682 = vmatprep.subr.bf16.mxu0 0
    %1683 = vmatpush1.bf16.msra.mxu0 0
    %1684 = vmatprep.subr.bf16.mxu0 0
    %1685 = vmatpush1.bf16.msra.mxu0 0
    %1686 = vmatprep.subr.bf16.mxu0 0
    %1687 = vmatpush1.bf16.msra.mxu0 0
    %1688 = vmatprep.subr.bf16.mxu0 0
    %1689 = vmatpush1.bf16.msra.mxu0 0
    %1690 = vmatprep.subr.bf16.mxu0 0
    %1691 = vmatpush1.bf16.msra.mxu0 0
    %1692 = vmatprep.subr.bf16.mxu0 0
    %1693 = vmatpush1.bf16.msra.mxu0 0
    %1694 = vmatprep.subr.bf16.mxu0 0
    %1695 = vmatpush1.bf16.msra.mxu0 0
    %1696 = vmatprep.mubr.bf16.mxu0 0
    %1697 = vmatmul.mubr.bf16.gmra.mrb[0].mxu0 %v1641
    %v1698 = vpop.f32.mrb[0].mxu0
    %v1699 = vadd.f32 0.0, %v1698
    %v1700 = vpop.f32.mrb[0].mxu0
    %v1701 = vpop.f32.mrb[0].mxu0
    %v1702 = vadd.f32 0.0, %v1701
    %v1703 = vpop.f32.mrb[0].mxu0
    %1704 = vmatprep.mubr.bf16.mxu0 0
    %1705 = vmatmul.mubr.bf16.gmra.mrb[0].mxu0 %v1644
    %v1706 = vpop.f32.mrb[0].mxu0
    %v1707 = vadd.f32 0.0, %v1706
    %v1708 = vpop.f32.mrb[0].mxu0
    %v1709 = vpop.f32.mrb[0].mxu0
    %v1710 = vadd.f32 0.0, %v1709
    %v1711 = vpop.f32.mrb[0].mxu0
    %1712 = vmatprep.mubr.bf16.mxu0 0
    %1713 = vmatmul.mubr.bf16.gmra.mrb[0].mxu0 %v1647
    %v1714 = vpop.f32.mrb[0].mxu0
    %v1715 = vadd.f32 0.0, %v1714
    %v1716 = vpop.f32.mrb[0].mxu0
    %v1717 = vpop.f32.mrb[0].mxu0
    %v1718 = vadd.f32 0.0, %v1717
    %v1719 = vpop.f32.mrb[0].mxu0
    %1720 = vmatprep.mubr.bf16.mxu0 0
    %1721 = vmatmul.mubr.bf16.gmra.mrb[0].mxu0 %v1650
    %v1722 = vpop.f32.mrb[0].mxu0
    %v1723 = vadd.f32 0.0, %v1722
    %v1724 = vpop.f32.mrb[0].mxu0
    %v1725 = vpop.f32.mrb[0].mxu0
    %v1726 = vadd.f32 0.0, %v1725
    %v1727 = vpop.f32.mrb[0].mxu0
    %1728 = vmatprep.mubr.bf16.mxu0 0
    %1729 = vmatmul.mubr.bf16.gmra.mrb[0].mxu0 %v1653
    %v1730 = vpop.f32.mrb[0].mxu0
    %v1731 = vadd.f32 0.0, %v1730
    %v1732 = vpop.f32.mrb[0].mxu0
    %v1733 = vpop.f32.mrb[0].mxu0
    %v1734 = vadd.f32 0.0, %v1733
    %v1735 = vpop.f32.mrb[0].mxu0
    %1736 = vmatprep.mubr.bf16.mxu0 0
    %1737 = vmatmul.mubr.bf16.gmra.mrb[0].mxu0 %v1656
    %v1738 = vpop.f32.mrb[0].mxu0
    %v1739 = vadd.f32 0.0, %v1738
    %v1740 = vpop.f32.mrb[0].mxu0
    %v1741 = vpop.f32.mrb[0].mxu0
    %v1742 = vadd.f32 0.0, %v1741
    %v1743 = vpop.f32.mrb[0].mxu0
    %1744 = vmatprep.mubr.bf16.mxu0 0
    %1745 = vmatmul.mubr.bf16.gmra.mrb[0].mxu0 %v1659
    %v1746 = vpop.f32.mrb[0].mxu0
    %v1747 = vadd.f32 0.0, %v1746
    %v1748 = vpop.f32.mrb[0].mxu0
    %v1749 = vpop.f32.mrb[0].mxu0
    %v1750 = vadd.f32 0.0, %v1749
    %v1751 = vpop.f32.mrb[0].mxu0
    %1752 = vmatprep.mubr.bf16.mxu0 0
    %1753 = vmatmul.mubr.bf16.gmra.mrb[0].mxu0 %v1662
    %v1754 = vpop.f32.mrb[0].mxu0
    %v1755 = vadd.f32 0.0, %v1754
    %v1756 = vpop.f32.mrb[0].mxu0
    %v1757 = vpop.f32.mrb[0].mxu0
    %v1758 = vadd.f32 0.0, %v1757
    %v1759 = vpop.f32.mrb[0].mxu0
    %1760 = vdwg.mxu0
    %v1761 = vadd.f32 %v1584, %v1699
    %v1762 = vadd.f32 %v1585, %v1702
    %v1763 = vadd.f32 %v1586, %v1707
    %v1764 = vadd.f32 %v1587, %v1710
    %v1765 = vadd.f32 %v1588, %v1715
    %v1766 = vadd.f32 %v1589, %v1718
    %v1767 = vadd.f32 %v1590, %v1723
    %v1768 = vadd.f32 %v1591, %v1726
    %v1769 = vadd.f32 %v1592, %v1731
    %v1770 = vadd.f32 %v1593, %v1734
    %v1771 = vadd.f32 %v1594, %v1739
    %v1772 = vadd.f32 %v1595, %v1742
    %v1773 = vadd.f32 %v1596, %v1747
    %v1774 = vadd.f32 %v1597, %v1750
    %v1775 = vadd.f32 %v1598, %v1755
    %v1776 = vadd.f32 %v1599, %v1758
    %v1777 = vld [vmem:[%s1422 + $0x2] sm:$0xff]
    %v1778 = vld [vmem:[%s1422 + $0x12] sm:$0xff]
    %v1779 = vld [vmem:[%s1422 + $0x22] sm:$0xff]
    %v1780 = vld [vmem:[%s1422 + $0x32] sm:$0xff]
    %v1781 = vld [vmem:[%s1422 + $0x42] sm:$0xff]
    %v1782 = vld [vmem:[%s1422 + $0x52] sm:$0xff]
    %v1783 = vld [vmem:[%s1422 + $0x62] sm:$0xff]
    %v1784 = vld [vmem:[%s1422 + $0x72] sm:$0xff]
    %v1785 = vld [vmem:[%s1422 + $0xa2] sm:$0xff]
    %v1786 = vld [vmem:[%s1422 + $0xb2] sm:$0xff]
    %v1787 = vld [vmem:[%s1422 + $0xc2] sm:$0xff]
    %v1788 = vld [vmem:[%s1422 + $0xd2] sm:$0xff]
    %v1789 = vld [vmem:[%s1422 + $0xe2] sm:$0xff]
    %v1790 = vld [vmem:[%s1422 + $0xf2] sm:$0xff]
    %v1791 = vld [vmem:[%s1422 + $0x102] sm:$0xff]
    %v1792 = vld [vmem:[%s1422 + $0x112] sm:$0xff]
    %v1793 = vpack.c.bf16 %v1778, %v1777
    %v1794 = vpack.c.bf16 %v1780, %v1779
    %v1795 = vpack.c.bf16 %v1782, %v1781
    %v1796 = vpack.c.bf16 %v1784, %v1783
    %v1797 = vpack.c.bf16 %v1786, %v1785
    %v1798 = vpack.c.bf16 %v1788, %v1787
    %v1799 = vpack.c.bf16 %v1790, %v1789
    %v1800 = vpack.c.bf16 %v1792, %v1791
    %v1801 = vld [vmem:[%s3 + $0x80] sm:$0xf]
    %v1802 = vld [vmem:[%s3 + $0x84] sm:$0xf]
    %v1803 = vld [vmem:[%s3 + $0x88] sm:$0xf]
    %v1804 = vld [vmem:[%s3 + $0x8c] sm:$0xf]
    %v1809 = vunpack.c.l.b16 %v1801
    %v1810 = vunpack.c.l.b16 %v1802
    %v1811 = vunpack.c.l.b16 %v1803
    %v1812 = vunpack.c.l.b16 %v1804
    %v1813 = vpack.c.b16 %v1810, %v1809
    %v1814 = vpack.c.b16 %v1812, %v1811
    %v1818 = vsel %vm333, %v1793, 0
    %v1821 = vsel %vm333, %v1794, 0
    %v1824 = vsel %vm333, %v1795, 0
    %v1827 = vsel %vm333, %v1796, 0
    %v1830 = vsel %vm333, %v1797, 0
    %v1833 = vsel %vm333, %v1798, 0
    %v1836 = vsel %vm333, %v1799, 0
    %v1839 = vsel %vm333, %v1800, 0
    %1841 = vmatprep.subr.bf16.mxu0 0
    %1842 = vmatpush1.bf16.msra.mxu0 %v1813
    %1843 = vmatprep.subr.bf16.mxu0 0
    %1844 = vmatpush1.bf16.msra.mxu0 %v1814
    %1845 = vmatprep.subr.bf16.mxu0 0
    %1846 = vmatpush1.bf16.msra.mxu0 0
    %1847 = vmatprep.subr.bf16.mxu0 0
    %1848 = vmatpush1.bf16.msra.mxu0 0
    %1849 = vmatprep.subr.bf16.mxu0 0
    %1850 = vmatpush1.bf16.msra.mxu0 0
    %1851 = vmatprep.subr.bf16.mxu0 0
    %1852 = vmatpush1.bf16.msra.mxu0 0
    %1853 = vmatprep.subr.bf16.mxu0 0
    %1854 = vmatpush1.bf16.msra.mxu0 0
    %1855 = vmatprep.subr.bf16.mxu0 0
    %1856 = vmatpush1.bf16.msra.mxu0 0
    %1857 = vmatprep.subr.bf16.mxu0 0
    %1858 = vmatpush1.bf16.msra.mxu0 0
    %1859 = vmatprep.subr.bf16.mxu0 0
    %1860 = vmatpush1.bf16.msra.mxu0 0
    %1861 = vmatprep.subr.bf16.mxu0 0
    %1862 = vmatpush1.bf16.msra.mxu0 0
    %1863 = vmatprep.subr.bf16.mxu0 0
    %1864 = vmatpush1.bf16.msra.mxu0 0
    %1865 = vmatprep.subr.bf16.mxu0 0
    %1866 = vmatpush1.bf16.msra.mxu0 0
    %1867 = vmatprep.subr.bf16.mxu0 0
    %1868 = vmatpush1.bf16.msra.mxu0 0
    %1869 = vmatprep.subr.bf16.mxu0 0
    %1870 = vmatpush1.bf16.msra.mxu0 0
    %1871 = vmatprep.subr.bf16.mxu0 0
    %1872 = vmatpush1.bf16.msra.mxu0 0
    %1873 = vmatprep.mubr.bf16.mxu0 0
    %1874 = vmatmul.mubr.bf16.gmra.mrb[0].mxu0 %v1818
    %v1875 = vpop.f32.mrb[0].mxu0
    %v1876 = vadd.f32 0.0, %v1875
    %v1877 = vpop.f32.mrb[0].mxu0
    %v1878 = vpop.f32.mrb[0].mxu0
    %v1879 = vadd.f32 0.0, %v1878
    %v1880 = vpop.f32.mrb[0].mxu0
    %1881 = vmatprep.mubr.bf16.mxu0 0
    %1882 = vmatmul.mubr.bf16.gmra.mrb[0].mxu0 %v1821
    %v1883 = vpop.f32.mrb[0].mxu0
    %v1884 = vadd.f32 0.0, %v1883
    %v1885 = vpop.f32.mrb[0].mxu0
    %v1886 = vpop.f32.mrb[0].mxu0
    %v1887 = vadd.f32 0.0, %v1886
    %v1888 = vpop.f32.mrb[0].mxu0
    %1889 = vmatprep.mubr.bf16.mxu0 0
    %1890 = vmatmul.mubr.bf16.gmra.mrb[0].mxu0 %v1824
    %v1891 = vpop.f32.mrb[0].mxu0
    %v1892 = vadd.f32 0.0, %v1891
    %v1893 = vpop.f32.mrb[0].mxu0
    %v1894 = vpop.f32.mrb[0].mxu0
    %v1895 = vadd.f32 0.0, %v1894
    %v1896 = vpop.f32.mrb[0].mxu0
    %1897 = vmatprep.mubr.bf16.mxu0 0
    %1898 = vmatmul.mubr.bf16.gmra.mrb[0].mxu0 %v1827
    %v1899 = vpop.f32.mrb[0].mxu0
    %v1900 = vadd.f32 0.0, %v1899
    %v1901 = vpop.f32.mrb[0].mxu0
    %v1902 = vpop.f32.mrb[0].mxu0
    %v1903 = vadd.f32 0.0, %v1902
    %v1904 = vpop.f32.mrb[0].mxu0
    %1905 = vmatprep.mubr.bf16.mxu0 0
    %1906 = vmatmul.mubr.bf16.gmra.mrb[0].mxu0 %v1830
    %v1907 = vpop.f32.mrb[0].mxu0
    %v1908 = vadd.f32 0.0, %v1907
    %v1909 = vpop.f32.mrb[0].mxu0
    %v1910 = vpop.f32.mrb[0].mxu0
    %v1911 = vadd.f32 0.0, %v1910
    %v1912 = vpop.f32.mrb[0].mxu0
    %1913 = vmatprep.mubr.bf16.mxu0 0
    %1914 = vmatmul.mubr.bf16.gmra.mrb[0].mxu0 %v1833
    %v1915 = vpop.f32.mrb[0].mxu0
    %v1916 = vadd.f32 0.0, %v1915
    %v1917 = vpop.f32.mrb[0].mxu0
    %v1918 = vpop.f32.mrb[0].mxu0
    %v1919 = vadd.f32 0.0, %v1918
    %v1920 = vpop.f32.mrb[0].mxu0
    %1921 = vmatprep.mubr.bf16.mxu0 0
    %1922 = vmatmul.mubr.bf16.gmra.mrb[0].mxu0 %v1836
    %v1923 = vpop.f32.mrb[0].mxu0
    %v1924 = vadd.f32 0.0, %v1923
    %v1925 = vpop.f32.mrb[0].mxu0
    %v1926 = vpop.f32.mrb[0].mxu0
    %v1927 = vadd.f32 0.0, %v1926
    %v1928 = vpop.f32.mrb[0].mxu0
    %1929 = vmatprep.mubr.bf16.mxu0 0
    %1930 = vmatmul.mubr.bf16.gmra.mrb[0].mxu0 %v1839
    %v1931 = vpop.f32.mrb[0].mxu0
    %v1932 = vadd.f32 0.0, %v1931
    %v1933 = vpop.f32.mrb[0].mxu0
    %v1934 = vpop.f32.mrb[0].mxu0
    %v1935 = vadd.f32 0.0, %v1934
    %v1936 = vpop.f32.mrb[0].mxu0
    %1937 = vdwg.mxu0
    %v1938 = vadd.f32 %v1761, %v1876
    %v1939 = vadd.f32 %v1762, %v1879
    %v1940 = vadd.f32 %v1763, %v1884
    %v1941 = vadd.f32 %v1764, %v1887
    %v1942 = vadd.f32 %v1765, %v1892
    %v1943 = vadd.f32 %v1766, %v1895
    %v1944 = vadd.f32 %v1767, %v1900
    %v1945 = vadd.f32 %v1768, %v1903
    %v1946 = vadd.f32 %v1769, %v1908
    %v1947 = vadd.f32 %v1770, %v1911
    %v1948 = vadd.f32 %v1771, %v1916
    %v1949 = vadd.f32 %v1772, %v1919
    %v1950 = vadd.f32 %v1773, %v1924
    %v1951 = vadd.f32 %v1774, %v1927
    %v1952 = vadd.f32 %v1775, %v1932
    %v1953 = vadd.f32 %v1776, %v1935
    %v1954 = vld [vmem:[%s4] sm:$0x1]
    %v1956 = vlaneseq
    %v1957 = vshrl.u32 %v1956, 7
    %v1958 = vsub.s32 0, %v1957
    %v1959 = vrot.slane %v1954, %v1958
    %v1961 = vadd.f32 %v1938, %v1959
    %v1962 = vadd.f32 %v1939, %v1959
    %v1963 = vadd.f32 %v1940, %v1959
    %v1964 = vadd.f32 %v1941, %v1959
    %v1965 = vadd.f32 %v1942, %v1959
    %v1966 = vadd.f32 %v1943, %v1959
    %v1967 = vadd.f32 %v1944, %v1959
    %v1968 = vadd.f32 %v1945, %v1959
    %v1969 = vadd.f32 %v1946, %v1959
    %v1970 = vadd.f32 %v1947, %v1959
    %v1971 = vadd.f32 %v1948, %v1959
    %v1972 = vadd.f32 %v1949, %v1959
    %v1973 = vadd.f32 %v1950, %v1959
    %v1974 = vadd.f32 %v1951, %v1959
    %v1975 = vadd.f32 %v1952, %v1959
    %v1976 = vadd.f32 %v1953, %v1959
    %1993 = vrot.lane.b32.xlu0 %v255, 96
    %v1994 = vpop.permute.xlu0 %1993
    %1995 = vrot.lane.b32.xlu0 %v258, 96
    %v1996 = vpop.permute.xlu0 %1995
    %1997 = vrot.lane.b32.xlu0 %v263, 96
    %v1998 = vpop.permute.xlu0 %1997
    %1999 = vrot.lane.b32.xlu0 %v266, 96
    %v2000 = vpop.permute.xlu0 %1999
    %2001 = vrot.lane.b32.xlu0 %v271, 96
    %v2002 = vpop.permute.xlu0 %2001
    %2003 = vrot.lane.b32.xlu0 %v274, 96
    %v2004 = vpop.permute.xlu0 %2003
    %2005 = vrot.lane.b32.xlu0 %v279, 96
    %v2006 = vpop.permute.xlu0 %2005
    %2007 = vrot.lane.b32.xlu0 %v282, 96
    %v2008 = vpop.permute.xlu0 %2007
    %2009 = vrot.lane.b32.xlu0 %v287, 96
    %v2010 = vpop.permute.xlu0 %2009
    %2011 = vrot.lane.b32.xlu0 %v290, 96
    %v2012 = vpop.permute.xlu0 %2011
    %2013 = vrot.lane.b32.xlu0 %v295, 96
    %v2014 = vpop.permute.xlu0 %2013
    %2015 = vrot.lane.b32.xlu0 %v298, 96
    %v2016 = vpop.permute.xlu0 %2015
    %2017 = vrot.lane.b32.xlu0 %v303, 96
    %v2018 = vpop.permute.xlu0 %2017
    %2019 = vrot.lane.b32.xlu0 %v306, 96
    %v2020 = vpop.permute.xlu0 %2019
    %2021 = vrot.lane.b32.xlu0 %v311, 96
    %v2022 = vpop.permute.xlu0 %2021
    %2023 = vrot.lane.b32.xlu0 %v314, 96
    %v2024 = vpop.permute.xlu0 %2023
    %v2041 = vadd.f32 %v1961, %v1994
    %v2042 = vadd.f32 %v1962, %v1996
    %v2043 = vadd.f32 %v1963, %v1998
    %v2044 = vadd.f32 %v1964, %v2000
    %v2045 = vadd.f32 %v1965, %v2002
    %v2046 = vadd.f32 %v1966, %v2004
    %v2047 = vadd.f32 %v1967, %v2006
    %v2048 = vadd.f32 %v1968, %v2008
    %v2049 = vadd.f32 %v1969, %v2010
    %v2050 = vadd.f32 %v1970, %v2012
    %v2051 = vadd.f32 %v1971, %v2014
    %v2052 = vadd.f32 %v1972, %v2016
    %v2053 = vadd.f32 %v1973, %v2018
    %v2054 = vadd.f32 %v1974, %v2020
    %v2055 = vadd.f32 %v1975, %v2022
    %v2056 = vadd.f32 %v1976, %v2024
    %v2057 = vmax.f32 %v2041, 0.0
    %v2058 = vmax.f32 %v2042, 0.0
    %v2059 = vmax.f32 %v2043, 0.0
    %v2060 = vmax.f32 %v2044, 0.0
    %v2061 = vmax.f32 %v2045, 0.0
    %v2062 = vmax.f32 %v2046, 0.0
    %v2063 = vmax.f32 %v2047, 0.0
    %v2064 = vmax.f32 %v2048, 0.0
    %v2065 = vmax.f32 %v2049, 0.0
    %v2066 = vmax.f32 %v2050, 0.0
    %v2067 = vmax.f32 %v2051, 0.0
    %v2068 = vmax.f32 %v2052, 0.0
    %v2069 = vmax.f32 %v2053, 0.0
    %v2070 = vmax.f32 %v2054, 0.0
    %v2071 = vmax.f32 %v2055, 0.0
    %v2072 = vmax.f32 %v2056, 0.0
    %v2073 = vsel %vm333, %v2057, 0.0
    %v2074 = vsel %vm333, %v2058, 0.0
    %v2075 = vadd.f32 %v2073, %v2074
    %v2076 = vsel %vm333, %v2059, 0.0
    %v2077 = vadd.f32 %v2075, %v2076
    %v2078 = vsel %vm333, %v2060, 0.0
    %v2079 = vadd.f32 %v2077, %v2078
    %v2080 = vsel %vm333, %v2061, 0.0
    %v2081 = vadd.f32 %v2079, %v2080
    %v2082 = vsel %vm333, %v2062, 0.0
    %v2083 = vadd.f32 %v2081, %v2082
    %v2084 = vsel %vm333, %v2063, 0.0
    %v2085 = vadd.f32 %v2083, %v2084
    %v2086 = vsel %vm333, %v2064, 0.0
    %v2087 = vadd.f32 %v2085, %v2086
    %v2088 = vrot.slane %v2087, 4
    %v2089 = vadd.f32 %v2087, %v2088
    %v2090 = vrot.slane %v2089, 2
    %v2091 = vadd.f32 %v2089, %v2090
    %v2092 = vrot.slane %v2091, 1
    %v2093 = vadd.f32 %v2091, %v2092
    %v2094 = vsel %vm333, %v2065, 0.0
    %v2095 = vsel %vm333, %v2066, 0.0
    %v2096 = vadd.f32 %v2094, %v2095
    %v2097 = vsel %vm333, %v2067, 0.0
    %v2098 = vadd.f32 %v2096, %v2097
    %v2099 = vsel %vm333, %v2068, 0.0
    %v2100 = vadd.f32 %v2098, %v2099
    %v2101 = vsel %vm333, %v2069, 0.0
    %v2102 = vadd.f32 %v2100, %v2101
    %v2103 = vsel %vm333, %v2070, 0.0
    %v2104 = vadd.f32 %v2102, %v2103
    %v2105 = vsel %vm333, %v2071, 0.0
    %v2106 = vadd.f32 %v2104, %v2105
    %v2107 = vsel %vm333, %v2072, 0.0
    %v2108 = vadd.f32 %v2106, %v2107
    %v2109 = vrot.slane %v2108, 4
    %v2110 = vadd.f32 %v2108, %v2109
    %v2111 = vrot.slane %v2110, 2
    %v2112 = vadd.f32 %v2110, %v2111
    %v2113 = vrot.slane %v2112, 1
    %v2114 = vadd.f32 %v2112, %v2113
    %v2115 = vrcp.pop 64.0
    %v2116 = vmul.f32 %v2093, %v2115
    %v2117 = vmul.f32 %v2114, %v2115
    %v2118 = vpack.c.bf16 %v2116, %v2116
    %v2119 = vpack.c.bf16 %v2117, %v2117
    %v2120 = vld [vmem:[%s5] sm:$0xf]
    %v2121 = vld [vmem:[%s5 + $0x4] sm:$0xf]
    %v2122 = vld [vmem:[%s5 + $0x8] sm:$0xf]
    %v2123 = vld [vmem:[%s5 + $0xc] sm:$0xf]
    %v2124 = vld [vmem:[%s6] sm:$0x1]
    %v2126 = vlaneseq
    %v2127 = vshrl.u32 %v2126, 7
    %v2128 = vsub.s32 0, %v2127
    %v2129 = vrot.slane %v2124, %v2128
    %v2133 = vunpack.c.l.b16 %v2118
    %v2134 = vunpack.c.l.b16 %v2119
    %vm2135 = vcmask 1041409
    %v2136 = vsel %vm2135, %v2134, %v2133
    %v2137 = vpack.c.b16 %v2136, %v2136
    %v2142 = vunpack.c.l.b16 %v2120
    %v2143 = vunpack.c.l.b16 %v2121
    %v2144 = vunpack.c.l.b16 %v2122
    %v2145 = vunpack.c.l.b16 %v2123
    %v2146 = vpack.c.b16 %v2143, %v2142
    %v2147 = vpack.c.b16 %v2145, %v2144
    %v2151 = vsel %vm333, %v2137, 0
    %2153 = vmatprep.subr.bf16.mxu0 0
    %2154 = vmatpush1.bf16.msra.mxu0 %v2146
    %2155 = vmatprep.subr.bf16.mxu0 0
    %2156 = vmatpush1.bf16.msra.mxu0 %v2147
    %2157 = vmatprep.subr.bf16.mxu0 0
    %2158 = vmatpush1.bf16.msra.mxu0 0
    %2159 = vmatprep.subr.bf16.mxu0 0
    %2160 = vmatpush1.bf16.msra.mxu0 0
    %2161 = vmatprep.subr.bf16.mxu0 0
    %2162 = vmatpush1.bf16.msra.mxu0 0
    %2163 = vmatprep.subr.bf16.mxu0 0
    %2164 = vmatpush1.bf16.msra.mxu0 0
    %2165 = vmatprep.subr.bf16.mxu0 0
    %2166 = vmatpush1.bf16.msra.mxu0 0
    %2167 = vmatprep.subr.bf16.mxu0 0
    %2168 = vmatpush1.bf16.msra.mxu0 0
    %2169 = vmatprep.subr.bf16.mxu0 0
    %2170 = vmatpush1.bf16.msra.mxu0 0
    %2171 = vmatprep.subr.bf16.mxu0 0
    %2172 = vmatpush1.bf16.msra.mxu0 0
    %2173 = vmatprep.subr.bf16.mxu0 0
    %2174 = vmatpush1.bf16.msra.mxu0 0
    %2175 = vmatprep.subr.bf16.mxu0 0
    %2176 = vmatpush1.bf16.msra.mxu0 0
    %2177 = vmatprep.subr.bf16.mxu0 0
    %2178 = vmatpush1.bf16.msra.mxu0 0
    %2179 = vmatprep.subr.bf16.mxu0 0
    %2180 = vmatpush1.bf16.msra.mxu0 0
    %2181 = vmatprep.subr.bf16.mxu0 0
    %2182 = vmatpush1.bf16.msra.mxu0 0
    %2183 = vmatprep.subr.bf16.mxu0 0
    %2184 = vmatpush1.bf16.msra.mxu0 0
    %2185 = vmatprep.mubr.bf16.mxu0 0
    %2186 = vmatmul.mubr.bf16.gmra.mrb[0].mxu0 %v2151
    %v2187 = vpop.f32.mrb[0].mxu0
    %v2188 = vadd.f32 %v2129, %v2187
    %v2189 = vpop.f32.mrb[0].mxu0
    %v2190 = vpop.f32.mrb[0].mxu0
    %v2191 = vpop.f32.mrb[0].mxu0
    %2192 = vdwg.mxu0
    %vm2193 = vcmask 74752
    %2194 = vst.msk [vmem:[#allocation3] sm:$0x3] %vm2193, %v2188
    // Predicated region
    $region30: #{resnet_forward.3} parent=1 // pred_check
      _
    $region31: #{resnet_forward.3} parent=1 // pred_check_branch
      %2196 = sbr.rel (0) target = $region33
    $region32: #{resnet_forward.3} parent=1 // pred_region
      %s2198 = ssub.s32 32, 32
      %2199 = vsyncadd [#allocation4], %s2198
      %s2201 = sshll.u32 [#allocation3], 4
      %s2202 = int_to_ptr.vmem [resolvable:$true] %s2201
      %2204 = dma.vmem_to_hbm [thread:$0]  %s2202, 32, %s7, [#allocation4]
    $region33: #{resnet_forward.3} parent=1 // pred_fallthru
      _
    // Predicated region
    $region34: #{resnet_forward.3} parent=1 // pred_check
      _
    $region35: #{resnet_forward.3} parent=1 // pred_check_branch
      %2206 = sbr.rel (0) target = $region37
    $region36: #{resnet_forward.3} parent=1 // pred_region
      %2207 = dma.done [#allocation4], 32
    $region37: #{resnet_forward.3} parent=1 // pred_fallthru
      _
    %2208 = vsyncpa [#allocation4], 1

// kernel: resnet_forward.2
$region0: #{resnet_forward.2}
  #allocation0 [shape = 'u32[]', space=smem, size = 0x4, offset = 0x4, fixed_abs, tag = 'smem constant byte address 0x4 - core index']
  #allocation1 [shape = 'u32[144,128]{1,0:T(1,128)}', space=vmem, size = 0x12000, scoped, tag = 'internal scratch']
  #allocation2 [shape = 'f32[1,18,18,16]{3,2,1,0:T(8,128)}', space=vmem, size = 0x36000, scoped, tag = 'scratch operand']
  #allocation3 [shape = 'f32[256,16]{1,0:T(8,128)}', space=vmem, size = 0x20000, scoped, tag = 'scratch operand']
  %s0 = inlined_call_operand.vmem [shape: f32[2,18,18,8], index: 0, kind: input, shape index: {}]
  %s1 = inlined_call_operand.vmem [shape: bf16[72,16], index: 1, kind: input, shape index: {}]
  %s2 = inlined_call_operand.vmem [shape: f32[1,16], index: 2, kind: input, shape index: {}]
  %s3 = inlined_call_operand.vmem [shape: bf16[144,16], index: 3, kind: input, shape index: {}]
  %s4 = inlined_call_operand.vmem [shape: f32[1,16], index: 4, kind: input, shape index: {}]
  %s5 = inlined_call_operand.vmem [shape: bf16[144,16], index: 5, kind: input, shape index: {}]
  %s6 = inlined_call_operand.vmem [shape: f32[1,16], index: 6, kind: input, shape index: {}]
  %s7 = inlined_call_operand.vmem [shape: bf16[2,256,16], index: 7, kind: output, shape index: {}]
  %s8 = sld [smem:[#allocation0]]
  $region61: #{resnet_forward.2} parent=0
    _
  %s10 = ssub.s32 1, %s8
  %s11 = scalar_select 0, %s10, %s8
  loop: start=0, step=1, limit=4
  $region2: #{resnet_forward.2} parent=0 // loop_pre_header
    _
  $region3: #{resnet_forward.2} parent=0 // loop_header
    %s13 = sphi 0, %s17
    %p14 = scmp.ge.s32.totalorder %s13, 4
    %s23 = sphi 0, %s25
    %s26 = sphi 0, %s23
    %s27 = sphi 0, %s26
    %s43 = sphi 0, %s27
    %s47 = sphi 0, %s47
    %s49 = sphi 0, %s47
    %s50 = sphi 0, %s49
    %s64 = sphi 0, %s50
    %s68 = sphi 0, %s68
    %s70 = sphi 0, %s68
    %s71 = sphi 0, %s70
    %s85 = sphi 0, %s71
    %s89 = sphi 0, %s89
    %s91 = sphi 0, %s89
    %s92 = sphi 0, %s91
    %s106 = sphi 0, %s92
    %s110 = sphi 0, %s110
    %s112 = sphi 0, %s110
    %s113 = sphi 0, %s112
    %s127 = sphi 0, %s113
    %s131 = sphi 0, %s131
    %s133 = sphi 0, %s131
    %s134 = sphi 0, %s133
    %s148 = sphi 0, %s134
    %s152 = sphi 0, %s152
    %s154 = sphi 0, %s152
    %s155 = sphi 0, %s154
    %s169 = sphi 0, %s155
    %s175 = sphi 0, %s177
    %s178 = sphi 0, %s175
    %s179 = sphi 0, %s178
    %s195 = sphi 0, %s179
  $region4: #{resnet_forward.2} parent=0 // loop_header_branch
    %16 = sbr.rel (%p14) target = $region8
  $region5: #{resnet_forward.2} parent=0 // loop_body
    %s18 = ssub.s32 %s13, 1
    %s19 = ssub.s32 %s13, 2
    %s20 = sadd.s32 %s13, 1
    %s21 = ssub.s32 %s13, %s20
    %p22 = scmp.eq.s32.totalorder %s21, 0
    %s24 = sadd.s32 %s23, 1
    %s25 = scalar_select %p22, %s23, %s24
    %p28 = pneg %p22
    %p29 = scmp.eq.s32.totalorder %s13, 1
    %p30 = por %p28, %p29
    %p31 = scmp.ne.s32.totalorder %s23, %s26
    %p32 = scmp.eq.s32.totalorder %s13, 0
    %p33 = por %p31, %p32
    %p34 = scmp.ne.s32.totalorder %s23, %s26
    %p35 = scmp.eq.s32.totalorder %s18, 1
    %p36 = por %p34, %p35
    %p37 = scmp.ne.s32.totalorder %s26, %s27
    %p38 = scmp.eq.s32.totalorder %s18, 0
    %p39 = por %p37, %p38
    %p40 = scmp.ne.s32.totalorder %s26, %s27
    %p41 = scmp.eq.s32.totalorder %s19, 1
    %p42 = por %p40, %p41
    %p44 = scmp.ne.s32.totalorder %s27, %s43
    %p45 = scmp.eq.s32.totalorder %s19, 0
    %p46 = por %p44, %p45
    %s48 = sadd.s32 %s47, 1
    %p51 = scmp.eq.s32.totalorder %s13, 1
    %p52 = scmp.ne.s32.totalorder %s47, %s49
    %p53 = scmp.eq.s32.totalorder %s13, 0
    %p54 = por %p52, %p53
    %p55 = scmp.ne.s32.totalorder %s47, %s49
    %p56 = scmp.eq.s32.totalorder %s18, 1
    %p57 = por %p55, %p56
    %p58 = scmp.ne.s32.totalorder %s49, %s50
    %p59 = scmp.eq.s32.totalorder %s18, 0
    %p60 = por %p58, %p59
    %p61 = scmp.ne.s32.totalorder %s49, %s50
    %p62 = scmp.eq.s32.totalorder %s19, 1
    %p63 = por %p61, %p62
    %p65 = scmp.ne.s32.totalorder %s50, %s64
    %p66 = scmp.eq.s32.totalorder %s19, 0
    %p67 = por %p65, %p66
    %s69 = sadd.s32 %s68, 1
    %p72 = scmp.eq.s32.totalorder %s13, 1
    %p73 = scmp.ne.s32.totalorder %s68, %s70
    %p74 = scmp.eq.s32.totalorder %s13, 0
    %p75 = por %p73, %p74
    %p76 = scmp.ne.s32.totalorder %s68, %s70
    %p77 = scmp.eq.s32.totalorder %s18, 1
    %p78 = por %p76, %p77
    %p79 = scmp.ne.s32.totalorder %s70, %s71
    %p80 = scmp.eq.s32.totalorder %s18, 0
    %p81 = por %p79, %p80
    %p82 = scmp.ne.s32.totalorder %s70, %s71
    %p83 = scmp.eq.s32.totalorder %s19, 1
    %p84 = por %p82, %p83
    %p86 = scmp.ne.s32.totalorder %s71, %s85
    %p87 = scmp.eq.s32.totalorder %s19, 0
    %p88 = por %p86, %p87
    %s90 = sadd.s32 %s89, 1
    %p93 = scmp.eq.s32.totalorder %s13, 1
    %p94 = scmp.ne.s32.totalorder %s89, %s91
    %p95 = scmp.eq.s32.totalorder %s13, 0
    %p96 = por %p94, %p95
    %p97 = scmp.ne.s32.totalorder %s89, %s91
    %p98 = scmp.eq.s32.totalorder %s18, 1
    %p99 = por %p97, %p98
    %p100 = scmp.ne.s32.totalorder %s91, %s92
    %p101 = scmp.eq.s32.totalorder %s18, 0
    %p102 = por %p100, %p101
    %p103 = scmp.ne.s32.totalorder %s91, %s92
    %p104 = scmp.eq.s32.totalorder %s19, 1
    %p105 = por %p103, %p104
    %p107 = scmp.ne.s32.totalorder %s92, %s106
    %p108 = scmp.eq.s32.totalorder %s19, 0
    %p109 = por %p107, %p108
    %s111 = sadd.s32 %s110, 1
    %p114 = scmp.eq.s32.totalorder %s13, 1
    %p115 = scmp.ne.s32.totalorder %s110, %s112
    %p116 = scmp.eq.s32.totalorder %s13, 0
    %p117 = por %p115, %p116
    %p118 = scmp.ne.s32.totalorder %s110, %s112
    %p119 = scmp.eq.s32.totalorder %s18, 1
    %p120 = por %p118, %p119
    %p121 = scmp.ne.s32.totalorder %s112, %s113
    %p122 = scmp.eq.s32.totalorder %s18, 0
    %p123 = por %p121, %p122
    %p124 = scmp.ne.s32.totalorder %s112, %s113
    %p125 = scmp.eq.s32.totalorder %s19, 1
    %p126 = por %p124, %p125
    %p128 = scmp.ne.s32.totalorder %s113, %s127
    %p129 = scmp.eq.s32.totalorder %s19, 0
    %p130 = por %p128, %p129
    %s132 = sadd.s32 %s131, 1
    %p135 = scmp.eq.s32.totalorder %s13, 1
    %p136 = scmp.ne.s32.totalorder %s131, %s133
    %p137 = scmp.eq.s32.totalorder %s13, 0
    %p138 = por %p136, %p137
    %p139 = scmp.ne.s32.totalorder %s131, %s133
    %p140 = scmp.eq.s32.totalorder %s18, 1
    %p141 = por %p139, %p140
    %p142 = scmp.ne.s32.totalorder %s133, %s134
    %p143 = scmp.eq.s32.totalorder %s18, 0
    %p144 = por %p142, %p143
    %p145 = scmp.ne.s32.totalorder %s133, %s134
    %p146 = scmp.eq.s32.totalorder %s19, 1
    %p147 = por %p145, %p146
    %p149 = scmp.ne.s32.totalorder %s134, %s148
    %p150 = scmp.eq.s32.totalorder %s19, 0
    %p151 = por %p149, %p150
    %s153 = sadd.s32 %s152, 1
    %p156 = scmp.eq.s32.totalorder %s13, 1
    %p157 = scmp.ne.s32.totalorder %s152, %s154
    %p158 = scmp.eq.s32.totalorder %s13, 0
    %p159 = por %p157, %p158
    %p160 = scmp.ne.s32.totalorder %s152, %s154
    %p161 = scmp.eq.s32.totalorder %s18, 1
    %p162 = por %p160, %p161
    %p163 = scmp.ne.s32.totalorder %s154, %s155
    %p164 = scmp.eq.s32.totalorder %s18, 0
    %p165 = por %p163, %p164
    %p166 = scmp.ne.s32.totalorder %s154, %s155
    %p167 = scmp.eq.s32.totalorder %s19, 1
    %p168 = por %p166, %p167
    %p170 = scmp.ne.s32.totalorder %s155, %s169
    %p171 = scmp.eq.s32.totalorder %s19, 0
    %p172 = por %p170, %p171
    %s173 = ssub.s32 %s13, %s20
    %p174 = scmp.eq.s32.totalorder %s173, 0
    %s176 = sadd.s32 %s175, 1
    %s177 = scalar_select %p174, %s175, %s176
    %p180 = pneg %p174
    %p181 = scmp.eq.s32.totalorder %s13, 1
    %p182 = por %p180, %p181
    %p183 = scmp.ne.s32.totalorder %s175, %s178
    %p184 = scmp.eq.s32.totalorder %s13, 0
    %p185 = por %p183, %p184
    %p186 = scmp.ne.s32.totalorder %s175, %s178
    %p187 = scmp.eq.s32.totalorder %s18, 1
    %p188 = por %p186, %p187
    %p189 = scmp.ne.s32.totalorder %s178, %s179
    %p190 = scmp.eq.s32.totalorder %s18, 0
    %p191 = por %p189, %p190
    %p192 = scmp.ne.s32.totalorder %s178, %s179
    %p193 = scmp.eq.s32.totalorder %s19, 1
    %p194 = por %p192, %p193
    %p196 = scmp.ne.s32.totalorder %s179, %s195
    %p197 = scmp.eq.s32.totalorder %s19, 0
    %p198 = por %p196, %p197
    %p199 = scmp.le.s32.totalorder 1, %s13
    %p200 = scmp.lt.s32.totalorder %s13, 3
    %p201 = pnand %p199, %p200
    %p202 = pneg %p201
    // Predicated region
    $region9: #{resnet_forward.2} parent=5 // pred_check
      _
    $region10: #{resnet_forward.2} parent=5 // pred_check_branch
      %204 = sbr.rel (%p201) target = $region12
    $region11: #{resnet_forward.2} parent=5 // pred_region
      %s205 = ssub.s32 %s13, 1
      // Predicated region
      $region13: #{resnet_forward.2} parent=11 // pred_check
        %p206 = pneg %p60
      $region14: #{resnet_forward.2} parent=11 // pred_check_branch
        %208 = sbr.rel (%p206) target = $region16
      $region15: #{resnet_forward.2} parent=11 // pred_region
        _
      $region16: #{resnet_forward.2} parent=11 // pred_fallthru
        _
      // Predicated region
      $region17: #{resnet_forward.2} parent=11 // pred_check
        %p209 = pneg %p81
      $region18: #{resnet_forward.2} parent=11 // pred_check_branch
        %211 = sbr.rel (%p209) target = $region20
      $region19: #{resnet_forward.2} parent=11 // pred_region
        _
      $region20: #{resnet_forward.2} parent=11 // pred_fallthru
        _
      // Predicated region
      $region21: #{resnet_forward.2} parent=11 // pred_check
        %p212 = pneg %p102
      $region22: #{resnet_forward.2} parent=11 // pred_check_branch
        %214 = sbr.rel (%p212) target = $region24
      $region23: #{resnet_forward.2} parent=11 // pred_region
        _
      $region24: #{resnet_forward.2} parent=11 // pred_fallthru
        _
      // Predicated region
      $region25: #{resnet_forward.2} parent=11 // pred_check
        %p215 = pneg %p123
      $region26: #{resnet_forward.2} parent=11 // pred_check_branch
        %217 = sbr.rel (%p215) target = $region28
      $region27: #{resnet_forward.2} parent=11 // pred_region
        _
      $region28: #{resnet_forward.2} parent=11 // pred_fallthru
        _
      // Predicated region
      $region29: #{resnet_forward.2} parent=11 // pred_check
        %p218 = pneg %p144
      $region30: #{resnet_forward.2} parent=11 // pred_check_branch
        %220 = sbr.rel (%p218) target = $region32
      $region31: #{resnet_forward.2} parent=11 // pred_region
        _
      $region32: #{resnet_forward.2} parent=11 // pred_fallthru
        _
      // Predicated region
      $region33: #{resnet_forward.2} parent=11 // pred_check
        %p221 = pneg %p165
      $region34: #{resnet_forward.2} parent=11 // pred_check_branch
        %223 = sbr.rel (%p221) target = $region36
      $region35: #{resnet_forward.2} parent=11 // pred_region
        _
      $region36: #{resnet_forward.2} parent=11 // pred_fallthru
        _
    $region12: #{resnet_forward.2} parent=5 // pred_fallthru
      _
    %p224 = scmp.lt.s32.totalorder %s13, 2
    // Predicated region
    $region37: #{resnet_forward.2} parent=5 // pred_check
      %p225 = pneg %p224
    $region38: #{resnet_forward.2} parent=5 // pred_check_branch
      %227 = sbr.rel (%p225) target = $region40
    $region39: #{resnet_forward.2} parent=5 // pred_region
      // Predicated region
      $region41: #{resnet_forward.2} parent=39 // pred_check
        %p228 = pneg %p33
      $region42: #{resnet_forward.2} parent=39 // pred_check_branch
        %230 = sbr.rel (%p228) target = $region44
      $region43: #{resnet_forward.2} parent=39 // pred_region
        %p231 = scmp.lt.s32.totalorder %s13, 1
        %s232 = scalar_select %p231, %s13, 1
        %s233 = smul.addr %s232, 54
        %s234 = smul.addr %s233, 8
        %s235 = scalar_lea.vmem %s0, %s234
      $region44: #{resnet_forward.2} parent=39 // pred_fallthru
        _
    $region40: #{resnet_forward.2} parent=5 // pred_fallthru
      _
    %p236 = scmp.le.s32.totalorder 1, %s13
    %p237 = scmp.lt.s32.totalorder %s13, 3
    %p238 = pnand %p236, %p237
    %p239 = pneg %p238
    // Predicated region
    $region45: #{resnet_forward.2} parent=5 // pred_check
      _
    $region46: #{resnet_forward.2} parent=5 // pred_check_branch
      %241 = sbr.rel (%p238) target = $region48
    $region47: #{resnet_forward.2} parent=5 // pred_region
      %s242 = ssub.s32 %s13, 1
      %p243 = scmp.lt.s32.totalorder %s18, 1
      %s244 = scalar_select %p243, %s18, 1
      %s245 = smul.addr %s244, 54
      %s246 = smul.addr %s245, 8
      %s247 = scalar_lea.vmem %s0, %s246
      %p248 = pneg %p39
      %p249 = pneg %p36
      %p250 = pneg %p60
      %p251 = pneg %p57
      %p252 = pneg %p81
      %p253 = pneg %p78
      %p254 = pneg %p102
      %p255 = pneg %p99
      %p256 = pneg %p123
      %p257 = pneg %p120
      %p258 = pneg %p144
      %p259 = pneg %p141
      %p260 = pneg %p165
      %p261 = pneg %p162
      %p262 = pneg %p191
      %p263 = pneg %p188
      %p264 = scmp.lt.s32.totalorder %s18, 1
      %s265 = scalar_select %p264, %s18, 1
      %s266 = smul.addr %s265, 32
      %s267 = smul.addr %s266, 4
      %s268 = scalar_lea.vmem %s7, %s267
      %p269 = scmp.lt.s32.totalorder %s18, 1
      %s270 = scalar_select %p269, %s18, 1
      %s271 = smul.addr %s270, 54
      %s272 = smul.addr %s271, 8
      %s273 = scalar_lea.vmem %s0, %s272
      %p274 = scmp.lt.s32.totalorder %s18, 1
      %s275 = scalar_select %p274, %s18, 1
      %s276 = smul.addr %s275, 32
      %s277 = smul.addr %s276, 4
      %s278 = scalar_lea.vmem %s7, %s277
      %v280 = vld [vmem:[%s273] sm:$0xff]
      %v281 = vld [vmem:[%s273 + $0x8] sm:$0xff]
      %v282 = vld [vmem:[%s273 + $0x18] sm:$0xff]
      %v283 = vld [vmem:[%s273 + $0x20] sm:$0xff]
      %v284 = vld [vmem:[%s273 + $0x30] sm:$0xff]
      %v285 = vld [vmem:[%s273 + $0x38] sm:$0xff]
      %v286 = vld [vmem:[%s273 + $0x48] sm:$0xff]
      %v287 = vld [vmem:[%s273 + $0x50] sm:$0xff]
      %v288 = vld [vmem:[%s273 + $0x60] sm:$0xff]
      %v289 = vld [vmem:[%s273 + $0x68] sm:$0xff]
      %v290 = vld [vmem:[%s273 + $0x78] sm:$0xff]
      %v291 = vld [vmem:[%s273 + $0x80] sm:$0xff]
      %v292 = vld [vmem:[%s273 + $0x90] sm:$0xff]
      %v293 = vld [vmem:[%s273 + $0x98] sm:$0xff]
      %v294 = vld [vmem:[%s273 + $0xa8] sm:$0xff]
      %v295 = vld [vmem:[%s273 + $0xb0] sm:$0xff]
      %v296 = vld [vmem:[%s273 + $0xc0] sm:$0xff]
      %v297 = vld [vmem:[%s273 + $0xc8] sm:$0xff]
      %v298 = vld [vmem:[%s273 + $0xd8] sm:$0xff]
      %v299 = vld [vmem:[%s273 + $0xe0] sm:$0xff]
      %v300 = vld [vmem:[%s273 + $0xf0] sm:$0xff]
      %v301 = vld [vmem:[%s273 + $0xf8] sm:$0xff]
      %v302 = vld [vmem:[%s273 + $0x108] sm:$0xff]
      %v303 = vld [vmem:[%s273 + $0x110] sm:$0xff]
      %v304 = vld [vmem:[%s273 + $0x120] sm:$0xff]
      %v305 = vld [vmem:[%s273 + $0x128] sm:$0xff]
      %v306 = vld [vmem:[%s273 + $0x138] sm:$0xff]
      %v307 = vld [vmem:[%s273 + $0x140] sm:$0xff]
      %v308 = vld [vmem:[%s273 + $0x150] sm:$0xff]
      %v309 = vld [vmem:[%s273 + $0x158] sm:$0xff]
      %v310 = vld [vmem:[%s273 + $0x168] sm:$0xff]
      %v311 = vld [vmem:[%s273 + $0x170] sm:$0xff]
      %v312 = vpack.c.bf16 %v281, %v280
      %v313 = vpack.c.bf16 %v283, %v282
      %v314 = vpack.c.bf16 %v285, %v284
      %v315 = vpack.c.bf16 %v287, %v286
      %v316 = vpack.c.bf16 %v289, %v288
      %v317 = vpack.c.bf16 %v291, %v290
      %v318 = vpack.c.bf16 %v293, %v292
      %v319 = vpack.c.bf16 %v295, %v294
      %v320 = vpack.c.bf16 %v297, %v296
      %v321 = vpack.c.bf16 %v299, %v298
      %v322 = vpack.c.bf16 %v301, %v300
      %v323 = vpack.c.bf16 %v303, %v302
      %v324 = vpack.c.bf16 %v305, %v304
      %v325 = vpack.c.bf16 %v307, %v306
      %v326 = vpack.c.bf16 %v309, %v308
      %v327 = vpack.c.bf16 %v311, %v310
      %v328 = vld [vmem:[%s1] sm:$0xf]
      %v329 = vld [vmem:[%s273 + $0x1] sm:$0xff]
      %v330 = vld [vmem:[%s273 + $0x9] sm:$0xff]
      %v331 = vld [vmem:[%s273 + $0x19] sm:$0xff]
      %v332 = vld [vmem:[%s273 + $0x21] sm:$0xff]
      %v333 = vld [vmem:[%s273 + $0x31] sm:$0xff]
      %v334 = vld [vmem:[%s273 + $0x39] sm:$0xff]
      %v335 = vld [vmem:[%s273 + $0x49] sm:$0xff]
      %v336 = vld [vmem:[%s273 + $0x51] sm:$0xff]
      %v337 = vld [vmem:[%s273 + $0x61] sm:$0xff]
      %v338 = vld [vmem:[%s273 + $0x69] sm:$0xff]
      %v339 = vld [vmem:[%s273 + $0x79] sm:$0xff]
      %v340 = vld [vmem:[%s273 + $0x81] sm:$0xff]
      %v341 = vld [vmem:[%s273 + $0x91] sm:$0xff]
      %v342 = vld [vmem:[%s273 + $0x99] sm:$0xff]
      %v343 = vld [vmem:[%s273 + $0xa9] sm:$0xff]
      %v344 = vld [vmem:[%s273 + $0xb1] sm:$0xff]
      %v345 = vld [vmem:[%s273 + $0xc1] sm:$0xff]
      %v346 = vld [vmem:[%s273 + $0xc9] sm:$0xff]
      %v347 = vld [vmem:[%s273 + $0xd9] sm:$0xff]
      %v348 = vld [vmem:[%s273 + $0xe1] sm:$0xff]
      %v349 = vld [vmem:[%s273 + $0xf1] sm:$0xff]
      %v350 = vld [vmem:[%s273 + $0xf9] sm:$0xff]
      %v351 = vld [vmem:[%s273 + $0x109] sm:$0xff]
      %v352 = vld [vmem:[%s273 + $0x111] sm:$0xff]
      %v353 = vld [vmem:[%s273 + $0x121] sm:$0xff]
      %v354 = vld [vmem:[%s273 + $0x129] sm:$0xff]
      %v355 = vld [vmem:[%s273 + $0x139] sm:$0xff]
      %v356 = vld [vmem:[%s273 + $0x141] sm:$0xff]
      %v357 = vld [vmem:[%s273 + $0x151] sm:$0xff]
      %v358 = vld [vmem:[%s273 + $0x159] sm:$0xff]
      %v359 = vld [vmem:[%s273 + $0x169] sm:$0xff]
      %v360 = vld [vmem:[%s273 + $0x171] sm:$0xff]
      %v361 = vpack.c.bf16 %v330, %v329
      %v362 = vpack.c.bf16 %v332, %v331
      %v363 = vpack.c.bf16 %v334, %v333
      %v364 = vpack.c.bf16 %v336, %v335
      %v365 = vpack.c.bf16 %v338, %v337
      %v366 = vpack.c.bf16 %v340, %v339
      %v367 = vpack.c.bf16 %v342, %v341
      %v368 = vpack.c.bf16 %v344, %v343
      %v369 = vpack.c.bf16 %v346, %v345
      %v370 = vpack.c.bf16 %v348, %v347
      %v371 = vpack.c.bf16 %v350, %v349
      %v372 = vpack.c.bf16 %v352, %v351
      %v373 = vpack.c.bf16 %v354, %v353
      %v374 = vpack.c.bf16 %v356, %v355
      %v375 = vpack.c.bf16 %v358, %v357
      %v376 = vpack.c.bf16 %v360, %v359
      %v377 = vld [vmem:[%s1 + $0x4] sm:$0xf]
      %vm378 = vcmask 64512
      %v380 = vsel %vm378, %v361, 0
      %v383 = vsel %vm378, %v362, 0
      %v386 = vsel %vm378, %v363, 0
      %v389 = vsel %vm378, %v364, 0
      %v392 = vsel %vm378, %v365, 0
      %v395 = vsel %vm378, %v366, 0
      %v398 = vsel %vm378, %v367, 0
      %v401 = vsel %vm378, %v368, 0
      %v404 = vsel %vm378, %v369, 0
      %v407 = vsel %vm378, %v370, 0
      %v410 = vsel %vm378, %v371, 0
      %v413 = vsel %vm378, %v372, 0
      %v416 = vsel %vm378, %v373, 0
      %v419 = vsel %vm378, %v374, 0
      %v422 = vsel %vm378, %v375, 0
      %v425 = vsel %vm378, %v376, 0
      %vm427 = vcmask 1043456
      %v429 = vsel %vm427, %v377, 0
      %431 = vmatprep.subr.bf16.mxu0 0
      %432 = vmatpush1.bf16.msra.mxu0 %v429
      %433 = vmatprep.subr.bf16.mxu0 0
      %434 = vmatpush1.bf16.msra.mxu0 0
      %435 = vmatprep.subr.bf16.mxu0 0
      %436 = vmatpush1.bf16.msra.mxu0 0
      %437 = vmatprep.subr.bf16.mxu0 0
      %438 = vmatpush1.bf16.msra.mxu0 0
      %439 = vmatprep.subr.bf16.mxu0 0
      %440 = vmatpush1.bf16.msra.mxu0 0
      %441 = vmatprep.subr.bf16.mxu0 0
      %442 = vmatpush1.bf16.msra.mxu0 0
      %443 = vmatprep.subr.bf16.mxu0 0
      %444 = vmatpush1.bf16.msra.mxu0 0
      %445 = vmatprep.subr.bf16.mxu0 0
      %446 = vmatpush1.bf16.msra.mxu0 0
      %447 = vmatprep.subr.bf16.mxu0 0
      %448 = vmatpush1.bf16.msra.mxu0 0
      %449 = vmatprep.subr.bf16.mxu0 0
      %450 = vmatpush1.bf16.msra.mxu0 0
      %451 = vmatprep.subr.bf16.mxu0 0
      %452 = vmatpush1.bf16.msra.mxu0 0
      %453 = vmatprep.subr.bf16.mxu0 0
      %454 = vmatpush1.bf16.msra.mxu0 0
      %455 = vmatprep.subr.bf16.mxu0 0
      %456 = vmatpush1.bf16.msra.mxu0 0
      %457 = vmatprep.subr.bf16.mxu0 0
      %458 = vmatpush1.bf16.msra.mxu0 0
      %459 = vmatprep.subr.bf16.mxu0 0
      %460 = vmatpush1.bf16.msra.mxu0 0
      %461 = vmatprep.subr.bf16.mxu0 0
      %462 = vmatpush1.bf16.msra.mxu0 0
      %463 = vmatprep.mubr.bf16.mxu0 0
      %464 = vmatmul.mubr.bf16.gmra.mrb[0].mxu0 %v380
      %v465 = vpop.f32.mrb[0].mxu0
      %v466 = vadd.f32 0.0, %v465
      %v467 = vpop.f32.mrb[0].mxu0
      %v468 = vpop.f32.mrb[0].mxu0
      %v469 = vadd.f32 0.0, %v468
      %v470 = vpop.f32.mrb[0].mxu0
      %471 = vmatprep.mubr.bf16.mxu0 0
      %472 = vmatmul.mubr.bf16.gmra.mrb[0].mxu0 %v383
      %v473 = vpop.f32.mrb[0].mxu0
      %v474 = vadd.f32 0.0, %v473
      %v475 = vpop.f32.mrb[0].mxu0
      %v476 = vpop.f32.mrb[0].mxu0
      %v477 = vadd.f32 0.0, %v476
      %v478 = vpop.f32.mrb[0].mxu0
      %479 = vmatprep.mubr.bf16.mxu0 0
      %480 = vmatmul.mubr.bf16.gmra.mrb[0].mxu0 %v386
      %v481 = vpop.f32.mrb[0].mxu0
      %v482 = vadd.f32 0.0, %v481
      %v483 = vpop.f32.mrb[0].mxu0
      %v484 = vpop.f32.mrb[0].mxu0
      %v485 = vadd.f32 0.0, %v484
      %v486 = vpop.f32.mrb[0].mxu0
      %487 = vmatprep.mubr.bf16.mxu0 0
      %488 = vmatmul.mubr.bf16.gmra.mrb[0].mxu0 %v389
      %v489 = vpop.f32.mrb[0].mxu0
      %v490 = vadd.f32 0.0, %v489
      %v491 = vpop.f32.mrb[0].mxu0
      %v492 = vpop.f32.mrb[0].mxu0
      %v493 = vadd.f32 0.0, %v492
      %v494 = vpop.f32.mrb[0].mxu0
      %495 = vmatprep.mubr.bf16.mxu0 0
      %496 = vmatmul.mubr.bf16.gmra.mrb[0].mxu0 %v392
      %v497 = vpop.f32.mrb[0].mxu0
      %v498 = vadd.f32 0.0, %v497
      %v499 = vpop.f32.mrb[0].mxu0
      %v500 = vpop.f32.mrb[0].mxu0
      %v501 = vadd.f32 0.0, %v500
      %v502 = vpop.f32.mrb[0].mxu0
      %503 = vmatprep.mubr.bf16.mxu0 0
      %504 = vmatmul.mubr.bf16.gmra.mrb[0].mxu0 %v395
      %v505 = vpop.f32.mrb[0].mxu0
      %v506 = vadd.f32 0.0, %v505
      %v507 = vpop.f32.mrb[0].mxu0
      %v508 = vpop.f32.mrb[0].mxu0
      %v509 = vadd.f32 0.0, %v508
      %v510 = vpop.f32.mrb[0].mxu0
      %511 = vmatprep.mubr.bf16.mxu0 0
      %512 = vmatmul.mubr.bf16.gmra.mrb[0].mxu0 %v398
      %v513 = vpop.f32.mrb[0].mxu0
      %v514 = vadd.f32 0.0, %v513
      %v515 = vpop.f32.mrb[0].mxu0
      %v516 = vpop.f32.mrb[0].mxu0
      %v517 = vadd.f32 0.0, %v516
      %v518 = vpop.f32.mrb[0].mxu0
      %519 = vmatprep.mubr.bf16.mxu0 0
      %520 = vmatmul.mubr.bf16.gmra.mrb[0].mxu0 %v401
      %v521 = vpop.f32.mrb[0].mxu0
      %v522 = vadd.f32 0.0, %v521
      %v523 = vpop.f32.mrb[0].mxu0
      %v524 = vpop.f32.mrb[0].mxu0
      %v525 = vadd.f32 0.0, %v524
      %v526 = vpop.f32.mrb[0].mxu0
      %527 = vmatprep.mubr.bf16.mxu0 0
      %528 = vmatmul.mubr.bf16.gmra.mrb[0].mxu0 %v404
      %v529 = vpop.f32.mrb[0].mxu0
      %v530 = vadd.f32 0.0, %v529
      %v531 = vpop.f32.mrb[0].mxu0
      %v532 = vpop.f32.mrb[0].mxu0
      %v533 = vadd.f32 0.0, %v532
      %v534 = vpop.f32.mrb[0].mxu0
      %535 = vmatprep.mubr.bf16.mxu0 0
      %536 = vmatmul.mubr.bf16.gmra.mrb[0].mxu0 %v407
      %v537 = vpop.f32.mrb[0].mxu0
      %v538 = vadd.f32 0.0, %v537
      %v539 = vpop.f32.mrb[0].mxu0
      %v540 = vpop.f32.mrb[0].mxu0
      %v541 = vadd.f32 0.0, %v540
      %v542 = vpop.f32.mrb[0].mxu0
      %543 = vmatprep.mubr.bf16.mxu0 0
      %544 = vmatmul.mubr.bf16.gmra.mrb[0].mxu0 %v410
      %v545 = vpop.f32.mrb[0].mxu0
      %v546 = vadd.f32 0.0, %v545
      %v547 = vpop.f32.mrb[0].mxu0
      %v548 = vpop.f32.mrb[0].mxu0
      %v549 = vadd.f32 0.0, %v548
      %v550 = vpop.f32.mrb[0].mxu0
      %551 = vmatprep.mubr.bf16.mxu0 0
      %552 = vmatmul.mubr.bf16.gmra.mrb[0].mxu0 %v413
      %v553 = vpop.f32.mrb[0].mxu0
      %v554 = vadd.f32 0.0, %v553
      %v555 = vpop.f32.mrb[0].mxu0
      %v556 = vpop.f32.mrb[0].mxu0
      %v557 = vadd.f32 0.0, %v556
      %v558 = vpop.f32.mrb[0].mxu0
      %559 = vmatprep.mubr.bf16.mxu0 0
      %560 = vmatmul.mubr.bf16.gmra.mrb[0].mxu0 %v416
      %v561 = vpop.f32.mrb[0].mxu0
      %v562 = vadd.f32 0.0, %v561
      %v563 = vpop.f32.mrb[0].mxu0
      %v564 = vpop.f32.mrb[0].mxu0
      %v565 = vadd.f32 0.0, %v564
      %v566 = vpop.f32.mrb[0].mxu0
      %567 = vmatprep.mubr.bf16.mxu0 0
      %568 = vmatmul.mubr.bf16.gmra.mrb[0].mxu0 %v419
      %v569 = vpop.f32.mrb[0].mxu0
      %v570 = vadd.f32 0.0, %v569
      %v571 = vpop.f32.mrb[0].mxu0
      %v572 = vpop.f32.mrb[0].mxu0
      %v573 = vadd.f32 0.0, %v572
      %v574 = vpop.f32.mrb[0].mxu0
      %575 = vmatprep.mubr.bf16.mxu0 0
      %576 = vmatmul.mubr.bf16.gmra.mrb[0].mxu0 %v422
      %v577 = vpop.f32.mrb[0].mxu0
      %v578 = vadd.f32 0.0, %v577
      %v579 = vpop.f32.mrb[0].mxu0
      %v580 = vpop.f32.mrb[0].mxu0
      %v581 = vadd.f32 0.0, %v580
      %v582 = vpop.f32.mrb[0].mxu0
      %583 = vmatprep.mubr.bf16.mxu0 0
      %584 = vmatmul.mubr.bf16.gmra.mrb[0].mxu0 %v425
      %v585 = vpop.f32.mrb[0].mxu0
      %v586 = vadd.f32 0.0, %v585
      %v587 = vpop.f32.mrb[0].mxu0
      %v588 = vpop.f32.mrb[0].mxu0
      %v589 = vadd.f32 0.0, %v588
      %v590 = vpop.f32.mrb[0].mxu0
      %591 = vdwg.mxu0
      %v593 = vsel %vm378, %v312, 0
      %v596 = vsel %vm378, %v313, 0
      %v599 = vsel %vm378, %v314, 0
      %v602 = vsel %vm378, %v315, 0
      %v605 = vsel %vm378, %v316, 0
      %v608 = vsel %vm378, %v317, 0
      %v611 = vsel %vm378, %v318, 0
      %v614 = vsel %vm378, %v319, 0
      %v617 = vsel %vm378, %v320, 0
      %v620 = vsel %vm378, %v321, 0
      %v623 = vsel %vm378, %v322, 0
      %v626 = vsel %vm378, %v323, 0
      %v629 = vsel %vm378, %v324, 0
      %v632 = vsel %vm378, %v325, 0
      %v635 = vsel %vm378, %v326, 0
      %v638 = vsel %vm378, %v327, 0
      %v641 = vsel %vm427, %v328, 0
      %643 = vmatprep.subr.bf16.mxu0 0
      %644 = vmatpush1.bf16.msra.mxu0 %v641
      %645 = vmatprep.subr.bf16.mxu0 0
      %646 = vmatpush1.bf16.msra.mxu0 0
      %647 = vmatprep.subr.bf16.mxu0 0
      %648 = vmatpush1.bf16.msra.mxu0 0
      %649 = vmatprep.subr.bf16.mxu0 0
      %650 = vmatpush1.bf16.msra.mxu0 0
      %651 = vmatprep.subr.bf16.mxu0 0
      %652 = vmatpush1.bf16.msra.mxu0 0
      %653 = vmatprep.subr.bf16.mxu0 0
      %654 = vmatpush1.bf16.msra.mxu0 0
      %655 = vmatprep.subr.bf16.mxu0 0
      %656 = vmatpush1.bf16.msra.mxu0 0
      %657 = vmatprep.subr.bf16.mxu0 0
      %658 = vmatpush1.bf16.msra.mxu0 0
      %659 = vmatprep.subr.bf16.mxu0 0
      %660 = vmatpush1.bf16.msra.mxu0 0
      %661 = vmatprep.subr.bf16.mxu0 0
      %662 = vmatpush1.bf16.msra.mxu0 0
      %663 = vmatprep.subr.bf16.mxu0 0
      %664 = vmatpush1.bf16.msra.mxu0 0
      %665 = vmatprep.subr.bf16.mxu0 0
      %666 = vmatpush1.bf16.msra.mxu0 0
      %667 = vmatprep.subr.bf16.mxu0 0
      %668 = vmatpush1.bf16.msra.mxu0 0
      %669 = vmatprep.subr.bf16.mxu0 0
      %670 = vmatpush1.bf16.msra.mxu0 0
      %671 = vmatprep.subr.bf16.mxu0 0
      %672 = vmatpush1.bf16.msra.mxu0 0
      %673 = vmatprep.subr.bf16.mxu0 0
      %674 = vmatpush1.bf16.msra.mxu0 0
      %675 = vmatprep.mubr.bf16.mxu0 0
      %676 = vmatmul.mubr.bf16.gmra.mrb[0].mxu0 %v593
      %v677 = vpop.f32.mrb[0].mxu0
      %v678 = vadd.f32 %v466, %v677
      %v679 = vpop.f32.mrb[0].mxu0
      %v680 = vpop.f32.mrb[0].mxu0
      %v681 = vadd.f32 %v469, %v680
      %v682 = vpop.f32.mrb[0].mxu0
      %683 = vmatprep.mubr.bf16.mxu0 0
      %684 = vmatmul.mubr.bf16.gmra.mrb[0].mxu0 %v596
      %v685 = vpop.f32.mrb[0].mxu0
      %v686 = vadd.f32 %v474, %v685
      %v687 = vpop.f32.mrb[0].mxu0
      %v688 = vpop.f32.mrb[0].mxu0
      %v689 = vadd.f32 %v477, %v688
      %v690 = vpop.f32.mrb[0].mxu0
      %691 = vmatprep.mubr.bf16.mxu0 0
      %692 = vmatmul.mubr.bf16.gmra.mrb[0].mxu0 %v599
      %v693 = vpop.f32.mrb[0].mxu0
      %v694 = vadd.f32 %v482, %v693
      %v695 = vpop.f32.mrb[0].mxu0
      %v696 = vpop.f32.mrb[0].mxu0
      %v697 = vadd.f32 %v485, %v696
      %v698 = vpop.f32.mrb[0].mxu0
      %699 = vmatprep.mubr.bf16.mxu0 0
      %700 = vmatmul.mubr.bf16.gmra.mrb[0].mxu0 %v602
      %v701 = vpop.f32.mrb[0].mxu0
      %v702 = vadd.f32 %v490, %v701
      %v703 = vpop.f32.mrb[0].mxu0
      %v704 = vpop.f32.mrb[0].mxu0
      %v705 = vadd.f32 %v493, %v704
      %v706 = vpop.f32.mrb[0].mxu0
      %707 = vmatprep.mubr.bf16.mxu0 0
      %708 = vmatmul.mubr.bf16.gmra.mrb[0].mxu0 %v605
      %v709 = vpop.f32.mrb[0].mxu0
      %v710 = vadd.f32 %v498, %v709
      %v711 = vpop.f32.mrb[0].mxu0
      %v712 = vpop.f32.mrb[0].mxu0
      %v713 = vadd.f32 %v501, %v712
      %v714 = vpop.f32.mrb[0].mxu0
      %715 = vmatprep.mubr.bf16.mxu0 0
      %716 = vmatmul.mubr.bf16.gmra.mrb[0].mxu0 %v608
      %v717 = vpop.f32.mrb[0].mxu0
      %v718 = vadd.f32 %v506, %v717
      %v719 = vpop.f32.mrb[0].mxu0
      %v720 = vpop.f32.mrb[0].mxu0
      %v721 = vadd.f32 %v509, %v720
      %v722 = vpop.f32.mrb[0].mxu0
      %723 = vmatprep.mubr.bf16.mxu0 0
      %724 = vmatmul.mubr.bf16.gmra.mrb[0].mxu0 %v611
      %v725 = vpop.f32.mrb[0].mxu0
      %v726 = vadd.f32 %v514, %v725
      %v727 = vpop.f32.mrb[0].mxu0
      %v728 = vpop.f32.mrb[0].mxu0
      %v729 = vadd.f32 %v517, %v728
      %v730 = vpop.f32.mrb[0].mxu0
      %731 = vmatprep.mubr.bf16.mxu0 0
      %732 = vmatmul.mubr.bf16.gmra.mrb[0].mxu0 %v614
      %v733 = vpop.f32.mrb[0].mxu0
      %v734 = vadd.f32 %v522, %v733
      %v735 = vpop.f32.mrb[0].mxu0
      %v736 = vpop.f32.mrb[0].mxu0
      %v737 = vadd.f32 %v525, %v736
      %v738 = vpop.f32.mrb[0].mxu0
      %739 = vmatprep.mubr.bf16.mxu0 0
      %740 = vmatmul.mubr.bf16.gmra.mrb[0].mxu0 %v617
      %v741 = vpop.f32.mrb[0].mxu0
      %v742 = vadd.f32 %v530, %v741
      %v743 = vpop.f32.mrb[0].mxu0
      %v744 = vpop.f32.mrb[0].mxu0
      %v745 = vadd.f32 %v533, %v744
      %v746 = vpop.f32.mrb[0].mxu0
      %747 = vmatprep.mubr.bf16.mxu0 0
      %748 = vmatmul.mubr.bf16.gmra.mrb[0].mxu0 %v620
      %v749 = vpop.f32.mrb[0].mxu0
      %v750 = vadd.f32 %v538, %v749
      %v751 = vpop.f32.mrb[0].mxu0
      %v752 = vpop.f32.mrb[0].mxu0
      %v753 = vadd.f32 %v541, %v752
      %v754 = vpop.f32.mrb[0].mxu0
      %755 = vmatprep.mubr.bf16.mxu0 0
      %756 = vmatmul.mubr.bf16.gmra.mrb[0].mxu0 %v623
      %v757 = vpop.f32.mrb[0].mxu0
      %v758 = vadd.f32 %v546, %v757
      %v759 = vpop.f32.mrb[0].mxu0
      %v760 = vpop.f32.mrb[0].mxu0
      %v761 = vadd.f32 %v549, %v760
      %v762 = vpop.f32.mrb[0].mxu0
      %763 = vmatprep.mubr.bf16.mxu0 0
      %764 = vmatmul.mubr.bf16.gmra.mrb[0].mxu0 %v626
      %v765 = vpop.f32.mrb[0].mxu0
      %v766 = vadd.f32 %v554, %v765
      %v767 = vpop.f32.mrb[0].mxu0
      %v768 = vpop.f32.mrb[0].mxu0
      %v769 = vadd.f32 %v557, %v768
      %v770 = vpop.f32.mrb[0].mxu0
      %771 = vmatprep.mubr.bf16.mxu0 0
      %772 = vmatmul.mubr.bf16.gmra.mrb[0].mxu0 %v629
      %v773 = vpop.f32.mrb[0].mxu0
      %v774 = vadd.f32 %v562, %v773
      %v775 = vpop.f32.mrb[0].mxu0
      %v776 = vpop.f32.mrb[0].mxu0
      %v777 = vadd.f32 %v565, %v776
      %v778 = vpop.f32.mrb[0].mxu0
      %779 = vmatprep.mubr.bf16.mxu0 0
      %780 = vmatmul.mubr.bf16.gmra.mrb[0].mxu0 %v632
      %v781 = vpop.f32.mrb[0].mxu0
      %v782 = vadd.f32 %v570, %v781
      %v783 = vpop.f32.mrb[0].mxu0
      %v784 = vpop.f32.mrb[0].mxu0
      %v785 = vadd.f32 %v573, %v784
      %v786 = vpop.f32.mrb[0].mxu0
      %787 = vmatprep.mubr.bf16.mxu0 0
      %788 = vmatmul.mubr.bf16.gmra.mrb[0].mxu0 %v635
      %v789 = vpop.f32.mrb[0].mxu0
      %v790 = vadd.f32 %v578, %v789
      %v791 = vpop.f32.mrb[0].mxu0
      %v792 = vpop.f32.mrb[0].mxu0
      %v793 = vadd.f32 %v581, %v792
      %v794 = vpop.f32.mrb[0].mxu0
      %795 = vmatprep.mubr.bf16.mxu0 0
      %796 = vmatmul.mubr.bf16.gmra.mrb[0].mxu0 %v638
      %v797 = vpop.f32.mrb[0].mxu0
      %v798 = vadd.f32 %v586, %v797
      %v799 = vpop.f32.mrb[0].mxu0
      %v800 = vpop.f32.mrb[0].mxu0
      %v801 = vadd.f32 %v589, %v800
      %v802 = vpop.f32.mrb[0].mxu0
      %803 = vdwg.mxu0
      %v804 = vld [vmem:[%s273 + $0x2] sm:$0xff]
      %v805 = vld [vmem:[%s273 + $0xa] sm:$0xff]
      %v806 = vld [vmem:[%s273 + $0x1a] sm:$0xff]
      %v807 = vld [vmem:[%s273 + $0x22] sm:$0xff]
      %v808 = vld [vmem:[%s273 + $0x32] sm:$0xff]
      %v809 = vld [vmem:[%s273 + $0x3a] sm:$0xff]
      %v810 = vld [vmem:[%s273 + $0x4a] sm:$0xff]
      %v811 = vld [vmem:[%s273 + $0x52] sm:$0xff]
      %v812 = vld [vmem:[%s273 + $0x62] sm:$0xff]
      %v813 = vld [vmem:[%s273 + $0x6a] sm:$0xff]
      %v814 = vld [vmem:[%s273 + $0x7a] sm:$0xff]
      %v815 = vld [vmem:[%s273 + $0x82] sm:$0xff]
      %v816 = vld [vmem:[%s273 + $0x92] sm:$0xff]
      %v817 = vld [vmem:[%s273 + $0x9a] sm:$0xff]
      %v818 = vld [vmem:[%s273 + $0xaa] sm:$0xff]
      %v819 = vld [vmem:[%s273 + $0xb2] sm:$0xff]
      %v820 = vld [vmem:[%s273 + $0xc2] sm:$0xff]
      %v821 = vld [vmem:[%s273 + $0xca] sm:$0xff]
      %v822 = vld [vmem:[%s273 + $0xda] sm:$0xff]
      %v823 = vld [vmem:[%s273 + $0xe2] sm:$0xff]
      %v824 = vld [vmem:[%s273 + $0xf2] sm:$0xff]
      %v825 = vld [vmem:[%s273 + $0xfa] sm:$0xff]
      %v826 = vld [vmem:[%s273 + $0x10a] sm:$0xff]
      %v827 = vld [vmem:[%s273 + $0x112] sm:$0xff]
      %v828 = vld [vmem:[%s273 + $0x122] sm:$0xff]
      %v829 = vld [vmem:[%s273 + $0x12a] sm:$0xff]
      %v830 = vld [vmem:[%s273 + $0x13a] sm:$0xff]
      %v831 = vld [vmem:[%s273 + $0x142] sm:$0xff]
      %v832 = vld [vmem:[%s273 + $0x152] sm:$0xff]
      %v833 = vld [vmem:[%s273 + $0x15a] sm:$0xff]
      %v834 = vld [vmem:[%s273 + $0x16a] sm:$0xff]
      %v835 = vld [vmem:[%s273 + $0x172] sm:$0xff]
      %v836 = vpack.c.bf16 %v805, %v804
      %v837 = vpack.c.bf16 %v807, %v806
      %v838 = vpack.c.bf16 %v809, %v808
      %v839 = vpack.c.bf16 %v811, %v810
      %v840 = vpack.c.bf16 %v813, %v812
      %v841 = vpack.c.bf16 %v815, %v814
      %v842 = vpack.c.bf16 %v817, %v816
      %v843 = vpack.c.bf16 %v819, %v818
      %v844 = vpack.c.bf16 %v821, %v820
      %v845 = vpack.c.bf16 %v823, %v822
      %v846 = vpack.c.bf16 %v825, %v824
      %v847 = vpack.c.bf16 %v827, %v826
      %v848 = vpack.c.bf16 %v829, %v828
      %v849 = vpack.c.bf16 %v831, %v830
      %v850 = vpack.c.bf16 %v833, %v832
      %v851 = vpack.c.bf16 %v835, %v834
      %v852 = vld [vmem:[%s1 + $0x8] sm:$0xf]
      %v854 = vsel %vm378, %v836, 0
      %v857 = vsel %vm378, %v837, 0
      %v860 = vsel %vm378, %v838, 0
      %v863 = vsel %vm378, %v839, 0
      %v866 = vsel %vm378, %v840, 0
      %v869 = vsel %vm378, %v841, 0
      %v872 = vsel %vm378, %v842, 0
      %v875 = vsel %vm378, %v843, 0
      %v878 = vsel %vm378, %v844, 0
      %v881 = vsel %vm378, %v845, 0
      %v884 = vsel %vm378, %v846, 0
      %v887 = vsel %vm378, %v847, 0
      %v890 = vsel %vm378, %v848, 0
      %v893 = vsel %vm378, %v849, 0
      %v896 = vsel %vm378, %v850, 0
      %v899 = vsel %vm378, %v851, 0
      %v902 = vsel %vm427, %v852, 0
      %904 = vmatprep.subr.bf16.mxu0 0
      %905 = vmatpush1.bf16.msra.mxu0 %v902
      %906 = vmatprep.subr.bf16.mxu0 0
      %907 = vmatpush1.bf16.msra.mxu0 0
      %908 = vmatprep.subr.bf16.mxu0 0
      %909 = vmatpush1.bf16.msra.mxu0 0
      %910 = vmatprep.subr.bf16.mxu0 0
      %911 = vmatpush1.bf16.msra.mxu0 0
      %912 = vmatprep.subr.bf16.mxu0 0
      %913 = vmatpush1.bf16.msra.mxu0 0
      %914 = vmatprep.subr.bf16.mxu0 0
      %915 = vmatpush1.bf16.msra.mxu0 0
      %916 = vmatprep.subr.bf16.mxu0 0
      %917 = vmatpush1.bf16.msra.mxu0 0
      %918 = vmatprep.subr.bf16.mxu0 0
      %919 = vmatpush1.bf16.msra.mxu0 0
      %920 = vmatprep.subr.bf16.mxu0 0
      %921 = vmatpush1.bf16.msra.mxu0 0
      %922 = vmatprep.subr.bf16.mxu0 0
      %923 = vmatpush1.bf16.msra.mxu0 0
      %924 = vmatprep.subr.bf16.mxu0 0
      %925 = vmatpush1.bf16.msra.mxu0 0
      %926 = vmatprep.subr.bf16.mxu0 0
      %927 = vmatpush1.bf16.msra.mxu0 0
      %928 = vmatprep.subr.bf16.mxu0 0
      %929 = vmatpush1.bf16.msra.mxu0 0
      %930 = vmatprep.subr.bf16.mxu0 0
      %931 = vmatpush1.bf16.msra.mxu0 0
      %932 = vmatprep.subr.bf16.mxu0 0
      %933 = vmatpush1.bf16.msra.mxu0 0
      %934 = vmatprep.subr.bf16.mxu0 0
      %935 = vmatpush1.bf16.msra.mxu0 0
      %936 = vmatprep.mubr.bf16.mxu0 0
      %937 = vmatmul.mubr.bf16.gmra.mrb[0].mxu0 %v854
      %v938 = vpop.f32.mrb[0].mxu0
      %v939 = vadd.f32 0.0, %v938
      %v940 = vpop.f32.mrb[0].mxu0
      %v941 = vpop.f32.mrb[0].mxu0
      %v942 = vadd.f32 0.0, %v941
      %v943 = vpop.f32.mrb[0].mxu0
      %944 = vmatprep.mubr.bf16.mxu0 0
      %945 = vmatmul.mubr.bf16.gmra.mrb[0].mxu0 %v857
      %v946 = vpop.f32.mrb[0].mxu0
      %v947 = vadd.f32 0.0, %v946
      %v948 = vpop.f32.mrb[0].mxu0
      %v949 = vpop.f32.mrb[0].mxu0
      %v950 = vadd.f32 0.0, %v949
      %v951 = vpop.f32.mrb[0].mxu0
      %952 = vmatprep.mubr.bf16.mxu0 0
      %953 = vmatmul.mubr.bf16.gmra.mrb[0].mxu0 %v860
      %v954 = vpop.f32.mrb[0].mxu0
      %v955 = vadd.f32 0.0, %v954
      %v956 = vpop.f32.mrb[0].mxu0
      %v957 = vpop.f32.mrb[0].mxu0
      %v958 = vadd.f32 0.0, %v957
      %v959 = vpop.f32.mrb[0].mxu0
      %960 = vmatprep.mubr.bf16.mxu0 0
      %961 = vmatmul.mubr.bf16.gmra.mrb[0].mxu0 %v863
      %v962 = vpop.f32.mrb[0].mxu0
      %v963 = vadd.f32 0.0, %v962
      %v964 = vpop.f32.mrb[0].mxu0
      %v965 = vpop.f32.mrb[0].mxu0
      %v966 = vadd.f32 0.0, %v965
      %v967 = vpop.f32.mrb[0].mxu0
      %968 = vmatprep.mubr.bf16.mxu0 0
      %969 = vmatmul.mubr.bf16.gmra.mrb[0].mxu0 %v866
      %v970 = vpop.f32.mrb[0].mxu0
      %v971 = vadd.f32 0.0, %v970
      %v972 = vpop.f32.mrb[0].mxu0
      %v973 = vpop.f32.mrb[0].mxu0
      %v974 = vadd.f32 0.0, %v973
      %v975 = vpop.f32.mrb[0].mxu0
      %976 = vmatprep.mubr.bf16.mxu0 0
      %977 = vmatmul.mubr.bf16.gmra.mrb[0].mxu0 %v869
      %v978 = vpop.f32.mrb[0].mxu0
      %v979 = vadd.f32 0.0, %v978
      %v980 = vpop.f32.mrb[0].mxu0
      %v981 = vpop.f32.mrb[0].mxu0
      %v982 = vadd.f32 0.0, %v981
      %v983 = vpop.f32.mrb[0].mxu0
      %984 = vmatprep.mubr.bf16.mxu0 0
      %985 = vmatmul.mubr.bf16.gmra.mrb[0].mxu0 %v872
      %v986 = vpop.f32.mrb[0].mxu0
      %v987 = vadd.f32 0.0, %v986
      %v988 = vpop.f32.mrb[0].mxu0
      %v989 = vpop.f32.mrb[0].mxu0
      %v990 = vadd.f32 0.0, %v989
      %v991 = vpop.f32.mrb[0].mxu0
      %992 = vmatprep.mubr.bf16.mxu0 0
      %993 = vmatmul.mubr.bf16.gmra.mrb[0].mxu0 %v875
      %v994 = vpop.f32.mrb[0].mxu0
      %v995 = vadd.f32 0.0, %v994
      %v996 = vpop.f32.mrb[0].mxu0
      %v997 = vpop.f32.mrb[0].mxu0
      %v998 = vadd.f32 0.0, %v997
      %v999 = vpop.f32.mrb[0].mxu0
      %1000 = vmatprep.mubr.bf16.mxu0 0
      %1001 = vmatmul.mubr.bf16.gmra.mrb[0].mxu0 %v878
      %v1002 = vpop.f32.mrb[0].mxu0
      %v1003 = vadd.f32 0.0, %v1002
      %v1004 = vpop.f32.mrb[0].mxu0
      %v1005 = vpop.f32.mrb[0].mxu0
      %v1006 = vadd.f32 0.0, %v1005
      %v1007 = vpop.f32.mrb[0].mxu0
      %1008 = vmatprep.mubr.bf16.mxu0 0
      %1009 = vmatmul.mubr.bf16.gmra.mrb[0].mxu0 %v881
      %v1010 = vpop.f32.mrb[0].mxu0
      %v1011 = vadd.f32 0.0, %v1010
      %v1012 = vpop.f32.mrb[0].mxu0
      %v1013 = vpop.f32.mrb[0].mxu0
      %v1014 = vadd.f32 0.0, %v1013
      %v1015 = vpop.f32.mrb[0].mxu0
      %1016 = vmatprep.mubr.bf16.mxu0 0
      %1017 = vmatmul.mubr.bf16.gmra.mrb[0].mxu0 %v884
      %v1018 = vpop.f32.mrb[0].mxu0
      %v1019 = vadd.f32 0.0, %v1018
      %v1020 = vpop.f32.mrb[0].mxu0
      %v1021 = vpop.f32.mrb[0].mxu0
      %v1022 = vadd.f32 0.0, %v1021
      %v1023 = vpop.f32.mrb[0].mxu0
      %1024 = vmatprep.mubr.bf16.mxu0 0
      %1025 = vmatmul.mubr.bf16.gmra.mrb[0].mxu0 %v887
      %v1026 = vpop.f32.mrb[0].mxu0
      %v1027 = vadd.f32 0.0, %v1026
      %v1028 = vpop.f32.mrb[0].mxu0
      %v1029 = vpop.f32.mrb[0].mxu0
      %v1030 = vadd.f32 0.0, %v1029
      %v1031 = vpop.f32.mrb[0].mxu0
      %1032 = vmatprep.mubr.bf16.mxu0 0
      %1033 = vmatmul.mubr.bf16.gmra.mrb[0].mxu0 %v890
      %v1034 = vpop.f32.mrb[0].mxu0
      %v1035 = vadd.f32 0.0, %v1034
      %v1036 = vpop.f32.mrb[0].mxu0
      %v1037 = vpop.f32.mrb[0].mxu0
      %v1038 = vadd.f32 0.0, %v1037
      %v1039 = vpop.f32.mrb[0].mxu0
      %1040 = vmatprep.mubr.bf16.mxu0 0
      %1041 = vmatmul.mubr.bf16.gmra.mrb[0].mxu0 %v893
      %v1042 = vpop.f32.mrb[0].mxu0
      %v1043 = vadd.f32 0.0, %v1042
      %v1044 = vpop.f32.mrb[0].mxu0
      %v1045 = vpop.f32.mrb[0].mxu0
      %v1046 = vadd.f32 0.0, %v1045
      %v1047 = vpop.f32.mrb[0].mxu0
      %1048 = vmatprep.mubr.bf16.mxu0 0
      %1049 = vmatmul.mubr.bf16.gmra.mrb[0].mxu0 %v896
      %v1050 = vpop.f32.mrb[0].mxu0
      %v1051 = vadd.f32 0.0, %v1050
      %v1052 = vpop.f32.mrb[0].mxu0
      %v1053 = vpop.f32.mrb[0].mxu0
      %v1054 = vadd.f32 0.0, %v1053
      %v1055 = vpop.f32.mrb[0].mxu0
      %1056 = vmatprep.mubr.bf16.mxu0 0
      %1057 = vmatmul.mubr.bf16.gmra.mrb[0].mxu0 %v899
      %v1058 = vpop.f32.mrb[0].mxu0
      %v1059 = vadd.f32 0.0, %v1058
      %v1060 = vpop.f32.mrb[0].mxu0
      %v1061 = vpop.f32.mrb[0].mxu0
      %v1062 = vadd.f32 0.0, %v1061
      %v1063 = vpop.f32.mrb[0].mxu0
      %1064 = vdwg.mxu0
      %v1065 = vadd.f32 %v678, %v939
      %v1066 = vadd.f32 %v681, %v942
      %v1067 = vadd.f32 %v686, %v947
      %v1068 = vadd.f32 %v689, %v950
      %v1069 = vadd.f32 %v694, %v955
      %v1070 = vadd.f32 %v697, %v958
      %v1071 = vadd.f32 %v702, %v963
      %v1072 = vadd.f32 %v705, %v966
      %v1073 = vadd.f32 %v710, %v971
      %v1074 = vadd.f32 %v713, %v974
      %v1075 = vadd.f32 %v718, %v979
      %v1076 = vadd.f32 %v721, %v982
      %v1077 = vadd.f32 %v726, %v987
      %v1078 = vadd.f32 %v729, %v990
      %v1079 = vadd.f32 %v734, %v995
      %v1080 = vadd.f32 %v737, %v998
      %v1081 = vadd.f32 %v742, %v1003
      %v1082 = vadd.f32 %v745, %v1006
      %v1083 = vadd.f32 %v750, %v1011
      %v1084 = vadd.f32 %v753, %v1014
      %v1085 = vadd.f32 %v758, %v1019
      %v1086 = vadd.f32 %v761, %v1022
      %v1087 = vadd.f32 %v766, %v1027
      %v1088 = vadd.f32 %v769, %v1030
      %v1089 = vadd.f32 %v774, %v1035
      %v1090 = vadd.f32 %v777, %v1038
      %v1091 = vadd.f32 %v782, %v1043
      %v1092 = vadd.f32 %v785, %v1046
      %v1093 = vadd.f32 %v790, %v1051
      %v1094 = vadd.f32 %v793, %v1054
      %v1095 = vadd.f32 %v798, %v1059
      %v1096 = vadd.f32 %v801, %v1062
      %s1097 = scalar_lea.vmem %s273, 24
      %v1098 = vld [vmem:[%s1097] sm:$0xff]
      %v1099 = vld [vmem:[%s1097 + $0x8] sm:$0xff]
      %v1100 = vld [vmem:[%s1097 + $0x18] sm:$0xff]
      %v1101 = vld [vmem:[%s1097 + $0x20] sm:$0xff]
      %v1102 = vld [vmem:[%s1097 + $0x30] sm:$0xff]
      %v1103 = vld [vmem:[%s1097 + $0x38] sm:$0xff]
      %v1104 = vld [vmem:[%s1097 + $0x48] sm:$0xff]
      %v1105 = vld [vmem:[%s1097 + $0x50] sm:$0xff]
      %v1106 = vld [vmem:[%s1097 + $0x60] sm:$0xff]
      %v1107 = vld [vmem:[%s1097 + $0x68] sm:$0xff]
      %v1108 = vld [vmem:[%s1097 + $0x78] sm:$0xff]
      %v1109 = vld [vmem:[%s1097 + $0x80] sm:$0xff]
      %v1110 = vld [vmem:[%s1097 + $0x90] sm:$0xff]
      %v1111 = vld [vmem:[%s1097 + $0x98] sm:$0xff]
      %v1112 = vld [vmem:[%s1097 + $0xa8] sm:$0xff]
      %v1113 = vld [vmem:[%s1097 + $0xb0] sm:$0xff]
      %v1114 = vld [vmem:[%s1097 + $0xc0] sm:$0xff]
      %v1115 = vld [vmem:[%s1097 + $0xc8] sm:$0xff]
      %v1116 = vld [vmem:[%s1097 + $0xd8] sm:$0xff]
      %v1117 = vld [vmem:[%s1097 + $0xe0] sm:$0xff]
      %v1118 = vld [vmem:[%s1097 + $0xf0] sm:$0xff]
      %v1119 = vld [vmem:[%s1097 + $0xf8] sm:$0xff]
      %v1120 = vld [vmem:[%s1097 + $0x108] sm:$0xff]
      %v1121 = vld [vmem:[%s1097 + $0x110] sm:$0xff]
      %v1122 = vld [vmem:[%s1097 + $0x120] sm:$0xff]
      %v1123 = vld [vmem:[%s1097 + $0x128] sm:$0xff]
      %v1124 = vld [vmem:[%s1097 + $0x138] sm:$0xff]
      %v1125 = vld [vmem:[%s1097 + $0x140] sm:$0xff]
      %v1126 = vld [vmem:[%s1097 + $0x150] sm:$0xff]
      %v1127 = vld [vmem:[%s1097 + $0x158] sm:$0xff]
      %v1128 = vld [vmem:[%s1097 + $0x168] sm:$0xff]
      %v1129 = vld [vmem:[%s1097 + $0x170] sm:$0xff]
      %v1130 = vpack.c.bf16 %v1099, %v1098
      %v1131 = vpack.c.bf16 %v1101, %v1100
      %v1132 = vpack.c.bf16 %v1103, %v1102
      %v1133 = vpack.c.bf16 %v1105, %v1104
      %v1134 = vpack.c.bf16 %v1107, %v1106
      %v1135 = vpack.c.bf16 %v1109, %v1108
      %v1136 = vpack.c.bf16 %v1111, %v1110
      %v1137 = vpack.c.bf16 %v1113, %v1112
      %v1138 = vpack.c.bf16 %v1115, %v1114
      %v1139 = vpack.c.bf16 %v1117, %v1116
      %v1140 = vpack.c.bf16 %v1119, %v1118
      %v1141 = vpack.c.bf16 %v1121, %v1120
      %v1142 = vpack.c.bf16 %v1123, %v1122
      %v1143 = vpack.c.bf16 %v1125, %v1124
      %v1144 = vpack.c.bf16 %v1127, %v1126
      %v1145 = vpack.c.bf16 %v1129, %v1128
      %v1146 = vld [vmem:[%s1 + $0xc] sm:$0xf]
      %v1148 = vsel %vm378, %v1130, 0
      %v1151 = vsel %vm378, %v1131, 0
      %v1154 = vsel %vm378, %v1132, 0
      %v1157 = vsel %vm378, %v1133, 0
      %v1160 = vsel %vm378, %v1134, 0
      %v1163 = vsel %vm378, %v1135, 0
      %v1166 = vsel %vm378, %v1136, 0
      %v1169 = vsel %vm378, %v1137, 0
      %v1172 = vsel %vm378, %v1138, 0
      %v1175 = vsel %vm378, %v1139, 0
      %v1178 = vsel %vm378, %v1140, 0
      %v1181 = vsel %vm378, %v1141, 0
      %v1184 = vsel %vm378, %v1142, 0
      %v1187 = vsel %vm378, %v1143, 0
      %v1190 = vsel %vm378, %v1144, 0
      %v1193 = vsel %vm378, %v1145, 0
      %v1196 = vsel %vm427, %v1146, 0
      %1198 = vmatprep.subr.bf16.mxu0 0
      %1199 = vmatpush1.bf16.msra.mxu0 %v1196
      %1200 = vmatprep.subr.bf16.mxu0 0
      %1201 = vmatpush1.bf16.msra.mxu0 0
      %1202 = vmatprep.subr.bf16.mxu0 0
      %1203 = vmatpush1.bf16.msra.mxu0 0
      %1204 = vmatprep.subr.bf16.mxu0 0
      %1205 = vmatpush1.bf16.msra.mxu0 0
      %1206 = vmatprep.subr.bf16.mxu0 0
      %1207 = vmatpush1.bf16.msra.mxu0 0
      %1208 = vmatprep.subr.bf16.mxu0 0
      %1209 = vmatpush1.bf16.msra.mxu0 0
      %1210 = vmatprep.subr.bf16.mxu0 0
      %1211 = vmatpush1.bf16.msra.mxu0 0
      %1212 = vmatprep.subr.bf16.mxu0 0
      %1213 = vmatpush1.bf16.msra.mxu0 0
      %1214 = vmatprep.subr.bf16.mxu0 0
      %1215 = vmatpush1.bf16.msra.mxu0 0
      %1216 = vmatprep.subr.bf16.mxu0 0
      %1217 = vmatpush1.bf16.msra.mxu0 0
      %1218 = vmatprep.subr.bf16.mxu0 0
      %1219 = vmatpush1.bf16.msra.mxu0 0
      %1220 = vmatprep.subr.bf16.mxu0 0
      %1221 = vmatpush1.bf16.msra.mxu0 0
      %1222 = vmatprep.subr.bf16.mxu0 0
      %1223 = vmatpush1.bf16.msra.mxu0 0
      %1224 = vmatprep.subr.bf16.mxu0 0
      %1225 = vmatpush1.bf16.msra.mxu0 0
      %1226 = vmatprep.subr.bf16.mxu0 0
      %1227 = vmatpush1.bf16.msra.mxu0 0
      %1228 = vmatprep.subr.bf16.mxu0 0
      %1229 = vmatpush1.bf16.msra.mxu0 0
      %1230 = vmatprep.mubr.bf16.mxu0 0
      %1231 = vmatmul.mubr.bf16.gmra.mrb[0].mxu0 %v1148
      %v1232 = vpop.f32.mrb[0].mxu0
      %v1233 = vadd.f32 0.0, %v1232
      %v1234 = vpop.f32.mrb[0].mxu0
      %v1235 = vpop.f32.mrb[0].mxu0
      %v1236 = vadd.f32 0.0, %v1235
      %v1237 = vpop.f32.mrb[0].mxu0
      %1238 = vmatprep.mubr.bf16.mxu0 0
      %1239 = vmatmul.mubr.bf16.gmra.mrb[0].mxu0 %v1151
      %v1240 = vpop.f32.mrb[0].mxu0
      %v1241 = vadd.f32 0.0, %v1240
      %v1242 = vpop.f32.mrb[0].mxu0
      %v1243 = vpop.f32.mrb[0].mxu0
      %v1244 = vadd.f32 0.0, %v1243
      %v1245 = vpop.f32.mrb[0].mxu0
      %1246 = vmatprep.mubr.bf16.mxu0 0
      %1247 = vmatmul.mubr.bf16.gmra.mrb[0].mxu0 %v1154
      %v1248 = vpop.f32.mrb[0].mxu0
      %v1249 = vadd.f32 0.0, %v1248
      %v1250 = vpop.f32.mrb[0].mxu0
      %v1251 = vpop.f32.mrb[0].mxu0
      %v1252 = vadd.f32 0.0, %v1251
      %v1253 = vpop.f32.mrb[0].mxu0
      %1254 = vmatprep.mubr.bf16.mxu0 0
      %1255 = vmatmul.mubr.bf16.gmra.mrb[0].mxu0 %v1157
      %v1256 = vpop.f32.mrb[0].mxu0
      %v1257 = vadd.f32 0.0, %v1256
      %v1258 = vpop.f32.mrb[0].mxu0
      %v1259 = vpop.f32.mrb[0].mxu0
      %v1260 = vadd.f32 0.0, %v1259
      %v1261 = vpop.f32.mrb[0].mxu0
      %1262 = vmatprep.mubr.bf16.mxu0 0
      %1263 = vmatmul.mubr.bf16.gmra.mrb[0].mxu0 %v1160
      %v1264 = vpop.f32.mrb[0].mxu0
      %v1265 = vadd.f32 0.0, %v1264
      %v1266 = vpop.f32.mrb[0].mxu0
      %v1267 = vpop.f32.mrb[0].mxu0
      %v1268 = vadd.f32 0.0, %v1267
      %v1269 = vpop.f32.mrb[0].mxu0
      %1270 = vmatprep.mubr.bf16.mxu0 0
      %1271 = vmatmul.mubr.bf16.gmra.mrb[0].mxu0 %v1163
      %v1272 = vpop.f32.mrb[0].mxu0
      %v1273 = vadd.f32 0.0, %v1272
      %v1274 = vpop.f32.mrb[0].mxu0
      %v1275 = vpop.f32.mrb[0].mxu0
      %v1276 = vadd.f32 0.0, %v1275
      %v1277 = vpop.f32.mrb[0].mxu0
      %1278 = vmatprep.mubr.bf16.mxu0 0
      %1279 = vmatmul.mubr.bf16.gmra.mrb[0].mxu0 %v1166
      %v1280 = vpop.f32.mrb[0].mxu0
      %v1281 = vadd.f32 0.0, %v1280
      %v1282 = vpop.f32.mrb[0].mxu0
      %v1283 = vpop.f32.mrb[0].mxu0
      %v1284 = vadd.f32 0.0, %v1283
      %v1285 = vpop.f32.mrb[0].mxu0
      %1286 = vmatprep.mubr.bf16.mxu0 0
      %1287 = vmatmul.mubr.bf16.gmra.mrb[0].mxu0 %v1169
      %v1288 = vpop.f32.mrb[0].mxu0
      %v1289 = vadd.f32 0.0, %v1288
      %v1290 = vpop.f32.mrb[0].mxu0
      %v1291 = vpop.f32.mrb[0].mxu0
      %v1292 = vadd.f32 0.0, %v1291
      %v1293 = vpop.f32.mrb[0].mxu0
      %1294 = vmatprep.mubr.bf16.mxu0 0
      %1295 = vmatmul.mubr.bf16.gmra.mrb[0].mxu0 %v1172
      %v1296 = vpop.f32.mrb[0].mxu0
      %v1297 = vadd.f32 0.0, %v1296
      %v1298 = vpop.f32.mrb[0].mxu0
      %v1299 = vpop.f32.mrb[0].mxu0
      %v1300 = vadd.f32 0.0, %v1299
      %v1301 = vpop.f32.mrb[0].mxu0
      %1302 = vmatprep.mubr.bf16.mxu0 0
      %1303 = vmatmul.mubr.bf16.gmra.mrb[0].mxu0 %v1175
      %v1304 = vpop.f32.mrb[0].mxu0
      %v1305 = vadd.f32 0.0, %v1304
      %v1306 = vpop.f32.mrb[0].mxu0
      %v1307 = vpop.f32.mrb[0].mxu0
      %v1308 = vadd.f32 0.0, %v1307
      %v1309 = vpop.f32.mrb[0].mxu0
      %1310 = vmatprep.mubr.bf16.mxu0 0
      %1311 = vmatmul.mubr.bf16.gmra.mrb[0].mxu0 %v1178
      %v1312 = vpop.f32.mrb[0].mxu0
      %v1313 = vadd.f32 0.0, %v1312
      %v1314 = vpop.f32.mrb[0].mxu0
      %v1315 = vpop.f32.mrb[0].mxu0
      %v1316 = vadd.f32 0.0, %v1315
      %v1317 = vpop.f32.mrb[0].mxu0
      %1318 = vmatprep.mubr.bf16.mxu0 0
      %1319 = vmatmul.mubr.bf16.gmra.mrb[0].mxu0 %v1181
      %v1320 = vpop.f32.mrb[0].mxu0
      %v1321 = vadd.f32 0.0, %v1320
      %v1322 = vpop.f32.mrb[0].mxu0
      %v1323 = vpop.f32.mrb[0].mxu0
      %v1324 = vadd.f32 0.0, %v1323
      %v1325 = vpop.f32.mrb[0].mxu0
      %1326 = vmatprep.mubr.bf16.mxu0 0
      %1327 = vmatmul.mubr.bf16.gmra.mrb[0].mxu0 %v1184
      %v1328 = vpop.f32.mrb[0].mxu0
      %v1329 = vadd.f32 0.0, %v1328
      %v1330 = vpop.f32.mrb[0].mxu0
      %v1331 = vpop.f32.mrb[0].mxu0
      %v1332 = vadd.f32 0.0, %v1331
      %v1333 = vpop.f32.mrb[0].mxu0
      %1334 = vmatprep.mubr.bf16.mxu0 0
      %1335 = vmatmul.mubr.bf16.gmra.mrb[0].mxu0 %v1187
      %v1336 = vpop.f32.mrb[0].mxu0
      %v1337 = vadd.f32 0.0, %v1336
      %v1338 = vpop.f32.mrb[0].mxu0
      %v1339 = vpop.f32.mrb[0].mxu0
      %v1340 = vadd.f32 0.0, %v1339
      %v1341 = vpop.f32.mrb[0].mxu0
      %1342 = vmatprep.mubr.bf16.mxu0 0
      %1343 = vmatmul.mubr.bf16.gmra.mrb[0].mxu0 %v1190
      %v1344 = vpop.f32.mrb[0].mxu0
      %v1345 = vadd.f32 0.0, %v1344
      %v1346 = vpop.f32.mrb[0].mxu0
      %v1347 = vpop.f32.mrb[0].mxu0
      %v1348 = vadd.f32 0.0, %v1347
      %v1349 = vpop.f32.mrb[0].mxu0
      %1350 = vmatprep.mubr.bf16.mxu0 0
      %1351 = vmatmul.mubr.bf16.gmra.mrb[0].mxu0 %v1193
      %v1352 = vpop.f32.mrb[0].mxu0
      %v1353 = vadd.f32 0.0, %v1352
      %v1354 = vpop.f32.mrb[0].mxu0
      %v1355 = vpop.f32.mrb[0].mxu0
      %v1356 = vadd.f32 0.0, %v1355
      %v1357 = vpop.f32.mrb[0].mxu0
      %1358 = vdwg.mxu0
      %v1359 = vadd.f32 %v1065, %v1233
      %v1360 = vadd.f32 %v1066, %v1236
      %v1361 = vadd.f32 %v1067, %v1241
      %v1362 = vadd.f32 %v1068, %v1244
      %v1363 = vadd.f32 %v1069, %v1249
      %v1364 = vadd.f32 %v1070, %v1252
      %v1365 = vadd.f32 %v1071, %v1257
      %v1366 = vadd.f32 %v1072, %v1260
      %v1367 = vadd.f32 %v1073, %v1265
      %v1368 = vadd.f32 %v1074, %v1268
      %v1369 = vadd.f32 %v1075, %v1273
      %v1370 = vadd.f32 %v1076, %v1276
      %v1371 = vadd.f32 %v1077, %v1281
      %v1372 = vadd.f32 %v1078, %v1284
      %v1373 = vadd.f32 %v1079, %v1289
      %v1374 = vadd.f32 %v1080, %v1292
      %v1375 = vadd.f32 %v1081, %v1297
      %v1376 = vadd.f32 %v1082, %v1300
      %v1377 = vadd.f32 %v1083, %v1305
      %v1378 = vadd.f32 %v1084, %v1308
      %v1379 = vadd.f32 %v1085, %v1313
      %v1380 = vadd.f32 %v1086, %v1316
      %v1381 = vadd.f32 %v1087, %v1321
      %v1382 = vadd.f32 %v1088, %v1324
      %v1383 = vadd.f32 %v1089, %v1329
      %v1384 = vadd.f32 %v1090, %v1332
      %v1385 = vadd.f32 %v1091, %v1337
      %v1386 = vadd.f32 %v1092, %v1340
      %v1387 = vadd.f32 %v1093, %v1345
      %v1388 = vadd.f32 %v1094, %v1348
      %v1389 = vadd.f32 %v1095, %v1353
      %v1390 = vadd.f32 %v1096, %v1356
      %v1391 = vld [vmem:[%s1097 + $0x1] sm:$0xff]
      %v1392 = vld [vmem:[%s1097 + $0x9] sm:$0xff]
      %v1393 = vld [vmem:[%s1097 + $0x19] sm:$0xff]
      %v1394 = vld [vmem:[%s1097 + $0x21] sm:$0xff]
      %v1395 = vld [vmem:[%s1097 + $0x31] sm:$0xff]
      %v1396 = vld [vmem:[%s1097 + $0x39] sm:$0xff]
      %v1397 = vld [vmem:[%s1097 + $0x49] sm:$0xff]
      %v1398 = vld [vmem:[%s1097 + $0x51] sm:$0xff]
      %v1399 = vld [vmem:[%s1097 + $0x61] sm:$0xff]
      %v1400 = vld [vmem:[%s1097 + $0x69] sm:$0xff]
      %v1401 = vld [vmem:[%s1097 + $0x79] sm:$0xff]
      %v1402 = vld [vmem:[%s1097 + $0x81] sm:$0xff]
      %v1403 = vld [vmem:[%s1097 + $0x91] sm:$0xff]
      %v1404 = vld [vmem:[%s1097 + $0x99] sm:$0xff]
      %v1405 = vld [vmem:[%s1097 + $0xa9] sm:$0xff]
      %v1406 = vld [vmem:[%s1097 + $0xb1] sm:$0xff]
      %v1407 = vld [vmem:[%s1097 + $0xc1] sm:$0xff]
      %v1408 = vld [vmem:[%s1097 + $0xc9] sm:$0xff]
      %v1409 = vld [vmem:[%s1097 + $0xd9] sm:$0xff]
      %v1410 = vld [vmem:[%s1097 + $0xe1] sm:$0xff]
      %v1411 = vld [vmem:[%s1097 + $0xf1] sm:$0xff]
      %v1412 = vld [vmem:[%s1097 + $0xf9] sm:$0xff]
      %v1413 = vld [vmem:[%s1097 + $0x109] sm:$0xff]
      %v1414 = vld [vmem:[%s1097 + $0x111] sm:$0xff]
      %v1415 = vld [vmem:[%s1097 + $0x121] sm:$0xff]
      %v1416 = vld [vmem:[%s1097 + $0x129] sm:$0xff]
      %v1417 = vld [vmem:[%s1097 + $0x139] sm:$0xff]
      %v1418 = vld [vmem:[%s1097 + $0x141] sm:$0xff]
      %v1419 = vld [vmem:[%s1097 + $0x151] sm:$0xff]
      %v1420 = vld [vmem:[%s1097 + $0x159] sm:$0xff]
      %v1421 = vld [vmem:[%s1097 + $0x169] sm:$0xff]
      %v1422 = vld [vmem:[%s1097 + $0x171] sm:$0xff]
      %v1423 = vpack.c.bf16 %v1392, %v1391
      %v1424 = vpack.c.bf16 %v1394, %v1393
      %v1425 = vpack.c.bf16 %v1396, %v1395
      %v1426 = vpack.c.bf16 %v1398, %v1397
      %v1427 = vpack.c.bf16 %v1400, %v1399
      %v1428 = vpack.c.bf16 %v1402, %v1401
      %v1429 = vpack.c.bf16 %v1404, %v1403
      %v1430 = vpack.c.bf16 %v1406, %v1405
      %v1431 = vpack.c.bf16 %v1408, %v1407
      %v1432 = vpack.c.bf16 %v1410, %v1409
      %v1433 = vpack.c.bf16 %v1412, %v1411
      %v1434 = vpack.c.bf16 %v1414, %v1413
      %v1435 = vpack.c.bf16 %v1416, %v1415
      %v1436 = vpack.c.bf16 %v1418, %v1417
      %v1437 = vpack.c.bf16 %v1420, %v1419
      %v1438 = vpack.c.bf16 %v1422, %v1421
      %v1439 = vld [vmem:[%s1 + $0x10] sm:$0xf]
      %v1441 = vsel %vm378, %v1423, 0
      %v1444 = vsel %vm378, %v1424, 0
      %v1447 = vsel %vm378, %v1425, 0
      %v1450 = vsel %vm378, %v1426, 0
      %v1453 = vsel %vm378, %v1427, 0
      %v1456 = vsel %vm378, %v1428, 0
      %v1459 = vsel %vm378, %v1429, 0
      %v1462 = vsel %vm378, %v1430, 0
      %v1465 = vsel %vm378, %v1431, 0
      %v1468 = vsel %vm378, %v1432, 0
      %v1471 = vsel %vm378, %v1433, 0
      %v1474 = vsel %vm378, %v1434, 0
      %v1477 = vsel %vm378, %v1435, 0
      %v1480 = vsel %vm378, %v1436, 0
      %v1483 = vsel %vm378, %v1437, 0
      %v1486 = vsel %vm378, %v1438, 0
      %v1489 = vsel %vm427, %v1439, 0
      %1491 = vmatprep.subr.bf16.mxu0 0
      %1492 = vmatpush1.bf16.msra.mxu0 %v1489
      %1493 = vmatprep.subr.bf16.mxu0 0
      %1494 = vmatpush1.bf16.msra.mxu0 0
      %1495 = vmatprep.subr.bf16.mxu0 0
      %1496 = vmatpush1.bf16.msra.mxu0 0
      %1497 = vmatprep.subr.bf16.mxu0 0
      %1498 = vmatpush1.bf16.msra.mxu0 0
      %1499 = vmatprep.subr.bf16.mxu0 0
      %1500 = vmatpush1.bf16.msra.mxu0 0
      %1501 = vmatprep.subr.bf16.mxu0 0
      %1502 = vmatpush1.bf16.msra.mxu0 0
      %1503 = vmatprep.subr.bf16.mxu0 0
      %1504 = vmatpush1.bf16.msra.mxu0 0
      %1505 = vmatprep.subr.bf16.mxu0 0
      %1506 = vmatpush1.bf16.msra.mxu0 0
      %1507 = vmatprep.subr.bf16.mxu0 0
      %1508 = vmatpush1.bf16.msra.mxu0 0
      %1509 = vmatprep.subr.bf16.mxu0 0
      %1510 = vmatpush1.bf16.msra.mxu0 0
      %1511 = vmatprep.subr.bf16.mxu0 0
      %1512 = vmatpush1.bf16.msra.mxu0 0
      %1513 = vmatprep.subr.bf16.mxu0 0
      %1514 = vmatpush1.bf16.msra.mxu0 0
      %1515 = vmatprep.subr.bf16.mxu0 0
      %1516 = vmatpush1.bf16.msra.mxu0 0
      %1517 = vmatprep.subr.bf16.mxu0 0
      %1518 = vmatpush1.bf16.msra.mxu0 0
      %1519 = vmatprep.subr.bf16.mxu0 0
      %1520 = vmatpush1.bf16.msra.mxu0 0
      %1521 = vmatprep.subr.bf16.mxu0 0
      %1522 = vmatpush1.bf16.msra.mxu0 0
      %1523 = vmatprep.mubr.bf16.mxu0 0
      %1524 = vmatmul.mubr.bf16.gmra.mrb[0].mxu0 %v1441
      %v1525 = vpop.f32.mrb[0].mxu0
      %v1526 = vadd.f32 0.0, %v1525
      %v1527 = vpop.f32.mrb[0].mxu0
      %v1528 = vpop.f32.mrb[0].mxu0
      %v1529 = vadd.f32 0.0, %v1528
      %v1530 = vpop.f32.mrb[0].mxu0
      %1531 = vmatprep.mubr.bf16.mxu0 0
      %1532 = vmatmul.mubr.bf16.gmra.mrb[0].mxu0 %v1444
      %v1533 = vpop.f32.mrb[0].mxu0
      %v1534 = vadd.f32 0.0, %v1533
      %v1535 = vpop.f32.mrb[0].mxu0
      %v1536 = vpop.f32.mrb[0].mxu0
      %v1537 = vadd.f32 0.0, %v1536
      %v1538 = vpop.f32.mrb[0].mxu0
      %1539 = vmatprep.mubr.bf16.mxu0 0
      %1540 = vmatmul.mubr.bf16.gmra.mrb[0].mxu0 %v1447
      %v1541 = vpop.f32.mrb[0].mxu0
      %v1542 = vadd.f32 0.0, %v1541
      %v1543 = vpop.f32.mrb[0].mxu0
      %v1544 = vpop.f32.mrb[0].mxu0
      %v1545 = vadd.f32 0.0, %v1544
      %v1546 = vpop.f32.mrb[0].mxu0
      %1547 = vmatprep.mubr.bf16.mxu0 0
      %1548 = vmatmul.mubr.bf16.gmra.mrb[0].mxu0 %v1450
      %v1549 = vpop.f32.mrb[0].mxu0
      %v1550 = vadd.f32 0.0, %v1549
      %v1551 = vpop.f32.mrb[0].mxu0
      %v1552 = vpop.f32.mrb[0].mxu0
      %v1553 = vadd.f32 0.0, %v1552
      %v1554 = vpop.f32.mrb[0].mxu0
      %1555 = vmatprep.mubr.bf16.mxu0 0
      %1556 = vmatmul.mubr.bf16.gmra.mrb[0].mxu0 %v1453
      %v1557 = vpop.f32.mrb[0].mxu0
      %v1558 = vadd.f32 0.0, %v1557
      %v1559 = vpop.f32.mrb[0].mxu0
      %v1560 = vpop.f32.mrb[0].mxu0
      %v1561 = vadd.f32 0.0, %v1560
      %v1562 = vpop.f32.mrb[0].mxu0
      %1563 = vmatprep.mubr.bf16.mxu0 0
      %1564 = vmatmul.mubr.bf16.gmra.mrb[0].mxu0 %v1456
      %v1565 = vpop.f32.mrb[0].mxu0
      %v1566 = vadd.f32 0.0, %v1565
      %v1567 = vpop.f32.mrb[0].mxu0
      %v1568 = vpop.f32.mrb[0].mxu0
      %v1569 = vadd.f32 0.0, %v1568
      %v1570 = vpop.f32.mrb[0].mxu0
      %1571 = vmatprep.mubr.bf16.mxu0 0
      %1572 = vmatmul.mubr.bf16.gmra.mrb[0].mxu0 %v1459
      %v1573 = vpop.f32.mrb[0].mxu0
      %v1574 = vadd.f32 0.0, %v1573
      %v1575 = vpop.f32.mrb[0].mxu0
      %v1576 = vpop.f32.mrb[0].mxu0
      %v1577 = vadd.f32 0.0, %v1576
      %v1578 = vpop.f32.mrb[0].mxu0
      %1579 = vmatprep.mubr.bf16.mxu0 0
      %1580 = vmatmul.mubr.bf16.gmra.mrb[0].mxu0 %v1462
      %v1581 = vpop.f32.mrb[0].mxu0
      %v1582 = vadd.f32 0.0, %v1581
      %v1583 = vpop.f32.mrb[0].mxu0
      %v1584 = vpop.f32.mrb[0].mxu0
      %v1585 = vadd.f32 0.0, %v1584
      %v1586 = vpop.f32.mrb[0].mxu0
      %1587 = vmatprep.mubr.bf16.mxu0 0
      %1588 = vmatmul.mubr.bf16.gmra.mrb[0].mxu0 %v1465
      %v1589 = vpop.f32.mrb[0].mxu0
      %v1590 = vadd.f32 0.0, %v1589
      %v1591 = vpop.f32.mrb[0].mxu0
      %v1592 = vpop.f32.mrb[0].mxu0
      %v1593 = vadd.f32 0.0, %v1592
      %v1594 = vpop.f32.mrb[0].mxu0
      %1595 = vmatprep.mubr.bf16.mxu0 0
      %1596 = vmatmul.mubr.bf16.gmra.mrb[0].mxu0 %v1468
      %v1597 = vpop.f32.mrb[0].mxu0
      %v1598 = vadd.f32 0.0, %v1597
      %v1599 = vpop.f32.mrb[0].mxu0
      %v1600 = vpop.f32.mrb[0].mxu0
      %v1601 = vadd.f32 0.0, %v1600
      %v1602 = vpop.f32.mrb[0].mxu0
      %1603 = vmatprep.mubr.bf16.mxu0 0
      %1604 = vmatmul.mubr.bf16.gmra.mrb[0].mxu0 %v1471
      %v1605 = vpop.f32.mrb[0].mxu0
      %v1606 = vadd.f32 0.0, %v1605
      %v1607 = vpop.f32.mrb[0].mxu0
      %v1608 = vpop.f32.mrb[0].mxu0
      %v1609 = vadd.f32 0.0, %v1608
      %v1610 = vpop.f32.mrb[0].mxu0
      %1611 = vmatprep.mubr.bf16.mxu0 0
      %1612 = vmatmul.mubr.bf16.gmra.mrb[0].mxu0 %v1474
      %v1613 = vpop.f32.mrb[0].mxu0
      %v1614 = vadd.f32 0.0, %v1613
      %v1615 = vpop.f32.mrb[0].mxu0
      %v1616 = vpop.f32.mrb[0].mxu0
      %v1617 = vadd.f32 0.0, %v1616
      %v1618 = vpop.f32.mrb[0].mxu0
      %1619 = vmatprep.mubr.bf16.mxu0 0
      %1620 = vmatmul.mubr.bf16.gmra.mrb[0].mxu0 %v1477
      %v1621 = vpop.f32.mrb[0].mxu0
      %v1622 = vadd.f32 0.0, %v1621
      %v1623 = vpop.f32.mrb[0].mxu0
      %v1624 = vpop.f32.mrb[0].mxu0
      %v1625 = vadd.f32 0.0, %v1624
      %v1626 = vpop.f32.mrb[0].mxu0
      %1627 = vmatprep.mubr.bf16.mxu0 0
      %1628 = vmatmul.mubr.bf16.gmra.mrb[0].mxu0 %v1480
      %v1629 = vpop.f32.mrb[0].mxu0
      %v1630 = vadd.f32 0.0, %v1629
      %v1631 = vpop.f32.mrb[0].mxu0
      %v1632 = vpop.f32.mrb[0].mxu0
      %v1633 = vadd.f32 0.0, %v1632
      %v1634 = vpop.f32.mrb[0].mxu0
      %1635 = vmatprep.mubr.bf16.mxu0 0
      %1636 = vmatmul.mubr.bf16.gmra.mrb[0].mxu0 %v1483
      %v1637 = vpop.f32.mrb[0].mxu0
      %v1638 = vadd.f32 0.0, %v1637
      %v1639 = vpop.f32.mrb[0].mxu0
      %v1640 = vpop.f32.mrb[0].mxu0
      %v1641 = vadd.f32 0.0, %v1640
      %v1642 = vpop.f32.mrb[0].mxu0
      %1643 = vmatprep.mubr.bf16.mxu0 0
      %1644 = vmatmul.mubr.bf16.gmra.mrb[0].mxu0 %v1486
      %v1645 = vpop.f32.mrb[0].mxu0
      %v1646 = vadd.f32 0.0, %v1645
      %v1647 = vpop.f32.mrb[0].mxu0
      %v1648 = vpop.f32.mrb[0].mxu0
      %v1649 = vadd.f32 0.0, %v1648
      %v1650 = vpop.f32.mrb[0].mxu0
      %1651 = vdwg.mxu0
      %v1652 = vadd.f32 %v1359, %v1526
      %v1653 = vadd.f32 %v1360, %v1529
      %v1654 = vadd.f32 %v1361, %v1534
      %v1655 = vadd.f32 %v1362, %v1537
      %v1656 = vadd.f32 %v1363, %v1542
      %v1657 = vadd.f32 %v1364, %v1545
      %v1658 = vadd.f32 %v1365, %v1550
      %v1659 = vadd.f32 %v1366, %v1553
      %v1660 = vadd.f32 %v1367, %v1558
      %v1661 = vadd.f32 %v1368, %v1561
      %v1662 = vadd.f32 %v1369, %v1566
      %v1663 = vadd.f32 %v1370, %v1569
      %v1664 = vadd.f32 %v1371, %v1574
      %v1665 = vadd.f32 %v1372, %v1577
      %v1666 = vadd.f32 %v1373, %v1582
      %v1667 = vadd.f32 %v1374, %v1585
      %v1668 = vadd.f32 %v1375, %v1590
      %v1669 = vadd.f32 %v1376, %v1593
      %v1670 = vadd.f32 %v1377, %v1598
      %v1671 = vadd.f32 %v1378, %v1601
      %v1672 = vadd.f32 %v1379, %v1606
      %v1673 = vadd.f32 %v1380, %v1609
      %v1674 = vadd.f32 %v1381, %v1614
      %v1675 = vadd.f32 %v1382, %v1617
      %v1676 = vadd.f32 %v1383, %v1622
      %v1677 = vadd.f32 %v1384, %v1625
      %v1678 = vadd.f32 %v1385, %v1630
      %v1679 = vadd.f32 %v1386, %v1633
      %v1680 = vadd.f32 %v1387, %v1638
      %v1681 = vadd.f32 %v1388, %v1641
      %v1682 = vadd.f32 %v1389, %v1646
      %v1683 = vadd.f32 %v1390, %v1649
      %v1684 = vld [vmem:[%s1097 + $0x2] sm:$0xff]
      %v1685 = vld [vmem:[%s1097 + $0xa] sm:$0xff]
      %v1686 = vld [vmem:[%s1097 + $0x1a] sm:$0xff]
      %v1687 = vld [vmem:[%s1097 + $0x22] sm:$0xff]
      %v1688 = vld [vmem:[%s1097 + $0x32] sm:$0xff]
      %v1689 = vld [vmem:[%s1097 + $0x3a] sm:$0xff]
      %v1690 = vld [vmem:[%s1097 + $0x4a] sm:$0xff]
      %v1691 = vld [vmem:[%s1097 + $0x52] sm:$0xff]
      %v1692 = vld [vmem:[%s1097 + $0x62] sm:$0xff]
      %v1693 = vld [vmem:[%s1097 + $0x6a] sm:$0xff]
      %v1694 = vld [vmem:[%s1097 + $0x7a] sm:$0xff]
      %v1695 = vld [vmem:[%s1097 + $0x82] sm:$0xff]
      %v1696 = vld [vmem:[%s1097 + $0x92] sm:$0xff]
      %v1697 = vld [vmem:[%s1097 + $0x9a] sm:$0xff]
      %v1698 = vld [vmem:[%s1097 + $0xaa] sm:$0xff]
      %v1699 = vld [vmem:[%s1097 + $0xb2] sm:$0xff]
      %v1700 = vld [vmem:[%s1097 + $0xc2] sm:$0xff]
      %v1701 = vld [vmem:[%s1097 + $0xca] sm:$0xff]
      %v1702 = vld [vmem:[%s1097 + $0xda] sm:$0xff]
      %v1703 = vld [vmem:[%s1097 + $0xe2] sm:$0xff]
      %v1704 = vld [vmem:[%s1097 + $0xf2] sm:$0xff]
      %v1705 = vld [vmem:[%s1097 + $0xfa] sm:$0xff]
      %v1706 = vld [vmem:[%s1097 + $0x10a] sm:$0xff]
      %v1707 = vld [vmem:[%s1097 + $0x112] sm:$0xff]
      %v1708 = vld [vmem:[%s1097 + $0x122] sm:$0xff]
      %v1709 = vld [vmem:[%s1097 + $0x12a] sm:$0xff]
      %v1710 = vld [vmem:[%s1097 + $0x13a] sm:$0xff]
      %v1711 = vld [vmem:[%s1097 + $0x142] sm:$0xff]
      %v1712 = vld [vmem:[%s1097 + $0x152] sm:$0xff]
      %v1713 = vld [vmem:[%s1097 + $0x15a] sm:$0xff]
      %v1714 = vld [vmem:[%s1097 + $0x16a] sm:$0xff]
      %v1715 = vld [vmem:[%s1097 + $0x172] sm:$0xff]
      %v1716 = vpack.c.bf16 %v1685, %v1684
      %v1717 = vpack.c.bf16 %v1687, %v1686
      %v1718 = vpack.c.bf16 %v1689, %v1688
      %v1719 = vpack.c.bf16 %v1691, %v1690
      %v1720 = vpack.c.bf16 %v1693, %v1692
      %v1721 = vpack.c.bf16 %v1695, %v1694
      %v1722 = vpack.c.bf16 %v1697, %v1696
      %v1723 = vpack.c.bf16 %v1699, %v1698
      %v1724 = vpack.c.bf16 %v1701, %v1700
      %v1725 = vpack.c.bf16 %v1703, %v1702
      %v1726 = vpack.c.bf16 %v1705, %v1704
      %v1727 = vpack.c.bf16 %v1707, %v1706
      %v1728 = vpack.c.bf16 %v1709, %v1708
      %v1729 = vpack.c.bf16 %v1711, %v1710
      %v1730 = vpack.c.bf16 %v1713, %v1712
      %v1731 = vpack.c.bf16 %v1715, %v1714
      %v1732 = vld [vmem:[%s1 + $0x14] sm:$0xf]
      %v1734 = vsel %vm378, %v1716, 0
      %v1737 = vsel %vm378, %v1717, 0
      %v1740 = vsel %vm378, %v1718, 0
      %v1743 = vsel %vm378, %v1719, 0
      %v1746 = vsel %vm378, %v1720, 0
      %v1749 = vsel %vm378, %v1721, 0
      %v1752 = vsel %vm378, %v1722, 0
      %v1755 = vsel %vm378, %v1723, 0
      %v1758 = vsel %vm378, %v1724, 0
      %v1761 = vsel %vm378, %v1725, 0
      %v1764 = vsel %vm378, %v1726, 0
      %v1767 = vsel %vm378, %v1727, 0
      %v1770 = vsel %vm378, %v1728, 0
      %v1773 = vsel %vm378, %v1729, 0
      %v1776 = vsel %vm378, %v1730, 0
      %v1779 = vsel %vm378, %v1731, 0
      %v1782 = vsel %vm427, %v1732, 0
      %1784 = vmatprep.subr.bf16.mxu0 0
      %1785 = vmatpush1.bf16.msra.mxu0 %v1782
      %1786 = vmatprep.subr.bf16.mxu0 0
      %1787 = vmatpush1.bf16.msra.mxu0 0
      %1788 = vmatprep.subr.bf16.mxu0 0
      %1789 = vmatpush1.bf16.msra.mxu0 0
      %1790 = vmatprep.subr.bf16.mxu0 0
      %1791 = vmatpush1.bf16.msra.mxu0 0
      %1792 = vmatprep.subr.bf16.mxu0 0
      %1793 = vmatpush1.bf16.msra.mxu0 0
      %1794 = vmatprep.subr.bf16.mxu0 0
      %1795 = vmatpush1.bf16.msra.mxu0 0
      %1796 = vmatprep.subr.bf16.mxu0 0
      %1797 = vmatpush1.bf16.msra.mxu0 0
      %1798 = vmatprep.subr.bf16.mxu0 0
      %1799 = vmatpush1.bf16.msra.mxu0 0
      %1800 = vmatprep.subr.bf16.mxu0 0
      %1801 = vmatpush1.bf16.msra.mxu0 0
      %1802 = vmatprep.subr.bf16.mxu0 0
      %1803 = vmatpush1.bf16.msra.mxu0 0
      %1804 = vmatprep.subr.bf16.mxu0 0
      %1805 = vmatpush1.bf16.msra.mxu0 0
      %1806 = vmatprep.subr.bf16.mxu0 0
      %1807 = vmatpush1.bf16.msra.mxu0 0
      %1808 = vmatprep.subr.bf16.mxu0 0
      %1809 = vmatpush1.bf16.msra.mxu0 0
      %1810 = vmatprep.subr.bf16.mxu0 0
      %1811 = vmatpush1.bf16.msra.mxu0 0
      %1812 = vmatprep.subr.bf16.mxu0 0
      %1813 = vmatpush1.bf16.msra.mxu0 0
      %1814 = vmatprep.subr.bf16.mxu0 0
      %1815 = vmatpush1.bf16.msra.mxu0 0
      %1816 = vmatprep.mubr.bf16.mxu0 0
      %1817 = vmatmul.mubr.bf16.gmra.mrb[0].mxu0 %v1734
      %v1818 = vpop.f32.mrb[0].mxu0
      %v1819 = vadd.f32 0.0, %v1818
      %v1820 = vpop.f32.mrb[0].mxu0
      %v1821 = vpop.f32.mrb[0].mxu0
      %v1822 = vadd.f32 0.0, %v1821
      %v1823 = vpop.f32.mrb[0].mxu0
      %1824 = vmatprep.mubr.bf16.mxu0 0
      %1825 = vmatmul.mubr.bf16.gmra.mrb[0].mxu0 %v1737
      %v1826 = vpop.f32.mrb[0].mxu0
      %v1827 = vadd.f32 0.0, %v1826
      %v1828 = vpop.f32.mrb[0].mxu0
      %v1829 = vpop.f32.mrb[0].mxu0
      %v1830 = vadd.f32 0.0, %v1829
      %v1831 = vpop.f32.mrb[0].mxu0
      %1832 = vmatprep.mubr.bf16.mxu0 0
      %1833 = vmatmul.mubr.bf16.gmra.mrb[0].mxu0 %v1740
      %v1834 = vpop.f32.mrb[0].mxu0
      %v1835 = vadd.f32 0.0, %v1834
      %v1836 = vpop.f32.mrb[0].mxu0
      %v1837 = vpop.f32.mrb[0].mxu0
      %v1838 = vadd.f32 0.0, %v1837
      %v1839 = vpop.f32.mrb[0].mxu0
      %1840 = vmatprep.mubr.bf16.mxu0 0
      %1841 = vmatmul.mubr.bf16.gmra.mrb[0].mxu0 %v1743
      %v1842 = vpop.f32.mrb[0].mxu0
      %v1843 = vadd.f32 0.0, %v1842
      %v1844 = vpop.f32.mrb[0].mxu0
      %v1845 = vpop.f32.mrb[0].mxu0
      %v1846 = vadd.f32 0.0, %v1845
      %v1847 = vpop.f32.mrb[0].mxu0
      %1848 = vmatprep.mubr.bf16.mxu0 0
      %1849 = vmatmul.mubr.bf16.gmra.mrb[0].mxu0 %v1746
      %v1850 = vpop.f32.mrb[0].mxu0
      %v1851 = vadd.f32 0.0, %v1850
      %v1852 = vpop.f32.mrb[0].mxu0
      %v1853 = vpop.f32.mrb[0].mxu0
      %v1854 = vadd.f32 0.0, %v1853
      %v1855 = vpop.f32.mrb[0].mxu0
      %1856 = vmatprep.mubr.bf16.mxu0 0
      %1857 = vmatmul.mubr.bf16.gmra.mrb[0].mxu0 %v1749
      %v1858 = vpop.f32.mrb[0].mxu0
      %v1859 = vadd.f32 0.0, %v1858
      %v1860 = vpop.f32.mrb[0].mxu0
      %v1861 = vpop.f32.mrb[0].mxu0
      %v1862 = vadd.f32 0.0, %v1861
      %v1863 = vpop.f32.mrb[0].mxu0
      %1864 = vmatprep.mubr.bf16.mxu0 0
      %1865 = vmatmul.mubr.bf16.gmra.mrb[0].mxu0 %v1752
      %v1866 = vpop.f32.mrb[0].mxu0
      %v1867 = vadd.f32 0.0, %v1866
      %v1868 = vpop.f32.mrb[0].mxu0
      %v1869 = vpop.f32.mrb[0].mxu0
      %v1870 = vadd.f32 0.0, %v1869
      %v1871 = vpop.f32.mrb[0].mxu0
      %1872 = vmatprep.mubr.bf16.mxu0 0
      %1873 = vmatmul.mubr.bf16.gmra.mrb[0].mxu0 %v1755
      %v1874 = vpop.f32.mrb[0].mxu0
      %v1875 = vadd.f32 0.0, %v1874
      %v1876 = vpop.f32.mrb[0].mxu0
      %v1877 = vpop.f32.mrb[0].mxu0
      %v1878 = vadd.f32 0.0, %v1877
      %v1879 = vpop.f32.mrb[0].mxu0
      %1880 = vmatprep.mubr.bf16.mxu0 0
      %1881 = vmatmul.mubr.bf16.gmra.mrb[0].mxu0 %v1758
      %v1882 = vpop.f32.mrb[0].mxu0
      %v1883 = vadd.f32 0.0, %v1882
      %v1884 = vpop.f32.mrb[0].mxu0
      %v1885 = vpop.f32.mrb[0].mxu0
      %v1886 = vadd.f32 0.0, %v1885
      %v1887 = vpop.f32.mrb[0].mxu0
      %1888 = vmatprep.mubr.bf16.mxu0 0
      %1889 = vmatmul.mubr.bf16.gmra.mrb[0].mxu0 %v1761
      %v1890 = vpop.f32.mrb[0].mxu0
      %v1891 = vadd.f32 0.0, %v1890
      %v1892 = vpop.f32.mrb[0].mxu0
      %v1893 = vpop.f32.mrb[0].mxu0
      %v1894 = vadd.f32 0.0, %v1893
      %v1895 = vpop.f32.mrb[0].mxu0
      %1896 = vmatprep.mubr.bf16.mxu0 0
      %1897 = vmatmul.mubr.bf16.gmra.mrb[0].mxu0 %v1764
      %v1898 = vpop.f32.mrb[0].mxu0
      %v1899 = vadd.f32 0.0, %v1898
      %v1900 = vpop.f32.mrb[0].mxu0
      %v1901 = vpop.f32.mrb[0].mxu0
      %v1902 = vadd.f32 0.0, %v1901
      %v1903 = vpop.f32.mrb[0].mxu0
      %1904 = vmatprep.mubr.bf16.mxu0 0
      %1905 = vmatmul.mubr.bf16.gmra.mrb[0].mxu0 %v1767
      %v1906 = vpop.f32.mrb[0].mxu0
      %v1907 = vadd.f32 0.0, %v1906
      %v1908 = vpop.f32.mrb[0].mxu0
      %v1909 = vpop.f32.mrb[0].mxu0
      %v1910 = vadd.f32 0.0, %v1909
      %v1911 = vpop.f32.mrb[0].mxu0
      %1912 = vmatprep.mubr.bf16.mxu0 0
      %1913 = vmatmul.mubr.bf16.gmra.mrb[0].mxu0 %v1770
      %v1914 = vpop.f32.mrb[0].mxu0
      %v1915 = vadd.f32 0.0, %v1914
      %v1916 = vpop.f32.mrb[0].mxu0
      %v1917 = vpop.f32.mrb[0].mxu0
      %v1918 = vadd.f32 0.0, %v1917
      %v1919 = vpop.f32.mrb[0].mxu0
      %1920 = vmatprep.mubr.bf16.mxu0 0
      %1921 = vmatmul.mubr.bf16.gmra.mrb[0].mxu0 %v1773
      %v1922 = vpop.f32.mrb[0].mxu0
      %v1923 = vadd.f32 0.0, %v1922
      %v1924 = vpop.f32.mrb[0].mxu0
      %v1925 = vpop.f32.mrb[0].mxu0
      %v1926 = vadd.f32 0.0, %v1925
      %v1927 = vpop.f32.mrb[0].mxu0
      %1928 = vmatprep.mubr.bf16.mxu0 0
      %1929 = vmatmul.mubr.bf16.gmra.mrb[0].mxu0 %v1776
      %v1930 = vpop.f32.mrb[0].mxu0
      %v1931 = vadd.f32 0.0, %v1930
      %v1932 = vpop.f32.mrb[0].mxu0
      %v1933 = vpop.f32.mrb[0].mxu0
      %v1934 = vadd.f32 0.0, %v1933
      %v1935 = vpop.f32.mrb[0].mxu0
      %1936 = vmatprep.mubr.bf16.mxu0 0
      %1937 = vmatmul.mubr.bf16.gmra.mrb[0].mxu0 %v1779
      %v1938 = vpop.f32.mrb[0].mxu0
      %v1939 = vadd.f32 0.0, %v1938
      %v1940 = vpop.f32.mrb[0].mxu0
      %v1941 = vpop.f32.mrb[0].mxu0
      %v1942 = vadd.f32 0.0, %v1941
      %v1943 = vpop.f32.mrb[0].mxu0
      %1944 = vdwg.mxu0
      %v1945 = vadd.f32 %v1652, %v1819
      %v1946 = vadd.f32 %v1653, %v1822
      %v1947 = vadd.f32 %v1654, %v1827
      %v1948 = vadd.f32 %v1655, %v1830
      %v1949 = vadd.f32 %v1656, %v1835
      %v1950 = vadd.f32 %v1657, %v1838
      %v1951 = vadd.f32 %v1658, %v1843
      %v1952 = vadd.f32 %v1659, %v1846
      %v1953 = vadd.f32 %v1660, %v1851
      %v1954 = vadd.f32 %v1661, %v1854
      %v1955 = vadd.f32 %v1662, %v1859
      %v1956 = vadd.f32 %v1663, %v1862
      %v1957 = vadd.f32 %v1664, %v1867
      %v1958 = vadd.f32 %v1665, %v1870
      %v1959 = vadd.f32 %v1666, %v1875
      %v1960 = vadd.f32 %v1667, %v1878
      %v1961 = vadd.f32 %v1668, %v1883
      %v1962 = vadd.f32 %v1669, %v1886
      %v1963 = vadd.f32 %v1670, %v1891
      %v1964 = vadd.f32 %v1671, %v1894
      %v1965 = vadd.f32 %v1672, %v1899
      %v1966 = vadd.f32 %v1673, %v1902
      %v1967 = vadd.f32 %v1674, %v1907
      %v1968 = vadd.f32 %v1675, %v1910
      %v1969 = vadd.f32 %v1676, %v1915
      %v1970 = vadd.f32 %v1677, %v1918
      %v1971 = vadd.f32 %v1678, %v1923
      %v1972 = vadd.f32 %v1679, %v1926
      %v1973 = vadd.f32 %v1680, %v1931
      %v1974 = vadd.f32 %v1681, %v1934
      %v1975 = vadd.f32 %v1682, %v1939
      %v1976 = vadd.f32 %v1683, %v1942
      %s1977 = scalar_lea.vmem %s273, 48
      %v1978 = vld [vmem:[%s1977] sm:$0xff]
      %v1979 = vld [vmem:[%s1977 + $0x8] sm:$0xff]
      %v1980 = vld [vmem:[%s1977 + $0x18] sm:$0xff]
      %v1981 = vld [vmem:[%s1977 + $0x20] sm:$0xff]
      %v1982 = vld [vmem:[%s1977 + $0x30] sm:$0xff]
      %v1983 = vld [vmem:[%s1977 + $0x38] sm:$0xff]
      %v1984 = vld [vmem:[%s1977 + $0x48] sm:$0xff]
      %v1985 = vld [vmem:[%s1977 + $0x50] sm:$0xff]
      %v1986 = vld [vmem:[%s1977 + $0x60] sm:$0xff]
      %v1987 = vld [vmem:[%s1977 + $0x68] sm:$0xff]
      %v1988 = vld [vmem:[%s1977 + $0x78] sm:$0xff]
      %v1989 = vld [vmem:[%s1977 + $0x80] sm:$0xff]
      %v1990 = vld [vmem:[%s1977 + $0x90] sm:$0xff]
      %v1991 = vld [vmem:[%s1977 + $0x98] sm:$0xff]
      %v1992 = vld [vmem:[%s1977 + $0xa8] sm:$0xff]
      %v1993 = vld [vmem:[%s1977 + $0xb0] sm:$0xff]
      %v1994 = vld [vmem:[%s1977 + $0xc0] sm:$0xff]
      %v1995 = vld [vmem:[%s1977 + $0xc8] sm:$0xff]
      %v1996 = vld [vmem:[%s1977 + $0xd8] sm:$0xff]
      %v1997 = vld [vmem:[%s1977 + $0xe0] sm:$0xff]
      %v1998 = vld [vmem:[%s1977 + $0xf0] sm:$0xff]
      %v1999 = vld [vmem:[%s1977 + $0xf8] sm:$0xff]
      %v2000 = vld [vmem:[%s1977 + $0x108] sm:$0xff]
      %v2001 = vld [vmem:[%s1977 + $0x110] sm:$0xff]
      %v2002 = vld [vmem:[%s1977 + $0x120] sm:$0xff]
      %v2003 = vld [vmem:[%s1977 + $0x128] sm:$0xff]
      %v2004 = vld [vmem:[%s1977 + $0x138] sm:$0xff]
      %v2005 = vld [vmem:[%s1977 + $0x140] sm:$0xff]
      %v2006 = vld [vmem:[%s1977 + $0x150] sm:$0xff]
      %v2007 = vld [vmem:[%s1977 + $0x158] sm:$0xff]
      %v2008 = vld [vmem:[%s1977 + $0x168] sm:$0xff]
      %v2009 = vld [vmem:[%s1977 + $0x170] sm:$0xff]
      %v2010 = vpack.c.bf16 %v1979, %v1978
      %v2011 = vpack.c.bf16 %v1981, %v1980
      %v2012 = vpack.c.bf16 %v1983, %v1982
      %v2013 = vpack.c.bf16 %v1985, %v1984
      %v2014 = vpack.c.bf16 %v1987, %v1986
      %v2015 = vpack.c.bf16 %v1989, %v1988
      %v2016 = vpack.c.bf16 %v1991, %v1990
      %v2017 = vpack.c.bf16 %v1993, %v1992
      %v2018 = vpack.c.bf16 %v1995, %v1994
      %v2019 = vpack.c.bf16 %v1997, %v1996
      %v2020 = vpack.c.bf16 %v1999, %v1998
      %v2021 = vpack.c.bf16 %v2001, %v2000
      %v2022 = vpack.c.bf16 %v2003, %v2002
      %v2023 = vpack.c.bf16 %v2005, %v2004
      %v2024 = vpack.c.bf16 %v2007, %v2006
      %v2025 = vpack.c.bf16 %v2009, %v2008
      %v2026 = vld [vmem:[%s1 + $0x18] sm:$0xf]
      %v2028 = vsel %vm378, %v2010, 0
      %v2031 = vsel %vm378, %v2011, 0
      %v2034 = vsel %vm378, %v2012, 0
      %v2037 = vsel %vm378, %v2013, 0
      %v2040 = vsel %vm378, %v2014, 0
      %v2043 = vsel %vm378, %v2015, 0
      %v2046 = vsel %vm378, %v2016, 0
      %v2049 = vsel %vm378, %v2017, 0
      %v2052 = vsel %vm378, %v2018, 0
      %v2055 = vsel %vm378, %v2019, 0
      %v2058 = vsel %vm378, %v2020, 0
      %v2061 = vsel %vm378, %v2021, 0
      %v2064 = vsel %vm378, %v2022, 0
      %v2067 = vsel %vm378, %v2023, 0
      %v2070 = vsel %vm378, %v2024, 0
      %v2073 = vsel %vm378, %v2025, 0
      %v2076 = vsel %vm427, %v2026, 0
      %2078 = vmatprep.subr.bf16.mxu0 0
      %2079 = vmatpush1.bf16.msra.mxu0 %v2076
      %2080 = vmatprep.subr.bf16.mxu0 0
      %2081 = vmatpush1.bf16.msra.mxu0 0
      %2082 = vmatprep.subr.bf16.mxu0 0
      %2083 = vmatpush1.bf16.msra.mxu0 0
      %2084 = vmatprep.subr.bf16.mxu0 0
      %2085 = vmatpush1.bf16.msra.mxu0 0
      %2086 = vmatprep.subr.bf16.mxu0 0
      %2087 = vmatpush1.bf16.msra.mxu0 0
      %2088 = vmatprep.subr.bf16.mxu0 0
      %2089 = vmatpush1.bf16.msra.mxu0 0
      %2090 = vmatprep.subr.bf16.mxu0 0
      %2091 = vmatpush1.bf16.msra.mxu0 0
      %2092 = vmatprep.subr.bf16.mxu0 0
      %2093 = vmatpush1.bf16.msra.mxu0 0
      %2094 = vmatprep.subr.bf16.mxu0 0
      %2095 = vmatpush1.bf16.msra.mxu0 0
      %2096 = vmatprep.subr.bf16.mxu0 0
      %2097 = vmatpush1.bf16.msra.mxu0 0
      %2098 = vmatprep.subr.bf16.mxu0 0
      %2099 = vmatpush1.bf16.msra.mxu0 0
      %2100 = vmatprep.subr.bf16.mxu0 0
      %2101 = vmatpush1.bf16.msra.mxu0 0
      %2102 = vmatprep.subr.bf16.mxu0 0
      %2103 = vmatpush1.bf16.msra.mxu0 0
      %2104 = vmatprep.subr.bf16.mxu0 0
      %2105 = vmatpush1.bf16.msra.mxu0 0
      %2106 = vmatprep.subr.bf16.mxu0 0
      %2107 = vmatpush1.bf16.msra.mxu0 0
      %2108 = vmatprep.subr.bf16.mxu0 0
      %2109 = vmatpush1.bf16.msra.mxu0 0
      %2110 = vmatprep.mubr.bf16.mxu0 0
      %2111 = vmatmul.mubr.bf16.gmra.mrb[0].mxu0 %v2028
      %v2112 = vpop.f32.mrb[0].mxu0
      %v2113 = vadd.f32 0.0, %v2112
      %v2114 = vpop.f32.mrb[0].mxu0
      %v2115 = vpop.f32.mrb[0].mxu0
      %v2116 = vadd.f32 0.0, %v2115
      %v2117 = vpop.f32.mrb[0].mxu0
      %2118 = vmatprep.mubr.bf16.mxu0 0
      %2119 = vmatmul.mubr.bf16.gmra.mrb[0].mxu0 %v2031
      %v2120 = vpop.f32.mrb[0].mxu0
      %v2121 = vadd.f32 0.0, %v2120
      %v2122 = vpop.f32.mrb[0].mxu0
      %v2123 = vpop.f32.mrb[0].mxu0
      %v2124 = vadd.f32 0.0, %v2123
      %v2125 = vpop.f32.mrb[0].mxu0
      %2126 = vmatprep.mubr.bf16.mxu0 0
      %2127 = vmatmul.mubr.bf16.gmra.mrb[0].mxu0 %v2034
      %v2128 = vpop.f32.mrb[0].mxu0
      %v2129 = vadd.f32 0.0, %v2128
      %v2130 = vpop.f32.mrb[0].mxu0
      %v2131 = vpop.f32.mrb[0].mxu0
      %v2132 = vadd.f32 0.0, %v2131
      %v2133 = vpop.f32.mrb[0].mxu0
      %2134 = vmatprep.mubr.bf16.mxu0 0
      %2135 = vmatmul.mubr.bf16.gmra.mrb[0].mxu0 %v2037
      %v2136 = vpop.f32.mrb[0].mxu0
      %v2137 = vadd.f32 0.0, %v2136
      %v2138 = vpop.f32.mrb[0].mxu0
      %v2139 = vpop.f32.mrb[0].mxu0
      %v2140 = vadd.f32 0.0, %v2139
      %v2141 = vpop.f32.mrb[0].mxu0
      %2142 = vmatprep.mubr.bf16.mxu0 0
      %2143 = vmatmul.mubr.bf16.gmra.mrb[0].mxu0 %v2040
      %v2144 = vpop.f32.mrb[0].mxu0
      %v2145 = vadd.f32 0.0, %v2144
      %v2146 = vpop.f32.mrb[0].mxu0
      %v2147 = vpop.f32.mrb[0].mxu0
      %v2148 = vadd.f32 0.0, %v2147
      %v2149 = vpop.f32.mrb[0].mxu0
      %2150 = vmatprep.mubr.bf16.mxu0 0
      %2151 = vmatmul.mubr.bf16.gmra.mrb[0].mxu0 %v2043
      %v2152 = vpop.f32.mrb[0].mxu0
      %v2153 = vadd.f32 0.0, %v2152
      %v2154 = vpop.f32.mrb[0].mxu0
      %v2155 = vpop.f32.mrb[0].mxu0
      %v2156 = vadd.f32 0.0, %v2155
      %v2157 = vpop.f32.mrb[0].mxu0
      %2158 = vmatprep.mubr.bf16.mxu0 0
      %2159 = vmatmul.mubr.bf16.gmra.mrb[0].mxu0 %v2046
      %v2160 = vpop.f32.mrb[0].mxu0
      %v2161 = vadd.f32 0.0, %v2160
      %v2162 = vpop.f32.mrb[0].mxu0
      %v2163 = vpop.f32.mrb[0].mxu0
      %v2164 = vadd.f32 0.0, %v2163
      %v2165 = vpop.f32.mrb[0].mxu0
      %2166 = vmatprep.mubr.bf16.mxu0 0
      %2167 = vmatmul.mubr.bf16.gmra.mrb[0].mxu0 %v2049
      %v2168 = vpop.f32.mrb[0].mxu0
      %v2169 = vadd.f32 0.0, %v2168
      %v2170 = vpop.f32.mrb[0].mxu0
      %v2171 = vpop.f32.mrb[0].mxu0
      %v2172 = vadd.f32 0.0, %v2171
      %v2173 = vpop.f32.mrb[0].mxu0
      %2174 = vmatprep.mubr.bf16.mxu0 0
      %2175 = vmatmul.mubr.bf16.gmra.mrb[0].mxu0 %v2052
      %v2176 = vpop.f32.mrb[0].mxu0
      %v2177 = vadd.f32 0.0, %v2176
      %v2178 = vpop.f32.mrb[0].mxu0
      %v2179 = vpop.f32.mrb[0].mxu0
      %v2180 = vadd.f32 0.0, %v2179
      %v2181 = vpop.f32.mrb[0].mxu0
      %2182 = vmatprep.mubr.bf16.mxu0 0
      %2183 = vmatmul.mubr.bf16.gmra.mrb[0].mxu0 %v2055
      %v2184 = vpop.f32.mrb[0].mxu0
      %v2185 = vadd.f32 0.0, %v2184
      %v2186 = vpop.f32.mrb[0].mxu0
      %v2187 = vpop.f32.mrb[0].mxu0
      %v2188 = vadd.f32 0.0, %v2187
      %v2189 = vpop.f32.mrb[0].mxu0
      %2190 = vmatprep.mubr.bf16.mxu0 0
      %2191 = vmatmul.mubr.bf16.gmra.mrb[0].mxu0 %v2058
      %v2192 = vpop.f32.mrb[0].mxu0
      %v2193 = vadd.f32 0.0, %v2192
      %v2194 = vpop.f32.mrb[0].mxu0
      %v2195 = vpop.f32.mrb[0].mxu0
      %v2196 = vadd.f32 0.0, %v2195
      %v2197 = vpop.f32.mrb[0].mxu0
      %2198 = vmatprep.mubr.bf16.mxu0 0
      %2199 = vmatmul.mubr.bf16.gmra.mrb[0].mxu0 %v2061
      %v2200 = vpop.f32.mrb[0].mxu0
      %v2201 = vadd.f32 0.0, %v2200
      %v2202 = vpop.f32.mrb[0].mxu0
      %v2203 = vpop.f32.mrb[0].mxu0
      %v2204 = vadd.f32 0.0, %v2203
      %v2205 = vpop.f32.mrb[0].mxu0
      %2206 = vmatprep.mubr.bf16.mxu0 0
      %2207 = vmatmul.mubr.bf16.gmra.mrb[0].mxu0 %v2064
      %v2208 = vpop.f32.mrb[0].mxu0
      %v2209 = vadd.f32 0.0, %v2208
      %v2210 = vpop.f32.mrb[0].mxu0
      %v2211 = vpop.f32.mrb[0].mxu0
      %v2212 = vadd.f32 0.0, %v2211
      %v2213 = vpop.f32.mrb[0].mxu0
      %2214 = vmatprep.mubr.bf16.mxu0 0
      %2215 = vmatmul.mubr.bf16.gmra.mrb[0].mxu0 %v2067
      %v2216 = vpop.f32.mrb[0].mxu0
      %v2217 = vadd.f32 0.0, %v2216
      %v2218 = vpop.f32.mrb[0].mxu0
      %v2219 = vpop.f32.mrb[0].mxu0
      %v2220 = vadd.f32 0.0, %v2219
      %v2221 = vpop.f32.mrb[0].mxu0
      %2222 = vmatprep.mubr.bf16.mxu0 0
      %2223 = vmatmul.mubr.bf16.gmra.mrb[0].mxu0 %v2070
      %v2224 = vpop.f32.mrb[0].mxu0
      %v2225 = vadd.f32 0.0, %v2224
      %v2226 = vpop.f32.mrb[0].mxu0
      %v2227 = vpop.f32.mrb[0].mxu0
      %v2228 = vadd.f32 0.0, %v2227
      %v2229 = vpop.f32.mrb[0].mxu0
      %2230 = vmatprep.mubr.bf16.mxu0 0
      %2231 = vmatmul.mubr.bf16.gmra.mrb[0].mxu0 %v2073
      %v2232 = vpop.f32.mrb[0].mxu0
      %v2233 = vadd.f32 0.0, %v2232
      %v2234 = vpop.f32.mrb[0].mxu0
      %v2235 = vpop.f32.mrb[0].mxu0
      %v2236 = vadd.f32 0.0, %v2235
      %v2237 = vpop.f32.mrb[0].mxu0
      %2238 = vdwg.mxu0
      %v2239 = vadd.f32 %v1945, %v2113
      %v2240 = vadd.f32 %v1946, %v2116
      %v2241 = vadd.f32 %v1947, %v2121
      %v2242 = vadd.f32 %v1948, %v2124
      %v2243 = vadd.f32 %v1949, %v2129
      %v2244 = vadd.f32 %v1950, %v2132
      %v2245 = vadd.f32 %v1951, %v2137
      %v2246 = vadd.f32 %v1952, %v2140
      %v2247 = vadd.f32 %v1953, %v2145
      %v2248 = vadd.f32 %v1954, %v2148
      %v2249 = vadd.f32 %v1955, %v2153
      %v2250 = vadd.f32 %v1956, %v2156
      %v2251 = vadd.f32 %v1957, %v2161
      %v2252 = vadd.f32 %v1958, %v2164
      %v2253 = vadd.f32 %v1959, %v2169
      %v2254 = vadd.f32 %v1960, %v2172
      %v2255 = vadd.f32 %v1961, %v2177
      %v2256 = vadd.f32 %v1962, %v2180
      %v2257 = vadd.f32 %v1963, %v2185
      %v2258 = vadd.f32 %v1964, %v2188
      %v2259 = vadd.f32 %v1965, %v2193
      %v2260 = vadd.f32 %v1966, %v2196
      %v2261 = vadd.f32 %v1967, %v2201
      %v2262 = vadd.f32 %v1968, %v2204
      %v2263 = vadd.f32 %v1969, %v2209
      %v2264 = vadd.f32 %v1970, %v2212
      %v2265 = vadd.f32 %v1971, %v2217
      %v2266 = vadd.f32 %v1972, %v2220
      %v2267 = vadd.f32 %v1973, %v2225
      %v2268 = vadd.f32 %v1974, %v2228
      %v2269 = vadd.f32 %v1975, %v2233
      %v2270 = vadd.f32 %v1976, %v2236
      %v2271 = vld [vmem:[%s1977 + $0x1] sm:$0xff]
      %v2272 = vld [vmem:[%s1977 + $0x9] sm:$0xff]
      %v2273 = vld [vmem:[%s1977 + $0x19] sm:$0xff]
      %v2274 = vld [vmem:[%s1977 + $0x21] sm:$0xff]
      %v2275 = vld [vmem:[%s1977 + $0x31] sm:$0xff]
      %v2276 = vld [vmem:[%s1977 + $0x39] sm:$0xff]
      %v2277 = vld [vmem:[%s1977 + $0x49] sm:$0xff]
      %v2278 = vld [vmem:[%s1977 + $0x51] sm:$0xff]
      %v2279 = vld [vmem:[%s1977 + $0x61] sm:$0xff]
      %v2280 = vld [vmem:[%s1977 + $0x69] sm:$0xff]
      %v2281 = vld [vmem:[%s1977 + $0x79] sm:$0xff]
      %v2282 = vld [vmem:[%s1977 + $0x81] sm:$0xff]
      %v2283 = vld [vmem:[%s1977 + $0x91] sm:$0xff]
      %v2284 = vld [vmem:[%s1977 + $0x99] sm:$0xff]
      %v2285 = vld [vmem:[%s1977 + $0xa9] sm:$0xff]
      %v2286 = vld [vmem:[%s1977 + $0xb1] sm:$0xff]
      %v2287 = vld [vmem:[%s1977 + $0xc1] sm:$0xff]
      %v2288 = vld [vmem:[%s1977 + $0xc9] sm:$0xff]
      %v2289 = vld [vmem:[%s1977 + $0xd9] sm:$0xff]
      %v2290 = vld [vmem:[%s1977 + $0xe1] sm:$0xff]
      %v2291 = vld [vmem:[%s1977 + $0xf1] sm:$0xff]
      %v2292 = vld [vmem:[%s1977 + $0xf9] sm:$0xff]
      %v2293 = vld [vmem:[%s1977 + $0x109] sm:$0xff]
      %v2294 = vld [vmem:[%s1977 + $0x111] sm:$0xff]
      %v2295 = vld [vmem:[%s1977 + $0x121] sm:$0xff]
      %v2296 = vld [vmem:[%s1977 + $0x129] sm:$0xff]
      %v2297 = vld [vmem:[%s1977 + $0x139] sm:$0xff]
      %v2298 = vld [vmem:[%s1977 + $0x141] sm:$0xff]
      %v2299 = vld [vmem:[%s1977 + $0x151] sm:$0xff]
      %v2300 = vld [vmem:[%s1977 + $0x159] sm:$0xff]
      %v2301 = vld [vmem:[%s1977 + $0x169] sm:$0xff]
      %v2302 = vld [vmem:[%s1977 + $0x171] sm:$0xff]
      %v2303 = vpack.c.bf16 %v2272, %v2271
      %v2304 = vpack.c.bf16 %v2274, %v2273
      %v2305 = vpack.c.bf16 %v2276, %v2275
      %v2306 = vpack.c.bf16 %v2278, %v2277
      %v2307 = vpack.c.bf16 %v2280, %v2279
      %v2308 = vpack.c.bf16 %v2282, %v2281
      %v2309 = vpack.c.bf16 %v2284, %v2283
      %v2310 = vpack.c.bf16 %v2286, %v2285
      %v2311 = vpack.c.bf16 %v2288, %v2287
      %v2312 = vpack.c.bf16 %v2290, %v2289
      %v2313 = vpack.c.bf16 %v2292, %v2291
      %v2314 = vpack.c.bf16 %v2294, %v2293
      %v2315 = vpack.c.bf16 %v2296, %v2295
      %v2316 = vpack.c.bf16 %v2298, %v2297
      %v2317 = vpack.c.bf16 %v2300, %v2299
      %v2318 = vpack.c.bf16 %v2302, %v2301
      %v2319 = vld [vmem:[%s1 + $0x1c] sm:$0xf]
      %v2321 = vsel %vm378, %v2303, 0
      %v2324 = vsel %vm378, %v2304, 0
      %v2327 = vsel %vm378, %v2305, 0
      %v2330 = vsel %vm378, %v2306, 0
      %v2333 = vsel %vm378, %v2307, 0
      %v2336 = vsel %vm378, %v2308, 0
      %v2339 = vsel %vm378, %v2309, 0
      %v2342 = vsel %vm378, %v2310, 0
      %v2345 = vsel %vm378, %v2311, 0
      %v2348 = vsel %vm378, %v2312, 0
      %v2351 = vsel %vm378, %v2313, 0
      %v2354 = vsel %vm378, %v2314, 0
      %v2357 = vsel %vm378, %v2315, 0
      %v2360 = vsel %vm378, %v2316, 0
      %v2363 = vsel %vm378, %v2317, 0
      %v2366 = vsel %vm378, %v2318, 0
      %v2369 = vsel %vm427, %v2319, 0
      %2371 = vmatprep.subr.bf16.mxu0 0
      %2372 = vmatpush1.bf16.msra.mxu0 %v2369
      %2373 = vmatprep.subr.bf16.mxu0 0
      %2374 = vmatpush1.bf16.msra.mxu0 0
      %2375 = vmatprep.subr.bf16.mxu0 0
      %2376 = vmatpush1.bf16.msra.mxu0 0
      %2377 = vmatprep.subr.bf16.mxu0 0
      %2378 = vmatpush1.bf16.msra.mxu0 0
      %2379 = vmatprep.subr.bf16.mxu0 0
      %2380 = vmatpush1.bf16.msra.mxu0 0
      %2381 = vmatprep.subr.bf16.mxu0 0
      %2382 = vmatpush1.bf16.msra.mxu0 0
      %2383 = vmatprep.subr.bf16.mxu0 0
      %2384 = vmatpush1.bf16.msra.mxu0 0
      %2385 = vmatprep.subr.bf16.mxu0 0
      %2386 = vmatpush1.bf16.msra.mxu0 0
      %2387 = vmatprep.subr.bf16.mxu0 0
      %2388 = vmatpush1.bf16.msra.mxu0 0
      %2389 = vmatprep.subr.bf16.mxu0 0
      %2390 = vmatpush1.bf16.msra.mxu0 0
      %2391 = vmatprep.subr.bf16.mxu0 0
      %2392 = vmatpush1.bf16.msra.mxu0 0
      %2393 = vmatprep.subr.bf16.mxu0 0
      %2394 = vmatpush1.bf16.msra.mxu0 0
      %2395 = vmatprep.subr.bf16.mxu0 0
      %2396 = vmatpush1.bf16.msra.mxu0 0
      %2397 = vmatprep.subr.bf16.mxu0 0
      %2398 = vmatpush1.bf16.msra.mxu0 0
      %2399 = vmatprep.subr.bf16.mxu0 0
      %2400 = vmatpush1.bf16.msra.mxu0 0
      %2401 = vmatprep.subr.bf16.mxu0 0
      %2402 = vmatpush1.bf16.msra.mxu0 0
      %2403 = vmatprep.mubr.bf16.mxu0 0
      %2404 = vmatmul.mubr.bf16.gmra.mrb[0].mxu0 %v2321
      %v2405 = vpop.f32.mrb[0].mxu0
      %v2406 = vadd.f32 0.0, %v2405
      %v2407 = vpop.f32.mrb[0].mxu0
      %v2408 = vpop.f32.mrb[0].mxu0
      %v2409 = vadd.f32 0.0, %v2408
      %v2410 = vpop.f32.mrb[0].mxu0
      %2411 = vmatprep.mubr.bf16.mxu0 0
      %2412 = vmatmul.mubr.bf16.gmra.mrb[0].mxu0 %v2324
      %v2413 = vpop.f32.mrb[0].mxu0
      %v2414 = vadd.f32 0.0, %v2413
      %v2415 = vpop.f32.mrb[0].mxu0
      %v2416 = vpop.f32.mrb[0].mxu0
      %v2417 = vadd.f32 0.0, %v2416
      %v2418 = vpop.f32.mrb[0].mxu0
      %2419 = vmatprep.mubr.bf16.mxu0 0
      %2420 = vmatmul.mubr.bf16.gmra.mrb[0].mxu0 %v2327
      %v2421 = vpop.f32.mrb[0].mxu0
      %v2422 = vadd.f32 0.0, %v2421
      %v2423 = vpop.f32.mrb[0].mxu0
      %v2424 = vpop.f32.mrb[0].mxu0
      %v2425 = vadd.f32 0.0, %v2424
      %v2426 = vpop.f32.mrb[0].mxu0
      %2427 = vmatprep.mubr.bf16.mxu0 0
      %2428 = vmatmul.mubr.bf16.gmra.mrb[0].mxu0 %v2330
      %v2429 = vpop.f32.mrb[0].mxu0
      %v2430 = vadd.f32 0.0, %v2429
      %v2431 = vpop.f32.mrb[0].mxu0
      %v2432 = vpop.f32.mrb[0].mxu0
      %v2433 = vadd.f32 0.0, %v2432
      %v2434 = vpop.f32.mrb[0].mxu0
      %2435 = vmatprep.mubr.bf16.mxu0 0
      %2436 = vmatmul.mubr.bf16.gmra.mrb[0].mxu0 %v2333
      %v2437 = vpop.f32.mrb[0].mxu0
      %v2438 = vadd.f32 0.0, %v2437
      %v2439 = vpop.f32.mrb[0].mxu0
      %v2440 = vpop.f32.mrb[0].mxu0
      %v2441 = vadd.f32 0.0, %v2440
      %v2442 = vpop.f32.mrb[0].mxu0
      %2443 = vmatprep.mubr.bf16.mxu0 0
      %2444 = vmatmul.mubr.bf16.gmra.mrb[0].mxu0 %v2336
      %v2445 = vpop.f32.mrb[0].mxu0
      %v2446 = vadd.f32 0.0, %v2445
      %v2447 = vpop.f32.mrb[0].mxu0
      %v2448 = vpop.f32.mrb[0].mxu0
      %v2449 = vadd.f32 0.0, %v2448
      %v2450 = vpop.f32.mrb[0].mxu0
      %2451 = vmatprep.mubr.bf16.mxu0 0
      %2452 = vmatmul.mubr.bf16.gmra.mrb[0].mxu0 %v2339
      %v2453 = vpop.f32.mrb[0].mxu0
      %v2454 = vadd.f32 0.0, %v2453
      %v2455 = vpop.f32.mrb[0].mxu0
      %v2456 = vpop.f32.mrb[0].mxu0
      %v2457 = vadd.f32 0.0, %v2456
      %v2458 = vpop.f32.mrb[0].mxu0
      %2459 = vmatprep.mubr.bf16.mxu0 0
      %2460 = vmatmul.mubr.bf16.gmra.mrb[0].mxu0 %v2342
      %v2461 = vpop.f32.mrb[0].mxu0
      %v2462 = vadd.f32 0.0, %v2461
      %v2463 = vpop.f32.mrb[0].mxu0
      %v2464 = vpop.f32.mrb[0].mxu0
      %v2465 = vadd.f32 0.0, %v2464
      %v2466 = vpop.f32.mrb[0].mxu0
      %2467 = vmatprep.mubr.bf16.mxu0 0
      %2468 = vmatmul.mubr.bf16.gmra.mrb[0].mxu0 %v2345
      %v2469 = vpop.f32.mrb[0].mxu0
      %v2470 = vadd.f32 0.0, %v2469
      %v2471 = vpop.f32.mrb[0].mxu0
      %v2472 = vpop.f32.mrb[0].mxu0
      %v2473 = vadd.f32 0.0, %v2472
      %v2474 = vpop.f32.mrb[0].mxu0
      %2475 = vmatprep.mubr.bf16.mxu0 0
      %2476 = vmatmul.mubr.bf16.gmra.mrb[0].mxu0 %v2348
      %v2477 = vpop.f32.mrb[0].mxu0
      %v2478 = vadd.f32 0.0, %v2477
      %v2479 = vpop.f32.mrb[0].mxu0
      %v2480 = vpop.f32.mrb[0].mxu0
      %v2481 = vadd.f32 0.0, %v2480
      %v2482 = vpop.f32.mrb[0].mxu0
      %2483 = vmatprep.mubr.bf16.mxu0 0
      %2484 = vmatmul.mubr.bf16.gmra.mrb[0].mxu0 %v2351
      %v2485 = vpop.f32.mrb[0].mxu0
      %v2486 = vadd.f32 0.0, %v2485
      %v2487 = vpop.f32.mrb[0].mxu0
      %v2488 = vpop.f32.mrb[0].mxu0
      %v2489 = vadd.f32 0.0, %v2488
      %v2490 = vpop.f32.mrb[0].mxu0
      %2491 = vmatprep.mubr.bf16.mxu0 0
      %2492 = vmatmul.mubr.bf16.gmra.mrb[0].mxu0 %v2354
      %v2493 = vpop.f32.mrb[0].mxu0
      %v2494 = vadd.f32 0.0, %v2493
      %v2495 = vpop.f32.mrb[0].mxu0
      %v2496 = vpop.f32.mrb[0].mxu0
      %v2497 = vadd.f32 0.0, %v2496
      %v2498 = vpop.f32.mrb[0].mxu0
      %2499 = vmatprep.mubr.bf16.mxu0 0
      %2500 = vmatmul.mubr.bf16.gmra.mrb[0].mxu0 %v2357
      %v2501 = vpop.f32.mrb[0].mxu0
      %v2502 = vadd.f32 0.0, %v2501
      %v2503 = vpop.f32.mrb[0].mxu0
      %v2504 = vpop.f32.mrb[0].mxu0
      %v2505 = vadd.f32 0.0, %v2504
      %v2506 = vpop.f32.mrb[0].mxu0
      %2507 = vmatprep.mubr.bf16.mxu0 0
      %2508 = vmatmul.mubr.bf16.gmra.mrb[0].mxu0 %v2360
      %v2509 = vpop.f32.mrb[0].mxu0
      %v2510 = vadd.f32 0.0, %v2509
      %v2511 = vpop.f32.mrb[0].mxu0
      %v2512 = vpop.f32.mrb[0].mxu0
      %v2513 = vadd.f32 0.0, %v2512
      %v2514 = vpop.f32.mrb[0].mxu0
      %2515 = vmatprep.mubr.bf16.mxu0 0
      %2516 = vmatmul.mubr.bf16.gmra.mrb[0].mxu0 %v2363
      %v2517 = vpop.f32.mrb[0].mxu0
      %v2518 = vadd.f32 0.0, %v2517
      %v2519 = vpop.f32.mrb[0].mxu0
      %v2520 = vpop.f32.mrb[0].mxu0
      %v2521 = vadd.f32 0.0, %v2520
      %v2522 = vpop.f32.mrb[0].mxu0
      %2523 = vmatprep.mubr.bf16.mxu0 0
      %2524 = vmatmul.mubr.bf16.gmra.mrb[0].mxu0 %v2366
      %v2525 = vpop.f32.mrb[0].mxu0
      %v2526 = vadd.f32 0.0, %v2525
      %v2527 = vpop.f32.mrb[0].mxu0
      %v2528 = vpop.f32.mrb[0].mxu0
      %v2529 = vadd.f32 0.0, %v2528
      %v2530 = vpop.f32.mrb[0].mxu0
      %2531 = vdwg.mxu0
      %v2532 = vadd.f32 %v2239, %v2406
      %v2533 = vadd.f32 %v2240, %v2409
      %v2534 = vadd.f32 %v2241, %v2414
      %v2535 = vadd.f32 %v2242, %v2417
      %v2536 = vadd.f32 %v2243, %v2422
      %v2537 = vadd.f32 %v2244, %v2425
      %v2538 = vadd.f32 %v2245, %v2430
      %v2539 = vadd.f32 %v2246, %v2433
      %v2540 = vadd.f32 %v2247, %v2438
      %v2541 = vadd.f32 %v2248, %v2441
      %v2542 = vadd.f32 %v2249, %v2446
      %v2543 = vadd.f32 %v2250, %v2449
      %v2544 = vadd.f32 %v2251, %v2454
      %v2545 = vadd.f32 %v2252, %v2457
      %v2546 = vadd.f32 %v2253, %v2462
      %v2547 = vadd.f32 %v2254, %v2465
      %v2548 = vadd.f32 %v2255, %v2470
      %v2549 = vadd.f32 %v2256, %v2473
      %v2550 = vadd.f32 %v2257, %v2478
      %v2551 = vadd.f32 %v2258, %v2481
      %v2552 = vadd.f32 %v2259, %v2486
      %v2553 = vadd.f32 %v2260, %v2489
      %v2554 = vadd.f32 %v2261, %v2494
      %v2555 = vadd.f32 %v2262, %v2497
      %v2556 = vadd.f32 %v2263, %v2502
      %v2557 = vadd.f32 %v2264, %v2505
      %v2558 = vadd.f32 %v2265, %v2510
      %v2559 = vadd.f32 %v2266, %v2513
      %v2560 = vadd.f32 %v2267, %v2518
      %v2561 = vadd.f32 %v2268, %v2521
      %v2562 = vadd.f32 %v2269, %v2526
      %v2563 = vadd.f32 %v2270, %v2529
      %v2564 = vld [vmem:[%s1977 + $0x2] sm:$0xff]
      %v2565 = vld [vmem:[%s1977 + $0xa] sm:$0xff]
      %v2566 = vld [vmem:[%s1977 + $0x1a] sm:$0xff]
      %v2567 = vld [vmem:[%s1977 + $0x22] sm:$0xff]
      %v2568 = vld [vmem:[%s1977 + $0x32] sm:$0xff]
      %v2569 = vld [vmem:[%s1977 + $0x3a] sm:$0xff]
      %v2570 = vld [vmem:[%s1977 + $0x4a] sm:$0xff]
      %v2571 = vld [vmem:[%s1977 + $0x52] sm:$0xff]
      %v2572 = vld [vmem:[%s1977 + $0x62] sm:$0xff]
      %v2573 = vld [vmem:[%s1977 + $0x6a] sm:$0xff]
      %v2574 = vld [vmem:[%s1977 + $0x7a] sm:$0xff]
      %v2575 = vld [vmem:[%s1977 + $0x82] sm:$0xff]
      %v2576 = vld [vmem:[%s1977 + $0x92] sm:$0xff]
      %v2577 = vld [vmem:[%s1977 + $0x9a] sm:$0xff]
      %v2578 = vld [vmem:[%s1977 + $0xaa] sm:$0xff]
      %v2579 = vld [vmem:[%s1977 + $0xb2] sm:$0xff]
      %v2580 = vld [vmem:[%s1977 + $0xc2] sm:$0xff]
      %v2581 = vld [vmem:[%s1977 + $0xca] sm:$0xff]
      %v2582 = vld [vmem:[%s1977 + $0xda] sm:$0xff]
      %v2583 = vld [vmem:[%s1977 + $0xe2] sm:$0xff]
      %v2584 = vld [vmem:[%s1977 + $0xf2] sm:$0xff]
      %v2585 = vld [vmem:[%s1977 + $0xfa] sm:$0xff]
      %v2586 = vld [vmem:[%s1977 + $0x10a] sm:$0xff]
      %v2587 = vld [vmem:[%s1977 + $0x112] sm:$0xff]
      %v2588 = vld [vmem:[%s1977 + $0x122] sm:$0xff]
      %v2589 = vld [vmem:[%s1977 + $0x12a] sm:$0xff]
      %v2590 = vld [vmem:[%s1977 + $0x13a] sm:$0xff]
      %v2591 = vld [vmem:[%s1977 + $0x142] sm:$0xff]
      %v2592 = vld [vmem:[%s1977 + $0x152] sm:$0xff]
      %v2593 = vld [vmem:[%s1977 + $0x15a] sm:$0xff]
      %v2594 = vld [vmem:[%s1977 + $0x16a] sm:$0xff]
      %v2595 = vld [vmem:[%s1977 + $0x172] sm:$0xff]
      %v2596 = vpack.c.bf16 %v2565, %v2564
      %v2597 = vpack.c.bf16 %v2567, %v2566
      %v2598 = vpack.c.bf16 %v2569, %v2568
      %v2599 = vpack.c.bf16 %v2571, %v2570
      %v2600 = vpack.c.bf16 %v2573, %v2572
      %v2601 = vpack.c.bf16 %v2575, %v2574
      %v2602 = vpack.c.bf16 %v2577, %v2576
      %v2603 = vpack.c.bf16 %v2579, %v2578
      %v2604 = vpack.c.bf16 %v2581, %v2580
      %v2605 = vpack.c.bf16 %v2583, %v2582
      %v2606 = vpack.c.bf16 %v2585, %v2584
      %v2607 = vpack.c.bf16 %v2587, %v2586
      %v2608 = vpack.c.bf16 %v2589, %v2588
      %v2609 = vpack.c.bf16 %v2591, %v2590
      %v2610 = vpack.c.bf16 %v2593, %v2592
      %v2611 = vpack.c.bf16 %v2595, %v2594
      %v2612 = vld [vmem:[%s1 + $0x20] sm:$0xf]
      %v2614 = vsel %vm378, %v2596, 0
      %v2617 = vsel %vm378, %v2597, 0
      %v2620 = vsel %vm378, %v2598, 0
      %v2623 = vsel %vm378, %v2599, 0
      %v2626 = vsel %vm378, %v2600, 0
      %v2629 = vsel %vm378, %v2601, 0
      %v2632 = vsel %vm378, %v2602, 0
      %v2635 = vsel %vm378, %v2603, 0
      %v2638 = vsel %vm378, %v2604, 0
      %v2641 = vsel %vm378, %v2605, 0
      %v2644 = vsel %vm378, %v2606, 0
      %v2647 = vsel %vm378, %v2607, 0
      %v2650 = vsel %vm378, %v2608, 0
      %v2653 = vsel %vm378, %v2609, 0
      %v2656 = vsel %vm378, %v2610, 0
      %v2659 = vsel %vm378, %v2611, 0
      %v2662 = vsel %vm427, %v2612, 0
      %2664 = vmatprep.subr.bf16.mxu0 0
      %2665 = vmatpush1.bf16.msra.mxu0 %v2662
      %2666 = vmatprep.subr.bf16.mxu0 0
      %2667 = vmatpush1.bf16.msra.mxu0 0
      %2668 = vmatprep.subr.bf16.mxu0 0
      %2669 = vmatpush1.bf16.msra.mxu0 0
      %2670 = vmatprep.subr.bf16.mxu0 0
      %2671 = vmatpush1.bf16.msra.mxu0 0
      %2672 = vmatprep.subr.bf16.mxu0 0
      %2673 = vmatpush1.bf16.msra.mxu0 0
      %2674 = vmatprep.subr.bf16.mxu0 0
      %2675 = vmatpush1.bf16.msra.mxu0 0
      %2676 = vmatprep.subr.bf16.mxu0 0
      %2677 = vmatpush1.bf16.msra.mxu0 0
      %2678 = vmatprep.subr.bf16.mxu0 0
      %2679 = vmatpush1.bf16.msra.mxu0 0
      %2680 = vmatprep.subr.bf16.mxu0 0
      %2681 = vmatpush1.bf16.msra.mxu0 0
      %2682 = vmatprep.subr.bf16.mxu0 0
      %2683 = vmatpush1.bf16.msra.mxu0 0
      %2684 = vmatprep.subr.bf16.mxu0 0
      %2685 = vmatpush1.bf16.msra.mxu0 0
      %2686 = vmatprep.subr.bf16.mxu0 0
      %2687 = vmatpush1.bf16.msra.mxu0 0
      %2688 = vmatprep.subr.bf16.mxu0 0
      %2689 = vmatpush1.bf16.msra.mxu0 0
      %2690 = vmatprep.subr.bf16.mxu0 0
      %2691 = vmatpush1.bf16.msra.mxu0 0
      %2692 = vmatprep.subr.bf16.mxu0 0
      %2693 = vmatpush1.bf16.msra.mxu0 0
      %2694 = vmatprep.subr.bf16.mxu0 0
      %2695 = vmatpush1.bf16.msra.mxu0 0
      %2696 = vmatprep.mubr.bf16.mxu0 0
      %2697 = vmatmul.mubr.bf16.gmra.mrb[0].mxu0 %v2614
      %v2698 = vpop.f32.mrb[0].mxu0
      %v2699 = vadd.f32 0.0, %v2698
      %v2700 = vpop.f32.mrb[0].mxu0
      %v2701 = vpop.f32.mrb[0].mxu0
      %v2702 = vadd.f32 0.0, %v2701
      %v2703 = vpop.f32.mrb[0].mxu0
      %2704 = vmatprep.mubr.bf16.mxu0 0
      %2705 = vmatmul.mubr.bf16.gmra.mrb[0].mxu0 %v2617
      %v2706 = vpop.f32.mrb[0].mxu0
      %v2707 = vadd.f32 0.0, %v2706
      %v2708 = vpop.f32.mrb[0].mxu0
      %v2709 = vpop.f32.mrb[0].mxu0
      %v2710 = vadd.f32 0.0, %v2709
      %v2711 = vpop.f32.mrb[0].mxu0
      %2712 = vmatprep.mubr.bf16.mxu0 0
      %2713 = vmatmul.mubr.bf16.gmra.mrb[0].mxu0 %v2620
      %v2714 = vpop.f32.mrb[0].mxu0
      %v2715 = vadd.f32 0.0, %v2714
      %v2716 = vpop.f32.mrb[0].mxu0
      %v2717 = vpop.f32.mrb[0].mxu0
      %v2718 = vadd.f32 0.0, %v2717
      %v2719 = vpop.f32.mrb[0].mxu0
      %2720 = vmatprep.mubr.bf16.mxu0 0
      %2721 = vmatmul.mubr.bf16.gmra.mrb[0].mxu0 %v2623
      %v2722 = vpop.f32.mrb[0].mxu0
      %v2723 = vadd.f32 0.0, %v2722
      %v2724 = vpop.f32.mrb[0].mxu0
      %v2725 = vpop.f32.mrb[0].mxu0
      %v2726 = vadd.f32 0.0, %v2725
      %v2727 = vpop.f32.mrb[0].mxu0
      %2728 = vmatprep.mubr.bf16.mxu0 0
      %2729 = vmatmul.mubr.bf16.gmra.mrb[0].mxu0 %v2626
      %v2730 = vpop.f32.mrb[0].mxu0
      %v2731 = vadd.f32 0.0, %v2730
      %v2732 = vpop.f32.mrb[0].mxu0
      %v2733 = vpop.f32.mrb[0].mxu0
      %v2734 = vadd.f32 0.0, %v2733
      %v2735 = vpop.f32.mrb[0].mxu0
      %2736 = vmatprep.mubr.bf16.mxu0 0
      %2737 = vmatmul.mubr.bf16.gmra.mrb[0].mxu0 %v2629
      %v2738 = vpop.f32.mrb[0].mxu0
      %v2739 = vadd.f32 0.0, %v2738
      %v2740 = vpop.f32.mrb[0].mxu0
      %v2741 = vpop.f32.mrb[0].mxu0
      %v2742 = vadd.f32 0.0, %v2741
      %v2743 = vpop.f32.mrb[0].mxu0
      %2744 = vmatprep.mubr.bf16.mxu0 0
      %2745 = vmatmul.mubr.bf16.gmra.mrb[0].mxu0 %v2632
      %v2746 = vpop.f32.mrb[0].mxu0
      %v2747 = vadd.f32 0.0, %v2746
      %v2748 = vpop.f32.mrb[0].mxu0
      %v2749 = vpop.f32.mrb[0].mxu0
      %v2750 = vadd.f32 0.0, %v2749
      %v2751 = vpop.f32.mrb[0].mxu0
      %2752 = vmatprep.mubr.bf16.mxu0 0
      %2753 = vmatmul.mubr.bf16.gmra.mrb[0].mxu0 %v2635
      %v2754 = vpop.f32.mrb[0].mxu0
      %v2755 = vadd.f32 0.0, %v2754
      %v2756 = vpop.f32.mrb[0].mxu0
      %v2757 = vpop.f32.mrb[0].mxu0
      %v2758 = vadd.f32 0.0, %v2757
      %v2759 = vpop.f32.mrb[0].mxu0
      %2760 = vmatprep.mubr.bf16.mxu0 0
      %2761 = vmatmul.mubr.bf16.gmra.mrb[0].mxu0 %v2638
      %v2762 = vpop.f32.mrb[0].mxu0
      %v2763 = vadd.f32 0.0, %v2762
      %v2764 = vpop.f32.mrb[0].mxu0
      %v2765 = vpop.f32.mrb[0].mxu0
      %v2766 = vadd.f32 0.0, %v2765
      %v2767 = vpop.f32.mrb[0].mxu0
      %2768 = vmatprep.mubr.bf16.mxu0 0
      %2769 = vmatmul.mubr.bf16.gmra.mrb[0].mxu0 %v2641
      %v2770 = vpop.f32.mrb[0].mxu0
      %v2771 = vadd.f32 0.0, %v2770
      %v2772 = vpop.f32.mrb[0].mxu0
      %v2773 = vpop.f32.mrb[0].mxu0
      %v2774 = vadd.f32 0.0, %v2773
      %v2775 = vpop.f32.mrb[0].mxu0
      %2776 = vmatprep.mubr.bf16.mxu0 0
      %2777 = vmatmul.mubr.bf16.gmra.mrb[0].mxu0 %v2644
      %v2778 = vpop.f32.mrb[0].mxu0
      %v2779 = vadd.f32 0.0, %v2778
      %v2780 = vpop.f32.mrb[0].mxu0
      %v2781 = vpop.f32.mrb[0].mxu0
      %v2782 = vadd.f32 0.0, %v2781
      %v2783 = vpop.f32.mrb[0].mxu0
      %2784 = vmatprep.mubr.bf16.mxu0 0
      %2785 = vmatmul.mubr.bf16.gmra.mrb[0].mxu0 %v2647
      %v2786 = vpop.f32.mrb[0].mxu0
      %v2787 = vadd.f32 0.0, %v2786
      %v2788 = vpop.f32.mrb[0].mxu0
      %v2789 = vpop.f32.mrb[0].mxu0
      %v2790 = vadd.f32 0.0, %v2789
      %v2791 = vpop.f32.mrb[0].mxu0
      %2792 = vmatprep.mubr.bf16.mxu0 0
      %2793 = vmatmul.mubr.bf16.gmra.mrb[0].mxu0 %v2650
      %v2794 = vpop.f32.mrb[0].mxu0
      %v2795 = vadd.f32 0.0, %v2794
      %v2796 = vpop.f32.mrb[0].mxu0
      %v2797 = vpop.f32.mrb[0].mxu0
      %v2798 = vadd.f32 0.0, %v2797
      %v2799 = vpop.f32.mrb[0].mxu0
      %2800 = vmatprep.mubr.bf16.mxu0 0
      %2801 = vmatmul.mubr.bf16.gmra.mrb[0].mxu0 %v2653
      %v2802 = vpop.f32.mrb[0].mxu0
      %v2803 = vadd.f32 0.0, %v2802
      %v2804 = vpop.f32.mrb[0].mxu0
      %v2805 = vpop.f32.mrb[0].mxu0
      %v2806 = vadd.f32 0.0, %v2805
      %v2807 = vpop.f32.mrb[0].mxu0
      %2808 = vmatprep.mubr.bf16.mxu0 0
      %2809 = vmatmul.mubr.bf16.gmra.mrb[0].mxu0 %v2656
      %v2810 = vpop.f32.mrb[0].mxu0
      %v2811 = vadd.f32 0.0, %v2810
      %v2812 = vpop.f32.mrb[0].mxu0
      %v2813 = vpop.f32.mrb[0].mxu0
      %v2814 = vadd.f32 0.0, %v2813
      %v2815 = vpop.f32.mrb[0].mxu0
      %2816 = vmatprep.mubr.bf16.mxu0 0
      %2817 = vmatmul.mubr.bf16.gmra.mrb[0].mxu0 %v2659
      %v2818 = vpop.f32.mrb[0].mxu0
      %v2819 = vadd.f32 0.0, %v2818
      %v2820 = vpop.f32.mrb[0].mxu0
      %v2821 = vpop.f32.mrb[0].mxu0
      %v2822 = vadd.f32 0.0, %v2821
      %v2823 = vpop.f32.mrb[0].mxu0
      %2824 = vdwg.mxu0
      %v2825 = vadd.f32 %v2532, %v2699
      %v2826 = vadd.f32 %v2533, %v2702
      %v2827 = vadd.f32 %v2534, %v2707
      %v2828 = vadd.f32 %v2535, %v2710
      %v2829 = vadd.f32 %v2536, %v2715
      %v2830 = vadd.f32 %v2537, %v2718
      %v2831 = vadd.f32 %v2538, %v2723
      %v2832 = vadd.f32 %v2539, %v2726
      %v2833 = vadd.f32 %v2540, %v2731
      %v2834 = vadd.f32 %v2541, %v2734
      %v2835 = vadd.f32 %v2542, %v2739
      %v2836 = vadd.f32 %v2543, %v2742
      %v2837 = vadd.f32 %v2544, %v2747
      %v2838 = vadd.f32 %v2545, %v2750
      %v2839 = vadd.f32 %v2546, %v2755
      %v2840 = vadd.f32 %v2547, %v2758
      %v2841 = vadd.f32 %v2548, %v2763
      %v2842 = vadd.f32 %v2549, %v2766
      %v2843 = vadd.f32 %v2550, %v2771
      %v2844 = vadd.f32 %v2551, %v2774
      %v2845 = vadd.f32 %v2552, %v2779
      %v2846 = vadd.f32 %v2553, %v2782
      %v2847 = vadd.f32 %v2554, %v2787
      %v2848 = vadd.f32 %v2555, %v2790
      %v2849 = vadd.f32 %v2556, %v2795
      %v2850 = vadd.f32 %v2557, %v2798
      %v2851 = vadd.f32 %v2558, %v2803
      %v2852 = vadd.f32 %v2559, %v2806
      %v2853 = vadd.f32 %v2560, %v2811
      %v2854 = vadd.f32 %v2561, %v2814
      %v2855 = vadd.f32 %v2562, %v2819
      %v2856 = vadd.f32 %v2563, %v2822
      %v2857 = vld [vmem:[%s2] sm:$0x1]
      %v2859 = vlaneseq
      %v2860 = vshrl.u32 %v2859, 7
      %v2861 = vsub.s32 0, %v2860
      %v2862 = vrot.slane %v2857, %v2861
      %v2864 = vadd.f32 %v2825, %v2862
      %v2865 = vadd.f32 %v2826, %v2862
      %v2866 = vadd.f32 %v2827, %v2862
      %v2867 = vadd.f32 %v2828, %v2862
      %v2868 = vadd.f32 %v2829, %v2862
      %v2869 = vadd.f32 %v2830, %v2862
      %v2870 = vadd.f32 %v2831, %v2862
      %v2871 = vadd.f32 %v2832, %v2862
      %v2872 = vadd.f32 %v2833, %v2862
      %v2873 = vadd.f32 %v2834, %v2862
      %v2874 = vadd.f32 %v2835, %v2862
      %v2875 = vadd.f32 %v2836, %v2862
      %v2876 = vadd.f32 %v2837, %v2862
      %v2877 = vadd.f32 %v2838, %v2862
      %v2878 = vadd.f32 %v2839, %v2862
      %v2879 = vadd.f32 %v2840, %v2862
      %v2880 = vadd.f32 %v2841, %v2862
      %v2881 = vadd.f32 %v2842, %v2862
      %v2882 = vadd.f32 %v2843, %v2862
      %v2883 = vadd.f32 %v2844, %v2862
      %v2884 = vadd.f32 %v2845, %v2862
      %v2885 = vadd.f32 %v2846, %v2862
      %v2886 = vadd.f32 %v2847, %v2862
      %v2887 = vadd.f32 %v2848, %v2862
      %v2888 = vadd.f32 %v2849, %v2862
      %v2889 = vadd.f32 %v2850, %v2862
      %v2890 = vadd.f32 %v2851, %v2862
      %v2891 = vadd.f32 %v2852, %v2862
      %v2892 = vadd.f32 %v2853, %v2862
      %v2893 = vadd.f32 %v2854, %v2862
      %v2894 = vadd.f32 %v2855, %v2862
      %v2895 = vadd.f32 %v2856, %v2862
      %v2896 = vmax.f32 %v2864, 0.0
      %v2897 = vmax.f32 %v2865, 0.0
      %v2898 = vmax.f32 %v2866, 0.0
      %v2899 = vmax.f32 %v2867, 0.0
      %v2900 = vmax.f32 %v2868, 0.0
      %v2901 = vmax.f32 %v2869, 0.0
      %v2902 = vmax.f32 %v2870, 0.0
      %v2903 = vmax.f32 %v2871, 0.0
      %v2904 = vmax.f32 %v2872, 0.0
      %v2905 = vmax.f32 %v2873, 0.0
      %v2906 = vmax.f32 %v2874, 0.0
      %v2907 = vmax.f32 %v2875, 0.0
      %v2908 = vmax.f32 %v2876, 0.0
      %v2909 = vmax.f32 %v2877, 0.0
      %v2910 = vmax.f32 %v2878, 0.0
      %v2911 = vmax.f32 %v2879, 0.0
      %v2912 = vmax.f32 %v2880, 0.0
      %v2913 = vmax.f32 %v2881, 0.0
      %v2914 = vmax.f32 %v2882, 0.0
      %v2915 = vmax.f32 %v2883, 0.0
      %v2916 = vmax.f32 %v2884, 0.0
      %v2917 = vmax.f32 %v2885, 0.0
      %v2918 = vmax.f32 %v2886, 0.0
      %v2919 = vmax.f32 %v2887, 0.0
      %v2920 = vmax.f32 %v2888, 0.0
      %v2921 = vmax.f32 %v2889, 0.0
      %v2922 = vmax.f32 %v2890, 0.0
      %v2923 = vmax.f32 %v2891, 0.0
      %v2924 = vmax.f32 %v2892, 0.0
      %v2925 = vmax.f32 %v2893, 0.0
      %v2926 = vmax.f32 %v2894, 0.0
      %v2927 = vmax.f32 %v2895, 0.0
      %vm2928 = vcmask 130048
      %2929 = vst.msk [vmem:[#allocation3] sm:$0xff] %vm2928, %v2896
      %2930 = vst.msk [vmem:[#allocation3 + $0x8] sm:$0xff] %vm2928, %v2897
      %2931 = vst.msk [vmem:[#allocation3 + $0x10] sm:$0xff] %vm2928, %v2898
      %2932 = vst.msk [vmem:[#allocation3 + $0x18] sm:$0xff] %vm2928, %v2899
      %2933 = vst.msk [vmem:[#allocation3 + $0x20] sm:$0xff] %vm2928, %v2900
      %2934 = vst.msk [vmem:[#allocation3 + $0x28] sm:$0xff] %vm2928, %v2901
      %2935 = vst.msk [vmem:[#allocation3 + $0x30] sm:$0xff] %vm2928, %v2902
      %2936 = vst.msk [vmem:[#allocation3 + $0x38] sm:$0xff] %vm2928, %v2903
      %2937 = vst.msk [vmem:[#allocation3 + $0x40] sm:$0xff] %vm2928, %v2904
      %2938 = vst.msk [vmem:[#allocation3 + $0x48] sm:$0xff] %vm2928, %v2905
      %2939 = vst.msk [vmem:[#allocation3 + $0x50] sm:$0xff] %vm2928, %v2906
      %2940 = vst.msk [vmem:[#allocation3 + $0x58] sm:$0xff] %vm2928, %v2907
      %2941 = vst.msk [vmem:[#allocation3 + $0x60] sm:$0xff] %vm2928, %v2908
      %2942 = vst.msk [vmem:[#allocation3 + $0x68] sm:$0xff] %vm2928, %v2909
      %2943 = vst.msk [vmem:[#allocation3 + $0x70] sm:$0xff] %vm2928, %v2910
      %2944 = vst.msk [vmem:[#allocation3 + $0x78] sm:$0xff] %vm2928, %v2911
      %2945 = vst.msk [vmem:[#allocation3 + $0x80] sm:$0xff] %vm2928, %v2912
      %2946 = vst.msk [vmem:[#allocation3 + $0x88] sm:$0xff] %vm2928, %v2913
      %2947 = vst.msk [vmem:[#allocation3 + $0x90] sm:$0xff] %vm2928, %v2914
      %2948 = vst.msk [vmem:[#allocation3 + $0x98] sm:$0xff] %vm2928, %v2915
      %2949 = vst.msk [vmem:[#allocation3 + $0xa0] sm:$0xff] %vm2928, %v2916
      %2950 = vst.msk [vmem:[#allocation3 + $0xa8] sm:$0xff] %vm2928, %v2917
      %2951 = vst.msk [vmem:[#allocation3 + $0xb0] sm:$0xff] %vm2928, %v2918
      %2952 = vst.msk [vmem:[#allocation3 + $0xb8] sm:$0xff] %vm2928, %v2919
      %2953 = vst.msk [vmem:[#allocation3 + $0xc0] sm:$0xff] %vm2928, %v2920
      %2954 = vst.msk [vmem:[#allocation3 + $0xc8] sm:$0xff] %vm2928, %v2921
      %2955 = vst.msk [vmem:[#allocation3 + $0xd0] sm:$0xff] %vm2928, %v2922
      %2956 = vst.msk [vmem:[#allocation3 + $0xd8] sm:$0xff] %vm2928, %v2923
      %2957 = vst.msk [vmem:[#allocation3 + $0xe0] sm:$0xff] %vm2928, %v2924
      %2958 = vst.msk [vmem:[#allocation3 + $0xe8] sm:$0xff] %vm2928, %v2925
      %2959 = vst.msk [vmem:[#allocation3 + $0xf0] sm:$0xff] %vm2928, %v2926
      %2960 = vst.msk [vmem:[#allocation3 + $0xf8] sm:$0xff] %vm2928, %v2927
      %2961 = vst.msk [vmem:[#allocation2] sm:$0xff] %vm2928, 0.0
      %2962 = vst.msk [vmem:[#allocation2 + $0x8] sm:$0xff] %vm2928, 0.0
      %vm2963 = vcmask 123904
      %2964 = vst.msk [vmem:[#allocation2 + $0x10] sm:$0x3] %vm2963, 0.0
      %2965 = vst.msk [vmem:[#allocation2 + $0x18] sm:$0xff] %vm2928, 0.0
      %2966 = vst.msk [vmem:[#allocation2 + $0x20] sm:$0xff] %vm2928, 0.0
      %2967 = vst.msk [vmem:[#allocation2 + $0x28] sm:$0x3] %vm2963, 0.0
      %2968 = vst.msk [vmem:[#allocation2 + $0x30] sm:$0xff] %vm2928, 0.0
      %2969 = vst.msk [vmem:[#allocation2 + $0x38] sm:$0xff] %vm2928, 0.0
      %2970 = vst.msk [vmem:[#allocation2 + $0x40] sm:$0x3] %vm2963, 0.0
      %2971 = vst.msk [vmem:[#allocation2 + $0x48] sm:$0xff] %vm2928, 0.0
      %2972 = vst.msk [vmem:[#allocation2 + $0x50] sm:$0xff] %vm2928, 0.0
      %2973 = vst.msk [vmem:[#allocation2 + $0x58] sm:$0x3] %vm2963, 0.0
      %2974 = vst.msk [vmem:[#allocation2 + $0x60] sm:$0xff] %vm2928, 0.0
      %2975 = vst.msk [vmem:[#allocation2 + $0x68] sm:$0xff] %vm2928, 0.0
      %2976 = vst.msk [vmem:[#allocation2 + $0x70] sm:$0x3] %vm2963, 0.0
      %2977 = vst.msk [vmem:[#allocation2 + $0x78] sm:$0xff] %vm2928, 0.0
      %2978 = vst.msk [vmem:[#allocation2 + $0x80] sm:$0xff] %vm2928, 0.0
      %2979 = vst.msk [vmem:[#allocation2 + $0x88] sm:$0x3] %vm2963, 0.0
      %2980 = vst.msk [vmem:[#allocation2 + $0x90] sm:$0xff] %vm2928, 0.0
      %2981 = vst.msk [vmem:[#allocation2 + $0x98] sm:$0xff] %vm2928, 0.0
      %2982 = vst.msk [vmem:[#allocation2 + $0xa0] sm:$0x3] %vm2963, 0.0
      %2983 = vst.msk [vmem:[#allocation2 + $0xa8] sm:$0xff] %vm2928, 0.0
      %2984 = vst.msk [vmem:[#allocation2 + $0xb0] sm:$0xff] %vm2928, 0.0
      %2985 = vst.msk [vmem:[#allocation2 + $0xb8] sm:$0x3] %vm2963, 0.0
      %2986 = vst.msk [vmem:[#allocation2 + $0xc0] sm:$0xff] %vm2928, 0.0
      %2987 = vst.msk [vmem:[#allocation2 + $0xc8] sm:$0xff] %vm2928, 0.0
      %2988 = vst.msk [vmem:[#allocation2 + $0xd0] sm:$0x3] %vm2963, 0.0
      %2989 = vst.msk [vmem:[#allocation2 + $0xd8] sm:$0xff] %vm2928, 0.0
      %2990 = vst.msk [vmem:[#allocation2 + $0xe0] sm:$0xff] %vm2928, 0.0
      %2991 = vst.msk [vmem:[#allocation2 + $0xe8] sm:$0x3] %vm2963, 0.0
      %2992 = vst.msk [vmem:[#allocation2 + $0xf0] sm:$0xff] %vm2928, 0.0
      %2993 = vst.msk [vmem:[#allocation2 + $0xf8] sm:$0xff] %vm2928, 0.0
      %2994 = vst.msk [vmem:[#allocation2 + $0x100] sm:$0x3] %vm2963, 0.0
      %2995 = vst.msk [vmem:[#allocation2 + $0x108] sm:$0xff] %vm2928, 0.0
      %2996 = vst.msk [vmem:[#allocation2 + $0x110] sm:$0xff] %vm2928, 0.0
      %2997 = vst.msk [vmem:[#allocation2 + $0x118] sm:$0x3] %vm2963, 0.0
      %2998 = vst.msk [vmem:[#allocation2 + $0x120] sm:$0xff] %vm2928, 0.0
      %2999 = vst.msk [vmem:[#allocation2 + $0x128] sm:$0xff] %vm2928, 0.0
      %3000 = vst.msk [vmem:[#allocation2 + $0x130] sm:$0x3] %vm2963, 0.0
      %3001 = vst.msk [vmem:[#allocation2 + $0x138] sm:$0xff] %vm2928, 0.0
      %3002 = vst.msk [vmem:[#allocation2 + $0x140] sm:$0xff] %vm2928, 0.0
      %3003 = vst.msk [vmem:[#allocation2 + $0x148] sm:$0x3] %vm2963, 0.0
      %3004 = vst.msk [vmem:[#allocation2 + $0x150] sm:$0xff] %vm2928, 0.0
      %3005 = vst.msk [vmem:[#allocation2 + $0x158] sm:$0xff] %vm2928, 0.0
      %3006 = vst.msk [vmem:[#allocation2 + $0x160] sm:$0x3] %vm2963, 0.0
      %3007 = vst.msk [vmem:[#allocation2 + $0x168] sm:$0xff] %vm2928, 0.0
      %3008 = vst.msk [vmem:[#allocation2 + $0x170] sm:$0xff] %vm2928, 0.0
      %3009 = vst.msk [vmem:[#allocation2 + $0x178] sm:$0x3] %vm2963, 0.0
      %3010 = vst.msk [vmem:[#allocation2 + $0x180] sm:$0xff] %vm2928, 0.0
      %3011 = vst.msk [vmem:[#allocation2 + $0x188] sm:$0xff] %vm2928, 0.0
      %3012 = vst.msk [vmem:[#allocation2 + $0x190] sm:$0x3] %vm2963, 0.0
      %3013 = vst.msk [vmem:[#allocation2 + $0x198] sm:$0xff] %vm2928, 0.0
      %3014 = vst.msk [vmem:[#allocation2 + $0x1a0] sm:$0xff] %vm2928, 0.0
      %3015 = vst.msk [vmem:[#allocation2 + $0x1a8] sm:$0x3] %vm2963, 0.0
      %s3016 = scalar_lea.vmem [#allocation2], 24
      %3017 = vst.msk [vmem:[%s3016 + $0x1] sm:$0xff] %vm2928, %v2896
      %3018 = vst.msk [vmem:[%s3016 + $0x9] sm:$0xff] %vm2928, %v2897
      %3019 = vst.msk [vmem:[%s3016 + $0x19] sm:$0xff] %vm2928, %v2898
      %3020 = vst.msk [vmem:[%s3016 + $0x21] sm:$0xff] %vm2928, %v2899
      %3021 = vst.msk [vmem:[%s3016 + $0x31] sm:$0xff] %vm2928, %v2900
      %3022 = vst.msk [vmem:[%s3016 + $0x39] sm:$0xff] %vm2928, %v2901
      %3023 = vst.msk [vmem:[%s3016 + $0x49] sm:$0xff] %vm2928, %v2902
      %3024 = vst.msk [vmem:[%s3016 + $0x51] sm:$0xff] %vm2928, %v2903
      %3025 = vst.msk [vmem:[%s3016 + $0x61] sm:$0xff] %vm2928, %v2904
      %3026 = vst.msk [vmem:[%s3016 + $0x69] sm:$0xff] %vm2928, %v2905
      %3027 = vst.msk [vmem:[%s3016 + $0x79] sm:$0xff] %vm2928, %v2906
      %3028 = vst.msk [vmem:[%s3016 + $0x81] sm:$0xff] %vm2928, %v2907
      %3029 = vst.msk [vmem:[%s3016 + $0x91] sm:$0xff] %vm2928, %v2908
      %3030 = vst.msk [vmem:[%s3016 + $0x99] sm:$0xff] %vm2928, %v2909
      %3031 = vst.msk [vmem:[%s3016 + $0xa9] sm:$0xff] %vm2928, %v2910
      %3032 = vst.msk [vmem:[%s3016 + $0xb1] sm:$0xff] %vm2928, %v2911
      %3033 = vst.msk [vmem:[%s3016 + $0xc1] sm:$0xff] %vm2928, %v2912
      %3034 = vst.msk [vmem:[%s3016 + $0xc9] sm:$0xff] %vm2928, %v2913
      %3035 = vst.msk [vmem:[%s3016 + $0xd9] sm:$0xff] %vm2928, %v2914
      %3036 = vst.msk [vmem:[%s3016 + $0xe1] sm:$0xff] %vm2928, %v2915
      %3037 = vst.msk [vmem:[%s3016 + $0xf1] sm:$0xff] %vm2928, %v2916
      %3038 = vst.msk [vmem:[%s3016 + $0xf9] sm:$0xff] %vm2928, %v2917
      %3039 = vst.msk [vmem:[%s3016 + $0x109] sm:$0xff] %vm2928, %v2918
      %3040 = vst.msk [vmem:[%s3016 + $0x111] sm:$0xff] %vm2928, %v2919
      %3041 = vst.msk [vmem:[%s3016 + $0x121] sm:$0xff] %vm2928, %v2920
      %3042 = vst.msk [vmem:[%s3016 + $0x129] sm:$0xff] %vm2928, %v2921
      %3043 = vst.msk [vmem:[%s3016 + $0x139] sm:$0xff] %vm2928, %v2922
      %3044 = vst.msk [vmem:[%s3016 + $0x141] sm:$0xff] %vm2928, %v2923
      %3045 = vst.msk [vmem:[%s3016 + $0x151] sm:$0xff] %vm2928, %v2924
      %3046 = vst.msk [vmem:[%s3016 + $0x159] sm:$0xff] %vm2928, %v2925
      %3047 = vst.msk [vmem:[%s3016 + $0x169] sm:$0xff] %vm2928, %v2926
      %3048 = vst.msk [vmem:[%s3016 + $0x171] sm:$0xff] %vm2928, %v2927
      %v3049 = vld [vmem:[#allocation2] sm:$0xff]
      %v3050 = vld [vmem:[#allocation2 + $0x8] sm:$0xff]
      %v3051 = vld [vmem:[#allocation2 + $0x18] sm:$0xff]
      %v3052 = vld [vmem:[#allocation2 + $0x20] sm:$0xff]
      %v3053 = vld [vmem:[#allocation2 + $0x30] sm:$0xff]
      %v3054 = vld [vmem:[#allocation2 + $0x38] sm:$0xff]
      %v3055 = vld [vmem:[#allocation2 + $0x48] sm:$0xff]
      %v3056 = vld [vmem:[#allocation2 + $0x50] sm:$0xff]
      %v3057 = vld [vmem:[#allocation2 + $0x60] sm:$0xff]
      %v3058 = vld [vmem:[#allocation2 + $0x68] sm:$0xff]
      %v3059 = vld [vmem:[#allocation2 + $0x78] sm:$0xff]
      %v3060 = vld [vmem:[#allocation2 + $0x80] sm:$0xff]
      %v3061 = vld [vmem:[#allocation2 + $0x90] sm:$0xff]
      %v3062 = vld [vmem:[#allocation2 + $0x98] sm:$0xff]
      %v3063 = vld [vmem:[#allocation2 + $0xa8] sm:$0xff]
      %v3064 = vld [vmem:[#allocation2 + $0xb0] sm:$0xff]
      %v3065 = vld [vmem:[#allocation2 + $0xc0] sm:$0xff]
      %v3066 = vld [vmem:[#allocation2 + $0xc8] sm:$0xff]
      %v3067 = vld [vmem:[#allocation2 + $0xd8] sm:$0xff]
      %v3068 = vld [vmem:[#allocation2 + $0xe0] sm:$0xff]
      %v3069 = vld [vmem:[#allocation2 + $0xf0] sm:$0xff]
      %v3070 = vld [vmem:[#allocation2 + $0xf8] sm:$0xff]
      %v3071 = vld [vmem:[#allocation2 + $0x108] sm:$0xff]
      %v3072 = vld [vmem:[#allocation2 + $0x110] sm:$0xff]
      %v3073 = vld [vmem:[#allocation2 + $0x120] sm:$0xff]
      %v3074 = vld [vmem:[#allocation2 + $0x128] sm:$0xff]
      %v3075 = vld [vmem:[#allocation2 + $0x138] sm:$0xff]
      %v3076 = vld [vmem:[#allocation2 + $0x140] sm:$0xff]
      %v3077 = vld [vmem:[#allocation2 + $0x150] sm:$0xff]
      %v3078 = vld [vmem:[#allocation2 + $0x158] sm:$0xff]
      %v3079 = vld [vmem:[#allocation2 + $0x168] sm:$0xff]
      %v3080 = vld [vmem:[#allocation2 + $0x170] sm:$0xff]
      %v3081 = vpack.c.bf16 %v3050, %v3049
      %v3082 = vpack.c.bf16 %v3052, %v3051
      %v3083 = vpack.c.bf16 %v3054, %v3053
      %v3084 = vpack.c.bf16 %v3056, %v3055
      %v3085 = vpack.c.bf16 %v3058, %v3057
      %v3086 = vpack.c.bf16 %v3060, %v3059
      %v3087 = vpack.c.bf16 %v3062, %v3061
      %v3088 = vpack.c.bf16 %v3064, %v3063
      %v3089 = vpack.c.bf16 %v3066, %v3065
      %v3090 = vpack.c.bf16 %v3068, %v3067
      %v3091 = vpack.c.bf16 %v3070, %v3069
      %v3092 = vpack.c.bf16 %v3072, %v3071
      %v3093 = vpack.c.bf16 %v3074, %v3073
      %v3094 = vpack.c.bf16 %v3076, %v3075
      %v3095 = vpack.c.bf16 %v3078, %v3077
      %v3096 = vpack.c.bf16 %v3080, %v3079
      %v3097 = vld [vmem:[%s3] sm:$0xf]
      %v3098 = vld [vmem:[%s3 + $0x4] sm:$0xf]
      %v3099 = vld [vmem:[#allocation2 + $0x1] sm:$0xff]
      %v3100 = vld [vmem:[#allocation2 + $0x9] sm:$0xff]
      %v3101 = vld [vmem:[#allocation2 + $0x19] sm:$0xff]
      %v3102 = vld [vmem:[#allocation2 + $0x21] sm:$0xff]
      %v3103 = vld [vmem:[#allocation2 + $0x31] sm:$0xff]
      %v3104 = vld [vmem:[#allocation2 + $0x39] sm:$0xff]
      %v3105 = vld [vmem:[#allocation2 + $0x49] sm:$0xff]
      %v3106 = vld [vmem:[#allocation2 + $0x51] sm:$0xff]
      %v3107 = vld [vmem:[#allocation2 + $0x61] sm:$0xff]
      %v3108 = vld [vmem:[#allocation2 + $0x69] sm:$0xff]
      %v3109 = vld [vmem:[#allocation2 + $0x79] sm:$0xff]
      %v3110 = vld [vmem:[#allocation2 + $0x81] sm:$0xff]
      %v3111 = vld [vmem:[#allocation2 + $0x91] sm:$0xff]
      %v3112 = vld [vmem:[#allocation2 + $0x99] sm:$0xff]
      %v3113 = vld [vmem:[#allocation2 + $0xa9] sm:$0xff]
      %v3114 = vld [vmem:[#allocation2 + $0xb1] sm:$0xff]
      %v3115 = vld [vmem:[#allocation2 + $0xc1] sm:$0xff]
      %v3116 = vld [vmem:[#allocation2 + $0xc9] sm:$0xff]
      %v3117 = vld [vmem:[#allocation2 + $0xd9] sm:$0xff]
      %v3118 = vld [vmem:[#allocation2 + $0xe1] sm:$0xff]
      %v3119 = vld [vmem:[#allocation2 + $0xf1] sm:$0xff]
      %v3120 = vld [vmem:[#allocation2 + $0xf9] sm:$0xff]
      %v3121 = vld [vmem:[#allocation2 + $0x109] sm:$0xff]
      %v3122 = vld [vmem:[#allocation2 + $0x111] sm:$0xff]
      %v3123 = vld [vmem:[#allocation2 + $0x121] sm:$0xff]
      %v3124 = vld [vmem:[#allocation2 + $0x129] sm:$0xff]
      %v3125 = vld [vmem:[#allocation2 + $0x139] sm:$0xff]
      %v3126 = vld [vmem:[#allocation2 + $0x141] sm:$0xff]
      %v3127 = vld [vmem:[#allocation2 + $0x151] sm:$0xff]
      %v3128 = vld [vmem:[#allocation2 + $0x159] sm:$0xff]
      %v3129 = vld [vmem:[#allocation2 + $0x169] sm:$0xff]
      %v3130 = vld [vmem:[#allocation2 + $0x171] sm:$0xff]
      %v3131 = vpack.c.bf16 %v3100, %v3099
      %v3132 = vpack.c.bf16 %v3102, %v3101
      %v3133 = vpack.c.bf16 %v3104, %v3103
      %v3134 = vpack.c.bf16 %v3106, %v3105
      %v3135 = vpack.c.bf16 %v3108, %v3107
      %v3136 = vpack.c.bf16 %v3110, %v3109
      %v3137 = vpack.c.bf16 %v3112, %v3111
      %v3138 = vpack.c.bf16 %v3114, %v3113
      %v3139 = vpack.c.bf16 %v3116, %v3115
      %v3140 = vpack.c.bf16 %v3118, %v3117
      %v3141 = vpack.c.bf16 %v3120, %v3119
      %v3142 = vpack.c.bf16 %v3122, %v3121
      %v3143 = vpack.c.bf16 %v3124, %v3123
      %v3144 = vpack.c.bf16 %v3126, %v3125
      %v3145 = vpack.c.bf16 %v3128, %v3127
      %v3146 = vpack.c.bf16 %v3130, %v3129
      %v3147 = vld [vmem:[%s3 + $0x8] sm:$0xf]
      %v3148 = vld [vmem:[%s3 + $0xc] sm:$0xf]
      %v3151 = vunpack.c.l.b16 %v3147
      %v3152 = vunpack.c.l.b16 %v3148
      %v3153 = vpack.c.b16 %v3152, %v3151
      %v3156 = vsel %vm2928, %v3131, 0
      %v3159 = vsel %vm2928, %v3132, 0
      %v3162 = vsel %vm2928, %v3133, 0
      %v3165 = vsel %vm2928, %v3134, 0
      %v3168 = vsel %vm2928, %v3135, 0
      %v3171 = vsel %vm2928, %v3136, 0
      %v3174 = vsel %vm2928, %v3137, 0
      %v3177 = vsel %vm2928, %v3138, 0
      %v3180 = vsel %vm2928, %v3139, 0
      %v3183 = vsel %vm2928, %v3140, 0
      %v3186 = vsel %vm2928, %v3141, 0
      %v3189 = vsel %vm2928, %v3142, 0
      %v3192 = vsel %vm2928, %v3143, 0
      %v3195 = vsel %vm2928, %v3144, 0
      %v3198 = vsel %vm2928, %v3145, 0
      %v3201 = vsel %vm2928, %v3146, 0
      %3203 = vmatprep.subr.bf16.mxu0 0
      %3204 = vmatpush1.bf16.msra.mxu0 %v3153
      %3205 = vmatprep.subr.bf16.mxu0 0
      %3206 = vmatpush1.bf16.msra.mxu0 0
      %3207 = vmatprep.subr.bf16.mxu0 0
      %3208 = vmatpush1.bf16.msra.mxu0 0
      %3209 = vmatprep.subr.bf16.mxu0 0
      %3210 = vmatpush1.bf16.msra.mxu0 0
      %3211 = vmatprep.subr.bf16.mxu0 0
      %3212 = vmatpush1.bf16.msra.mxu0 0
      %3213 = vmatprep.subr.bf16.mxu0 0
      %3214 = vmatpush1.bf16.msra.mxu0 0
      %3215 = vmatprep.subr.bf16.mxu0 0
      %3216 = vmatpush1.bf16.msra.mxu0 0
      %3217 = vmatprep.subr.bf16.mxu0 0
      %3218 = vmatpush1.bf16.msra.mxu0 0
      %3219 = vmatprep.subr.bf16.mxu0 0
      %3220 = vmatpush1.bf16.msra.mxu0 0
      %3221 = vmatprep.subr.bf16.mxu0 0
      %3222 = vmatpush1.bf16.msra.mxu0 0
      %3223 = vmatprep.subr.bf16.mxu0 0
      %3224 = vmatpush1.bf16.msra.mxu0 0
      %3225 = vmatprep.subr.bf16.mxu0 0
      %3226 = vmatpush1.bf16.msra.mxu0 0
      %3227 = vmatprep.subr.bf16.mxu0 0
      %3228 = vmatpush1.bf16.msra.mxu0 0
      %3229 = vmatprep.subr.bf16.mxu0 0
      %3230 = vmatpush1.bf16.msra.mxu0 0
      %3231 = vmatprep.subr.bf16.mxu0 0
      %3232 = vmatpush1.bf16.msra.mxu0 0
      %3233 = vmatprep.subr.bf16.mxu0 0
      %3234 = vmatpush1.bf16.msra.mxu0 0
      %3235 = vmatprep.mubr.bf16.mxu0 0
      %3236 = vmatmul.mubr.bf16.gmra.mrb[0].mxu0 %v3156
      %v3237 = vpop.f32.mrb[0].mxu0
      %v3238 = vadd.f32 0.0, %v3237
      %v3239 = vpop.f32.mrb[0].mxu0
      %v3240 = vpop.f32.mrb[0].mxu0
      %v3241 = vadd.f32 0.0, %v3240
      %v3242 = vpop.f32.mrb[0].mxu0
      %3243 = vmatprep.mubr.bf16.mxu0 0
      %3244 = vmatmul.mubr.bf16.gmra.mrb[0].mxu0 %v3159
      %v3245 = vpop.f32.mrb[0].mxu0
      %v3246 = vadd.f32 0.0, %v3245
      %v3247 = vpop.f32.mrb[0].mxu0
      %v3248 = vpop.f32.mrb[0].mxu0
      %v3249 = vadd.f32 0.0, %v3248
      %v3250 = vpop.f32.mrb[0].mxu0
      %3251 = vmatprep.mubr.bf16.mxu0 0
      %3252 = vmatmul.mubr.bf16.gmra.mrb[0].mxu0 %v3162
      %v3253 = vpop.f32.mrb[0].mxu0
      %v3254 = vadd.f32 0.0, %v3253
      %v3255 = vpop.f32.mrb[0].mxu0
      %v3256 = vpop.f32.mrb[0].mxu0
      %v3257 = vadd.f32 0.0, %v3256
      %v3258 = vpop.f32.mrb[0].mxu0
      %3259 = vmatprep.mubr.bf16.mxu0 0
      %3260 = vmatmul.mubr.bf16.gmra.mrb[0].mxu0 %v3165
      %v3261 = vpop.f32.mrb[0].mxu0
      %v3262 = vadd.f32 0.0, %v3261
      %v3263 = vpop.f32.mrb[0].mxu0
      %v3264 = vpop.f32.mrb[0].mxu0
      %v3265 = vadd.f32 0.0, %v3264
      %v3266 = vpop.f32.mrb[0].mxu0
      %3267 = vmatprep.mubr.bf16.mxu0 0
      %3268 = vmatmul.mubr.bf16.gmra.mrb[0].mxu0 %v3168
      %v3269 = vpop.f32.mrb[0].mxu0
      %v3270 = vadd.f32 0.0, %v3269
      %v3271 = vpop.f32.mrb[0].mxu0
      %v3272 = vpop.f32.mrb[0].mxu0
      %v3273 = vadd.f32 0.0, %v3272
      %v3274 = vpop.f32.mrb[0].mxu0
      %3275 = vmatprep.mubr.bf16.mxu0 0
      %3276 = vmatmul.mubr.bf16.gmra.mrb[0].mxu0 %v3171
      %v3277 = vpop.f32.mrb[0].mxu0
      %v3278 = vadd.f32 0.0, %v3277
      %v3279 = vpop.f32.mrb[0].mxu0
      %v3280 = vpop.f32.mrb[0].mxu0
      %v3281 = vadd.f32 0.0, %v3280
      %v3282 = vpop.f32.mrb[0].mxu0
      %3283 = vmatprep.mubr.bf16.mxu0 0
      %3284 = vmatmul.mubr.bf16.gmra.mrb[0].mxu0 %v3174
      %v3285 = vpop.f32.mrb[0].mxu0
      %v3286 = vadd.f32 0.0, %v3285
      %v3287 = vpop.f32.mrb[0].mxu0
      %v3288 = vpop.f32.mrb[0].mxu0
      %v3289 = vadd.f32 0.0, %v3288
      %v3290 = vpop.f32.mrb[0].mxu0
      %3291 = vmatprep.mubr.bf16.mxu0 0
      %3292 = vmatmul.mubr.bf16.gmra.mrb[0].mxu0 %v3177
      %v3293 = vpop.f32.mrb[0].mxu0
      %v3294 = vadd.f32 0.0, %v3293
      %v3295 = vpop.f32.mrb[0].mxu0
      %v3296 = vpop.f32.mrb[0].mxu0
      %v3297 = vadd.f32 0.0, %v3296
      %v3298 = vpop.f32.mrb[0].mxu0
      %3299 = vmatprep.mubr.bf16.mxu0 0
      %3300 = vmatmul.mubr.bf16.gmra.mrb[0].mxu0 %v3180
      %v3301 = vpop.f32.mrb[0].mxu0
      %v3302 = vadd.f32 0.0, %v3301
      %v3303 = vpop.f32.mrb[0].mxu0
      %v3304 = vpop.f32.mrb[0].mxu0
      %v3305 = vadd.f32 0.0, %v3304
      %v3306 = vpop.f32.mrb[0].mxu0
      %3307 = vmatprep.mubr.bf16.mxu0 0
      %3308 = vmatmul.mubr.bf16.gmra.mrb[0].mxu0 %v3183
      %v3309 = vpop.f32.mrb[0].mxu0
      %v3310 = vadd.f32 0.0, %v3309
      %v3311 = vpop.f32.mrb[0].mxu0
      %v3312 = vpop.f32.mrb[0].mxu0
      %v3313 = vadd.f32 0.0, %v3312
      %v3314 = vpop.f32.mrb[0].mxu0
      %3315 = vmatprep.mubr.bf16.mxu0 0
      %3316 = vmatmul.mubr.bf16.gmra.mrb[0].mxu0 %v3186
      %v3317 = vpop.f32.mrb[0].mxu0
      %v3318 = vadd.f32 0.0, %v3317
      %v3319 = vpop.f32.mrb[0].mxu0
      %v3320 = vpop.f32.mrb[0].mxu0
      %v3321 = vadd.f32 0.0, %v3320
      %v3322 = vpop.f32.mrb[0].mxu0
      %3323 = vmatprep.mubr.bf16.mxu0 0
      %3324 = vmatmul.mubr.bf16.gmra.mrb[0].mxu0 %v3189
      %v3325 = vpop.f32.mrb[0].mxu0
      %v3326 = vadd.f32 0.0, %v3325
      %v3327 = vpop.f32.mrb[0].mxu0
      %v3328 = vpop.f32.mrb[0].mxu0
      %v3329 = vadd.f32 0.0, %v3328
      %v3330 = vpop.f32.mrb[0].mxu0
      %3331 = vmatprep.mubr.bf16.mxu0 0
      %3332 = vmatmul.mubr.bf16.gmra.mrb[0].mxu0 %v3192
      %v3333 = vpop.f32.mrb[0].mxu0
      %v3334 = vadd.f32 0.0, %v3333
      %v3335 = vpop.f32.mrb[0].mxu0
      %v3336 = vpop.f32.mrb[0].mxu0
      %v3337 = vadd.f32 0.0, %v3336
      %v3338 = vpop.f32.mrb[0].mxu0
      %3339 = vmatprep.mubr.bf16.mxu0 0
      %3340 = vmatmul.mubr.bf16.gmra.mrb[0].mxu0 %v3195
      %v3341 = vpop.f32.mrb[0].mxu0
      %v3342 = vadd.f32 0.0, %v3341
      %v3343 = vpop.f32.mrb[0].mxu0
      %v3344 = vpop.f32.mrb[0].mxu0
      %v3345 = vadd.f32 0.0, %v3344
      %v3346 = vpop.f32.mrb[0].mxu0
      %3347 = vmatprep.mubr.bf16.mxu0 0
      %3348 = vmatmul.mubr.bf16.gmra.mrb[0].mxu0 %v3198
      %v3349 = vpop.f32.mrb[0].mxu0
      %v3350 = vadd.f32 0.0, %v3349
      %v3351 = vpop.f32.mrb[0].mxu0
      %v3352 = vpop.f32.mrb[0].mxu0
      %v3353 = vadd.f32 0.0, %v3352
      %v3354 = vpop.f32.mrb[0].mxu0
      %3355 = vmatprep.mubr.bf16.mxu0 0
      %3356 = vmatmul.mubr.bf16.gmra.mrb[0].mxu0 %v3201
      %v3357 = vpop.f32.mrb[0].mxu0
      %v3358 = vadd.f32 0.0, %v3357
      %v3359 = vpop.f32.mrb[0].mxu0
      %v3360 = vpop.f32.mrb[0].mxu0
      %v3361 = vadd.f32 0.0, %v3360
      %v3362 = vpop.f32.mrb[0].mxu0
      %3363 = vdwg.mxu0
      %v3366 = vunpack.c.l.b16 %v3097
      %v3367 = vunpack.c.l.b16 %v3098
      %v3368 = vpack.c.b16 %v3367, %v3366
      %v3371 = vsel %vm2928, %v3081, 0
      %v3374 = vsel %vm2928, %v3082, 0
      %v3377 = vsel %vm2928, %v3083, 0
      %v3380 = vsel %vm2928, %v3084, 0
      %v3383 = vsel %vm2928, %v3085, 0
      %v3386 = vsel %vm2928, %v3086, 0
      %v3389 = vsel %vm2928, %v3087, 0
      %v3392 = vsel %vm2928, %v3088, 0
      %v3395 = vsel %vm2928, %v3089, 0
      %v3398 = vsel %vm2928, %v3090, 0
      %v3401 = vsel %vm2928, %v3091, 0
      %v3404 = vsel %vm2928, %v3092, 0
      %v3407 = vsel %vm2928, %v3093, 0
      %v3410 = vsel %vm2928, %v3094, 0
      %v3413 = vsel %vm2928, %v3095, 0
      %v3416 = vsel %vm2928, %v3096, 0
      %3418 = vmatprep.subr.bf16.mxu0 0
      %3419 = vmatpush1.bf16.msra.mxu0 %v3368
      %3420 = vmatprep.subr.bf16.mxu0 0
      %3421 = vmatpush1.bf16.msra.mxu0 0
      %3422 = vmatprep.subr.bf16.mxu0 0
      %3423 = vmatpush1.bf16.msra.mxu0 0
      %3424 = vmatprep.subr.bf16.mxu0 0
      %3425 = vmatpush1.bf16.msra.mxu0 0
      %3426 = vmatprep.subr.bf16.mxu0 0
      %3427 = vmatpush1.bf16.msra.mxu0 0
      %3428 = vmatprep.subr.bf16.mxu0 0
      %3429 = vmatpush1.bf16.msra.mxu0 0
      %3430 = vmatprep.subr.bf16.mxu0 0
      %3431 = vmatpush1.bf16.msra.mxu0 0
      %3432 = vmatprep.subr.bf16.mxu0 0
      %3433 = vmatpush1.bf16.msra.mxu0 0
      %3434 = vmatprep.subr.bf16.mxu0 0
      %3435 = vmatpush1.bf16.msra.mxu0 0
      %3436 = vmatprep.subr.bf16.mxu0 0
      %3437 = vmatpush1.bf16.msra.mxu0 0
      %3438 = vmatprep.subr.bf16.mxu0 0
      %3439 = vmatpush1.bf16.msra.mxu0 0
      %3440 = vmatprep.subr.bf16.mxu0 0
      %3441 = vmatpush1.bf16.msra.mxu0 0
      %3442 = vmatprep.subr.bf16.mxu0 0
      %3443 = vmatpush1.bf16.msra.mxu0 0
      %3444 = vmatprep.subr.bf16.mxu0 0
      %3445 = vmatpush1.bf16.msra.mxu0 0
      %3446 = vmatprep.subr.bf16.mxu0 0
      %3447 = vmatpush1.bf16.msra.mxu0 0
      %3448 = vmatprep.subr.bf16.mxu0 0
      %3449 = vmatpush1.bf16.msra.mxu0 0
      %3450 = vmatprep.mubr.bf16.mxu0 0
      %3451 = vmatmul.mubr.bf16.gmra.mrb[0].mxu0 %v3371
      %v3452 = vpop.f32.mrb[0].mxu0
      %v3453 = vadd.f32 %v3238, %v3452
      %v3454 = vpop.f32.mrb[0].mxu0
      %v3455 = vpop.f32.mrb[0].mxu0
      %v3456 = vadd.f32 %v3241, %v3455
      %v3457 = vpop.f32.mrb[0].mxu0
      %3458 = vmatprep.mubr.bf16.mxu0 0
      %3459 = vmatmul.mubr.bf16.gmra.mrb[0].mxu0 %v3374
      %v3460 = vpop.f32.mrb[0].mxu0
      %v3461 = vadd.f32 %v3246, %v3460
      %v3462 = vpop.f32.mrb[0].mxu0
      %v3463 = vpop.f32.mrb[0].mxu0
      %v3464 = vadd.f32 %v3249, %v3463
      %v3465 = vpop.f32.mrb[0].mxu0
      %3466 = vmatprep.mubr.bf16.mxu0 0
      %3467 = vmatmul.mubr.bf16.gmra.mrb[0].mxu0 %v3377
      %v3468 = vpop.f32.mrb[0].mxu0
      %v3469 = vadd.f32 %v3254, %v3468
      %v3470 = vpop.f32.mrb[0].mxu0
      %v3471 = vpop.f32.mrb[0].mxu0
      %v3472 = vadd.f32 %v3257, %v3471
      %v3473 = vpop.f32.mrb[0].mxu0
      %3474 = vmatprep.mubr.bf16.mxu0 0
      %3475 = vmatmul.mubr.bf16.gmra.mrb[0].mxu0 %v3380
      %v3476 = vpop.f32.mrb[0].mxu0
      %v3477 = vadd.f32 %v3262, %v3476
      %v3478 = vpop.f32.mrb[0].mxu0
      %v3479 = vpop.f32.mrb[0].mxu0
      %v3480 = vadd.f32 %v3265, %v3479
      %v3481 = vpop.f32.mrb[0].mxu0
      %3482 = vmatprep.mubr.bf16.mxu0 0
      %3483 = vmatmul.mubr.bf16.gmra.mrb[0].mxu0 %v3383
      %v3484 = vpop.f32.mrb[0].mxu0
      %v3485 = vadd.f32 %v3270, %v3484
      %v3486 = vpop.f32.mrb[0].mxu0
      %v3487 = vpop.f32.mrb[0].mxu0
      %v3488 = vadd.f32 %v3273, %v3487
      %v3489 = vpop.f32.mrb[0].mxu0
      %3490 = vmatprep.mubr.bf16.mxu0 0
      %3491 = vmatmul.mubr.bf16.gmra.mrb[0].mxu0 %v3386
      %v3492 = vpop.f32.mrb[0].mxu0
      %v3493 = vadd.f32 %v3278, %v3492
      %v3494 = vpop.f32.mrb[0].mxu0
      %v3495 = vpop.f32.mrb[0].mxu0
      %v3496 = vadd.f32 %v3281, %v3495
      %v3497 = vpop.f32.mrb[0].mxu0
      %3498 = vmatprep.mubr.bf16.mxu0 0
      %3499 = vmatmul.mubr.bf16.gmra.mrb[0].mxu0 %v3389
      %v3500 = vpop.f32.mrb[0].mxu0
      %v3501 = vadd.f32 %v3286, %v3500
      %v3502 = vpop.f32.mrb[0].mxu0
      %v3503 = vpop.f32.mrb[0].mxu0
      %v3504 = vadd.f32 %v3289, %v3503
      %v3505 = vpop.f32.mrb[0].mxu0
      %3506 = vmatprep.mubr.bf16.mxu0 0
      %3507 = vmatmul.mubr.bf16.gmra.mrb[0].mxu0 %v3392
      %v3508 = vpop.f32.mrb[0].mxu0
      %v3509 = vadd.f32 %v3294, %v3508
      %v3510 = vpop.f32.mrb[0].mxu0
      %v3511 = vpop.f32.mrb[0].mxu0
      %v3512 = vadd.f32 %v3297, %v3511
      %v3513 = vpop.f32.mrb[0].mxu0
      %3514 = vmatprep.mubr.bf16.mxu0 0
      %3515 = vmatmul.mubr.bf16.gmra.mrb[0].mxu0 %v3395
      %v3516 = vpop.f32.mrb[0].mxu0
      %v3517 = vadd.f32 %v3302, %v3516
      %v3518 = vpop.f32.mrb[0].mxu0
      %v3519 = vpop.f32.mrb[0].mxu0
      %v3520 = vadd.f32 %v3305, %v3519
      %v3521 = vpop.f32.mrb[0].mxu0
      %3522 = vmatprep.mubr.bf16.mxu0 0
      %3523 = vmatmul.mubr.bf16.gmra.mrb[0].mxu0 %v3398
      %v3524 = vpop.f32.mrb[0].mxu0
      %v3525 = vadd.f32 %v3310, %v3524
      %v3526 = vpop.f32.mrb[0].mxu0
      %v3527 = vpop.f32.mrb[0].mxu0
      %v3528 = vadd.f32 %v3313, %v3527
      %v3529 = vpop.f32.mrb[0].mxu0
      %3530 = vmatprep.mubr.bf16.mxu0 0
      %3531 = vmatmul.mubr.bf16.gmra.mrb[0].mxu0 %v3401
      %v3532 = vpop.f32.mrb[0].mxu0
      %v3533 = vadd.f32 %v3318, %v3532
      %v3534 = vpop.f32.mrb[0].mxu0
      %v3535 = vpop.f32.mrb[0].mxu0
      %v3536 = vadd.f32 %v3321, %v3535
      %v3537 = vpop.f32.mrb[0].mxu0
      %3538 = vmatprep.mubr.bf16.mxu0 0
      %3539 = vmatmul.mubr.bf16.gmra.mrb[0].mxu0 %v3404
      %v3540 = vpop.f32.mrb[0].mxu0
      %v3541 = vadd.f32 %v3326, %v3540
      %v3542 = vpop.f32.mrb[0].mxu0
      %v3543 = vpop.f32.mrb[0].mxu0
      %v3544 = vadd.f32 %v3329, %v3543
      %v3545 = vpop.f32.mrb[0].mxu0
      %3546 = vmatprep.mubr.bf16.mxu0 0
      %3547 = vmatmul.mubr.bf16.gmra.mrb[0].mxu0 %v3407
      %v3548 = vpop.f32.mrb[0].mxu0
      %v3549 = vadd.f32 %v3334, %v3548
      %v3550 = vpop.f32.mrb[0].mxu0
      %v3551 = vpop.f32.mrb[0].mxu0
      %v3552 = vadd.f32 %v3337, %v3551
      %v3553 = vpop.f32.mrb[0].mxu0
      %3554 = vmatprep.mubr.bf16.mxu0 0
      %3555 = vmatmul.mubr.bf16.gmra.mrb[0].mxu0 %v3410
      %v3556 = vpop.f32.mrb[0].mxu0
      %v3557 = vadd.f32 %v3342, %v3556
      %v3558 = vpop.f32.mrb[0].mxu0
      %v3559 = vpop.f32.mrb[0].mxu0
      %v3560 = vadd.f32 %v3345, %v3559
      %v3561 = vpop.f32.mrb[0].mxu0
      %3562 = vmatprep.mubr.bf16.mxu0 0
      %3563 = vmatmul.mubr.bf16.gmra.mrb[0].mxu0 %v3413
      %v3564 = vpop.f32.mrb[0].mxu0
      %v3565 = vadd.f32 %v3350, %v3564
      %v3566 = vpop.f32.mrb[0].mxu0
      %v3567 = vpop.f32.mrb[0].mxu0
      %v3568 = vadd.f32 %v3353, %v3567
      %v3569 = vpop.f32.mrb[0].mxu0
      %3570 = vmatprep.mubr.bf16.mxu0 0
      %3571 = vmatmul.mubr.bf16.gmra.mrb[0].mxu0 %v3416
      %v3572 = vpop.f32.mrb[0].mxu0
      %v3573 = vadd.f32 %v3358, %v3572
      %v3574 = vpop.f32.mrb[0].mxu0
      %v3575 = vpop.f32.mrb[0].mxu0
      %v3576 = vadd.f32 %v3361, %v3575
      %v3577 = vpop.f32.mrb[0].mxu0
      %3578 = vdwg.mxu0
      %v3579 = vld [vmem:[#allocation2 + $0x2] sm:$0xff]
      %v3580 = vld [vmem:[#allocation2 + $0xa] sm:$0xff]
      %v3581 = vld [vmem:[#allocation2 + $0x1a] sm:$0xff]
      %v3582 = vld [vmem:[#allocation2 + $0x22] sm:$0xff]
      %v3583 = vld [vmem:[#allocation2 + $0x32] sm:$0xff]
      %v3584 = vld [vmem:[#allocation2 + $0x3a] sm:$0xff]
      %v3585 = vld [vmem:[#allocation2 + $0x4a] sm:$0xff]
      %v3586 = vld [vmem:[#allocation2 + $0x52] sm:$0xff]
      %v3587 = vld [vmem:[#allocation2 + $0x62] sm:$0xff]
      %v3588 = vld [vmem:[#allocation2 + $0x6a] sm:$0xff]
      %v3589 = vld [vmem:[#allocation2 + $0x7a] sm:$0xff]
      %v3590 = vld [vmem:[#allocation2 + $0x82] sm:$0xff]
      %v3591 = vld [vmem:[#allocation2 + $0x92] sm:$0xff]
      %v3592 = vld [vmem:[#allocation2 + $0x9a] sm:$0xff]
      %v3593 = vld [vmem:[#allocation2 + $0xaa] sm:$0xff]
      %v3594 = vld [vmem:[#allocation2 + $0xb2] sm:$0xff]
      %v3595 = vld [vmem:[#allocation2 + $0xc2] sm:$0xff]
      %v3596 = vld [vmem:[#allocation2 + $0xca] sm:$0xff]
      %v3597 = vld [vmem:[#allocation2 + $0xda] sm:$0xff]
      %v3598 = vld [vmem:[#allocation2 + $0xe2] sm:$0xff]
      %v3599 = vld [vmem:[#allocation2 + $0xf2] sm:$0xff]
      %v3600 = vld [vmem:[#allocation2 + $0xfa] sm:$0xff]
      %v3601 = vld [vmem:[#allocation2 + $0x10a] sm:$0xff]
      %v3602 = vld [vmem:[#allocation2 + $0x112] sm:$0xff]
      %v3603 = vld [vmem:[#allocation2 + $0x122] sm:$0xff]
      %v3604 = vld [vmem:[#allocation2 + $0x12a] sm:$0xff]
      %v3605 = vld [vmem:[#allocation2 + $0x13a] sm:$0xff]
      %v3606 = vld [vmem:[#allocation2 + $0x142] sm:$0xff]
      %v3607 = vld [vmem:[#allocation2 + $0x152] sm:$0xff]
      %v3608 = vld [vmem:[#allocation2 + $0x15a] sm:$0xff]
      %v3609 = vld [vmem:[#allocation2 + $0x16a] sm:$0xff]
      %v3610 = vld [vmem:[#allocation2 + $0x172] sm:$0xff]
      %v3611 = vpack.c.bf16 %v3580, %v3579
      %v3612 = vpack.c.bf16 %v3582, %v3581
      %v3613 = vpack.c.bf16 %v3584, %v3583
      %v3614 = vpack.c.bf16 %v3586, %v3585
      %v3615 = vpack.c.bf16 %v3588, %v3587
      %v3616 = vpack.c.bf16 %v3590, %v3589
      %v3617 = vpack.c.bf16 %v3592, %v3591
      %v3618 = vpack.c.bf16 %v3594, %v3593
      %v3619 = vpack.c.bf16 %v3596, %v3595
      %v3620 = vpack.c.bf16 %v3598, %v3597
      %v3621 = vpack.c.bf16 %v3600, %v3599
      %v3622 = vpack.c.bf16 %v3602, %v3601
      %v3623 = vpack.c.bf16 %v3604, %v3603
      %v3624 = vpack.c.bf16 %v3606, %v3605
      %v3625 = vpack.c.bf16 %v3608, %v3607
      %v3626 = vpack.c.bf16 %v3610, %v3609
      %v3627 = vld [vmem:[%s3 + $0x10] sm:$0xf]
      %v3628 = vld [vmem:[%s3 + $0x14] sm:$0xf]
      %v3631 = vunpack.c.l.b16 %v3627
      %v3632 = vunpack.c.l.b16 %v3628
      %v3633 = vpack.c.b16 %v3632, %v3631
      %v3636 = vsel %vm2928, %v3611, 0
      %v3639 = vsel %vm2928, %v3612, 0
      %v3642 = vsel %vm2928, %v3613, 0
      %v3645 = vsel %vm2928, %v3614, 0
      %v3648 = vsel %vm2928, %v3615, 0
      %v3651 = vsel %vm2928, %v3616, 0
      %v3654 = vsel %vm2928, %v3617, 0
      %v3657 = vsel %vm2928, %v3618, 0
      %v3660 = vsel %vm2928, %v3619, 0
      %v3663 = vsel %vm2928, %v3620, 0
      %v3666 = vsel %vm2928, %v3621, 0
      %v3669 = vsel %vm2928, %v3622, 0
      %v3672 = vsel %vm2928, %v3623, 0
      %v3675 = vsel %vm2928, %v3624, 0
      %v3678 = vsel %vm2928, %v3625, 0
      %v3681 = vsel %vm2928, %v3626, 0
      %3683 = vmatprep.subr.bf16.mxu0 0
      %3684 = vmatpush1.bf16.msra.mxu0 %v3633
      %3685 = vmatprep.subr.bf16.mxu0 0
      %3686 = vmatpush1.bf16.msra.mxu0 0
      %3687 = vmatprep.subr.bf16.mxu0 0
      %3688 = vmatpush1.bf16.msra.mxu0 0
      %3689 = vmatprep.subr.bf16.mxu0 0
      %3690 = vmatpush1.bf16.msra.mxu0 0
      %3691 = vmatprep.subr.bf16.mxu0 0
      %3692 = vmatpush1.bf16.msra.mxu0 0
      %3693 = vmatprep.subr.bf16.mxu0 0
      %3694 = vmatpush1.bf16.msra.mxu0 0
      %3695 = vmatprep.subr.bf16.mxu0 0
      %3696 = vmatpush1.bf16.msra.mxu0 0
      %3697 = vmatprep.subr.bf16.mxu0 0
      %3698 = vmatpush1.bf16.msra.mxu0 0
      %3699 = vmatprep.subr.bf16.mxu0 0
      %3700 = vmatpush1.bf16.msra.mxu0 0
      %3701 = vmatprep.subr.bf16.mxu0 0
      %3702 = vmatpush1.bf16.msra.mxu0 0
      %3703 = vmatprep.subr.bf16.mxu0 0
      %3704 = vmatpush1.bf16.msra.mxu0 0
      %3705 = vmatprep.subr.bf16.mxu0 0
      %3706 = vmatpush1.bf16.msra.mxu0 0
      %3707 = vmatprep.subr.bf16.mxu0 0
      %3708 = vmatpush1.bf16.msra.mxu0 0
      %3709 = vmatprep.subr.bf16.mxu0 0
      %3710 = vmatpush1.bf16.msra.mxu0 0
      %3711 = vmatprep.subr.bf16.mxu0 0
      %3712 = vmatpush1.bf16.msra.mxu0 0
      %3713 = vmatprep.subr.bf16.mxu0 0
      %3714 = vmatpush1.bf16.msra.mxu0 0
      %3715 = vmatprep.mubr.bf16.mxu0 0
      %3716 = vmatmul.mubr.bf16.gmra.mrb[0].mxu0 %v3636
      %v3717 = vpop.f32.mrb[0].mxu0
      %v3718 = vadd.f32 0.0, %v3717
      %v3719 = vpop.f32.mrb[0].mxu0
      %v3720 = vpop.f32.mrb[0].mxu0
      %v3721 = vadd.f32 0.0, %v3720
      %v3722 = vpop.f32.mrb[0].mxu0
      %3723 = vmatprep.mubr.bf16.mxu0 0
      %3724 = vmatmul.mubr.bf16.gmra.mrb[0].mxu0 %v3639
      %v3725 = vpop.f32.mrb[0].mxu0
      %v3726 = vadd.f32 0.0, %v3725
      %v3727 = vpop.f32.mrb[0].mxu0
      %v3728 = vpop.f32.mrb[0].mxu0
      %v3729 = vadd.f32 0.0, %v3728
      %v3730 = vpop.f32.mrb[0].mxu0
      %3731 = vmatprep.mubr.bf16.mxu0 0
      %3732 = vmatmul.mubr.bf16.gmra.mrb[0].mxu0 %v3642
      %v3733 = vpop.f32.mrb[0].mxu0
      %v3734 = vadd.f32 0.0, %v3733
      %v3735 = vpop.f32.mrb[0].mxu0
      %v3736 = vpop.f32.mrb[0].mxu0
      %v3737 = vadd.f32 0.0, %v3736
      %v3738 = vpop.f32.mrb[0].mxu0
      %3739 = vmatprep.mubr.bf16.mxu0 0
      %3740 = vmatmul.mubr.bf16.gmra.mrb[0].mxu0 %v3645
      %v3741 = vpop.f32.mrb[0].mxu0
      %v3742 = vadd.f32 0.0, %v3741
      %v3743 = vpop.f32.mrb[0].mxu0
      %v3744 = vpop.f32.mrb[0].mxu0
      %v3745 = vadd.f32 0.0, %v3744
      %v3746 = vpop.f32.mrb[0].mxu0
      %3747 = vmatprep.mubr.bf16.mxu0 0
      %3748 = vmatmul.mubr.bf16.gmra.mrb[0].mxu0 %v3648
      %v3749 = vpop.f32.mrb[0].mxu0
      %v3750 = vadd.f32 0.0, %v3749
      %v3751 = vpop.f32.mrb[0].mxu0
      %v3752 = vpop.f32.mrb[0].mxu0
      %v3753 = vadd.f32 0.0, %v3752
      %v3754 = vpop.f32.mrb[0].mxu0
      %3755 = vmatprep.mubr.bf16.mxu0 0
      %3756 = vmatmul.mubr.bf16.gmra.mrb[0].mxu0 %v3651
      %v3757 = vpop.f32.mrb[0].mxu0
      %v3758 = vadd.f32 0.0, %v3757
      %v3759 = vpop.f32.mrb[0].mxu0
      %v3760 = vpop.f32.mrb[0].mxu0
      %v3761 = vadd.f32 0.0, %v3760
      %v3762 = vpop.f32.mrb[0].mxu0
      %3763 = vmatprep.mubr.bf16.mxu0 0
      %3764 = vmatmul.mubr.bf16.gmra.mrb[0].mxu0 %v3654
      %v3765 = vpop.f32.mrb[0].mxu0
      %v3766 = vadd.f32 0.0, %v3765
      %v3767 = vpop.f32.mrb[0].mxu0
      %v3768 = vpop.f32.mrb[0].mxu0
      %v3769 = vadd.f32 0.0, %v3768
      %v3770 = vpop.f32.mrb[0].mxu0
      %3771 = vmatprep.mubr.bf16.mxu0 0
      %3772 = vmatmul.mubr.bf16.gmra.mrb[0].mxu0 %v3657
      %v3773 = vpop.f32.mrb[0].mxu0
      %v3774 = vadd.f32 0.0, %v3773
      %v3775 = vpop.f32.mrb[0].mxu0
      %v3776 = vpop.f32.mrb[0].mxu0
      %v3777 = vadd.f32 0.0, %v3776
      %v3778 = vpop.f32.mrb[0].mxu0
      %3779 = vmatprep.mubr.bf16.mxu0 0
      %3780 = vmatmul.mubr.bf16.gmra.mrb[0].mxu0 %v3660
      %v3781 = vpop.f32.mrb[0].mxu0
      %v3782 = vadd.f32 0.0, %v3781
      %v3783 = vpop.f32.mrb[0].mxu0
      %v3784 = vpop.f32.mrb[0].mxu0
      %v3785 = vadd.f32 0.0, %v3784
      %v3786 = vpop.f32.mrb[0].mxu0
      %3787 = vmatprep.mubr.bf16.mxu0 0
      %3788 = vmatmul.mubr.bf16.gmra.mrb[0].mxu0 %v3663
      %v3789 = vpop.f32.mrb[0].mxu0
      %v3790 = vadd.f32 0.0, %v3789
      %v3791 = vpop.f32.mrb[0].mxu0
      %v3792 = vpop.f32.mrb[0].mxu0
      %v3793 = vadd.f32 0.0, %v3792
      %v3794 = vpop.f32.mrb[0].mxu0
      %3795 = vmatprep.mubr.bf16.mxu0 0
      %3796 = vmatmul.mubr.bf16.gmra.mrb[0].mxu0 %v3666
      %v3797 = vpop.f32.mrb[0].mxu0
      %v3798 = vadd.f32 0.0, %v3797
      %v3799 = vpop.f32.mrb[0].mxu0
      %v3800 = vpop.f32.mrb[0].mxu0
      %v3801 = vadd.f32 0.0, %v3800
      %v3802 = vpop.f32.mrb[0].mxu0
      %3803 = vmatprep.mubr.bf16.mxu0 0
      %3804 = vmatmul.mubr.bf16.gmra.mrb[0].mxu0 %v3669
      %v3805 = vpop.f32.mrb[0].mxu0
      %v3806 = vadd.f32 0.0, %v3805
      %v3807 = vpop.f32.mrb[0].mxu0
      %v3808 = vpop.f32.mrb[0].mxu0
      %v3809 = vadd.f32 0.0, %v3808
      %v3810 = vpop.f32.mrb[0].mxu0
      %3811 = vmatprep.mubr.bf16.mxu0 0
      %3812 = vmatmul.mubr.bf16.gmra.mrb[0].mxu0 %v3672
      %v3813 = vpop.f32.mrb[0].mxu0
      %v3814 = vadd.f32 0.0, %v3813
      %v3815 = vpop.f32.mrb[0].mxu0
      %v3816 = vpop.f32.mrb[0].mxu0
      %v3817 = vadd.f32 0.0, %v3816
      %v3818 = vpop.f32.mrb[0].mxu0
      %3819 = vmatprep.mubr.bf16.mxu0 0
      %3820 = vmatmul.mubr.bf16.gmra.mrb[0].mxu0 %v3675
      %v3821 = vpop.f32.mrb[0].mxu0
      %v3822 = vadd.f32 0.0, %v3821
      %v3823 = vpop.f32.mrb[0].mxu0
      %v3824 = vpop.f32.mrb[0].mxu0
      %v3825 = vadd.f32 0.0, %v3824
      %v3826 = vpop.f32.mrb[0].mxu0
      %3827 = vmatprep.mubr.bf16.mxu0 0
      %3828 = vmatmul.mubr.bf16.gmra.mrb[0].mxu0 %v3678
      %v3829 = vpop.f32.mrb[0].mxu0
      %v3830 = vadd.f32 0.0, %v3829
      %v3831 = vpop.f32.mrb[0].mxu0
      %v3832 = vpop.f32.mrb[0].mxu0
      %v3833 = vadd.f32 0.0, %v3832
      %v3834 = vpop.f32.mrb[0].mxu0
      %3835 = vmatprep.mubr.bf16.mxu0 0
      %3836 = vmatmul.mubr.bf16.gmra.mrb[0].mxu0 %v3681
      %v3837 = vpop.f32.mrb[0].mxu0
      %v3838 = vadd.f32 0.0, %v3837
      %v3839 = vpop.f32.mrb[0].mxu0
      %v3840 = vpop.f32.mrb[0].mxu0
      %v3841 = vadd.f32 0.0, %v3840
      %v3842 = vpop.f32.mrb[0].mxu0
      %3843 = vdwg.mxu0
      %v3844 = vadd.f32 %v3453, %v3718
      %v3845 = vadd.f32 %v3456, %v3721
      %v3846 = vadd.f32 %v3461, %v3726
      %v3847 = vadd.f32 %v3464, %v3729
      %v3848 = vadd.f32 %v3469, %v3734
      %v3849 = vadd.f32 %v3472, %v3737
      %v3850 = vadd.f32 %v3477, %v3742
      %v3851 = vadd.f32 %v3480, %v3745
      %v3852 = vadd.f32 %v3485, %v3750
      %v3853 = vadd.f32 %v3488, %v3753
      %v3854 = vadd.f32 %v3493, %v3758
      %v3855 = vadd.f32 %v3496, %v3761
      %v3856 = vadd.f32 %v3501, %v3766
      %v3857 = vadd.f32 %v3504, %v3769
      %v3858 = vadd.f32 %v3509, %v3774
      %v3859 = vadd.f32 %v3512, %v3777
      %v3860 = vadd.f32 %v3517, %v3782
      %v3861 = vadd.f32 %v3520, %v3785
      %v3862 = vadd.f32 %v3525, %v3790
      %v3863 = vadd.f32 %v3528, %v3793
      %v3864 = vadd.f32 %v3533, %v3798
      %v3865 = vadd.f32 %v3536, %v3801
      %v3866 = vadd.f32 %v3541, %v3806
      %v3867 = vadd.f32 %v3544, %v3809
      %v3868 = vadd.f32 %v3549, %v3814
      %v3869 = vadd.f32 %v3552, %v3817
      %v3870 = vadd.f32 %v3557, %v3822
      %v3871 = vadd.f32 %v3560, %v3825
      %v3872 = vadd.f32 %v3565, %v3830
      %v3873 = vadd.f32 %v3568, %v3833
      %v3874 = vadd.f32 %v3573, %v3838
      %v3875 = vadd.f32 %v3576, %v3841
      %v3876 = vld [vmem:[%s3016] sm:$0xff]
      %v3877 = vld [vmem:[%s3016 + $0x8] sm:$0xff]
      %v3878 = vld [vmem:[%s3016 + $0x18] sm:$0xff]
      %v3879 = vld [vmem:[%s3016 + $0x20] sm:$0xff]
      %v3880 = vld [vmem:[%s3016 + $0x30] sm:$0xff]
      %v3881 = vld [vmem:[%s3016 + $0x38] sm:$0xff]
      %v3882 = vld [vmem:[%s3016 + $0x48] sm:$0xff]
      %v3883 = vld [vmem:[%s3016 + $0x50] sm:$0xff]
      %v3884 = vld [vmem:[%s3016 + $0x60] sm:$0xff]
      %v3885 = vld [vmem:[%s3016 + $0x68] sm:$0xff]
      %v3886 = vld [vmem:[%s3016 + $0x78] sm:$0xff]
      %v3887 = vld [vmem:[%s3016 + $0x80] sm:$0xff]
      %v3888 = vld [vmem:[%s3016 + $0x90] sm:$0xff]
      %v3889 = vld [vmem:[%s3016 + $0x98] sm:$0xff]
      %v3890 = vld [vmem:[%s3016 + $0xa8] sm:$0xff]
      %v3891 = vld [vmem:[%s3016 + $0xb0] sm:$0xff]
      %v3892 = vld [vmem:[%s3016 + $0xc0] sm:$0xff]
      %v3893 = vld [vmem:[%s3016 + $0xc8] sm:$0xff]
      %v3894 = vld [vmem:[%s3016 + $0xd8] sm:$0xff]
      %v3895 = vld [vmem:[%s3016 + $0xe0] sm:$0xff]
      %v3896 = vld [vmem:[%s3016 + $0xf0] sm:$0xff]
      %v3897 = vld [vmem:[%s3016 + $0xf8] sm:$0xff]
      %v3898 = vld [vmem:[%s3016 + $0x108] sm:$0xff]
      %v3899 = vld [vmem:[%s3016 + $0x110] sm:$0xff]
      %v3900 = vld [vmem:[%s3016 + $0x120] sm:$0xff]
      %v3901 = vld [vmem:[%s3016 + $0x128] sm:$0xff]
      %v3902 = vld [vmem:[%s3016 + $0x138] sm:$0xff]
      %v3903 = vld [vmem:[%s3016 + $0x140] sm:$0xff]
      %v3904 = vld [vmem:[%s3016 + $0x150] sm:$0xff]
      %v3905 = vld [vmem:[%s3016 + $0x158] sm:$0xff]
      %v3906 = vld [vmem:[%s3016 + $0x168] sm:$0xff]
      %v3907 = vld [vmem:[%s3016 + $0x170] sm:$0xff]
      %v3908 = vpack.c.bf16 %v3877, %v3876
      %v3909 = vpack.c.bf16 %v3879, %v3878
      %v3910 = vpack.c.bf16 %v3881, %v3880
      %v3911 = vpack.c.bf16 %v3883, %v3882
      %v3912 = vpack.c.bf16 %v3885, %v3884
      %v3913 = vpack.c.bf16 %v3887, %v3886
      %v3914 = vpack.c.bf16 %v3889, %v3888
      %v3915 = vpack.c.bf16 %v3891, %v3890
      %v3916 = vpack.c.bf16 %v3893, %v3892
      %v3917 = vpack.c.bf16 %v3895, %v3894
      %v3918 = vpack.c.bf16 %v3897, %v3896
      %v3919 = vpack.c.bf16 %v3899, %v3898
      %v3920 = vpack.c.bf16 %v3901, %v3900
      %v3921 = vpack.c.bf16 %v3903, %v3902
      %v3922 = vpack.c.bf16 %v3905, %v3904
      %v3923 = vpack.c.bf16 %v3907, %v3906
      %v3924 = vld [vmem:[%s3 + $0x18] sm:$0xf]
      %v3925 = vld [vmem:[%s3 + $0x1c] sm:$0xf]
      %v3928 = vunpack.c.l.b16 %v3924
      %v3929 = vunpack.c.l.b16 %v3925
      %v3930 = vpack.c.b16 %v3929, %v3928
      %v3933 = vsel %vm2928, %v3908, 0
      %v3936 = vsel %vm2928, %v3909, 0
      %v3939 = vsel %vm2928, %v3910, 0
      %v3942 = vsel %vm2928, %v3911, 0
      %v3945 = vsel %vm2928, %v3912, 0
      %v3948 = vsel %vm2928, %v3913, 0
      %v3951 = vsel %vm2928, %v3914, 0
      %v3954 = vsel %vm2928, %v3915, 0
      %v3957 = vsel %vm2928, %v3916, 0
      %v3960 = vsel %vm2928, %v3917, 0
      %v3963 = vsel %vm2928, %v3918, 0
      %v3966 = vsel %vm2928, %v3919, 0
      %v3969 = vsel %vm2928, %v3920, 0
      %v3972 = vsel %vm2928, %v3921, 0
      %v3975 = vsel %vm2928, %v3922, 0
      %v3978 = vsel %vm2928, %v3923, 0
      %3980 = vmatprep.subr.bf16.mxu0 0
      %3981 = vmatpush1.bf16.msra.mxu0 %v3930
      %3982 = vmatprep.subr.bf16.mxu0 0
      %3983 = vmatpush1.bf16.msra.mxu0 0
      %3984 = vmatprep.subr.bf16.mxu0 0
      %3985 = vmatpush1.bf16.msra.mxu0 0
      %3986 = vmatprep.subr.bf16.mxu0 0
      %3987 = vmatpush1.bf16.msra.mxu0 0
      %3988 = vmatprep.subr.bf16.mxu0 0
      %3989 = vmatpush1.bf16.msra.mxu0 0
      %3990 = vmatprep.subr.bf16.mxu0 0
      %3991 = vmatpush1.bf16.msra.mxu0 0
      %3992 = vmatprep.subr.bf16.mxu0 0
      %3993 = vmatpush1.bf16.msra.mxu0 0
      %3994 = vmatprep.subr.bf16.mxu0 0
      %3995 = vmatpush1.bf16.msra.mxu0 0
      %3996 = vmatprep.subr.bf16.mxu0 0
      %3997 = vmatpush1.bf16.msra.mxu0 0
      %3998 = vmatprep.subr.bf16.mxu0 0
      %3999 = vmatpush1.bf16.msra.mxu0 0
      %4000 = vmatprep.subr.bf16.mxu0 0
      %4001 = vmatpush1.bf16.msra.mxu0 0
      %4002 = vmatprep.subr.bf16.mxu0 0
      %4003 = vmatpush1.bf16.msra.mxu0 0
      %4004 = vmatprep.subr.bf16.mxu0 0
      %4005 = vmatpush1.bf16.msra.mxu0 0
      %4006 = vmatprep.subr.bf16.mxu0 0
      %4007 = vmatpush1.bf16.msra.mxu0 0
      %4008 = vmatprep.subr.bf16.mxu0 0
      %4009 = vmatpush1.bf16.msra.mxu0 0
      %4010 = vmatprep.subr.bf16.mxu0 0
      %4011 = vmatpush1.bf16.msra.mxu0 0
      %4012 = vmatprep.mubr.bf16.mxu0 0
      %4013 = vmatmul.mubr.bf16.gmra.mrb[0].mxu0 %v3933
      %v4014 = vpop.f32.mrb[0].mxu0
      %v4015 = vadd.f32 0.0, %v4014
      %v4016 = vpop.f32.mrb[0].mxu0
      %v4017 = vpop.f32.mrb[0].mxu0
      %v4018 = vadd.f32 0.0, %v4017
      %v4019 = vpop.f32.mrb[0].mxu0
      %4020 = vmatprep.mubr.bf16.mxu0 0
      %4021 = vmatmul.mubr.bf16.gmra.mrb[0].mxu0 %v3936
      %v4022 = vpop.f32.mrb[0].mxu0
      %v4023 = vadd.f32 0.0, %v4022
      %v4024 = vpop.f32.mrb[0].mxu0
      %v4025 = vpop.f32.mrb[0].mxu0
      %v4026 = vadd.f32 0.0, %v4025
      %v4027 = vpop.f32.mrb[0].mxu0
      %4028 = vmatprep.mubr.bf16.mxu0 0
      %4029 = vmatmul.mubr.bf16.gmra.mrb[0].mxu0 %v3939
      %v4030 = vpop.f32.mrb[0].mxu0
      %v4031 = vadd.f32 0.0, %v4030
      %v4032 = vpop.f32.mrb[0].mxu0
      %v4033 = vpop.f32.mrb[0].mxu0
      %v4034 = vadd.f32 0.0, %v4033
      %v4035 = vpop.f32.mrb[0].mxu0
      %4036 = vmatprep.mubr.bf16.mxu0 0
      %4037 = vmatmul.mubr.bf16.gmra.mrb[0].mxu0 %v3942
      %v4038 = vpop.f32.mrb[0].mxu0
      %v4039 = vadd.f32 0.0, %v4038
      %v4040 = vpop.f32.mrb[0].mxu0
      %v4041 = vpop.f32.mrb[0].mxu0
      %v4042 = vadd.f32 0.0, %v4041
      %v4043 = vpop.f32.mrb[0].mxu0
      %4044 = vmatprep.mubr.bf16.mxu0 0
      %4045 = vmatmul.mubr.bf16.gmra.mrb[0].mxu0 %v3945
      %v4046 = vpop.f32.mrb[0].mxu0
      %v4047 = vadd.f32 0.0, %v4046
      %v4048 = vpop.f32.mrb[0].mxu0
      %v4049 = vpop.f32.mrb[0].mxu0
      %v4050 = vadd.f32 0.0, %v4049
      %v4051 = vpop.f32.mrb[0].mxu0
      %4052 = vmatprep.mubr.bf16.mxu0 0
      %4053 = vmatmul.mubr.bf16.gmra.mrb[0].mxu0 %v3948
      %v4054 = vpop.f32.mrb[0].mxu0
      %v4055 = vadd.f32 0.0, %v4054
      %v4056 = vpop.f32.mrb[0].mxu0
      %v4057 = vpop.f32.mrb[0].mxu0
      %v4058 = vadd.f32 0.0, %v4057
      %v4059 = vpop.f32.mrb[0].mxu0
      %4060 = vmatprep.mubr.bf16.mxu0 0
      %4061 = vmatmul.mubr.bf16.gmra.mrb[0].mxu0 %v3951
      %v4062 = vpop.f32.mrb[0].mxu0
      %v4063 = vadd.f32 0.0, %v4062
      %v4064 = vpop.f32.mrb[0].mxu0
      %v4065 = vpop.f32.mrb[0].mxu0
      %v4066 = vadd.f32 0.0, %v4065
      %v4067 = vpop.f32.mrb[0].mxu0
      %4068 = vmatprep.mubr.bf16.mxu0 0
      %4069 = vmatmul.mubr.bf16.gmra.mrb[0].mxu0 %v3954
      %v4070 = vpop.f32.mrb[0].mxu0
      %v4071 = vadd.f32 0.0, %v4070
      %v4072 = vpop.f32.mrb[0].mxu0
      %v4073 = vpop.f32.mrb[0].mxu0
      %v4074 = vadd.f32 0.0, %v4073
      %v4075 = vpop.f32.mrb[0].mxu0
      %4076 = vmatprep.mubr.bf16.mxu0 0
      %4077 = vmatmul.mubr.bf16.gmra.mrb[0].mxu0 %v3957
      %v4078 = vpop.f32.mrb[0].mxu0
      %v4079 = vadd.f32 0.0, %v4078
      %v4080 = vpop.f32.mrb[0].mxu0
      %v4081 = vpop.f32.mrb[0].mxu0
      %v4082 = vadd.f32 0.0, %v4081
      %v4083 = vpop.f32.mrb[0].mxu0
      %4084 = vmatprep.mubr.bf16.mxu0 0
      %4085 = vmatmul.mubr.bf16.gmra.mrb[0].mxu0 %v3960
      %v4086 = vpop.f32.mrb[0].mxu0
      %v4087 = vadd.f32 0.0, %v4086
      %v4088 = vpop.f32.mrb[0].mxu0
      %v4089 = vpop.f32.mrb[0].mxu0
      %v4090 = vadd.f32 0.0, %v4089
      %v4091 = vpop.f32.mrb[0].mxu0
      %4092 = vmatprep.mubr.bf16.mxu0 0
      %4093 = vmatmul.mubr.bf16.gmra.mrb[0].mxu0 %v3963
      %v4094 = vpop.f32.mrb[0].mxu0
      %v4095 = vadd.f32 0.0, %v4094
      %v4096 = vpop.f32.mrb[0].mxu0
      %v4097 = vpop.f32.mrb[0].mxu0
      %v4098 = vadd.f32 0.0, %v4097
      %v4099 = vpop.f32.mrb[0].mxu0
      %4100 = vmatprep.mubr.bf16.mxu0 0
      %4101 = vmatmul.mubr.bf16.gmra.mrb[0].mxu0 %v3966
      %v4102 = vpop.f32.mrb[0].mxu0
      %v4103 = vadd.f32 0.0, %v4102
      %v4104 = vpop.f32.mrb[0].mxu0
      %v4105 = vpop.f32.mrb[0].mxu0
      %v4106 = vadd.f32 0.0, %v4105
      %v4107 = vpop.f32.mrb[0].mxu0
      %4108 = vmatprep.mubr.bf16.mxu0 0
      %4109 = vmatmul.mubr.bf16.gmra.mrb[0].mxu0 %v3969
      %v4110 = vpop.f32.mrb[0].mxu0
      %v4111 = vadd.f32 0.0, %v4110
      %v4112 = vpop.f32.mrb[0].mxu0
      %v4113 = vpop.f32.mrb[0].mxu0
      %v4114 = vadd.f32 0.0, %v4113
      %v4115 = vpop.f32.mrb[0].mxu0
      %4116 = vmatprep.mubr.bf16.mxu0 0
      %4117 = vmatmul.mubr.bf16.gmra.mrb[0].mxu0 %v3972
      %v4118 = vpop.f32.mrb[0].mxu0
      %v4119 = vadd.f32 0.0, %v4118
      %v4120 = vpop.f32.mrb[0].mxu0
      %v4121 = vpop.f32.mrb[0].mxu0
      %v4122 = vadd.f32 0.0, %v4121
      %v4123 = vpop.f32.mrb[0].mxu0
      %4124 = vmatprep.mubr.bf16.mxu0 0
      %4125 = vmatmul.mubr.bf16.gmra.mrb[0].mxu0 %v3975
      %v4126 = vpop.f32.mrb[0].mxu0
      %v4127 = vadd.f32 0.0, %v4126
      %v4128 = vpop.f32.mrb[0].mxu0
      %v4129 = vpop.f32.mrb[0].mxu0
      %v4130 = vadd.f32 0.0, %v4129
      %v4131 = vpop.f32.mrb[0].mxu0
      %4132 = vmatprep.mubr.bf16.mxu0 0
      %4133 = vmatmul.mubr.bf16.gmra.mrb[0].mxu0 %v3978
      %v4134 = vpop.f32.mrb[0].mxu0
      %v4135 = vadd.f32 0.0, %v4134
      %v4136 = vpop.f32.mrb[0].mxu0
      %v4137 = vpop.f32.mrb[0].mxu0
      %v4138 = vadd.f32 0.0, %v4137
      %v4139 = vpop.f32.mrb[0].mxu0
      %4140 = vdwg.mxu0
      %v4141 = vadd.f32 %v3844, %v4015
      %v4142 = vadd.f32 %v3845, %v4018
      %v4143 = vadd.f32 %v3846, %v4023
      %v4144 = vadd.f32 %v3847, %v4026
      %v4145 = vadd.f32 %v3848, %v4031
      %v4146 = vadd.f32 %v3849, %v4034
      %v4147 = vadd.f32 %v3850, %v4039
      %v4148 = vadd.f32 %v3851, %v4042
      %v4149 = vadd.f32 %v3852, %v4047
      %v4150 = vadd.f32 %v3853, %v4050
      %v4151 = vadd.f32 %v3854, %v4055
      %v4152 = vadd.f32 %v3855, %v4058
      %v4153 = vadd.f32 %v3856, %v4063
      %v4154 = vadd.f32 %v3857, %v4066
      %v4155 = vadd.f32 %v3858, %v4071
      %v4156 = vadd.f32 %v3859, %v4074
      %v4157 = vadd.f32 %v3860, %v4079
      %v4158 = vadd.f32 %v3861, %v4082
      %v4159 = vadd.f32 %v3862, %v4087
      %v4160 = vadd.f32 %v3863, %v4090
      %v4161 = vadd.f32 %v3864, %v4095
      %v4162 = vadd.f32 %v3865, %v4098
      %v4163 = vadd.f32 %v3866, %v4103
      %v4164 = vadd.f32 %v3867, %v4106
      %v4165 = vadd.f32 %v3868, %v4111
      %v4166 = vadd.f32 %v3869, %v4114
      %v4167 = vadd.f32 %v3870, %v4119
      %v4168 = vadd.f32 %v3871, %v4122
      %v4169 = vadd.f32 %v3872, %v4127
      %v4170 = vadd.f32 %v3873, %v4130
      %v4171 = vadd.f32 %v3874, %v4135
      %v4172 = vadd.f32 %v3875, %v4138
      %v4173 = vld [vmem:[%s3016 + $0x1] sm:$0xff]
      %v4174 = vld [vmem:[%s3016 + $0x9] sm:$0xff]
      %v4175 = vld [vmem:[%s3016 + $0x19] sm:$0xff]
      %v4176 = vld [vmem:[%s3016 + $0x21] sm:$0xff]
      %v4177 = vld [vmem:[%s3016 + $0x31] sm:$0xff]
      %v4178 = vld [vmem:[%s3016 + $0x39] sm:$0xff]
      %v4179 = vld [vmem:[%s3016 + $0x49] sm:$0xff]
      %v4180 = vld [vmem:[%s3016 + $0x51] sm:$0xff]
      %v4181 = vld [vmem:[%s3016 + $0x61] sm:$0xff]
      %v4182 = vld [vmem:[%s3016 + $0x69] sm:$0xff]
      %v4183 = vld [vmem:[%s3016 + $0x79] sm:$0xff]
      %v4184 = vld [vmem:[%s3016 + $0x81] sm:$0xff]
      %v4185 = vld [vmem:[%s3016 + $0x91] sm:$0xff]
      %v4186 = vld [vmem:[%s3016 + $0x99] sm:$0xff]
      %v4187 = vld [vmem:[%s3016 + $0xa9] sm:$0xff]
      %v4188 = vld [vmem:[%s3016 + $0xb1] sm:$0xff]
      %v4189 = vld [vmem:[%s3016 + $0xc1] sm:$0xff]
      %v4190 = vld [vmem:[%s3016 + $0xc9] sm:$0xff]
      %v4191 = vld [vmem:[%s3016 + $0xd9] sm:$0xff]
      %v4192 = vld [vmem:[%s3016 + $0xe1] sm:$0xff]
      %v4193 = vld [vmem:[%s3016 + $0xf1] sm:$0xff]
      %v4194 = vld [vmem:[%s3016 + $0xf9] sm:$0xff]
      %v4195 = vld [vmem:[%s3016 + $0x109] sm:$0xff]
      %v4196 = vld [vmem:[%s3016 + $0x111] sm:$0xff]
      %v4197 = vld [vmem:[%s3016 + $0x121] sm:$0xff]
      %v4198 = vld [vmem:[%s3016 + $0x129] sm:$0xff]
      %v4199 = vld [vmem:[%s3016 + $0x139] sm:$0xff]
      %v4200 = vld [vmem:[%s3016 + $0x141] sm:$0xff]
      %v4201 = vld [vmem:[%s3016 + $0x151] sm:$0xff]
      %v4202 = vld [vmem:[%s3016 + $0x159] sm:$0xff]
      %v4203 = vld [vmem:[%s3016 + $0x169] sm:$0xff]
      %v4204 = vld [vmem:[%s3016 + $0x171] sm:$0xff]
      %v4205 = vpack.c.bf16 %v4174, %v4173
      %v4206 = vpack.c.bf16 %v4176, %v4175
      %v4207 = vpack.c.bf16 %v4178, %v4177
      %v4208 = vpack.c.bf16 %v4180, %v4179
      %v4209 = vpack.c.bf16 %v4182, %v4181
      %v4210 = vpack.c.bf16 %v4184, %v4183
      %v4211 = vpack.c.bf16 %v4186, %v4185
      %v4212 = vpack.c.bf16 %v4188, %v4187
      %v4213 = vpack.c.bf16 %v4190, %v4189
      %v4214 = vpack.c.bf16 %v4192, %v4191
      %v4215 = vpack.c.bf16 %v4194, %v4193
      %v4216 = vpack.c.bf16 %v4196, %v4195
      %v4217 = vpack.c.bf16 %v4198, %v4197
      %v4218 = vpack.c.bf16 %v4200, %v4199
      %v4219 = vpack.c.bf16 %v4202, %v4201
      %v4220 = vpack.c.bf16 %v4204, %v4203
      %v4221 = vld [vmem:[%s3 + $0x20] sm:$0xf]
      %v4222 = vld [vmem:[%s3 + $0x24] sm:$0xf]
      %v4225 = vunpack.c.l.b16 %v4221
      %v4226 = vunpack.c.l.b16 %v4222
      %v4227 = vpack.c.b16 %v4226, %v4225
      %v4230 = vsel %vm2928, %v4205, 0
      %v4233 = vsel %vm2928, %v4206, 0
      %v4236 = vsel %vm2928, %v4207, 0
      %v4239 = vsel %vm2928, %v4208, 0
      %v4242 = vsel %vm2928, %v4209, 0
      %v4245 = vsel %vm2928, %v4210, 0
      %v4248 = vsel %vm2928, %v4211, 0
      %v4251 = vsel %vm2928, %v4212, 0
      %v4254 = vsel %vm2928, %v4213, 0
      %v4257 = vsel %vm2928, %v4214, 0
      %v4260 = vsel %vm2928, %v4215, 0
      %v4263 = vsel %vm2928, %v4216, 0
      %v4266 = vsel %vm2928, %v4217, 0
      %v4269 = vsel %vm2928, %v4218, 0
      %v4272 = vsel %vm2928, %v4219, 0
      %v4275 = vsel %vm2928, %v4220, 0
      %4277 = vmatprep.subr.bf16.mxu0 0
      %4278 = vmatpush1.bf16.msra.mxu0 %v4227
      %4279 = vmatprep.subr.bf16.mxu0 0
      %4280 = vmatpush1.bf16.msra.mxu0 0
      %4281 = vmatprep.subr.bf16.mxu0 0
      %4282 = vmatpush1.bf16.msra.mxu0 0
      %4283 = vmatprep.subr.bf16.mxu0 0
      %4284 = vmatpush1.bf16.msra.mxu0 0
      %4285 = vmatprep.subr.bf16.mxu0 0
      %4286 = vmatpush1.bf16.msra.mxu0 0
      %4287 = vmatprep.subr.bf16.mxu0 0
      %4288 = vmatpush1.bf16.msra.mxu0 0
      %4289 = vmatprep.subr.bf16.mxu0 0
      %4290 = vmatpush1.bf16.msra.mxu0 0
      %4291 = vmatprep.subr.bf16.mxu0 0
      %4292 = vmatpush1.bf16.msra.mxu0 0
      %4293 = vmatprep.subr.bf16.mxu0 0
      %4294 = vmatpush1.bf16.msra.mxu0 0
      %4295 = vmatprep.subr.bf16.mxu0 0
      %4296 = vmatpush1.bf16.msra.mxu0 0
      %4297 = vmatprep.subr.bf16.mxu0 0
      %4298 = vmatpush1.bf16.msra.mxu0 0
      %4299 = vmatprep.subr.bf16.mxu0 0
      %4300 = vmatpush1.bf16.msra.mxu0 0
      %4301 = vmatprep.subr.bf16.mxu0 0
      %4302 = vmatpush1.bf16.msra.mxu0 0
      %4303 = vmatprep.subr.bf16.mxu0 0
      %4304 = vmatpush1.bf16.msra.mxu0 0
      %4305 = vmatprep.subr.bf16.mxu0 0
      %4306 = vmatpush1.bf16.msra.mxu0 0
      %4307 = vmatprep.subr.bf16.mxu0 0
      %4308 = vmatpush1.bf16.msra.mxu0 0
      %4309 = vmatprep.mubr.bf16.mxu0 0
      %4310 = vmatmul.mubr.bf16.gmra.mrb[0].mxu0 %v4230
      %v4311 = vpop.f32.mrb[0].mxu0
      %v4312 = vadd.f32 0.0, %v4311
      %v4313 = vpop.f32.mrb[0].mxu0
      %v4314 = vpop.f32.mrb[0].mxu0
      %v4315 = vadd.f32 0.0, %v4314
      %v4316 = vpop.f32.mrb[0].mxu0
      %4317 = vmatprep.mubr.bf16.mxu0 0
      %4318 = vmatmul.mubr.bf16.gmra.mrb[0].mxu0 %v4233
      %v4319 = vpop.f32.mrb[0].mxu0
      %v4320 = vadd.f32 0.0, %v4319
      %v4321 = vpop.f32.mrb[0].mxu0
      %v4322 = vpop.f32.mrb[0].mxu0
      %v4323 = vadd.f32 0.0, %v4322
      %v4324 = vpop.f32.mrb[0].mxu0
      %4325 = vmatprep.mubr.bf16.mxu0 0
      %4326 = vmatmul.mubr.bf16.gmra.mrb[0].mxu0 %v4236
      %v4327 = vpop.f32.mrb[0].mxu0
      %v4328 = vadd.f32 0.0, %v4327
      %v4329 = vpop.f32.mrb[0].mxu0
      %v4330 = vpop.f32.mrb[0].mxu0
      %v4331 = vadd.f32 0.0, %v4330
      %v4332 = vpop.f32.mrb[0].mxu0
      %4333 = vmatprep.mubr.bf16.mxu0 0
      %4334 = vmatmul.mubr.bf16.gmra.mrb[0].mxu0 %v4239
      %v4335 = vpop.f32.mrb[0].mxu0
      %v4336 = vadd.f32 0.0, %v4335
      %v4337 = vpop.f32.mrb[0].mxu0
      %v4338 = vpop.f32.mrb[0].mxu0
      %v4339 = vadd.f32 0.0, %v4338
      %v4340 = vpop.f32.mrb[0].mxu0
      %4341 = vmatprep.mubr.bf16.mxu0 0
      %4342 = vmatmul.mubr.bf16.gmra.mrb[0].mxu0 %v4242
      %v4343 = vpop.f32.mrb[0].mxu0
      %v4344 = vadd.f32 0.0, %v4343
      %v4345 = vpop.f32.mrb[0].mxu0
      %v4346 = vpop.f32.mrb[0].mxu0
      %v4347 = vadd.f32 0.0, %v4346
      %v4348 = vpop.f32.mrb[0].mxu0
      %4349 = vmatprep.mubr.bf16.mxu0 0
      %4350 = vmatmul.mubr.bf16.gmra.mrb[0].mxu0 %v4245
      %v4351 = vpop.f32.mrb[0].mxu0
      %v4352 = vadd.f32 0.0, %v4351
      %v4353 = vpop.f32.mrb[0].mxu0
      %v4354 = vpop.f32.mrb[0].mxu0
      %v4355 = vadd.f32 0.0, %v4354
      %v4356 = vpop.f32.mrb[0].mxu0
      %4357 = vmatprep.mubr.bf16.mxu0 0
      %4358 = vmatmul.mubr.bf16.gmra.mrb[0].mxu0 %v4248
      %v4359 = vpop.f32.mrb[0].mxu0
      %v4360 = vadd.f32 0.0, %v4359
      %v4361 = vpop.f32.mrb[0].mxu0
      %v4362 = vpop.f32.mrb[0].mxu0
      %v4363 = vadd.f32 0.0, %v4362
      %v4364 = vpop.f32.mrb[0].mxu0
      %4365 = vmatprep.mubr.bf16.mxu0 0
      %4366 = vmatmul.mubr.bf16.gmra.mrb[0].mxu0 %v4251
      %v4367 = vpop.f32.mrb[0].mxu0
      %v4368 = vadd.f32 0.0, %v4367
      %v4369 = vpop.f32.mrb[0].mxu0
      %v4370 = vpop.f32.mrb[0].mxu0
      %v4371 = vadd.f32 0.0, %v4370
      %v4372 = vpop.f32.mrb[0].mxu0
      %4373 = vmatprep.mubr.bf16.mxu0 0
      %4374 = vmatmul.mubr.bf16.gmra.mrb[0].mxu0 %v4254
      %v4375 = vpop.f32.mrb[0].mxu0
      %v4376 = vadd.f32 0.0, %v4375
      %v4377 = vpop.f32.mrb[0].mxu0
      %v4378 = vpop.f32.mrb[0].mxu0
      %v4379 = vadd.f32 0.0, %v4378
      %v4380 = vpop.f32.mrb[0].mxu0
      %4381 = vmatprep.mubr.bf16.mxu0 0
      %4382 = vmatmul.mubr.bf16.gmra.mrb[0].mxu0 %v4257
      %v4383 = vpop.f32.mrb[0].mxu0
      %v4384 = vadd.f32 0.0, %v4383
      %v4385 = vpop.f32.mrb[0].mxu0
      %v4386 = vpop.f32.mrb[0].mxu0
      %v4387 = vadd.f32 0.0, %v4386
      %v4388 = vpop.f32.mrb[0].mxu0
      %4389 = vmatprep.mubr.bf16.mxu0 0
      %4390 = vmatmul.mubr.bf16.gmra.mrb[0].mxu0 %v4260
      %v4391 = vpop.f32.mrb[0].mxu0
      %v4392 = vadd.f32 0.0, %v4391
      %v4393 = vpop.f32.mrb[0].mxu0
      %v4394 = vpop.f32.mrb[0].mxu0
      %v4395 = vadd.f32 0.0, %v4394
      %v4396 = vpop.f32.mrb[0].mxu0
      %4397 = vmatprep.mubr.bf16.mxu0 0
      %4398 = vmatmul.mubr.bf16.gmra.mrb[0].mxu0 %v4263
      %v4399 = vpop.f32.mrb[0].mxu0
      %v4400 = vadd.f32 0.0, %v4399
      %v4401 = vpop.f32.mrb[0].mxu0
      %v4402 = vpop.f32.mrb[0].mxu0
      %v4403 = vadd.f32 0.0, %v4402
      %v4404 = vpop.f32.mrb[0].mxu0
      %4405 = vmatprep.mubr.bf16.mxu0 0
      %4406 = vmatmul.mubr.bf16.gmra.mrb[0].mxu0 %v4266
      %v4407 = vpop.f32.mrb[0].mxu0
      %v4408 = vadd.f32 0.0, %v4407
      %v4409 = vpop.f32.mrb[0].mxu0
      %v4410 = vpop.f32.mrb[0].mxu0
      %v4411 = vadd.f32 0.0, %v4410
      %v4412 = vpop.f32.mrb[0].mxu0
      %4413 = vmatprep.mubr.bf16.mxu0 0
      %4414 = vmatmul.mubr.bf16.gmra.mrb[0].mxu0 %v4269
      %v4415 = vpop.f32.mrb[0].mxu0
      %v4416 = vadd.f32 0.0, %v4415
      %v4417 = vpop.f32.mrb[0].mxu0
      %v4418 = vpop.f32.mrb[0].mxu0
      %v4419 = vadd.f32 0.0, %v4418
      %v4420 = vpop.f32.mrb[0].mxu0
      %4421 = vmatprep.mubr.bf16.mxu0 0
      %4422 = vmatmul.mubr.bf16.gmra.mrb[0].mxu0 %v4272
      %v4423 = vpop.f32.mrb[0].mxu0
      %v4424 = vadd.f32 0.0, %v4423
      %v4425 = vpop.f32.mrb[0].mxu0
      %v4426 = vpop.f32.mrb[0].mxu0
      %v4427 = vadd.f32 0.0, %v4426
      %v4428 = vpop.f32.mrb[0].mxu0
      %4429 = vmatprep.mubr.bf16.mxu0 0
      %4430 = vmatmul.mubr.bf16.gmra.mrb[0].mxu0 %v4275
      %v4431 = vpop.f32.mrb[0].mxu0
      %v4432 = vadd.f32 0.0, %v4431
      %v4433 = vpop.f32.mrb[0].mxu0
      %v4434 = vpop.f32.mrb[0].mxu0
      %v4435 = vadd.f32 0.0, %v4434
      %v4436 = vpop.f32.mrb[0].mxu0
      %4437 = vdwg.mxu0
      %v4438 = vadd.f32 %v4141, %v4312
      %v4439 = vadd.f32 %v4142, %v4315
      %v4440 = vadd.f32 %v4143, %v4320
      %v4441 = vadd.f32 %v4144, %v4323
      %v4442 = vadd.f32 %v4145, %v4328
      %v4443 = vadd.f32 %v4146, %v4331
      %v4444 = vadd.f32 %v4147, %v4336
      %v4445 = vadd.f32 %v4148, %v4339
      %v4446 = vadd.f32 %v4149, %v4344
      %v4447 = vadd.f32 %v4150, %v4347
      %v4448 = vadd.f32 %v4151, %v4352
      %v4449 = vadd.f32 %v4152, %v4355
      %v4450 = vadd.f32 %v4153, %v4360
      %v4451 = vadd.f32 %v4154, %v4363
      %v4452 = vadd.f32 %v4155, %v4368
      %v4453 = vadd.f32 %v4156, %v4371
      %v4454 = vadd.f32 %v4157, %v4376
      %v4455 = vadd.f32 %v4158, %v4379
      %v4456 = vadd.f32 %v4159, %v4384
      %v4457 = vadd.f32 %v4160, %v4387
      %v4458 = vadd.f32 %v4161, %v4392
      %v4459 = vadd.f32 %v4162, %v4395
      %v4460 = vadd.f32 %v4163, %v4400
      %v4461 = vadd.f32 %v4164, %v4403
      %v4462 = vadd.f32 %v4165, %v4408
      %v4463 = vadd.f32 %v4166, %v4411
      %v4464 = vadd.f32 %v4167, %v4416
      %v4465 = vadd.f32 %v4168, %v4419
      %v4466 = vadd.f32 %v4169, %v4424
      %v4467 = vadd.f32 %v4170, %v4427
      %v4468 = vadd.f32 %v4171, %v4432
      %v4469 = vadd.f32 %v4172, %v4435
      %v4470 = vld [vmem:[%s3016 + $0x2] sm:$0xff]
      %v4471 = vld [vmem:[%s3016 + $0xa] sm:$0xff]
      %v4472 = vld [vmem:[%s3016 + $0x1a] sm:$0xff]
      %v4473 = vld [vmem:[%s3016 + $0x22] sm:$0xff]
      %v4474 = vld [vmem:[%s3016 + $0x32] sm:$0xff]
      %v4475 = vld [vmem:[%s3016 + $0x3a] sm:$0xff]
      %v4476 = vld [vmem:[%s3016 + $0x4a] sm:$0xff]
      %v4477 = vld [vmem:[%s3016 + $0x52] sm:$0xff]
      %v4478 = vld [vmem:[%s3016 + $0x62] sm:$0xff]
      %v4479 = vld [vmem:[%s3016 + $0x6a] sm:$0xff]
      %v4480 = vld [vmem:[%s3016 + $0x7a] sm:$0xff]
      %v4481 = vld [vmem:[%s3016 + $0x82] sm:$0xff]
      %v4482 = vld [vmem:[%s3016 + $0x92] sm:$0xff]
      %v4483 = vld [vmem:[%s3016 + $0x9a] sm:$0xff]
      %v4484 = vld [vmem:[%s3016 + $0xaa] sm:$0xff]
      %v4485 = vld [vmem:[%s3016 + $0xb2] sm:$0xff]
      %v4486 = vld [vmem:[%s3016 + $0xc2] sm:$0xff]
      %v4487 = vld [vmem:[%s3016 + $0xca] sm:$0xff]
      %v4488 = vld [vmem:[%s3016 + $0xda] sm:$0xff]
      %v4489 = vld [vmem:[%s3016 + $0xe2] sm:$0xff]
      %v4490 = vld [vmem:[%s3016 + $0xf2] sm:$0xff]
      %v4491 = vld [vmem:[%s3016 + $0xfa] sm:$0xff]
      %v4492 = vld [vmem:[%s3016 + $0x10a] sm:$0xff]
      %v4493 = vld [vmem:[%s3016 + $0x112] sm:$0xff]
      %v4494 = vld [vmem:[%s3016 + $0x122] sm:$0xff]
      %v4495 = vld [vmem:[%s3016 + $0x12a] sm:$0xff]
      %v4496 = vld [vmem:[%s3016 + $0x13a] sm:$0xff]
      %v4497 = vld [vmem:[%s3016 + $0x142] sm:$0xff]
      %v4498 = vld [vmem:[%s3016 + $0x152] sm:$0xff]
      %v4499 = vld [vmem:[%s3016 + $0x15a] sm:$0xff]
      %v4500 = vld [vmem:[%s3016 + $0x16a] sm:$0xff]
      %v4501 = vld [vmem:[%s3016 + $0x172] sm:$0xff]
      %v4502 = vpack.c.bf16 %v4471, %v4470
      %v4503 = vpack.c.bf16 %v4473, %v4472
      %v4504 = vpack.c.bf16 %v4475, %v4474
      %v4505 = vpack.c.bf16 %v4477, %v4476
      %v4506 = vpack.c.bf16 %v4479, %v4478
      %v4507 = vpack.c.bf16 %v4481, %v4480
      %v4508 = vpack.c.bf16 %v4483, %v4482
      %v4509 = vpack.c.bf16 %v4485, %v4484
      %v4510 = vpack.c.bf16 %v4487, %v4486
      %v4511 = vpack.c.bf16 %v4489, %v4488
      %v4512 = vpack.c.bf16 %v4491, %v4490
      %v4513 = vpack.c.bf16 %v4493, %v4492
      %v4514 = vpack.c.bf16 %v4495, %v4494
      %v4515 = vpack.c.bf16 %v4497, %v4496
      %v4516 = vpack.c.bf16 %v4499, %v4498
      %v4517 = vpack.c.bf16 %v4501, %v4500
      %v4518 = vld [vmem:[%s3 + $0x28] sm:$0xf]
      %v4519 = vld [vmem:[%s3 + $0x2c] sm:$0xf]
      %v4522 = vunpack.c.l.b16 %v4518
      %v4523 = vunpack.c.l.b16 %v4519
      %v4524 = vpack.c.b16 %v4523, %v4522
      %v4527 = vsel %vm2928, %v4502, 0
      %v4530 = vsel %vm2928, %v4503, 0
      %v4533 = vsel %vm2928, %v4504, 0
      %v4536 = vsel %vm2928, %v4505, 0
      %v4539 = vsel %vm2928, %v4506, 0
      %v4542 = vsel %vm2928, %v4507, 0
      %v4545 = vsel %vm2928, %v4508, 0
      %v4548 = vsel %vm2928, %v4509, 0
      %v4551 = vsel %vm2928, %v4510, 0
      %v4554 = vsel %vm2928, %v4511, 0
      %v4557 = vsel %vm2928, %v4512, 0
      %v4560 = vsel %vm2928, %v4513, 0
      %v4563 = vsel %vm2928, %v4514, 0
      %v4566 = vsel %vm2928, %v4515, 0
      %v4569 = vsel %vm2928, %v4516, 0
      %v4572 = vsel %vm2928, %v4517, 0
      %4574 = vmatprep.subr.bf16.mxu0 0
      %4575 = vmatpush1.bf16.msra.mxu0 %v4524
      %4576 = vmatprep.subr.bf16.mxu0 0
      %4577 = vmatpush1.bf16.msra.mxu0 0
      %4578 = vmatprep.subr.bf16.mxu0 0
      %4579 = vmatpush1.bf16.msra.mxu0 0
      %4580 = vmatprep.subr.bf16.mxu0 0
      %4581 = vmatpush1.bf16.msra.mxu0 0
      %4582 = vmatprep.subr.bf16.mxu0 0
      %4583 = vmatpush1.bf16.msra.mxu0 0
      %4584 = vmatprep.subr.bf16.mxu0 0
      %4585 = vmatpush1.bf16.msra.mxu0 0
      %4586 = vmatprep.subr.bf16.mxu0 0
      %4587 = vmatpush1.bf16.msra.mxu0 0
      %4588 = vmatprep.subr.bf16.mxu0 0
      %4589 = vmatpush1.bf16.msra.mxu0 0
      %4590 = vmatprep.subr.bf16.mxu0 0
      %4591 = vmatpush1.bf16.msra.mxu0 0
      %4592 = vmatprep.subr.bf16.mxu0 0
      %4593 = vmatpush1.bf16.msra.mxu0 0
      %4594 = vmatprep.subr.bf16.mxu0 0
      %4595 = vmatpush1.bf16.msra.mxu0 0
      %4596 = vmatprep.subr.bf16.mxu0 0
      %4597 = vmatpush1.bf16.msra.mxu0 0
      %4598 = vmatprep.subr.bf16.mxu0 0
      %4599 = vmatpush1.bf16.msra.mxu0 0
      %4600 = vmatprep.subr.bf16.mxu0 0
      %4601 = vmatpush1.bf16.msra.mxu0 0
      %4602 = vmatprep.subr.bf16.mxu0 0
      %4603 = vmatpush1.bf16.msra.mxu0 0
      %4604 = vmatprep.subr.bf16.mxu0 0
      %4605 = vmatpush1.bf16.msra.mxu0 0
      %4606 = vmatprep.mubr.bf16.mxu0 0
      %4607 = vmatmul.mubr.bf16.gmra.mrb[0].mxu0 %v4527
      %v4608 = vpop.f32.mrb[0].mxu0
      %v4609 = vadd.f32 0.0, %v4608
      %v4610 = vpop.f32.mrb[0].mxu0
      %v4611 = vpop.f32.mrb[0].mxu0
      %v4612 = vadd.f32 0.0, %v4611
      %v4613 = vpop.f32.mrb[0].mxu0
      %4614 = vmatprep.mubr.bf16.mxu0 0
      %4615 = vmatmul.mubr.bf16.gmra.mrb[0].mxu0 %v4530
      %v4616 = vpop.f32.mrb[0].mxu0
      %v4617 = vadd.f32 0.0, %v4616
      %v4618 = vpop.f32.mrb[0].mxu0
      %v4619 = vpop.f32.mrb[0].mxu0
      %v4620 = vadd.f32 0.0, %v4619
      %v4621 = vpop.f32.mrb[0].mxu0
      %4622 = vmatprep.mubr.bf16.mxu0 0
      %4623 = vmatmul.mubr.bf16.gmra.mrb[0].mxu0 %v4533
      %v4624 = vpop.f32.mrb[0].mxu0
      %v4625 = vadd.f32 0.0, %v4624
      %v4626 = vpop.f32.mrb[0].mxu0
      %v4627 = vpop.f32.mrb[0].mxu0
      %v4628 = vadd.f32 0.0, %v4627
      %v4629 = vpop.f32.mrb[0].mxu0
      %4630 = vmatprep.mubr.bf16.mxu0 0
      %4631 = vmatmul.mubr.bf16.gmra.mrb[0].mxu0 %v4536
      %v4632 = vpop.f32.mrb[0].mxu0
      %v4633 = vadd.f32 0.0, %v4632
      %v4634 = vpop.f32.mrb[0].mxu0
      %v4635 = vpop.f32.mrb[0].mxu0
      %v4636 = vadd.f32 0.0, %v4635
      %v4637 = vpop.f32.mrb[0].mxu0
      %4638 = vmatprep.mubr.bf16.mxu0 0
      %4639 = vmatmul.mubr.bf16.gmra.mrb[0].mxu0 %v4539
      %v4640 = vpop.f32.mrb[0].mxu0
      %v4641 = vadd.f32 0.0, %v4640
      %v4642 = vpop.f32.mrb[0].mxu0
      %v4643 = vpop.f32.mrb[0].mxu0
      %v4644 = vadd.f32 0.0, %v4643
      %v4645 = vpop.f32.mrb[0].mxu0
      %4646 = vmatprep.mubr.bf16.mxu0 0
      %4647 = vmatmul.mubr.bf16.gmra.mrb[0].mxu0 %v4542
      %v4648 = vpop.f32.mrb[0].mxu0
      %v4649 = vadd.f32 0.0, %v4648
      %v4650 = vpop.f32.mrb[0].mxu0
      %v4651 = vpop.f32.mrb[0].mxu0
      %v4652 = vadd.f32 0.0, %v4651
      %v4653 = vpop.f32.mrb[0].mxu0
      %4654 = vmatprep.mubr.bf16.mxu0 0
      %4655 = vmatmul.mubr.bf16.gmra.mrb[0].mxu0 %v4545
      %v4656 = vpop.f32.mrb[0].mxu0
      %v4657 = vadd.f32 0.0, %v4656
      %v4658 = vpop.f32.mrb[0].mxu0
      %v4659 = vpop.f32.mrb[0].mxu0
      %v4660 = vadd.f32 0.0, %v4659
      %v4661 = vpop.f32.mrb[0].mxu0
      %4662 = vmatprep.mubr.bf16.mxu0 0
      %4663 = vmatmul.mubr.bf16.gmra.mrb[0].mxu0 %v4548
      %v4664 = vpop.f32.mrb[0].mxu0
      %v4665 = vadd.f32 0.0, %v4664
      %v4666 = vpop.f32.mrb[0].mxu0
      %v4667 = vpop.f32.mrb[0].mxu0
      %v4668 = vadd.f32 0.0, %v4667
      %v4669 = vpop.f32.mrb[0].mxu0
      %4670 = vmatprep.mubr.bf16.mxu0 0
      %4671 = vmatmul.mubr.bf16.gmra.mrb[0].mxu0 %v4551
      %v4672 = vpop.f32.mrb[0].mxu0
      %v4673 = vadd.f32 0.0, %v4672
      %v4674 = vpop.f32.mrb[0].mxu0
      %v4675 = vpop.f32.mrb[0].mxu0
      %v4676 = vadd.f32 0.0, %v4675
      %v4677 = vpop.f32.mrb[0].mxu0
      %4678 = vmatprep.mubr.bf16.mxu0 0
      %4679 = vmatmul.mubr.bf16.gmra.mrb[0].mxu0 %v4554
      %v4680 = vpop.f32.mrb[0].mxu0
      %v4681 = vadd.f32 0.0, %v4680
      %v4682 = vpop.f32.mrb[0].mxu0
      %v4683 = vpop.f32.mrb[0].mxu0
      %v4684 = vadd.f32 0.0, %v4683
      %v4685 = vpop.f32.mrb[0].mxu0
      %4686 = vmatprep.mubr.bf16.mxu0 0
      %4687 = vmatmul.mubr.bf16.gmra.mrb[0].mxu0 %v4557
      %v4688 = vpop.f32.mrb[0].mxu0
      %v4689 = vadd.f32 0.0, %v4688
      %v4690 = vpop.f32.mrb[0].mxu0
      %v4691 = vpop.f32.mrb[0].mxu0
      %v4692 = vadd.f32 0.0, %v4691
      %v4693 = vpop.f32.mrb[0].mxu0
      %4694 = vmatprep.mubr.bf16.mxu0 0
      %4695 = vmatmul.mubr.bf16.gmra.mrb[0].mxu0 %v4560
      %v4696 = vpop.f32.mrb[0].mxu0
      %v4697 = vadd.f32 0.0, %v4696
      %v4698 = vpop.f32.mrb[0].mxu0
      %v4699 = vpop.f32.mrb[0].mxu0
      %v4700 = vadd.f32 0.0, %v4699
      %v4701 = vpop.f32.mrb[0].mxu0
      %4702 = vmatprep.mubr.bf16.mxu0 0
      %4703 = vmatmul.mubr.bf16.gmra.mrb[0].mxu0 %v4563
      %v4704 = vpop.f32.mrb[0].mxu0
      %v4705 = vadd.f32 0.0, %v4704
      %v4706 = vpop.f32.mrb[0].mxu0
      %v4707 = vpop.f32.mrb[0].mxu0
      %v4708 = vadd.f32 0.0, %v4707
      %v4709 = vpop.f32.mrb[0].mxu0
      %4710 = vmatprep.mubr.bf16.mxu0 0
      %4711 = vmatmul.mubr.bf16.gmra.mrb[0].mxu0 %v4566
      %v4712 = vpop.f32.mrb[0].mxu0
      %v4713 = vadd.f32 0.0, %v4712
      %v4714 = vpop.f32.mrb[0].mxu0
      %v4715 = vpop.f32.mrb[0].mxu0
      %v4716 = vadd.f32 0.0, %v4715
      %v4717 = vpop.f32.mrb[0].mxu0
      %4718 = vmatprep.mubr.bf16.mxu0 0
      %4719 = vmatmul.mubr.bf16.gmra.mrb[0].mxu0 %v4569
      %v4720 = vpop.f32.mrb[0].mxu0
      %v4721 = vadd.f32 0.0, %v4720
      %v4722 = vpop.f32.mrb[0].mxu0
      %v4723 = vpop.f32.mrb[0].mxu0
      %v4724 = vadd.f32 0.0, %v4723
      %v4725 = vpop.f32.mrb[0].mxu0
      %4726 = vmatprep.mubr.bf16.mxu0 0
      %4727 = vmatmul.mubr.bf16.gmra.mrb[0].mxu0 %v4572
      %v4728 = vpop.f32.mrb[0].mxu0
      %v4729 = vadd.f32 0.0, %v4728
      %v4730 = vpop.f32.mrb[0].mxu0
      %v4731 = vpop.f32.mrb[0].mxu0
      %v4732 = vadd.f32 0.0, %v4731
      %v4733 = vpop.f32.mrb[0].mxu0
      %4734 = vdwg.mxu0
      %v4735 = vadd.f32 %v4438, %v4609
      %v4736 = vadd.f32 %v4439, %v4612
      %v4737 = vadd.f32 %v4440, %v4617
      %v4738 = vadd.f32 %v4441, %v4620
      %v4739 = vadd.f32 %v4442, %v4625
      %v4740 = vadd.f32 %v4443, %v4628
      %v4741 = vadd.f32 %v4444, %v4633
      %v4742 = vadd.f32 %v4445, %v4636
      %v4743 = vadd.f32 %v4446, %v4641
      %v4744 = vadd.f32 %v4447, %v4644
      %v4745 = vadd.f32 %v4448, %v4649
      %v4746 = vadd.f32 %v4449, %v4652
      %v4747 = vadd.f32 %v4450, %v4657
      %v4748 = vadd.f32 %v4451, %v4660
      %v4749 = vadd.f32 %v4452, %v4665
      %v4750 = vadd.f32 %v4453, %v4668
      %v4751 = vadd.f32 %v4454, %v4673
      %v4752 = vadd.f32 %v4455, %v4676
      %v4753 = vadd.f32 %v4456, %v4681
      %v4754 = vadd.f32 %v4457, %v4684
      %v4755 = vadd.f32 %v4458, %v4689
      %v4756 = vadd.f32 %v4459, %v4692
      %v4757 = vadd.f32 %v4460, %v4697
      %v4758 = vadd.f32 %v4461, %v4700
      %v4759 = vadd.f32 %v4462, %v4705
      %v4760 = vadd.f32 %v4463, %v4708
      %v4761 = vadd.f32 %v4464, %v4713
      %v4762 = vadd.f32 %v4465, %v4716
      %v4763 = vadd.f32 %v4466, %v4721
      %v4764 = vadd.f32 %v4467, %v4724
      %v4765 = vadd.f32 %v4468, %v4729
      %v4766 = vadd.f32 %v4469, %v4732
      %s4767 = scalar_lea.vmem [#allocation2], 48
      %v4768 = vld [vmem:[%s4767] sm:$0xff]
      %v4769 = vld [vmem:[%s4767 + $0x8] sm:$0xff]
      %v4770 = vld [vmem:[%s4767 + $0x18] sm:$0xff]
      %v4771 = vld [vmem:[%s4767 + $0x20] sm:$0xff]
      %v4772 = vld [vmem:[%s4767 + $0x30] sm:$0xff]
      %v4773 = vld [vmem:[%s4767 + $0x38] sm:$0xff]
      %v4774 = vld [vmem:[%s4767 + $0x48] sm:$0xff]
      %v4775 = vld [vmem:[%s4767 + $0x50] sm:$0xff]
      %v4776 = vld [vmem:[%s4767 + $0x60] sm:$0xff]
      %v4777 = vld [vmem:[%s4767 + $0x68] sm:$0xff]
      %v4778 = vld [vmem:[%s4767 + $0x78] sm:$0xff]
      %v4779 = vld [vmem:[%s4767 + $0x80] sm:$0xff]
      %v4780 = vld [vmem:[%s4767 + $0x90] sm:$0xff]
      %v4781 = vld [vmem:[%s4767 + $0x98] sm:$0xff]
      %v4782 = vld [vmem:[%s4767 + $0xa8] sm:$0xff]
      %v4783 = vld [vmem:[%s4767 + $0xb0] sm:$0xff]
      %v4784 = vld [vmem:[%s4767 + $0xc0] sm:$0xff]
      %v4785 = vld [vmem:[%s4767 + $0xc8] sm:$0xff]
      %v4786 = vld [vmem:[%s4767 + $0xd8] sm:$0xff]
      %v4787 = vld [vmem:[%s4767 + $0xe0] sm:$0xff]
      %v4788 = vld [vmem:[%s4767 + $0xf0] sm:$0xff]
      %v4789 = vld [vmem:[%s4767 + $0xf8] sm:$0xff]
      %v4790 = vld [vmem:[%s4767 + $0x108] sm:$0xff]
      %v4791 = vld [vmem:[%s4767 + $0x110] sm:$0xff]
      %v4792 = vld [vmem:[%s4767 + $0x120] sm:$0xff]
      %v4793 = vld [vmem:[%s4767 + $0x128] sm:$0xff]
      %v4794 = vld [vmem:[%s4767 + $0x138] sm:$0xff]
      %v4795 = vld [vmem:[%s4767 + $0x140] sm:$0xff]
      %v4796 = vld [vmem:[%s4767 + $0x150] sm:$0xff]
      %v4797 = vld [vmem:[%s4767 + $0x158] sm:$0xff]
      %v4798 = vld [vmem:[%s4767 + $0x168] sm:$0xff]
      %v4799 = vld [vmem:[%s4767 + $0x170] sm:$0xff]
      %v4800 = vpack.c.bf16 %v4769, %v4768
      %v4801 = vpack.c.bf16 %v4771, %v4770
      %v4802 = vpack.c.bf16 %v4773, %v4772
      %v4803 = vpack.c.bf16 %v4775, %v4774
      %v4804 = vpack.c.bf16 %v4777, %v4776
      %v4805 = vpack.c.bf16 %v4779, %v4778
      %v4806 = vpack.c.bf16 %v4781, %v4780
      %v4807 = vpack.c.bf16 %v4783, %v4782
      %v4808 = vpack.c.bf16 %v4785, %v4784
      %v4809 = vpack.c.bf16 %v4787, %v4786
      %v4810 = vpack.c.bf16 %v4789, %v4788
      %v4811 = vpack.c.bf16 %v4791, %v4790
      %v4812 = vpack.c.bf16 %v4793, %v4792
      %v4813 = vpack.c.bf16 %v4795, %v4794
      %v4814 = vpack.c.bf16 %v4797, %v4796
      %v4815 = vpack.c.bf16 %v4799, %v4798
      %v4816 = vld [vmem:[%s3 + $0x30] sm:$0xf]
      %v4817 = vld [vmem:[%s3 + $0x34] sm:$0xf]
      %v4820 = vunpack.c.l.b16 %v4816
      %v4821 = vunpack.c.l.b16 %v4817
      %v4822 = vpack.c.b16 %v4821, %v4820
      %v4825 = vsel %vm2928, %v4800, 0
      %v4828 = vsel %vm2928, %v4801, 0
      %v4831 = vsel %vm2928, %v4802, 0
      %v4834 = vsel %vm2928, %v4803, 0
      %v4837 = vsel %vm2928, %v4804, 0
      %v4840 = vsel %vm2928, %v4805, 0
      %v4843 = vsel %vm2928, %v4806, 0
      %v4846 = vsel %vm2928, %v4807, 0
      %v4849 = vsel %vm2928, %v4808, 0
      %v4852 = vsel %vm2928, %v4809, 0
      %v4855 = vsel %vm2928, %v4810, 0
      %v4858 = vsel %vm2928, %v4811, 0
      %v4861 = vsel %vm2928, %v4812, 0
      %v4864 = vsel %vm2928, %v4813, 0
      %v4867 = vsel %vm2928, %v4814, 0
      %v4870 = vsel %vm2928, %v4815, 0
      %4872 = vmatprep.subr.bf16.mxu0 0
      %4873 = vmatpush1.bf16.msra.mxu0 %v4822
      %4874 = vmatprep.subr.bf16.mxu0 0
      %4875 = vmatpush1.bf16.msra.mxu0 0
      %4876 = vmatprep.subr.bf16.mxu0 0
      %4877 = vmatpush1.bf16.msra.mxu0 0
      %4878 = vmatprep.subr.bf16.mxu0 0
      %4879 = vmatpush1.bf16.msra.mxu0 0
      %4880 = vmatprep.subr.bf16.mxu0 0
      %4881 = vmatpush1.bf16.msra.mxu0 0
      %4882 = vmatprep.subr.bf16.mxu0 0
      %4883 = vmatpush1.bf16.msra.mxu0 0
      %4884 = vmatprep.subr.bf16.mxu0 0
      %4885 = vmatpush1.bf16.msra.mxu0 0
      %4886 = vmatprep.subr.bf16.mxu0 0
      %4887 = vmatpush1.bf16.msra.mxu0 0
      %4888 = vmatprep.subr.bf16.mxu0 0
      %4889 = vmatpush1.bf16.msra.mxu0 0
      %4890 = vmatprep.subr.bf16.mxu0 0
      %4891 = vmatpush1.bf16.msra.mxu0 0
      %4892 = vmatprep.subr.bf16.mxu0 0
      %4893 = vmatpush1.bf16.msra.mxu0 0
      %4894 = vmatprep.subr.bf16.mxu0 0
      %4895 = vmatpush1.bf16.msra.mxu0 0
      %4896 = vmatprep.subr.bf16.mxu0 0
      %4897 = vmatpush1.bf16.msra.mxu0 0
      %4898 = vmatprep.subr.bf16.mxu0 0
      %4899 = vmatpush1.bf16.msra.mxu0 0
      %4900 = vmatprep.subr.bf16.mxu0 0
      %4901 = vmatpush1.bf16.msra.mxu0 0
      %4902 = vmatprep.subr.bf16.mxu0 0
      %4903 = vmatpush1.bf16.msra.mxu0 0
      %4904 = vmatprep.mubr.bf16.mxu0 0
      %4905 = vmatmul.mubr.bf16.gmra.mrb[0].mxu0 %v4825
      %v4906 = vpop.f32.mrb[0].mxu0
      %v4907 = vadd.f32 0.0, %v4906
      %v4908 = vpop.f32.mrb[0].mxu0
      %v4909 = vpop.f32.mrb[0].mxu0
      %v4910 = vadd.f32 0.0, %v4909
      %v4911 = vpop.f32.mrb[0].mxu0
      %4912 = vmatprep.mubr.bf16.mxu0 0
      %4913 = vmatmul.mubr.bf16.gmra.mrb[0].mxu0 %v4828
      %v4914 = vpop.f32.mrb[0].mxu0
      %v4915 = vadd.f32 0.0, %v4914
      %v4916 = vpop.f32.mrb[0].mxu0
      %v4917 = vpop.f32.mrb[0].mxu0
      %v4918 = vadd.f32 0.0, %v4917
      %v4919 = vpop.f32.mrb[0].mxu0
      %4920 = vmatprep.mubr.bf16.mxu0 0
      %4921 = vmatmul.mubr.bf16.gmra.mrb[0].mxu0 %v4831
      %v4922 = vpop.f32.mrb[0].mxu0
      %v4923 = vadd.f32 0.0, %v4922
      %v4924 = vpop.f32.mrb[0].mxu0
      %v4925 = vpop.f32.mrb[0].mxu0
      %v4926 = vadd.f32 0.0, %v4925
      %v4927 = vpop.f32.mrb[0].mxu0
      %4928 = vmatprep.mubr.bf16.mxu0 0
      %4929 = vmatmul.mubr.bf16.gmra.mrb[0].mxu0 %v4834
      %v4930 = vpop.f32.mrb[0].mxu0
      %v4931 = vadd.f32 0.0, %v4930
      %v4932 = vpop.f32.mrb[0].mxu0
      %v4933 = vpop.f32.mrb[0].mxu0
      %v4934 = vadd.f32 0.0, %v4933
      %v4935 = vpop.f32.mrb[0].mxu0
      %4936 = vmatprep.mubr.bf16.mxu0 0
      %4937 = vmatmul.mubr.bf16.gmra.mrb[0].mxu0 %v4837
      %v4938 = vpop.f32.mrb[0].mxu0
      %v4939 = vadd.f32 0.0, %v4938
      %v4940 = vpop.f32.mrb[0].mxu0
      %v4941 = vpop.f32.mrb[0].mxu0
      %v4942 = vadd.f32 0.0, %v4941
      %v4943 = vpop.f32.mrb[0].mxu0
      %4944 = vmatprep.mubr.bf16.mxu0 0
      %4945 = vmatmul.mubr.bf16.gmra.mrb[0].mxu0 %v4840
      %v4946 = vpop.f32.mrb[0].mxu0
      %v4947 = vadd.f32 0.0, %v4946
      %v4948 = vpop.f32.mrb[0].mxu0
      %v4949 = vpop.f32.mrb[0].mxu0
      %v4950 = vadd.f32 0.0, %v4949
      %v4951 = vpop.f32.mrb[0].mxu0
      %4952 = vmatprep.mubr.bf16.mxu0 0
      %4953 = vmatmul.mubr.bf16.gmra.mrb[0].mxu0 %v4843
      %v4954 = vpop.f32.mrb[0].mxu0
      %v4955 = vadd.f32 0.0, %v4954
      %v4956 = vpop.f32.mrb[0].mxu0
      %v4957 = vpop.f32.mrb[0].mxu0
      %v4958 = vadd.f32 0.0, %v4957
      %v4959 = vpop.f32.mrb[0].mxu0
      %4960 = vmatprep.mubr.bf16.mxu0 0
      %4961 = vmatmul.mubr.bf16.gmra.mrb[0].mxu0 %v4846
      %v4962 = vpop.f32.mrb[0].mxu0
      %v4963 = vadd.f32 0.0, %v4962
      %v4964 = vpop.f32.mrb[0].mxu0
      %v4965 = vpop.f32.mrb[0].mxu0
      %v4966 = vadd.f32 0.0, %v4965
      %v4967 = vpop.f32.mrb[0].mxu0
      %4968 = vmatprep.mubr.bf16.mxu0 0
      %4969 = vmatmul.mubr.bf16.gmra.mrb[0].mxu0 %v4849
      %v4970 = vpop.f32.mrb[0].mxu0
      %v4971 = vadd.f32 0.0, %v4970
      %v4972 = vpop.f32.mrb[0].mxu0
      %v4973 = vpop.f32.mrb[0].mxu0
      %v4974 = vadd.f32 0.0, %v4973
      %v4975 = vpop.f32.mrb[0].mxu0
      %4976 = vmatprep.mubr.bf16.mxu0 0
      %4977 = vmatmul.mubr.bf16.gmra.mrb[0].mxu0 %v4852
      %v4978 = vpop.f32.mrb[0].mxu0
      %v4979 = vadd.f32 0.0, %v4978
      %v4980 = vpop.f32.mrb[0].mxu0
      %v4981 = vpop.f32.mrb[0].mxu0
      %v4982 = vadd.f32 0.0, %v4981
      %v4983 = vpop.f32.mrb[0].mxu0
      %4984 = vmatprep.mubr.bf16.mxu0 0
      %4985 = vmatmul.mubr.bf16.gmra.mrb[0].mxu0 %v4855
      %v4986 = vpop.f32.mrb[0].mxu0
      %v4987 = vadd.f32 0.0, %v4986
      %v4988 = vpop.f32.mrb[0].mxu0
      %v4989 = vpop.f32.mrb[0].mxu0
      %v4990 = vadd.f32 0.0, %v4989
      %v4991 = vpop.f32.mrb[0].mxu0
      %4992 = vmatprep.mubr.bf16.mxu0 0
      %4993 = vmatmul.mubr.bf16.gmra.mrb[0].mxu0 %v4858
      %v4994 = vpop.f32.mrb[0].mxu0
      %v4995 = vadd.f32 0.0, %v4994
      %v4996 = vpop.f32.mrb[0].mxu0
      %v4997 = vpop.f32.mrb[0].mxu0
      %v4998 = vadd.f32 0.0, %v4997
      %v4999 = vpop.f32.mrb[0].mxu0
      %5000 = vmatprep.mubr.bf16.mxu0 0
      %5001 = vmatmul.mubr.bf16.gmra.mrb[0].mxu0 %v4861
      %v5002 = vpop.f32.mrb[0].mxu0
      %v5003 = vadd.f32 0.0, %v5002
      %v5004 = vpop.f32.mrb[0].mxu0
      %v5005 = vpop.f32.mrb[0].mxu0
      %v5006 = vadd.f32 0.0, %v5005
      %v5007 = vpop.f32.mrb[0].mxu0
      %5008 = vmatprep.mubr.bf16.mxu0 0
      %5009 = vmatmul.mubr.bf16.gmra.mrb[0].mxu0 %v4864
      %v5010 = vpop.f32.mrb[0].mxu0
      %v5011 = vadd.f32 0.0, %v5010
      %v5012 = vpop.f32.mrb[0].mxu0
      %v5013 = vpop.f32.mrb[0].mxu0
      %v5014 = vadd.f32 0.0, %v5013
      %v5015 = vpop.f32.mrb[0].mxu0
      %5016 = vmatprep.mubr.bf16.mxu0 0
      %5017 = vmatmul.mubr.bf16.gmra.mrb[0].mxu0 %v4867
      %v5018 = vpop.f32.mrb[0].mxu0
      %v5019 = vadd.f32 0.0, %v5018
      %v5020 = vpop.f32.mrb[0].mxu0
      %v5021 = vpop.f32.mrb[0].mxu0
      %v5022 = vadd.f32 0.0, %v5021
      %v5023 = vpop.f32.mrb[0].mxu0
      %5024 = vmatprep.mubr.bf16.mxu0 0
      %5025 = vmatmul.mubr.bf16.gmra.mrb[0].mxu0 %v4870
      %v5026 = vpop.f32.mrb[0].mxu0
      %v5027 = vadd.f32 0.0, %v5026
      %v5028 = vpop.f32.mrb[0].mxu0
      %v5029 = vpop.f32.mrb[0].mxu0
      %v5030 = vadd.f32 0.0, %v5029
      %v5031 = vpop.f32.mrb[0].mxu0
      %5032 = vdwg.mxu0
      %v5033 = vadd.f32 %v4735, %v4907
      %v5034 = vadd.f32 %v4736, %v4910
      %v5035 = vadd.f32 %v4737, %v4915
      %v5036 = vadd.f32 %v4738, %v4918
      %v5037 = vadd.f32 %v4739, %v4923
      %v5038 = vadd.f32 %v4740, %v4926
      %v5039 = vadd.f32 %v4741, %v4931
      %v5040 = vadd.f32 %v4742, %v4934
      %v5041 = vadd.f32 %v4743, %v4939
      %v5042 = vadd.f32 %v4744, %v4942
      %v5043 = vadd.f32 %v4745, %v4947
      %v5044 = vadd.f32 %v4746, %v4950
      %v5045 = vadd.f32 %v4747, %v4955
      %v5046 = vadd.f32 %v4748, %v4958
      %v5047 = vadd.f32 %v4749, %v4963
      %v5048 = vadd.f32 %v4750, %v4966
      %v5049 = vadd.f32 %v4751, %v4971
      %v5050 = vadd.f32 %v4752, %v4974
      %v5051 = vadd.f32 %v4753, %v4979
      %v5052 = vadd.f32 %v4754, %v4982
      %v5053 = vadd.f32 %v4755, %v4987
      %v5054 = vadd.f32 %v4756, %v4990
      %v5055 = vadd.f32 %v4757, %v4995
      %v5056 = vadd.f32 %v4758, %v4998
      %v5057 = vadd.f32 %v4759, %v5003
      %v5058 = vadd.f32 %v4760, %v5006
      %v5059 = vadd.f32 %v4761, %v5011
      %v5060 = vadd.f32 %v4762, %v5014
      %v5061 = vadd.f32 %v4763, %v5019
      %v5062 = vadd.f32 %v4764, %v5022
      %v5063 = vadd.f32 %v4765, %v5027
      %v5064 = vadd.f32 %v4766, %v5030
      %v5065 = vld [vmem:[%s4767 + $0x1] sm:$0xff]
      %v5066 = vld [vmem:[%s4767 + $0x9] sm:$0xff]
      %v5067 = vld [vmem:[%s4767 + $0x19] sm:$0xff]
      %v5068 = vld [vmem:[%s4767 + $0x21] sm:$0xff]
      %v5069 = vld [vmem:[%s4767 + $0x31] sm:$0xff]
      %v5070 = vld [vmem:[%s4767 + $0x39] sm:$0xff]
      %v5071 = vld [vmem:[%s4767 + $0x49] sm:$0xff]
      %v5072 = vld [vmem:[%s4767 + $0x51] sm:$0xff]
      %v5073 = vld [vmem:[%s4767 + $0x61] sm:$0xff]
      %v5074 = vld [vmem:[%s4767 + $0x69] sm:$0xff]
      %v5075 = vld [vmem:[%s4767 + $0x79] sm:$0xff]
      %v5076 = vld [vmem:[%s4767 + $0x81] sm:$0xff]
      %v5077 = vld [vmem:[%s4767 + $0x91] sm:$0xff]
      %v5078 = vld [vmem:[%s4767 + $0x99] sm:$0xff]
      %v5079 = vld [vmem:[%s4767 + $0xa9] sm:$0xff]
      %v5080 = vld [vmem:[%s4767 + $0xb1] sm:$0xff]
      %v5081 = vld [vmem:[%s4767 + $0xc1] sm:$0xff]
      %v5082 = vld [vmem:[%s4767 + $0xc9] sm:$0xff]
      %v5083 = vld [vmem:[%s4767 + $0xd9] sm:$0xff]
      %v5084 = vld [vmem:[%s4767 + $0xe1] sm:$0xff]
      %v5085 = vld [vmem:[%s4767 + $0xf1] sm:$0xff]
      %v5086 = vld [vmem:[%s4767 + $0xf9] sm:$0xff]
      %v5087 = vld [vmem:[%s4767 + $0x109] sm:$0xff]
      %v5088 = vld [vmem:[%s4767 + $0x111] sm:$0xff]
      %v5089 = vld [vmem:[%s4767 + $0x121] sm:$0xff]
      %v5090 = vld [vmem:[%s4767 + $0x129] sm:$0xff]
      %v5091 = vld [vmem:[%s4767 + $0x139] sm:$0xff]
      %v5092 = vld [vmem:[%s4767 + $0x141] sm:$0xff]
      %v5093 = vld [vmem:[%s4767 + $0x151] sm:$0xff]
      %v5094 = vld [vmem:[%s4767 + $0x159] sm:$0xff]
      %v5095 = vld [vmem:[%s4767 + $0x169] sm:$0xff]
      %v5096 = vld [vmem:[%s4767 + $0x171] sm:$0xff]
      %v5097 = vpack.c.bf16 %v5066, %v5065
      %v5098 = vpack.c.bf16 %v5068, %v5067
      %v5099 = vpack.c.bf16 %v5070, %v5069
      %v5100 = vpack.c.bf16 %v5072, %v5071
      %v5101 = vpack.c.bf16 %v5074, %v5073
      %v5102 = vpack.c.bf16 %v5076, %v5075
      %v5103 = vpack.c.bf16 %v5078, %v5077
      %v5104 = vpack.c.bf16 %v5080, %v5079
      %v5105 = vpack.c.bf16 %v5082, %v5081
      %v5106 = vpack.c.bf16 %v5084, %v5083
      %v5107 = vpack.c.bf16 %v5086, %v5085
      %v5108 = vpack.c.bf16 %v5088, %v5087
      %v5109 = vpack.c.bf16 %v5090, %v5089
      %v5110 = vpack.c.bf16 %v5092, %v5091
      %v5111 = vpack.c.bf16 %v5094, %v5093
      %v5112 = vpack.c.bf16 %v5096, %v5095
      %v5113 = vld [vmem:[%s3 + $0x38] sm:$0xf]
      %v5114 = vld [vmem:[%s3 + $0x3c] sm:$0xf]
      %v5117 = vunpack.c.l.b16 %v5113
      %v5118 = vunpack.c.l.b16 %v5114
      %v5119 = vpack.c.b16 %v5118, %v5117
      %v5122 = vsel %vm2928, %v5097, 0
      %v5125 = vsel %vm2928, %v5098, 0
      %v5128 = vsel %vm2928, %v5099, 0
      %v5131 = vsel %vm2928, %v5100, 0
      %v5134 = vsel %vm2928, %v5101, 0
      %v5137 = vsel %vm2928, %v5102, 0
      %v5140 = vsel %vm2928, %v5103, 0
      %v5143 = vsel %vm2928, %v5104, 0
      %v5146 = vsel %vm2928, %v5105, 0
      %v5149 = vsel %vm2928, %v5106, 0
      %v5152 = vsel %vm2928, %v5107, 0
      %v5155 = vsel %vm2928, %v5108, 0
      %v5158 = vsel %vm2928, %v5109, 0
      %v5161 = vsel %vm2928, %v5110, 0
      %v5164 = vsel %vm2928, %v5111, 0
      %v5167 = vsel %vm2928, %v5112, 0
      %5169 = vmatprep.subr.bf16.mxu0 0
      %5170 = vmatpush1.bf16.msra.mxu0 %v5119
      %5171 = vmatprep.subr.bf16.mxu0 0
      %5172 = vmatpush1.bf16.msra.mxu0 0
      %5173 = vmatprep.subr.bf16.mxu0 0
      %5174 = vmatpush1.bf16.msra.mxu0 0
      %5175 = vmatprep.subr.bf16.mxu0 0
      %5176 = vmatpush1.bf16.msra.mxu0 0
      %5177 = vmatprep.subr.bf16.mxu0 0
      %5178 = vmatpush1.bf16.msra.mxu0 0
      %5179 = vmatprep.subr.bf16.mxu0 0
      %5180 = vmatpush1.bf16.msra.mxu0 0
      %5181 = vmatprep.subr.bf16.mxu0 0
      %5182 = vmatpush1.bf16.msra.mxu0 0
      %5183 = vmatprep.subr.bf16.mxu0 0
      %5184 = vmatpush1.bf16.msra.mxu0 0
      %5185 = vmatprep.subr.bf16.mxu0 0
      %5186 = vmatpush1.bf16.msra.mxu0 0
      %5187 = vmatprep.subr.bf16.mxu0 0
      %5188 = vmatpush1.bf16.msra.mxu0 0
      %5189 = vmatprep.subr.bf16.mxu0 0
      %5190 = vmatpush1.bf16.msra.mxu0 0
      %5191 = vmatprep.subr.bf16.mxu0 0
      %5192 = vmatpush1.bf16.msra.mxu0 0
      %5193 = vmatprep.subr.bf16.mxu0 0
      %5194 = vmatpush1.bf16.msra.mxu0 0
      %5195 = vmatprep.subr.bf16.mxu0 0
      %5196 = vmatpush1.bf16.msra.mxu0 0
      %5197 = vmatprep.subr.bf16.mxu0 0
      %5198 = vmatpush1.bf16.msra.mxu0 0
      %5199 = vmatprep.subr.bf16.mxu0 0
      %5200 = vmatpush1.bf16.msra.mxu0 0
      %5201 = vmatprep.mubr.bf16.mxu0 0
      %5202 = vmatmul.mubr.bf16.gmra.mrb[0].mxu0 %v5122
      %v5203 = vpop.f32.mrb[0].mxu0
      %v5204 = vadd.f32 0.0, %v5203
      %v5205 = vpop.f32.mrb[0].mxu0
      %v5206 = vpop.f32.mrb[0].mxu0
      %v5207 = vadd.f32 0.0, %v5206
      %v5208 = vpop.f32.mrb[0].mxu0
      %5209 = vmatprep.mubr.bf16.mxu0 0
      %5210 = vmatmul.mubr.bf16.gmra.mrb[0].mxu0 %v5125
      %v5211 = vpop.f32.mrb[0].mxu0
      %v5212 = vadd.f32 0.0, %v5211
      %v5213 = vpop.f32.mrb[0].mxu0
      %v5214 = vpop.f32.mrb[0].mxu0
      %v5215 = vadd.f32 0.0, %v5214
      %v5216 = vpop.f32.mrb[0].mxu0
      %5217 = vmatprep.mubr.bf16.mxu0 0
      %5218 = vmatmul.mubr.bf16.gmra.mrb[0].mxu0 %v5128
      %v5219 = vpop.f32.mrb[0].mxu0
      %v5220 = vadd.f32 0.0, %v5219
      %v5221 = vpop.f32.mrb[0].mxu0
      %v5222 = vpop.f32.mrb[0].mxu0
      %v5223 = vadd.f32 0.0, %v5222
      %v5224 = vpop.f32.mrb[0].mxu0
      %5225 = vmatprep.mubr.bf16.mxu0 0
      %5226 = vmatmul.mubr.bf16.gmra.mrb[0].mxu0 %v5131
      %v5227 = vpop.f32.mrb[0].mxu0
      %v5228 = vadd.f32 0.0, %v5227
      %v5229 = vpop.f32.mrb[0].mxu0
      %v5230 = vpop.f32.mrb[0].mxu0
      %v5231 = vadd.f32 0.0, %v5230
      %v5232 = vpop.f32.mrb[0].mxu0
      %5233 = vmatprep.mubr.bf16.mxu0 0
      %5234 = vmatmul.mubr.bf16.gmra.mrb[0].mxu0 %v5134
      %v5235 = vpop.f32.mrb[0].mxu0
      %v5236 = vadd.f32 0.0, %v5235
      %v5237 = vpop.f32.mrb[0].mxu0
      %v5238 = vpop.f32.mrb[0].mxu0
      %v5239 = vadd.f32 0.0, %v5238
      %v5240 = vpop.f32.mrb[0].mxu0
      %5241 = vmatprep.mubr.bf16.mxu0 0
      %5242 = vmatmul.mubr.bf16.gmra.mrb[0].mxu0 %v5137
      %v5243 = vpop.f32.mrb[0].mxu0
      %v5244 = vadd.f32 0.0, %v5243
      %v5245 = vpop.f32.mrb[0].mxu0
      %v5246 = vpop.f32.mrb[0].mxu0
      %v5247 = vadd.f32 0.0, %v5246
      %v5248 = vpop.f32.mrb[0].mxu0
      %5249 = vmatprep.mubr.bf16.mxu0 0
      %5250 = vmatmul.mubr.bf16.gmra.mrb[0].mxu0 %v5140
      %v5251 = vpop.f32.mrb[0].mxu0
      %v5252 = vadd.f32 0.0, %v5251
      %v5253 = vpop.f32.mrb[0].mxu0
      %v5254 = vpop.f32.mrb[0].mxu0
      %v5255 = vadd.f32 0.0, %v5254
      %v5256 = vpop.f32.mrb[0].mxu0
      %5257 = vmatprep.mubr.bf16.mxu0 0
      %5258 = vmatmul.mubr.bf16.gmra.mrb[0].mxu0 %v5143
      %v5259 = vpop.f32.mrb[0].mxu0
      %v5260 = vadd.f32 0.0, %v5259
      %v5261 = vpop.f32.mrb[0].mxu0
      %v5262 = vpop.f32.mrb[0].mxu0
      %v5263 = vadd.f32 0.0, %v5262
      %v5264 = vpop.f32.mrb[0].mxu0
      %5265 = vmatprep.mubr.bf16.mxu0 0
      %5266 = vmatmul.mubr.bf16.gmra.mrb[0].mxu0 %v5146
      %v5267 = vpop.f32.mrb[0].mxu0
      %v5268 = vadd.f32 0.0, %v5267
      %v5269 = vpop.f32.mrb[0].mxu0
      %v5270 = vpop.f32.mrb[0].mxu0
      %v5271 = vadd.f32 0.0, %v5270
      %v5272 = vpop.f32.mrb[0].mxu0
      %5273 = vmatprep.mubr.bf16.mxu0 0
      %5274 = vmatmul.mubr.bf16.gmra.mrb[0].mxu0 %v5149
      %v5275 = vpop.f32.mrb[0].mxu0
      %v5276 = vadd.f32 0.0, %v5275
      %v5277 = vpop.f32.mrb[0].mxu0
      %v5278 = vpop.f32.mrb[0].mxu0
      %v5279 = vadd.f32 0.0, %v5278
      %v5280 = vpop.f32.mrb[0].mxu0
      %5281 = vmatprep.mubr.bf16.mxu0 0
      %5282 = vmatmul.mubr.bf16.gmra.mrb[0].mxu0 %v5152
      %v5283 = vpop.f32.mrb[0].mxu0
      %v5284 = vadd.f32 0.0, %v5283
      %v5285 = vpop.f32.mrb[0].mxu0
      %v5286 = vpop.f32.mrb[0].mxu0
      %v5287 = vadd.f32 0.0, %v5286
      %v5288 = vpop.f32.mrb[0].mxu0
      %5289 = vmatprep.mubr.bf16.mxu0 0
      %5290 = vmatmul.mubr.bf16.gmra.mrb[0].mxu0 %v5155
      %v5291 = vpop.f32.mrb[0].mxu0
      %v5292 = vadd.f32 0.0, %v5291
      %v5293 = vpop.f32.mrb[0].mxu0
      %v5294 = vpop.f32.mrb[0].mxu0
      %v5295 = vadd.f32 0.0, %v5294
      %v5296 = vpop.f32.mrb[0].mxu0
      %5297 = vmatprep.mubr.bf16.mxu0 0
      %5298 = vmatmul.mubr.bf16.gmra.mrb[0].mxu0 %v5158
      %v5299 = vpop.f32.mrb[0].mxu0
      %v5300 = vadd.f32 0.0, %v5299
      %v5301 = vpop.f32.mrb[0].mxu0
      %v5302 = vpop.f32.mrb[0].mxu0
      %v5303 = vadd.f32 0.0, %v5302
      %v5304 = vpop.f32.mrb[0].mxu0
      %5305 = vmatprep.mubr.bf16.mxu0 0
      %5306 = vmatmul.mubr.bf16.gmra.mrb[0].mxu0 %v5161
      %v5307 = vpop.f32.mrb[0].mxu0
      %v5308 = vadd.f32 0.0, %v5307
      %v5309 = vpop.f32.mrb[0].mxu0
      %v5310 = vpop.f32.mrb[0].mxu0
      %v5311 = vadd.f32 0.0, %v5310
      %v5312 = vpop.f32.mrb[0].mxu0
      %5313 = vmatprep.mubr.bf16.mxu0 0
      %5314 = vmatmul.mubr.bf16.gmra.mrb[0].mxu0 %v5164
      %v5315 = vpop.f32.mrb[0].mxu0
      %v5316 = vadd.f32 0.0, %v5315
      %v5317 = vpop.f32.mrb[0].mxu0
      %v5318 = vpop.f32.mrb[0].mxu0
      %v5319 = vadd.f32 0.0, %v5318
      %v5320 = vpop.f32.mrb[0].mxu0
      %5321 = vmatprep.mubr.bf16.mxu0 0
      %5322 = vmatmul.mubr.bf16.gmra.mrb[0].mxu0 %v5167
      %v5323 = vpop.f32.mrb[0].mxu0
      %v5324 = vadd.f32 0.0, %v5323
      %v5325 = vpop.f32.mrb[0].mxu0
      %v5326 = vpop.f32.mrb[0].mxu0
      %v5327 = vadd.f32 0.0, %v5326
      %v5328 = vpop.f32.mrb[0].mxu0
      %5329 = vdwg.mxu0
      %v5330 = vadd.f32 %v5033, %v5204
      %v5331 = vadd.f32 %v5034, %v5207
      %v5332 = vadd.f32 %v5035, %v5212
      %v5333 = vadd.f32 %v5036, %v5215
      %v5334 = vadd.f32 %v5037, %v5220
      %v5335 = vadd.f32 %v5038, %v5223
      %v5336 = vadd.f32 %v5039, %v5228
      %v5337 = vadd.f32 %v5040, %v5231
      %v5338 = vadd.f32 %v5041, %v5236
      %v5339 = vadd.f32 %v5042, %v5239
      %v5340 = vadd.f32 %v5043, %v5244
      %v5341 = vadd.f32 %v5044, %v5247
      %v5342 = vadd.f32 %v5045, %v5252
      %v5343 = vadd.f32 %v5046, %v5255
      %v5344 = vadd.f32 %v5047, %v5260
      %v5345 = vadd.f32 %v5048, %v5263
      %v5346 = vadd.f32 %v5049, %v5268
      %v5347 = vadd.f32 %v5050, %v5271
      %v5348 = vadd.f32 %v5051, %v5276
      %v5349 = vadd.f32 %v5052, %v5279
      %v5350 = vadd.f32 %v5053, %v5284
      %v5351 = vadd.f32 %v5054, %v5287
      %v5352 = vadd.f32 %v5055, %v5292
      %v5353 = vadd.f32 %v5056, %v5295
      %v5354 = vadd.f32 %v5057, %v5300
      %v5355 = vadd.f32 %v5058, %v5303
      %v5356 = vadd.f32 %v5059, %v5308
      %v5357 = vadd.f32 %v5060, %v5311
      %v5358 = vadd.f32 %v5061, %v5316
      %v5359 = vadd.f32 %v5062, %v5319
      %v5360 = vadd.f32 %v5063, %v5324
      %v5361 = vadd.f32 %v5064, %v5327
      %v5362 = vld [vmem:[%s4767 + $0x2] sm:$0xff]
      %v5363 = vld [vmem:[%s4767 + $0xa] sm:$0xff]
      %v5364 = vld [vmem:[%s4767 + $0x1a] sm:$0xff]
      %v5365 = vld [vmem:[%s4767 + $0x22] sm:$0xff]
      %v5366 = vld [vmem:[%s4767 + $0x32] sm:$0xff]
      %v5367 = vld [vmem:[%s4767 + $0x3a] sm:$0xff]
      %v5368 = vld [vmem:[%s4767 + $0x4a] sm:$0xff]
      %v5369 = vld [vmem:[%s4767 + $0x52] sm:$0xff]
      %v5370 = vld [vmem:[%s4767 + $0x62] sm:$0xff]
      %v5371 = vld [vmem:[%s4767 + $0x6a] sm:$0xff]
      %v5372 = vld [vmem:[%s4767 + $0x7a] sm:$0xff]
      %v5373 = vld [vmem:[%s4767 + $0x82] sm:$0xff]
      %v5374 = vld [vmem:[%s4767 + $0x92] sm:$0xff]
      %v5375 = vld [vmem:[%s4767 + $0x9a] sm:$0xff]
      %v5376 = vld [vmem:[%s4767 + $0xaa] sm:$0xff]
      %v5377 = vld [vmem:[%s4767 + $0xb2] sm:$0xff]
      %v5378 = vld [vmem:[%s4767 + $0xc2] sm:$0xff]
      %v5379 = vld [vmem:[%s4767 + $0xca] sm:$0xff]
      %v5380 = vld [vmem:[%s4767 + $0xda] sm:$0xff]
      %v5381 = vld [vmem:[%s4767 + $0xe2] sm:$0xff]
      %v5382 = vld [vmem:[%s4767 + $0xf2] sm:$0xff]
      %v5383 = vld [vmem:[%s4767 + $0xfa] sm:$0xff]
      %v5384 = vld [vmem:[%s4767 + $0x10a] sm:$0xff]
      %v5385 = vld [vmem:[%s4767 + $0x112] sm:$0xff]
      %v5386 = vld [vmem:[%s4767 + $0x122] sm:$0xff]
      %v5387 = vld [vmem:[%s4767 + $0x12a] sm:$0xff]
      %v5388 = vld [vmem:[%s4767 + $0x13a] sm:$0xff]
      %v5389 = vld [vmem:[%s4767 + $0x142] sm:$0xff]
      %v5390 = vld [vmem:[%s4767 + $0x152] sm:$0xff]
      %v5391 = vld [vmem:[%s4767 + $0x15a] sm:$0xff]
      %v5392 = vld [vmem:[%s4767 + $0x16a] sm:$0xff]
      %v5393 = vld [vmem:[%s4767 + $0x172] sm:$0xff]
      %v5394 = vpack.c.bf16 %v5363, %v5362
      %v5395 = vpack.c.bf16 %v5365, %v5364
      %v5396 = vpack.c.bf16 %v5367, %v5366
      %v5397 = vpack.c.bf16 %v5369, %v5368
      %v5398 = vpack.c.bf16 %v5371, %v5370
      %v5399 = vpack.c.bf16 %v5373, %v5372
      %v5400 = vpack.c.bf16 %v5375, %v5374
      %v5401 = vpack.c.bf16 %v5377, %v5376
      %v5402 = vpack.c.bf16 %v5379, %v5378
      %v5403 = vpack.c.bf16 %v5381, %v5380
      %v5404 = vpack.c.bf16 %v5383, %v5382
      %v5405 = vpack.c.bf16 %v5385, %v5384
      %v5406 = vpack.c.bf16 %v5387, %v5386
      %v5407 = vpack.c.bf16 %v5389, %v5388
      %v5408 = vpack.c.bf16 %v5391, %v5390
      %v5409 = vpack.c.bf16 %v5393, %v5392
      %v5410 = vld [vmem:[%s3 + $0x40] sm:$0xf]
      %v5411 = vld [vmem:[%s3 + $0x44] sm:$0xf]
      %v5414 = vunpack.c.l.b16 %v5410
      %v5415 = vunpack.c.l.b16 %v5411
      %v5416 = vpack.c.b16 %v5415, %v5414
      %v5419 = vsel %vm2928, %v5394, 0
      %v5422 = vsel %vm2928, %v5395, 0
      %v5425 = vsel %vm2928, %v5396, 0
      %v5428 = vsel %vm2928, %v5397, 0
      %v5431 = vsel %vm2928, %v5398, 0
      %v5434 = vsel %vm2928, %v5399, 0
      %v5437 = vsel %vm2928, %v5400, 0
      %v5440 = vsel %vm2928, %v5401, 0
      %v5443 = vsel %vm2928, %v5402, 0
      %v5446 = vsel %vm2928, %v5403, 0
      %v5449 = vsel %vm2928, %v5404, 0
      %v5452 = vsel %vm2928, %v5405, 0
      %v5455 = vsel %vm2928, %v5406, 0
      %v5458 = vsel %vm2928, %v5407, 0
      %v5461 = vsel %vm2928, %v5408, 0
      %v5464 = vsel %vm2928, %v5409, 0
      %5466 = vmatprep.subr.bf16.mxu0 0
      %5467 = vmatpush1.bf16.msra.mxu0 %v5416
      %5468 = vmatprep.subr.bf16.mxu0 0
      %5469 = vmatpush1.bf16.msra.mxu0 0
      %5470 = vmatprep.subr.bf16.mxu0 0
      %5471 = vmatpush1.bf16.msra.mxu0 0
      %5472 = vmatprep.subr.bf16.mxu0 0
      %5473 = vmatpush1.bf16.msra.mxu0 0
      %5474 = vmatprep.subr.bf16.mxu0 0
      %5475 = vmatpush1.bf16.msra.mxu0 0
      %5476 = vmatprep.subr.bf16.mxu0 0
      %5477 = vmatpush1.bf16.msra.mxu0 0
      %5478 = vmatprep.subr.bf16.mxu0 0
      %5479 = vmatpush1.bf16.msra.mxu0 0
      %5480 = vmatprep.subr.bf16.mxu0 0
      %5481 = vmatpush1.bf16.msra.mxu0 0
      %5482 = vmatprep.subr.bf16.mxu0 0
      %5483 = vmatpush1.bf16.msra.mxu0 0
      %5484 = vmatprep.subr.bf16.mxu0 0
      %5485 = vmatpush1.bf16.msra.mxu0 0
      %5486 = vmatprep.subr.bf16.mxu0 0
      %5487 = vmatpush1.bf16.msra.mxu0 0
      %5488 = vmatprep.subr.bf16.mxu0 0
      %5489 = vmatpush1.bf16.msra.mxu0 0
      %5490 = vmatprep.subr.bf16.mxu0 0
      %5491 = vmatpush1.bf16.msra.mxu0 0
      %5492 = vmatprep.subr.bf16.mxu0 0
      %5493 = vmatpush1.bf16.msra.mxu0 0
      %5494 = vmatprep.subr.bf16.mxu0 0
      %5495 = vmatpush1.bf16.msra.mxu0 0
      %5496 = vmatprep.subr.bf16.mxu0 0
      %5497 = vmatpush1.bf16.msra.mxu0 0
      %5498 = vmatprep.mubr.bf16.mxu0 0
      %5499 = vmatmul.mubr.bf16.gmra.mrb[0].mxu0 %v5419
      %v5500 = vpop.f32.mrb[0].mxu0
      %v5501 = vadd.f32 0.0, %v5500
      %v5502 = vpop.f32.mrb[0].mxu0
      %v5503 = vpop.f32.mrb[0].mxu0
      %v5504 = vadd.f32 0.0, %v5503
      %v5505 = vpop.f32.mrb[0].mxu0
      %5506 = vmatprep.mubr.bf16.mxu0 0
      %5507 = vmatmul.mubr.bf16.gmra.mrb[0].mxu0 %v5422
      %v5508 = vpop.f32.mrb[0].mxu0
      %v5509 = vadd.f32 0.0, %v5508
      %v5510 = vpop.f32.mrb[0].mxu0
      %v5511 = vpop.f32.mrb[0].mxu0
      %v5512 = vadd.f32 0.0, %v5511
      %v5513 = vpop.f32.mrb[0].mxu0
      %5514 = vmatprep.mubr.bf16.mxu0 0
      %5515 = vmatmul.mubr.bf16.gmra.mrb[0].mxu0 %v5425
      %v5516 = vpop.f32.mrb[0].mxu0
      %v5517 = vadd.f32 0.0, %v5516
      %v5518 = vpop.f32.mrb[0].mxu0
      %v5519 = vpop.f32.mrb[0].mxu0
      %v5520 = vadd.f32 0.0, %v5519
      %v5521 = vpop.f32.mrb[0].mxu0
      %5522 = vmatprep.mubr.bf16.mxu0 0
      %5523 = vmatmul.mubr.bf16.gmra.mrb[0].mxu0 %v5428
      %v5524 = vpop.f32.mrb[0].mxu0
      %v5525 = vadd.f32 0.0, %v5524
      %v5526 = vpop.f32.mrb[0].mxu0
      %v5527 = vpop.f32.mrb[0].mxu0
      %v5528 = vadd.f32 0.0, %v5527
      %v5529 = vpop.f32.mrb[0].mxu0
      %5530 = vmatprep.mubr.bf16.mxu0 0
      %5531 = vmatmul.mubr.bf16.gmra.mrb[0].mxu0 %v5431
      %v5532 = vpop.f32.mrb[0].mxu0
      %v5533 = vadd.f32 0.0, %v5532
      %v5534 = vpop.f32.mrb[0].mxu0
      %v5535 = vpop.f32.mrb[0].mxu0
      %v5536 = vadd.f32 0.0, %v5535
      %v5537 = vpop.f32.mrb[0].mxu0
      %5538 = vmatprep.mubr.bf16.mxu0 0
      %5539 = vmatmul.mubr.bf16.gmra.mrb[0].mxu0 %v5434
      %v5540 = vpop.f32.mrb[0].mxu0
      %v5541 = vadd.f32 0.0, %v5540
      %v5542 = vpop.f32.mrb[0].mxu0
      %v5543 = vpop.f32.mrb[0].mxu0
      %v5544 = vadd.f32 0.0, %v5543
      %v5545 = vpop.f32.mrb[0].mxu0
      %5546 = vmatprep.mubr.bf16.mxu0 0
      %5547 = vmatmul.mubr.bf16.gmra.mrb[0].mxu0 %v5437
      %v5548 = vpop.f32.mrb[0].mxu0
      %v5549 = vadd.f32 0.0, %v5548
      %v5550 = vpop.f32.mrb[0].mxu0
      %v5551 = vpop.f32.mrb[0].mxu0
      %v5552 = vadd.f32 0.0, %v5551
      %v5553 = vpop.f32.mrb[0].mxu0
      %5554 = vmatprep.mubr.bf16.mxu0 0
      %5555 = vmatmul.mubr.bf16.gmra.mrb[0].mxu0 %v5440
      %v5556 = vpop.f32.mrb[0].mxu0
      %v5557 = vadd.f32 0.0, %v5556
      %v5558 = vpop.f32.mrb[0].mxu0
      %v5559 = vpop.f32.mrb[0].mxu0
      %v5560 = vadd.f32 0.0, %v5559
      %v5561 = vpop.f32.mrb[0].mxu0
      %5562 = vmatprep.mubr.bf16.mxu0 0
      %5563 = vmatmul.mubr.bf16.gmra.mrb[0].mxu0 %v5443
      %v5564 = vpop.f32.mrb[0].mxu0
      %v5565 = vadd.f32 0.0, %v5564
      %v5566 = vpop.f32.mrb[0].mxu0
      %v5567 = vpop.f32.mrb[0].mxu0
      %v5568 = vadd.f32 0.0, %v5567
      %v5569 = vpop.f32.mrb[0].mxu0
      %5570 = vmatprep.mubr.bf16.mxu0 0
      %5571 = vmatmul.mubr.bf16.gmra.mrb[0].mxu0 %v5446
      %v5572 = vpop.f32.mrb[0].mxu0
      %v5573 = vadd.f32 0.0, %v5572
      %v5574 = vpop.f32.mrb[0].mxu0
      %v5575 = vpop.f32.mrb[0].mxu0
      %v5576 = vadd.f32 0.0, %v5575
      %v5577 = vpop.f32.mrb[0].mxu0
      %5578 = vmatprep.mubr.bf16.mxu0 0
      %5579 = vmatmul.mubr.bf16.gmra.mrb[0].mxu0 %v5449
      %v5580 = vpop.f32.mrb[0].mxu0
      %v5581 = vadd.f32 0.0, %v5580
      %v5582 = vpop.f32.mrb[0].mxu0
      %v5583 = vpop.f32.mrb[0].mxu0
      %v5584 = vadd.f32 0.0, %v5583
      %v5585 = vpop.f32.mrb[0].mxu0
      %5586 = vmatprep.mubr.bf16.mxu0 0
      %5587 = vmatmul.mubr.bf16.gmra.mrb[0].mxu0 %v5452
      %v5588 = vpop.f32.mrb[0].mxu0
      %v5589 = vadd.f32 0.0, %v5588
      %v5590 = vpop.f32.mrb[0].mxu0
      %v5591 = vpop.f32.mrb[0].mxu0
      %v5592 = vadd.f32 0.0, %v5591
      %v5593 = vpop.f32.mrb[0].mxu0
      %5594 = vmatprep.mubr.bf16.mxu0 0
      %5595 = vmatmul.mubr.bf16.gmra.mrb[0].mxu0 %v5455
      %v5596 = vpop.f32.mrb[0].mxu0
      %v5597 = vadd.f32 0.0, %v5596
      %v5598 = vpop.f32.mrb[0].mxu0
      %v5599 = vpop.f32.mrb[0].mxu0
      %v5600 = vadd.f32 0.0, %v5599
      %v5601 = vpop.f32.mrb[0].mxu0
      %5602 = vmatprep.mubr.bf16.mxu0 0
      %5603 = vmatmul.mubr.bf16.gmra.mrb[0].mxu0 %v5458
      %v5604 = vpop.f32.mrb[0].mxu0
      %v5605 = vadd.f32 0.0, %v5604
      %v5606 = vpop.f32.mrb[0].mxu0
      %v5607 = vpop.f32.mrb[0].mxu0
      %v5608 = vadd.f32 0.0, %v5607
      %v5609 = vpop.f32.mrb[0].mxu0
      %5610 = vmatprep.mubr.bf16.mxu0 0
      %5611 = vmatmul.mubr.bf16.gmra.mrb[0].mxu0 %v5461
      %v5612 = vpop.f32.mrb[0].mxu0
      %v5613 = vadd.f32 0.0, %v5612
      %v5614 = vpop.f32.mrb[0].mxu0
      %v5615 = vpop.f32.mrb[0].mxu0
      %v5616 = vadd.f32 0.0, %v5615
      %v5617 = vpop.f32.mrb[0].mxu0
      %5618 = vmatprep.mubr.bf16.mxu0 0
      %5619 = vmatmul.mubr.bf16.gmra.mrb[0].mxu0 %v5464
      %v5620 = vpop.f32.mrb[0].mxu0
      %v5621 = vadd.f32 0.0, %v5620
      %v5622 = vpop.f32.mrb[0].mxu0
      %v5623 = vpop.f32.mrb[0].mxu0
      %v5624 = vadd.f32 0.0, %v5623
      %v5625 = vpop.f32.mrb[0].mxu0
      %5626 = vdwg.mxu0
      %v5627 = vadd.f32 %v5330, %v5501
      %v5628 = vadd.f32 %v5331, %v5504
      %v5629 = vadd.f32 %v5332, %v5509
      %v5630 = vadd.f32 %v5333, %v5512
      %v5631 = vadd.f32 %v5334, %v5517
      %v5632 = vadd.f32 %v5335, %v5520
      %v5633 = vadd.f32 %v5336, %v5525
      %v5634 = vadd.f32 %v5337, %v5528
      %v5635 = vadd.f32 %v5338, %v5533
      %v5636 = vadd.f32 %v5339, %v5536
      %v5637 = vadd.f32 %v5340, %v5541
      %v5638 = vadd.f32 %v5341, %v5544
      %v5639 = vadd.f32 %v5342, %v5549
      %v5640 = vadd.f32 %v5343, %v5552
      %v5641 = vadd.f32 %v5344, %v5557
      %v5642 = vadd.f32 %v5345, %v5560
      %v5643 = vadd.f32 %v5346, %v5565
      %v5644 = vadd.f32 %v5347, %v5568
      %v5645 = vadd.f32 %v5348, %v5573
      %v5646 = vadd.f32 %v5349, %v5576
      %v5647 = vadd.f32 %v5350, %v5581
      %v5648 = vadd.f32 %v5351, %v5584
      %v5649 = vadd.f32 %v5352, %v5589
      %v5650 = vadd.f32 %v5353, %v5592
      %v5651 = vadd.f32 %v5354, %v5597
      %v5652 = vadd.f32 %v5355, %v5600
      %v5653 = vadd.f32 %v5356, %v5605
      %v5654 = vadd.f32 %v5357, %v5608
      %v5655 = vadd.f32 %v5358, %v5613
      %v5656 = vadd.f32 %v5359, %v5616
      %v5657 = vadd.f32 %v5360, %v5621
      %v5658 = vadd.f32 %v5361, %v5624
      %v5659 = vld [vmem:[%s4] sm:$0x1]
      %v5661 = vlaneseq
      %v5662 = vshrl.u32 %v5661, 7
      %v5663 = vsub.s32 0, %v5662
      %v5664 = vrot.slane %v5659, %v5663
      %v5666 = vadd.f32 %v5627, %v5664
      %v5667 = vadd.f32 %v5628, %v5664
      %v5668 = vadd.f32 %v5629, %v5664
      %v5669 = vadd.f32 %v5630, %v5664
      %v5670 = vadd.f32 %v5631, %v5664
      %v5671 = vadd.f32 %v5632, %v5664
      %v5672 = vadd.f32 %v5633, %v5664
      %v5673 = vadd.f32 %v5634, %v5664
      %v5674 = vadd.f32 %v5635, %v5664
      %v5675 = vadd.f32 %v5636, %v5664
      %v5676 = vadd.f32 %v5637, %v5664
      %v5677 = vadd.f32 %v5638, %v5664
      %v5678 = vadd.f32 %v5639, %v5664
      %v5679 = vadd.f32 %v5640, %v5664
      %v5680 = vadd.f32 %v5641, %v5664
      %v5681 = vadd.f32 %v5642, %v5664
      %v5682 = vadd.f32 %v5643, %v5664
      %v5683 = vadd.f32 %v5644, %v5664
      %v5684 = vadd.f32 %v5645, %v5664
      %v5685 = vadd.f32 %v5646, %v5664
      %v5686 = vadd.f32 %v5647, %v5664
      %v5687 = vadd.f32 %v5648, %v5664
      %v5688 = vadd.f32 %v5649, %v5664
      %v5689 = vadd.f32 %v5650, %v5664
      %v5690 = vadd.f32 %v5651, %v5664
      %v5691 = vadd.f32 %v5652, %v5664
      %v5692 = vadd.f32 %v5653, %v5664
      %v5693 = vadd.f32 %v5654, %v5664
      %v5694 = vadd.f32 %v5655, %v5664
      %v5695 = vadd.f32 %v5656, %v5664
      %v5696 = vadd.f32 %v5657, %v5664
      %v5697 = vadd.f32 %v5658, %v5664
      %v5698 = vmax.f32 %v5666, 0.0
      %v5699 = vmax.f32 %v5667, 0.0
      %v5700 = vmax.f32 %v5668, 0.0
      %v5701 = vmax.f32 %v5669, 0.0
      %v5702 = vmax.f32 %v5670, 0.0
      %v5703 = vmax.f32 %v5671, 0.0
      %v5704 = vmax.f32 %v5672, 0.0
      %v5705 = vmax.f32 %v5673, 0.0
      %v5706 = vmax.f32 %v5674, 0.0
      %v5707 = vmax.f32 %v5675, 0.0
      %v5708 = vmax.f32 %v5676, 0.0
      %v5709 = vmax.f32 %v5677, 0.0
      %v5710 = vmax.f32 %v5678, 0.0
      %v5711 = vmax.f32 %v5679, 0.0
      %v5712 = vmax.f32 %v5680, 0.0
      %v5713 = vmax.f32 %v5681, 0.0
      %v5714 = vmax.f32 %v5682, 0.0
      %v5715 = vmax.f32 %v5683, 0.0
      %v5716 = vmax.f32 %v5684, 0.0
      %v5717 = vmax.f32 %v5685, 0.0
      %v5718 = vmax.f32 %v5686, 0.0
      %v5719 = vmax.f32 %v5687, 0.0
      %v5720 = vmax.f32 %v5688, 0.0
      %v5721 = vmax.f32 %v5689, 0.0
      %v5722 = vmax.f32 %v5690, 0.0
      %v5723 = vmax.f32 %v5691, 0.0
      %v5724 = vmax.f32 %v5692, 0.0
      %v5725 = vmax.f32 %v5693, 0.0
      %v5726 = vmax.f32 %v5694, 0.0
      %v5727 = vmax.f32 %v5695, 0.0
      %v5728 = vmax.f32 %v5696, 0.0
      %v5729 = vmax.f32 %v5697, 0.0
      %5730 = vst.msk [vmem:[%s3016 + $0x1] sm:$0xff] %vm2928, %v5698
      %5731 = vst.msk [vmem:[%s3016 + $0x9] sm:$0xff] %vm2928, %v5699
      %5732 = vst.msk [vmem:[%s3016 + $0x19] sm:$0xff] %vm2928, %v5700
      %5733 = vst.msk [vmem:[%s3016 + $0x21] sm:$0xff] %vm2928, %v5701
      %5734 = vst.msk [vmem:[%s3016 + $0x31] sm:$0xff] %vm2928, %v5702
      %5735 = vst.msk [vmem:[%s3016 + $0x39] sm:$0xff] %vm2928, %v5703
      %5736 = vst.msk [vmem:[%s3016 + $0x49] sm:$0xff] %vm2928, %v5704
      %5737 = vst.msk [vmem:[%s3016 + $0x51] sm:$0xff] %vm2928, %v5705
      %5738 = vst.msk [vmem:[%s3016 + $0x61] sm:$0xff] %vm2928, %v5706
      %5739 = vst.msk [vmem:[%s3016 + $0x69] sm:$0xff] %vm2928, %v5707
      %5740 = vst.msk [vmem:[%s3016 + $0x79] sm:$0xff] %vm2928, %v5708
      %5741 = vst.msk [vmem:[%s3016 + $0x81] sm:$0xff] %vm2928, %v5709
      %5742 = vst.msk [vmem:[%s3016 + $0x91] sm:$0xff] %vm2928, %v5710
      %5743 = vst.msk [vmem:[%s3016 + $0x99] sm:$0xff] %vm2928, %v5711
      %5744 = vst.msk [vmem:[%s3016 + $0xa9] sm:$0xff] %vm2928, %v5712
      %5745 = vst.msk [vmem:[%s3016 + $0xb1] sm:$0xff] %vm2928, %v5713
      %5746 = vst.msk [vmem:[%s3016 + $0xc1] sm:$0xff] %vm2928, %v5714
      %5747 = vst.msk [vmem:[%s3016 + $0xc9] sm:$0xff] %vm2928, %v5715
      %5748 = vst.msk [vmem:[%s3016 + $0xd9] sm:$0xff] %vm2928, %v5716
      %5749 = vst.msk [vmem:[%s3016 + $0xe1] sm:$0xff] %vm2928, %v5717
      %5750 = vst.msk [vmem:[%s3016 + $0xf1] sm:$0xff] %vm2928, %v5718
      %5751 = vst.msk [vmem:[%s3016 + $0xf9] sm:$0xff] %vm2928, %v5719
      %5752 = vst.msk [vmem:[%s3016 + $0x109] sm:$0xff] %vm2928, %v5720
      %5753 = vst.msk [vmem:[%s3016 + $0x111] sm:$0xff] %vm2928, %v5721
      %5754 = vst.msk [vmem:[%s3016 + $0x121] sm:$0xff] %vm2928, %v5722
      %5755 = vst.msk [vmem:[%s3016 + $0x129] sm:$0xff] %vm2928, %v5723
      %5756 = vst.msk [vmem:[%s3016 + $0x139] sm:$0xff] %vm2928, %v5724
      %5757 = vst.msk [vmem:[%s3016 + $0x141] sm:$0xff] %vm2928, %v5725
      %5758 = vst.msk [vmem:[%s3016 + $0x151] sm:$0xff] %vm2928, %v5726
      %5759 = vst.msk [vmem:[%s3016 + $0x159] sm:$0xff] %vm2928, %v5727
      %5760 = vst.msk [vmem:[%s3016 + $0x169] sm:$0xff] %vm2928, %v5728
      %5761 = vst.msk [vmem:[%s3016 + $0x171] sm:$0xff] %vm2928, %v5729
      %v5762 = vld [vmem:[#allocation2] sm:$0xff]
      %v5763 = vld [vmem:[#allocation2 + $0x8] sm:$0xff]
      %v5764 = vld [vmem:[#allocation2 + $0x18] sm:$0xff]
      %v5765 = vld [vmem:[#allocation2 + $0x20] sm:$0xff]
      %v5766 = vld [vmem:[#allocation2 + $0x30] sm:$0xff]
      %v5767 = vld [vmem:[#allocation2 + $0x38] sm:$0xff]
      %v5768 = vld [vmem:[#allocation2 + $0x48] sm:$0xff]
      %v5769 = vld [vmem:[#allocation2 + $0x50] sm:$0xff]
      %v5770 = vld [vmem:[#allocation2 + $0x60] sm:$0xff]
      %v5771 = vld [vmem:[#allocation2 + $0x68] sm:$0xff]
      %v5772 = vld [vmem:[#allocation2 + $0x78] sm:$0xff]
      %v5773 = vld [vmem:[#allocation2 + $0x80] sm:$0xff]
      %v5774 = vld [vmem:[#allocation2 + $0x90] sm:$0xff]
      %v5775 = vld [vmem:[#allocation2 + $0x98] sm:$0xff]
      %v5776 = vld [vmem:[#allocation2 + $0xa8] sm:$0xff]
      %v5777 = vld [vmem:[#allocation2 + $0xb0] sm:$0xff]
      %v5778 = vld [vmem:[#allocation2 + $0xc0] sm:$0xff]
      %v5779 = vld [vmem:[#allocation2 + $0xc8] sm:$0xff]
      %v5780 = vld [vmem:[#allocation2 + $0xd8] sm:$0xff]
      %v5781 = vld [vmem:[#allocation2 + $0xe0] sm:$0xff]
      %v5782 = vld [vmem:[#allocation2 + $0xf0] sm:$0xff]
      %v5783 = vld [vmem:[#allocation2 + $0xf8] sm:$0xff]
      %v5784 = vld [vmem:[#allocation2 + $0x108] sm:$0xff]
      %v5785 = vld [vmem:[#allocation2 + $0x110] sm:$0xff]
      %v5786 = vld [vmem:[#allocation2 + $0x120] sm:$0xff]
      %v5787 = vld [vmem:[#allocation2 + $0x128] sm:$0xff]
      %v5788 = vld [vmem:[#allocation2 + $0x138] sm:$0xff]
      %v5789 = vld [vmem:[#allocation2 + $0x140] sm:$0xff]
      %v5790 = vld [vmem:[#allocation2 + $0x150] sm:$0xff]
      %v5791 = vld [vmem:[#allocation2 + $0x158] sm:$0xff]
      %v5792 = vld [vmem:[#allocation2 + $0x168] sm:$0xff]
      %v5793 = vld [vmem:[#allocation2 + $0x170] sm:$0xff]
      %v5794 = vpack.c.bf16 %v5763, %v5762
      %v5795 = vpack.c.bf16 %v5765, %v5764
      %v5796 = vpack.c.bf16 %v5767, %v5766
      %v5797 = vpack.c.bf16 %v5769, %v5768
      %v5798 = vpack.c.bf16 %v5771, %v5770
      %v5799 = vpack.c.bf16 %v5773, %v5772
      %v5800 = vpack.c.bf16 %v5775, %v5774
      %v5801 = vpack.c.bf16 %v5777, %v5776
      %v5802 = vpack.c.bf16 %v5779, %v5778
      %v5803 = vpack.c.bf16 %v5781, %v5780
      %v5804 = vpack.c.bf16 %v5783, %v5782
      %v5805 = vpack.c.bf16 %v5785, %v5784
      %v5806 = vpack.c.bf16 %v5787, %v5786
      %v5807 = vpack.c.bf16 %v5789, %v5788
      %v5808 = vpack.c.bf16 %v5791, %v5790
      %v5809 = vpack.c.bf16 %v5793, %v5792
      %v5810 = vld [vmem:[%s5] sm:$0xf]
      %v5811 = vld [vmem:[%s5 + $0x4] sm:$0xf]
      %v5812 = vld [vmem:[#allocation2 + $0x1] sm:$0xff]
      %v5813 = vld [vmem:[#allocation2 + $0x9] sm:$0xff]
      %v5814 = vld [vmem:[#allocation2 + $0x19] sm:$0xff]
      %v5815 = vld [vmem:[#allocation2 + $0x21] sm:$0xff]
      %v5816 = vld [vmem:[#allocation2 + $0x31] sm:$0xff]
      %v5817 = vld [vmem:[#allocation2 + $0x39] sm:$0xff]
      %v5818 = vld [vmem:[#allocation2 + $0x49] sm:$0xff]
      %v5819 = vld [vmem:[#allocation2 + $0x51] sm:$0xff]
      %v5820 = vld [vmem:[#allocation2 + $0x61] sm:$0xff]
      %v5821 = vld [vmem:[#allocation2 + $0x69] sm:$0xff]
      %v5822 = vld [vmem:[#allocation2 + $0x79] sm:$0xff]
      %v5823 = vld [vmem:[#allocation2 + $0x81] sm:$0xff]
      %v5824 = vld [vmem:[#allocation2 + $0x91] sm:$0xff]
      %v5825 = vld [vmem:[#allocation2 + $0x99] sm:$0xff]
      %v5826 = vld [vmem:[#allocation2 + $0xa9] sm:$0xff]
      %v5827 = vld [vmem:[#allocation2 + $0xb1] sm:$0xff]
      %v5828 = vld [vmem:[#allocation2 + $0xc1] sm:$0xff]
      %v5829 = vld [vmem:[#allocation2 + $0xc9] sm:$0xff]
      %v5830 = vld [vmem:[#allocation2 + $0xd9] sm:$0xff]
      %v5831 = vld [vmem:[#allocation2 + $0xe1] sm:$0xff]
      %v5832 = vld [vmem:[#allocation2 + $0xf1] sm:$0xff]
      %v5833 = vld [vmem:[#allocation2 + $0xf9] sm:$0xff]
      %v5834 = vld [vmem:[#allocation2 + $0x109] sm:$0xff]
      %v5835 = vld [vmem:[#allocation2 + $0x111] sm:$0xff]
      %v5836 = vld [vmem:[#allocation2 + $0x121] sm:$0xff]
      %v5837 = vld [vmem:[#allocation2 + $0x129] sm:$0xff]
      %v5838 = vld [vmem:[#allocation2 + $0x139] sm:$0xff]
      %v5839 = vld [vmem:[#allocation2 + $0x141] sm:$0xff]
      %v5840 = vld [vmem:[#allocation2 + $0x151] sm:$0xff]
      %v5841 = vld [vmem:[#allocation2 + $0x159] sm:$0xff]
      %v5842 = vld [vmem:[#allocation2 + $0x169] sm:$0xff]
      %v5843 = vld [vmem:[#allocation2 + $0x171] sm:$0xff]
      %v5844 = vpack.c.bf16 %v5813, %v5812
      %v5845 = vpack.c.bf16 %v5815, %v5814
      %v5846 = vpack.c.bf16 %v5817, %v5816
      %v5847 = vpack.c.bf16 %v5819, %v5818
      %v5848 = vpack.c.bf16 %v5821, %v5820
      %v5849 = vpack.c.bf16 %v5823, %v5822
      %v5850 = vpack.c.bf16 %v5825, %v5824
      %v5851 = vpack.c.bf16 %v5827, %v5826
      %v5852 = vpack.c.bf16 %v5829, %v5828
      %v5853 = vpack.c.bf16 %v5831, %v5830
      %v5854 = vpack.c.bf16 %v5833, %v5832
      %v5855 = vpack.c.bf16 %v5835, %v5834
      %v5856 = vpack.c.bf16 %v5837, %v5836
      %v5857 = vpack.c.bf16 %v5839, %v5838
      %v5858 = vpack.c.bf16 %v5841, %v5840
      %v5859 = vpack.c.bf16 %v5843, %v5842
      %v5860 = vld [vmem:[%s5 + $0x8] sm:$0xf]
      %v5861 = vld [vmem:[%s5 + $0xc] sm:$0xf]
      %v5864 = vunpack.c.l.b16 %v5860
      %v5865 = vunpack.c.l.b16 %v5861
      %v5866 = vpack.c.b16 %v5865, %v5864
      %v5869 = vsel %vm2928, %v5844, 0
      %v5872 = vsel %vm2928, %v5845, 0
      %v5875 = vsel %vm2928, %v5846, 0
      %v5878 = vsel %vm2928, %v5847, 0
      %v5881 = vsel %vm2928, %v5848, 0
      %v5884 = vsel %vm2928, %v5849, 0
      %v5887 = vsel %vm2928, %v5850, 0
      %v5890 = vsel %vm2928, %v5851, 0
      %v5893 = vsel %vm2928, %v5852, 0
      %v5896 = vsel %vm2928, %v5853, 0
      %v5899 = vsel %vm2928, %v5854, 0
      %v5902 = vsel %vm2928, %v5855, 0
      %v5905 = vsel %vm2928, %v5856, 0
      %v5908 = vsel %vm2928, %v5857, 0
      %v5911 = vsel %vm2928, %v5858, 0
      %v5914 = vsel %vm2928, %v5859, 0
      %5916 = vmatprep.subr.bf16.mxu0 0
      %5917 = vmatpush1.bf16.msra.mxu0 %v5866
      %5918 = vmatprep.subr.bf16.mxu0 0
      %5919 = vmatpush1.bf16.msra.mxu0 0
      %5920 = vmatprep.subr.bf16.mxu0 0
      %5921 = vmatpush1.bf16.msra.mxu0 0
      %5922 = vmatprep.subr.bf16.mxu0 0
      %5923 = vmatpush1.bf16.msra.mxu0 0
      %5924 = vmatprep.subr.bf16.mxu0 0
      %5925 = vmatpush1.bf16.msra.mxu0 0
      %5926 = vmatprep.subr.bf16.mxu0 0
      %5927 = vmatpush1.bf16.msra.mxu0 0
      %5928 = vmatprep.subr.bf16.mxu0 0
      %5929 = vmatpush1.bf16.msra.mxu0 0
      %5930 = vmatprep.subr.bf16.mxu0 0
      %5931 = vmatpush1.bf16.msra.mxu0 0
      %5932 = vmatprep.subr.bf16.mxu0 0
      %5933 = vmatpush1.bf16.msra.mxu0 0
      %5934 = vmatprep.subr.bf16.mxu0 0
      %5935 = vmatpush1.bf16.msra.mxu0 0
      %5936 = vmatprep.subr.bf16.mxu0 0
      %5937 = vmatpush1.bf16.msra.mxu0 0
      %5938 = vmatprep.subr.bf16.mxu0 0
      %5939 = vmatpush1.bf16.msra.mxu0 0
      %5940 = vmatprep.subr.bf16.mxu0 0
      %5941 = vmatpush1.bf16.msra.mxu0 0
      %5942 = vmatprep.subr.bf16.mxu0 0
      %5943 = vmatpush1.bf16.msra.mxu0 0
      %5944 = vmatprep.subr.bf16.mxu0 0
      %5945 = vmatpush1.bf16.msra.mxu0 0
      %5946 = vmatprep.subr.bf16.mxu0 0
      %5947 = vmatpush1.bf16.msra.mxu0 0
      %5948 = vmatprep.mubr.bf16.mxu0 0
      %5949 = vmatmul.mubr.bf16.gmra.mrb[0].mxu0 %v5869
      %v5950 = vpop.f32.mrb[0].mxu0
      %v5951 = vadd.f32 0.0, %v5950
      %v5952 = vpop.f32.mrb[0].mxu0
      %v5953 = vpop.f32.mrb[0].mxu0
      %v5954 = vadd.f32 0.0, %v5953
      %v5955 = vpop.f32.mrb[0].mxu0
      %5956 = vmatprep.mubr.bf16.mxu0 0
      %5957 = vmatmul.mubr.bf16.gmra.mrb[0].mxu0 %v5872
      %v5958 = vpop.f32.mrb[0].mxu0
      %v5959 = vadd.f32 0.0, %v5958
      %v5960 = vpop.f32.mrb[0].mxu0
      %v5961 = vpop.f32.mrb[0].mxu0
      %v5962 = vadd.f32 0.0, %v5961
      %v5963 = vpop.f32.mrb[0].mxu0
      %5964 = vmatprep.mubr.bf16.mxu0 0
      %5965 = vmatmul.mubr.bf16.gmra.mrb[0].mxu0 %v5875
      %v5966 = vpop.f32.mrb[0].mxu0
      %v5967 = vadd.f32 0.0, %v5966
      %v5968 = vpop.f32.mrb[0].mxu0
      %v5969 = vpop.f32.mrb[0].mxu0
      %v5970 = vadd.f32 0.0, %v5969
      %v5971 = vpop.f32.mrb[0].mxu0
      %5972 = vmatprep.mubr.bf16.mxu0 0
      %5973 = vmatmul.mubr.bf16.gmra.mrb[0].mxu0 %v5878
      %v5974 = vpop.f32.mrb[0].mxu0
      %v5975 = vadd.f32 0.0, %v5974
      %v5976 = vpop.f32.mrb[0].mxu0
      %v5977 = vpop.f32.mrb[0].mxu0
      %v5978 = vadd.f32 0.0, %v5977
      %v5979 = vpop.f32.mrb[0].mxu0
      %5980 = vmatprep.mubr.bf16.mxu0 0
      %5981 = vmatmul.mubr.bf16.gmra.mrb[0].mxu0 %v5881
      %v5982 = vpop.f32.mrb[0].mxu0
      %v5983 = vadd.f32 0.0, %v5982
      %v5984 = vpop.f32.mrb[0].mxu0
      %v5985 = vpop.f32.mrb[0].mxu0
      %v5986 = vadd.f32 0.0, %v5985
      %v5987 = vpop.f32.mrb[0].mxu0
      %5988 = vmatprep.mubr.bf16.mxu0 0
      %5989 = vmatmul.mubr.bf16.gmra.mrb[0].mxu0 %v5884
      %v5990 = vpop.f32.mrb[0].mxu0
      %v5991 = vadd.f32 0.0, %v5990
      %v5992 = vpop.f32.mrb[0].mxu0
      %v5993 = vpop.f32.mrb[0].mxu0
      %v5994 = vadd.f32 0.0, %v5993
      %v5995 = vpop.f32.mrb[0].mxu0
      %5996 = vmatprep.mubr.bf16.mxu0 0
      %5997 = vmatmul.mubr.bf16.gmra.mrb[0].mxu0 %v5887
      %v5998 = vpop.f32.mrb[0].mxu0
      %v5999 = vadd.f32 0.0, %v5998
      %v6000 = vpop.f32.mrb[0].mxu0
      %v6001 = vpop.f32.mrb[0].mxu0
      %v6002 = vadd.f32 0.0, %v6001
      %v6003 = vpop.f32.mrb[0].mxu0
      %6004 = vmatprep.mubr.bf16.mxu0 0
      %6005 = vmatmul.mubr.bf16.gmra.mrb[0].mxu0 %v5890
      %v6006 = vpop.f32.mrb[0].mxu0
      %v6007 = vadd.f32 0.0, %v6006
      %v6008 = vpop.f32.mrb[0].mxu0
      %v6009 = vpop.f32.mrb[0].mxu0
      %v6010 = vadd.f32 0.0, %v6009
      %v6011 = vpop.f32.mrb[0].mxu0
      %6012 = vmatprep.mubr.bf16.mxu0 0
      %6013 = vmatmul.mubr.bf16.gmra.mrb[0].mxu0 %v5893
      %v6014 = vpop.f32.mrb[0].mxu0
      %v6015 = vadd.f32 0.0, %v6014
      %v6016 = vpop.f32.mrb[0].mxu0
      %v6017 = vpop.f32.mrb[0].mxu0
      %v6018 = vadd.f32 0.0, %v6017
      %v6019 = vpop.f32.mrb[0].mxu0
      %6020 = vmatprep.mubr.bf16.mxu0 0
      %6021 = vmatmul.mubr.bf16.gmra.mrb[0].mxu0 %v5896
      %v6022 = vpop.f32.mrb[0].mxu0
      %v6023 = vadd.f32 0.0, %v6022
      %v6024 = vpop.f32.mrb[0].mxu0
      %v6025 = vpop.f32.mrb[0].mxu0
      %v6026 = vadd.f32 0.0, %v6025
      %v6027 = vpop.f32.mrb[0].mxu0
      %6028 = vmatprep.mubr.bf16.mxu0 0
      %6029 = vmatmul.mubr.bf16.gmra.mrb[0].mxu0 %v5899
      %v6030 = vpop.f32.mrb[0].mxu0
      %v6031 = vadd.f32 0.0, %v6030
      %v6032 = vpop.f32.mrb[0].mxu0
      %v6033 = vpop.f32.mrb[0].mxu0
      %v6034 = vadd.f32 0.0, %v6033
      %v6035 = vpop.f32.mrb[0].mxu0
      %6036 = vmatprep.mubr.bf16.mxu0 0
      %6037 = vmatmul.mubr.bf16.gmra.mrb[0].mxu0 %v5902
      %v6038 = vpop.f32.mrb[0].mxu0
      %v6039 = vadd.f32 0.0, %v6038
      %v6040 = vpop.f32.mrb[0].mxu0
      %v6041 = vpop.f32.mrb[0].mxu0
      %v6042 = vadd.f32 0.0, %v6041
      %v6043 = vpop.f32.mrb[0].mxu0
      %6044 = vmatprep.mubr.bf16.mxu0 0
      %6045 = vmatmul.mubr.bf16.gmra.mrb[0].mxu0 %v5905
      %v6046 = vpop.f32.mrb[0].mxu0
      %v6047 = vadd.f32 0.0, %v6046
      %v6048 = vpop.f32.mrb[0].mxu0
      %v6049 = vpop.f32.mrb[0].mxu0
      %v6050 = vadd.f32 0.0, %v6049
      %v6051 = vpop.f32.mrb[0].mxu0
      %6052 = vmatprep.mubr.bf16.mxu0 0
      %6053 = vmatmul.mubr.bf16.gmra.mrb[0].mxu0 %v5908
      %v6054 = vpop.f32.mrb[0].mxu0
      %v6055 = vadd.f32 0.0, %v6054
      %v6056 = vpop.f32.mrb[0].mxu0
      %v6057 = vpop.f32.mrb[0].mxu0
      %v6058 = vadd.f32 0.0, %v6057
      %v6059 = vpop.f32.mrb[0].mxu0
      %6060 = vmatprep.mubr.bf16.mxu0 0
      %6061 = vmatmul.mubr.bf16.gmra.mrb[0].mxu0 %v5911
      %v6062 = vpop.f32.mrb[0].mxu0
      %v6063 = vadd.f32 0.0, %v6062
      %v6064 = vpop.f32.mrb[0].mxu0
      %v6065 = vpop.f32.mrb[0].mxu0
      %v6066 = vadd.f32 0.0, %v6065
      %v6067 = vpop.f32.mrb[0].mxu0
      %6068 = vmatprep.mubr.bf16.mxu0 0
      %6069 = vmatmul.mubr.bf16.gmra.mrb[0].mxu0 %v5914
      %v6070 = vpop.f32.mrb[0].mxu0
      %v6071 = vadd.f32 0.0, %v6070
      %v6072 = vpop.f32.mrb[0].mxu0
      %v6073 = vpop.f32.mrb[0].mxu0
      %v6074 = vadd.f32 0.0, %v6073
      %v6075 = vpop.f32.mrb[0].mxu0
      %6076 = vdwg.mxu0
      %v6079 = vunpack.c.l.b16 %v5810
      %v6080 = vunpack.c.l.b16 %v5811
      %v6081 = vpack.c.b16 %v6080, %v6079
      %v6084 = vsel %vm2928, %v5794, 0
      %v6087 = vsel %vm2928, %v5795, 0
      %v6090 = vsel %vm2928, %v5796, 0
      %v6093 = vsel %vm2928, %v5797, 0
      %v6096 = vsel %vm2928, %v5798, 0
      %v6099 = vsel %vm2928, %v5799, 0
      %v6102 = vsel %vm2928, %v5800, 0
      %v6105 = vsel %vm2928, %v5801, 0
      %v6108 = vsel %vm2928, %v5802, 0
      %v6111 = vsel %vm2928, %v5803, 0
      %v6114 = vsel %vm2928, %v5804, 0
      %v6117 = vsel %vm2928, %v5805, 0
      %v6120 = vsel %vm2928, %v5806, 0
      %v6123 = vsel %vm2928, %v5807, 0
      %v6126 = vsel %vm2928, %v5808, 0
      %v6129 = vsel %vm2928, %v5809, 0
      %6131 = vmatprep.subr.bf16.mxu0 0
      %6132 = vmatpush1.bf16.msra.mxu0 %v6081
      %6133 = vmatprep.subr.bf16.mxu0 0
      %6134 = vmatpush1.bf16.msra.mxu0 0
      %6135 = vmatprep.subr.bf16.mxu0 0
      %6136 = vmatpush1.bf16.msra.mxu0 0
      %6137 = vmatprep.subr.bf16.mxu0 0
      %6138 = vmatpush1.bf16.msra.mxu0 0
      %6139 = vmatprep.subr.bf16.mxu0 0
      %6140 = vmatpush1.bf16.msra.mxu0 0
      %6141 = vmatprep.subr.bf16.mxu0 0
      %6142 = vmatpush1.bf16.msra.mxu0 0
      %6143 = vmatprep.subr.bf16.mxu0 0
      %6144 = vmatpush1.bf16.msra.mxu0 0
      %6145 = vmatprep.subr.bf16.mxu0 0
      %6146 = vmatpush1.bf16.msra.mxu0 0
      %6147 = vmatprep.subr.bf16.mxu0 0
      %6148 = vmatpush1.bf16.msra.mxu0 0
      %6149 = vmatprep.subr.bf16.mxu0 0
      %6150 = vmatpush1.bf16.msra.mxu0 0
      %6151 = vmatprep.subr.bf16.mxu0 0
      %6152 = vmatpush1.bf16.msra.mxu0 0
      %6153 = vmatprep.subr.bf16.mxu0 0
      %6154 = vmatpush1.bf16.msra.mxu0 0
      %6155 = vmatprep.subr.bf16.mxu0 0
      %6156 = vmatpush1.bf16.msra.mxu0 0
      %6157 = vmatprep.subr.bf16.mxu0 0
      %6158 = vmatpush1.bf16.msra.mxu0 0
      %6159 = vmatprep.subr.bf16.mxu0 0
      %6160 = vmatpush1.bf16.msra.mxu0 0
      %6161 = vmatprep.subr.bf16.mxu0 0
      %6162 = vmatpush1.bf16.msra.mxu0 0
      %6163 = vmatprep.mubr.bf16.mxu0 0
      %6164 = vmatmul.mubr.bf16.gmra.mrb[0].mxu0 %v6084
      %v6165 = vpop.f32.mrb[0].mxu0
      %v6166 = vadd.f32 %v5951, %v6165
      %v6167 = vpop.f32.mrb[0].mxu0
      %v6168 = vpop.f32.mrb[0].mxu0
      %v6169 = vadd.f32 %v5954, %v6168
      %v6170 = vpop.f32.mrb[0].mxu0
      %6171 = vmatprep.mubr.bf16.mxu0 0
      %6172 = vmatmul.mubr.bf16.gmra.mrb[0].mxu0 %v6087
      %v6173 = vpop.f32.mrb[0].mxu0
      %v6174 = vadd.f32 %v5959, %v6173
      %v6175 = vpop.f32.mrb[0].mxu0
      %v6176 = vpop.f32.mrb[0].mxu0
      %v6177 = vadd.f32 %v5962, %v6176
      %v6178 = vpop.f32.mrb[0].mxu0
      %6179 = vmatprep.mubr.bf16.mxu0 0
      %6180 = vmatmul.mubr.bf16.gmra.mrb[0].mxu0 %v6090
      %v6181 = vpop.f32.mrb[0].mxu0
      %v6182 = vadd.f32 %v5967, %v6181
      %v6183 = vpop.f32.mrb[0].mxu0
      %v6184 = vpop.f32.mrb[0].mxu0
      %v6185 = vadd.f32 %v5970, %v6184
      %v6186 = vpop.f32.mrb[0].mxu0
      %6187 = vmatprep.mubr.bf16.mxu0 0
      %6188 = vmatmul.mubr.bf16.gmra.mrb[0].mxu0 %v6093
      %v6189 = vpop.f32.mrb[0].mxu0
      %v6190 = vadd.f32 %v5975, %v6189
      %v6191 = vpop.f32.mrb[0].mxu0
      %v6192 = vpop.f32.mrb[0].mxu0
      %v6193 = vadd.f32 %v5978, %v6192
      %v6194 = vpop.f32.mrb[0].mxu0
      %6195 = vmatprep.mubr.bf16.mxu0 0
      %6196 = vmatmul.mubr.bf16.gmra.mrb[0].mxu0 %v6096
      %v6197 = vpop.f32.mrb[0].mxu0
      %v6198 = vadd.f32 %v5983, %v6197
      %v6199 = vpop.f32.mrb[0].mxu0
      %v6200 = vpop.f32.mrb[0].mxu0
      %v6201 = vadd.f32 %v5986, %v6200
      %v6202 = vpop.f32.mrb[0].mxu0
      %6203 = vmatprep.mubr.bf16.mxu0 0
      %6204 = vmatmul.mubr.bf16.gmra.mrb[0].mxu0 %v6099
      %v6205 = vpop.f32.mrb[0].mxu0
      %v6206 = vadd.f32 %v5991, %v6205
      %v6207 = vpop.f32.mrb[0].mxu0
      %v6208 = vpop.f32.mrb[0].mxu0
      %v6209 = vadd.f32 %v5994, %v6208
      %v6210 = vpop.f32.mrb[0].mxu0
      %6211 = vmatprep.mubr.bf16.mxu0 0
      %6212 = vmatmul.mubr.bf16.gmra.mrb[0].mxu0 %v6102
      %v6213 = vpop.f32.mrb[0].mxu0
      %v6214 = vadd.f32 %v5999, %v6213
      %v6215 = vpop.f32.mrb[0].mxu0
      %v6216 = vpop.f32.mrb[0].mxu0
      %v6217 = vadd.f32 %v6002, %v6216
      %v6218 = vpop.f32.mrb[0].mxu0
      %6219 = vmatprep.mubr.bf16.mxu0 0
      %6220 = vmatmul.mubr.bf16.gmra.mrb[0].mxu0 %v6105
      %v6221 = vpop.f32.mrb[0].mxu0
      %v6222 = vadd.f32 %v6007, %v6221
      %v6223 = vpop.f32.mrb[0].mxu0
      %v6224 = vpop.f32.mrb[0].mxu0
      %v6225 = vadd.f32 %v6010, %v6224
      %v6226 = vpop.f32.mrb[0].mxu0
      %6227 = vmatprep.mubr.bf16.mxu0 0
      %6228 = vmatmul.mubr.bf16.gmra.mrb[0].mxu0 %v6108
      %v6229 = vpop.f32.mrb[0].mxu0
      %v6230 = vadd.f32 %v6015, %v6229
      %v6231 = vpop.f32.mrb[0].mxu0
      %v6232 = vpop.f32.mrb[0].mxu0
      %v6233 = vadd.f32 %v6018, %v6232
      %v6234 = vpop.f32.mrb[0].mxu0
      %6235 = vmatprep.mubr.bf16.mxu0 0
      %6236 = vmatmul.mubr.bf16.gmra.mrb[0].mxu0 %v6111
      %v6237 = vpop.f32.mrb[0].mxu0
      %v6238 = vadd.f32 %v6023, %v6237
      %v6239 = vpop.f32.mrb[0].mxu0
      %v6240 = vpop.f32.mrb[0].mxu0
      %v6241 = vadd.f32 %v6026, %v6240
      %v6242 = vpop.f32.mrb[0].mxu0
      %6243 = vmatprep.mubr.bf16.mxu0 0
      %6244 = vmatmul.mubr.bf16.gmra.mrb[0].mxu0 %v6114
      %v6245 = vpop.f32.mrb[0].mxu0
      %v6246 = vadd.f32 %v6031, %v6245
      %v6247 = vpop.f32.mrb[0].mxu0
      %v6248 = vpop.f32.mrb[0].mxu0
      %v6249 = vadd.f32 %v6034, %v6248
      %v6250 = vpop.f32.mrb[0].mxu0
      %6251 = vmatprep.mubr.bf16.mxu0 0
      %6252 = vmatmul.mubr.bf16.gmra.mrb[0].mxu0 %v6117
      %v6253 = vpop.f32.mrb[0].mxu0
      %v6254 = vadd.f32 %v6039, %v6253
      %v6255 = vpop.f32.mrb[0].mxu0
      %v6256 = vpop.f32.mrb[0].mxu0
      %v6257 = vadd.f32 %v6042, %v6256
      %v6258 = vpop.f32.mrb[0].mxu0
      %6259 = vmatprep.mubr.bf16.mxu0 0
      %6260 = vmatmul.mubr.bf16.gmra.mrb[0].mxu0 %v6120
      %v6261 = vpop.f32.mrb[0].mxu0
      %v6262 = vadd.f32 %v6047, %v6261
      %v6263 = vpop.f32.mrb[0].mxu0
      %v6264 = vpop.f32.mrb[0].mxu0
      %v6265 = vadd.f32 %v6050, %v6264
      %v6266 = vpop.f32.mrb[0].mxu0
      %6267 = vmatprep.mubr.bf16.mxu0 0
      %6268 = vmatmul.mubr.bf16.gmra.mrb[0].mxu0 %v6123
      %v6269 = vpop.f32.mrb[0].mxu0
      %v6270 = vadd.f32 %v6055, %v6269
      %v6271 = vpop.f32.mrb[0].mxu0
      %v6272 = vpop.f32.mrb[0].mxu0
      %v6273 = vadd.f32 %v6058, %v6272
      %v6274 = vpop.f32.mrb[0].mxu0
      %6275 = vmatprep.mubr.bf16.mxu0 0
      %6276 = vmatmul.mubr.bf16.gmra.mrb[0].mxu0 %v6126
      %v6277 = vpop.f32.mrb[0].mxu0
      %v6278 = vadd.f32 %v6063, %v6277
      %v6279 = vpop.f32.mrb[0].mxu0
      %v6280 = vpop.f32.mrb[0].mxu0
      %v6281 = vadd.f32 %v6066, %v6280
      %v6282 = vpop.f32.mrb[0].mxu0
      %6283 = vmatprep.mubr.bf16.mxu0 0
      %6284 = vmatmul.mubr.bf16.gmra.mrb[0].mxu0 %v6129
      %v6285 = vpop.f32.mrb[0].mxu0
      %v6286 = vadd.f32 %v6071, %v6285
      %v6287 = vpop.f32.mrb[0].mxu0
      %v6288 = vpop.f32.mrb[0].mxu0
      %v6289 = vadd.f32 %v6074, %v6288
      %v6290 = vpop.f32.mrb[0].mxu0
      %6291 = vdwg.mxu0
      %v6292 = vld [vmem:[#allocation2 + $0x2] sm:$0xff]
      %v6293 = vld [vmem:[#allocation2 + $0xa] sm:$0xff]
      %v6294 = vld [vmem:[#allocation2 + $0x1a] sm:$0xff]
      %v6295 = vld [vmem:[#allocation2 + $0x22] sm:$0xff]
      %v6296 = vld [vmem:[#allocation2 + $0x32] sm:$0xff]
      %v6297 = vld [vmem:[#allocation2 + $0x3a] sm:$0xff]
      %v6298 = vld [vmem:[#allocation2 + $0x4a] sm:$0xff]
      %v6299 = vld [vmem:[#allocation2 + $0x52] sm:$0xff]
      %v6300 = vld [vmem:[#allocation2 + $0x62] sm:$0xff]
      %v6301 = vld [vmem:[#allocation2 + $0x6a] sm:$0xff]
      %v6302 = vld [vmem:[#allocation2 + $0x7a] sm:$0xff]
      %v6303 = vld [vmem:[#allocation2 + $0x82] sm:$0xff]
      %v6304 = vld [vmem:[#allocation2 + $0x92] sm:$0xff]
      %v6305 = vld [vmem:[#allocation2 + $0x9a] sm:$0xff]
      %v6306 = vld [vmem:[#allocation2 + $0xaa] sm:$0xff]
      %v6307 = vld [vmem:[#allocation2 + $0xb2] sm:$0xff]
      %v6308 = vld [vmem:[#allocation2 + $0xc2] sm:$0xff]
      %v6309 = vld [vmem:[#allocation2 + $0xca] sm:$0xff]
      %v6310 = vld [vmem:[#allocation2 + $0xda] sm:$0xff]
      %v6311 = vld [vmem:[#allocation2 + $0xe2] sm:$0xff]
      %v6312 = vld [vmem:[#allocation2 + $0xf2] sm:$0xff]
      %v6313 = vld [vmem:[#allocation2 + $0xfa] sm:$0xff]
      %v6314 = vld [vmem:[#allocation2 + $0x10a] sm:$0xff]
      %v6315 = vld [vmem:[#allocation2 + $0x112] sm:$0xff]
      %v6316 = vld [vmem:[#allocation2 + $0x122] sm:$0xff]
      %v6317 = vld [vmem:[#allocation2 + $0x12a] sm:$0xff]
      %v6318 = vld [vmem:[#allocation2 + $0x13a] sm:$0xff]
      %v6319 = vld [vmem:[#allocation2 + $0x142] sm:$0xff]
      %v6320 = vld [vmem:[#allocation2 + $0x152] sm:$0xff]
      %v6321 = vld [vmem:[#allocation2 + $0x15a] sm:$0xff]
      %v6322 = vld [vmem:[#allocation2 + $0x16a] sm:$0xff]
      %v6323 = vld [vmem:[#allocation2 + $0x172] sm:$0xff]
      %v6324 = vpack.c.bf16 %v6293, %v6292
      %v6325 = vpack.c.bf16 %v6295, %v6294
      %v6326 = vpack.c.bf16 %v6297, %v6296
      %v6327 = vpack.c.bf16 %v6299, %v6298
      %v6328 = vpack.c.bf16 %v6301, %v6300
      %v6329 = vpack.c.bf16 %v6303, %v6302
      %v6330 = vpack.c.bf16 %v6305, %v6304
      %v6331 = vpack.c.bf16 %v6307, %v6306
      %v6332 = vpack.c.bf16 %v6309, %v6308
      %v6333 = vpack.c.bf16 %v6311, %v6310
      %v6334 = vpack.c.bf16 %v6313, %v6312
      %v6335 = vpack.c.bf16 %v6315, %v6314
      %v6336 = vpack.c.bf16 %v6317, %v6316
      %v6337 = vpack.c.bf16 %v6319, %v6318
      %v6338 = vpack.c.bf16 %v6321, %v6320
      %v6339 = vpack.c.bf16 %v6323, %v6322
      %v6340 = vld [vmem:[%s5 + $0x10] sm:$0xf]
      %v6341 = vld [vmem:[%s5 + $0x14] sm:$0xf]
      %v6344 = vunpack.c.l.b16 %v6340
      %v6345 = vunpack.c.l.b16 %v6341
      %v6346 = vpack.c.b16 %v6345, %v6344
      %v6349 = vsel %vm2928, %v6324, 0
      %v6352 = vsel %vm2928, %v6325, 0
      %v6355 = vsel %vm2928, %v6326, 0
      %v6358 = vsel %vm2928, %v6327, 0
      %v6361 = vsel %vm2928, %v6328, 0
      %v6364 = vsel %vm2928, %v6329, 0
      %v6367 = vsel %vm2928, %v6330, 0
      %v6370 = vsel %vm2928, %v6331, 0
      %v6373 = vsel %vm2928, %v6332, 0
      %v6376 = vsel %vm2928, %v6333, 0
      %v6379 = vsel %vm2928, %v6334, 0
      %v6382 = vsel %vm2928, %v6335, 0
      %v6385 = vsel %vm2928, %v6336, 0
      %v6388 = vsel %vm2928, %v6337, 0
      %v6391 = vsel %vm2928, %v6338, 0
      %v6394 = vsel %vm2928, %v6339, 0
      %6396 = vmatprep.subr.bf16.mxu0 0
      %6397 = vmatpush1.bf16.msra.mxu0 %v6346
      %6398 = vmatprep.subr.bf16.mxu0 0
      %6399 = vmatpush1.bf16.msra.mxu0 0
      %6400 = vmatprep.subr.bf16.mxu0 0
      %6401 = vmatpush1.bf16.msra.mxu0 0
      %6402 = vmatprep.subr.bf16.mxu0 0
      %6403 = vmatpush1.bf16.msra.mxu0 0
      %6404 = vmatprep.subr.bf16.mxu0 0
      %6405 = vmatpush1.bf16.msra.mxu0 0
      %6406 = vmatprep.subr.bf16.mxu0 0
      %6407 = vmatpush1.bf16.msra.mxu0 0
      %6408 = vmatprep.subr.bf16.mxu0 0
      %6409 = vmatpush1.bf16.msra.mxu0 0
      %6410 = vmatprep.subr.bf16.mxu0 0
      %6411 = vmatpush1.bf16.msra.mxu0 0
      %6412 = vmatprep.subr.bf16.mxu0 0
      %6413 = vmatpush1.bf16.msra.mxu0 0
      %6414 = vmatprep.subr.bf16.mxu0 0
      %6415 = vmatpush1.bf16.msra.mxu0 0
      %6416 = vmatprep.subr.bf16.mxu0 0
      %6417 = vmatpush1.bf16.msra.mxu0 0
      %6418 = vmatprep.subr.bf16.mxu0 0
      %6419 = vmatpush1.bf16.msra.mxu0 0
      %6420 = vmatprep.subr.bf16.mxu0 0
      %6421 = vmatpush1.bf16.msra.mxu0 0
      %6422 = vmatprep.subr.bf16.mxu0 0
      %6423 = vmatpush1.bf16.msra.mxu0 0
      %6424 = vmatprep.subr.bf16.mxu0 0
      %6425 = vmatpush1.bf16.msra.mxu0 0
      %6426 = vmatprep.subr.bf16.mxu0 0
      %6427 = vmatpush1.bf16.msra.mxu0 0
      %6428 = vmatprep.mubr.bf16.mxu0 0
      %6429 = vmatmul.mubr.bf16.gmra.mrb[0].mxu0 %v6349
      %v6430 = vpop.f32.mrb[0].mxu0
      %v6431 = vadd.f32 0.0, %v6430
      %v6432 = vpop.f32.mrb[0].mxu0
      %v6433 = vpop.f32.mrb[0].mxu0
      %v6434 = vadd.f32 0.0, %v6433
      %v6435 = vpop.f32.mrb[0].mxu0
      %6436 = vmatprep.mubr.bf16.mxu0 0
      %6437 = vmatmul.mubr.bf16.gmra.mrb[0].mxu0 %v6352
      %v6438 = vpop.f32.mrb[0].mxu0
      %v6439 = vadd.f32 0.0, %v6438
      %v6440 = vpop.f32.mrb[0].mxu0
      %v6441 = vpop.f32.mrb[0].mxu0
      %v6442 = vadd.f32 0.0, %v6441
      %v6443 = vpop.f32.mrb[0].mxu0
      %6444 = vmatprep.mubr.bf16.mxu0 0
      %6445 = vmatmul.mubr.bf16.gmra.mrb[0].mxu0 %v6355
      %v6446 = vpop.f32.mrb[0].mxu0
      %v6447 = vadd.f32 0.0, %v6446
      %v6448 = vpop.f32.mrb[0].mxu0
      %v6449 = vpop.f32.mrb[0].mxu0
      %v6450 = vadd.f32 0.0, %v6449
      %v6451 = vpop.f32.mrb[0].mxu0
      %6452 = vmatprep.mubr.bf16.mxu0 0
      %6453 = vmatmul.mubr.bf16.gmra.mrb[0].mxu0 %v6358
      %v6454 = vpop.f32.mrb[0].mxu0
      %v6455 = vadd.f32 0.0, %v6454
      %v6456 = vpop.f32.mrb[0].mxu0
      %v6457 = vpop.f32.mrb[0].mxu0
      %v6458 = vadd.f32 0.0, %v6457
      %v6459 = vpop.f32.mrb[0].mxu0
      %6460 = vmatprep.mubr.bf16.mxu0 0
      %6461 = vmatmul.mubr.bf16.gmra.mrb[0].mxu0 %v6361
      %v6462 = vpop.f32.mrb[0].mxu0
      %v6463 = vadd.f32 0.0, %v6462
      %v6464 = vpop.f32.mrb[0].mxu0
      %v6465 = vpop.f32.mrb[0].mxu0
      %v6466 = vadd.f32 0.0, %v6465
      %v6467 = vpop.f32.mrb[0].mxu0
      %6468 = vmatprep.mubr.bf16.mxu0 0
      %6469 = vmatmul.mubr.bf16.gmra.mrb[0].mxu0 %v6364
      %v6470 = vpop.f32.mrb[0].mxu0
      %v6471 = vadd.f32 0.0, %v6470
      %v6472 = vpop.f32.mrb[0].mxu0
      %v6473 = vpop.f32.mrb[0].mxu0
      %v6474 = vadd.f32 0.0, %v6473
      %v6475 = vpop.f32.mrb[0].mxu0
      %6476 = vmatprep.mubr.bf16.mxu0 0
      %6477 = vmatmul.mubr.bf16.gmra.mrb[0].mxu0 %v6367
      %v6478 = vpop.f32.mrb[0].mxu0
      %v6479 = vadd.f32 0.0, %v6478
      %v6480 = vpop.f32.mrb[0].mxu0
      %v6481 = vpop.f32.mrb[0].mxu0
      %v6482 = vadd.f32 0.0, %v6481
      %v6483 = vpop.f32.mrb[0].mxu0
      %6484 = vmatprep.mubr.bf16.mxu0 0
      %6485 = vmatmul.mubr.bf16.gmra.mrb[0].mxu0 %v6370
      %v6486 = vpop.f32.mrb[0].mxu0
      %v6487 = vadd.f32 0.0, %v6486
      %v6488 = vpop.f32.mrb[0].mxu0
      %v6489 = vpop.f32.mrb[0].mxu0
      %v6490 = vadd.f32 0.0, %v6489
      %v6491 = vpop.f32.mrb[0].mxu0
      %6492 = vmatprep.mubr.bf16.mxu0 0
      %6493 = vmatmul.mubr.bf16.gmra.mrb[0].mxu0 %v6373
      %v6494 = vpop.f32.mrb[0].mxu0
      %v6495 = vadd.f32 0.0, %v6494
      %v6496 = vpop.f32.mrb[0].mxu0
      %v6497 = vpop.f32.mrb[0].mxu0
      %v6498 = vadd.f32 0.0, %v6497
      %v6499 = vpop.f32.mrb[0].mxu0
      %6500 = vmatprep.mubr.bf16.mxu0 0
      %6501 = vmatmul.mubr.bf16.gmra.mrb[0].mxu0 %v6376
      %v6502 = vpop.f32.mrb[0].mxu0
      %v6503 = vadd.f32 0.0, %v6502
      %v6504 = vpop.f32.mrb[0].mxu0
      %v6505 = vpop.f32.mrb[0].mxu0
      %v6506 = vadd.f32 0.0, %v6505
      %v6507 = vpop.f32.mrb[0].mxu0
      %6508 = vmatprep.mubr.bf16.mxu0 0
      %6509 = vmatmul.mubr.bf16.gmra.mrb[0].mxu0 %v6379
      %v6510 = vpop.f32.mrb[0].mxu0
      %v6511 = vadd.f32 0.0, %v6510
      %v6512 = vpop.f32.mrb[0].mxu0
      %v6513 = vpop.f32.mrb[0].mxu0
      %v6514 = vadd.f32 0.0, %v6513
      %v6515 = vpop.f32.mrb[0].mxu0
      %6516 = vmatprep.mubr.bf16.mxu0 0
      %6517 = vmatmul.mubr.bf16.gmra.mrb[0].mxu0 %v6382
      %v6518 = vpop.f32.mrb[0].mxu0
      %v6519 = vadd.f32 0.0, %v6518
      %v6520 = vpop.f32.mrb[0].mxu0
      %v6521 = vpop.f32.mrb[0].mxu0
      %v6522 = vadd.f32 0.0, %v6521
      %v6523 = vpop.f32.mrb[0].mxu0
      %6524 = vmatprep.mubr.bf16.mxu0 0
      %6525 = vmatmul.mubr.bf16.gmra.mrb[0].mxu0 %v6385
      %v6526 = vpop.f32.mrb[0].mxu0
      %v6527 = vadd.f32 0.0, %v6526
      %v6528 = vpop.f32.mrb[0].mxu0
      %v6529 = vpop.f32.mrb[0].mxu0
      %v6530 = vadd.f32 0.0, %v6529
      %v6531 = vpop.f32.mrb[0].mxu0
      %6532 = vmatprep.mubr.bf16.mxu0 0
      %6533 = vmatmul.mubr.bf16.gmra.mrb[0].mxu0 %v6388
      %v6534 = vpop.f32.mrb[0].mxu0
      %v6535 = vadd.f32 0.0, %v6534
      %v6536 = vpop.f32.mrb[0].mxu0
      %v6537 = vpop.f32.mrb[0].mxu0
      %v6538 = vadd.f32 0.0, %v6537
      %v6539 = vpop.f32.mrb[0].mxu0
      %6540 = vmatprep.mubr.bf16.mxu0 0
      %6541 = vmatmul.mubr.bf16.gmra.mrb[0].mxu0 %v6391
      %v6542 = vpop.f32.mrb[0].mxu0
      %v6543 = vadd.f32 0.0, %v6542
      %v6544 = vpop.f32.mrb[0].mxu0
      %v6545 = vpop.f32.mrb[0].mxu0
      %v6546 = vadd.f32 0.0, %v6545
      %v6547 = vpop.f32.mrb[0].mxu0
      %6548 = vmatprep.mubr.bf16.mxu0 0
      %6549 = vmatmul.mubr.bf16.gmra.mrb[0].mxu0 %v6394
      %v6550 = vpop.f32.mrb[0].mxu0
      %v6551 = vadd.f32 0.0, %v6550
      %v6552 = vpop.f32.mrb[0].mxu0
      %v6553 = vpop.f32.mrb[0].mxu0
      %v6554 = vadd.f32 0.0, %v6553
      %v6555 = vpop.f32.mrb[0].mxu0
      %6556 = vdwg.mxu0
      %v6557 = vadd.f32 %v6166, %v6431
      %v6558 = vadd.f32 %v6169, %v6434
      %v6559 = vadd.f32 %v6174, %v6439
      %v6560 = vadd.f32 %v6177, %v6442
      %v6561 = vadd.f32 %v6182, %v6447
      %v6562 = vadd.f32 %v6185, %v6450
      %v6563 = vadd.f32 %v6190, %v6455
      %v6564 = vadd.f32 %v6193, %v6458
      %v6565 = vadd.f32 %v6198, %v6463
      %v6566 = vadd.f32 %v6201, %v6466
      %v6567 = vadd.f32 %v6206, %v6471
      %v6568 = vadd.f32 %v6209, %v6474
      %v6569 = vadd.f32 %v6214, %v6479
      %v6570 = vadd.f32 %v6217, %v6482
      %v6571 = vadd.f32 %v6222, %v6487
      %v6572 = vadd.f32 %v6225, %v6490
      %v6573 = vadd.f32 %v6230, %v6495
      %v6574 = vadd.f32 %v6233, %v6498
      %v6575 = vadd.f32 %v6238, %v6503
      %v6576 = vadd.f32 %v6241, %v6506
      %v6577 = vadd.f32 %v6246, %v6511
      %v6578 = vadd.f32 %v6249, %v6514
      %v6579 = vadd.f32 %v6254, %v6519
      %v6580 = vadd.f32 %v6257, %v6522
      %v6581 = vadd.f32 %v6262, %v6527
      %v6582 = vadd.f32 %v6265, %v6530
      %v6583 = vadd.f32 %v6270, %v6535
      %v6584 = vadd.f32 %v6273, %v6538
      %v6585 = vadd.f32 %v6278, %v6543
      %v6586 = vadd.f32 %v6281, %v6546
      %v6587 = vadd.f32 %v6286, %v6551
      %v6588 = vadd.f32 %v6289, %v6554
      %v6589 = vld [vmem:[%s3016] sm:$0xff]
      %v6590 = vld [vmem:[%s3016 + $0x8] sm:$0xff]
      %v6591 = vld [vmem:[%s3016 + $0x18] sm:$0xff]
      %v6592 = vld [vmem:[%s3016 + $0x20] sm:$0xff]
      %v6593 = vld [vmem:[%s3016 + $0x30] sm:$0xff]
      %v6594 = vld [vmem:[%s3016 + $0x38] sm:$0xff]
      %v6595 = vld [vmem:[%s3016 + $0x48] sm:$0xff]
      %v6596 = vld [vmem:[%s3016 + $0x50] sm:$0xff]
      %v6597 = vld [vmem:[%s3016 + $0x60] sm:$0xff]
      %v6598 = vld [vmem:[%s3016 + $0x68] sm:$0xff]
      %v6599 = vld [vmem:[%s3016 + $0x78] sm:$0xff]
      %v6600 = vld [vmem:[%s3016 + $0x80] sm:$0xff]
      %v6601 = vld [vmem:[%s3016 + $0x90] sm:$0xff]
      %v6602 = vld [vmem:[%s3016 + $0x98] sm:$0xff]
      %v6603 = vld [vmem:[%s3016 + $0xa8] sm:$0xff]
      %v6604 = vld [vmem:[%s3016 + $0xb0] sm:$0xff]
      %v6605 = vld [vmem:[%s3016 + $0xc0] sm:$0xff]
      %v6606 = vld [vmem:[%s3016 + $0xc8] sm:$0xff]
      %v6607 = vld [vmem:[%s3016 + $0xd8] sm:$0xff]
      %v6608 = vld [vmem:[%s3016 + $0xe0] sm:$0xff]
      %v6609 = vld [vmem:[%s3016 + $0xf0] sm:$0xff]
      %v6610 = vld [vmem:[%s3016 + $0xf8] sm:$0xff]
      %v6611 = vld [vmem:[%s3016 + $0x108] sm:$0xff]
      %v6612 = vld [vmem:[%s3016 + $0x110] sm:$0xff]
      %v6613 = vld [vmem:[%s3016 + $0x120] sm:$0xff]
      %v6614 = vld [vmem:[%s3016 + $0x128] sm:$0xff]
      %v6615 = vld [vmem:[%s3016 + $0x138] sm:$0xff]
      %v6616 = vld [vmem:[%s3016 + $0x140] sm:$0xff]
      %v6617 = vld [vmem:[%s3016 + $0x150] sm:$0xff]
      %v6618 = vld [vmem:[%s3016 + $0x158] sm:$0xff]
      %v6619 = vld [vmem:[%s3016 + $0x168] sm:$0xff]
      %v6620 = vld [vmem:[%s3016 + $0x170] sm:$0xff]
      %v6621 = vpack.c.bf16 %v6590, %v6589
      %v6622 = vpack.c.bf16 %v6592, %v6591
      %v6623 = vpack.c.bf16 %v6594, %v6593
      %v6624 = vpack.c.bf16 %v6596, %v6595
      %v6625 = vpack.c.bf16 %v6598, %v6597
      %v6626 = vpack.c.bf16 %v6600, %v6599
      %v6627 = vpack.c.bf16 %v6602, %v6601
      %v6628 = vpack.c.bf16 %v6604, %v6603
      %v6629 = vpack.c.bf16 %v6606, %v6605
      %v6630 = vpack.c.bf16 %v6608, %v6607
      %v6631 = vpack.c.bf16 %v6610, %v6609
      %v6632 = vpack.c.bf16 %v6612, %v6611
      %v6633 = vpack.c.bf16 %v6614, %v6613
      %v6634 = vpack.c.bf16 %v6616, %v6615
      %v6635 = vpack.c.bf16 %v6618, %v6617
      %v6636 = vpack.c.bf16 %v6620, %v6619
      %v6637 = vld [vmem:[%s5 + $0x18] sm:$0xf]
      %v6638 = vld [vmem:[%s5 + $0x1c] sm:$0xf]
      %v6641 = vunpack.c.l.b16 %v6637
      %v6642 = vunpack.c.l.b16 %v6638
      %v6643 = vpack.c.b16 %v6642, %v6641
      %v6646 = vsel %vm2928, %v6621, 0
      %v6649 = vsel %vm2928, %v6622, 0
      %v6652 = vsel %vm2928, %v6623, 0
      %v6655 = vsel %vm2928, %v6624, 0
      %v6658 = vsel %vm2928, %v6625, 0
      %v6661 = vsel %vm2928, %v6626, 0
      %v6664 = vsel %vm2928, %v6627, 0
      %v6667 = vsel %vm2928, %v6628, 0
      %v6670 = vsel %vm2928, %v6629, 0
      %v6673 = vsel %vm2928, %v6630, 0
      %v6676 = vsel %vm2928, %v6631, 0
      %v6679 = vsel %vm2928, %v6632, 0
      %v6682 = vsel %vm2928, %v6633, 0
      %v6685 = vsel %vm2928, %v6634, 0
      %v6688 = vsel %vm2928, %v6635, 0
      %v6691 = vsel %vm2928, %v6636, 0
      %6693 = vmatprep.subr.bf16.mxu0 0
      %6694 = vmatpush1.bf16.msra.mxu0 %v6643
      %6695 = vmatprep.subr.bf16.mxu0 0
      %6696 = vmatpush1.bf16.msra.mxu0 0
      %6697 = vmatprep.subr.bf16.mxu0 0
      %6698 = vmatpush1.bf16.msra.mxu0 0
      %6699 = vmatprep.subr.bf16.mxu0 0
      %6700 = vmatpush1.bf16.msra.mxu0 0
      %6701 = vmatprep.subr.bf16.mxu0 0
      %6702 = vmatpush1.bf16.msra.mxu0 0
      %6703 = vmatprep.subr.bf16.mxu0 0
      %6704 = vmatpush1.bf16.msra.mxu0 0
      %6705 = vmatprep.subr.bf16.mxu0 0
      %6706 = vmatpush1.bf16.msra.mxu0 0
      %6707 = vmatprep.subr.bf16.mxu0 0
      %6708 = vmatpush1.bf16.msra.mxu0 0
      %6709 = vmatprep.subr.bf16.mxu0 0
      %6710 = vmatpush1.bf16.msra.mxu0 0
      %6711 = vmatprep.subr.bf16.mxu0 0
      %6712 = vmatpush1.bf16.msra.mxu0 0
      %6713 = vmatprep.subr.bf16.mxu0 0
      %6714 = vmatpush1.bf16.msra.mxu0 0
      %6715 = vmatprep.subr.bf16.mxu0 0
      %6716 = vmatpush1.bf16.msra.mxu0 0
      %6717 = vmatprep.subr.bf16.mxu0 0
      %6718 = vmatpush1.bf16.msra.mxu0 0
      %6719 = vmatprep.subr.bf16.mxu0 0
      %6720 = vmatpush1.bf16.msra.mxu0 0
      %6721 = vmatprep.subr.bf16.mxu0 0
      %6722 = vmatpush1.bf16.msra.mxu0 0
      %6723 = vmatprep.subr.bf16.mxu0 0
      %6724 = vmatpush1.bf16.msra.mxu0 0
      %6725 = vmatprep.mubr.bf16.mxu0 0
      %6726 = vmatmul.mubr.bf16.gmra.mrb[0].mxu0 %v6646
      %v6727 = vpop.f32.mrb[0].mxu0
      %v6728 = vadd.f32 0.0, %v6727
      %v6729 = vpop.f32.mrb[0].mxu0
      %v6730 = vpop.f32.mrb[0].mxu0
      %v6731 = vadd.f32 0.0, %v6730
      %v6732 = vpop.f32.mrb[0].mxu0
      %6733 = vmatprep.mubr.bf16.mxu0 0
      %6734 = vmatmul.mubr.bf16.gmra.mrb[0].mxu0 %v6649
      %v6735 = vpop.f32.mrb[0].mxu0
      %v6736 = vadd.f32 0.0, %v6735
      %v6737 = vpop.f32.mrb[0].mxu0
      %v6738 = vpop.f32.mrb[0].mxu0
      %v6739 = vadd.f32 0.0, %v6738
      %v6740 = vpop.f32.mrb[0].mxu0
      %6741 = vmatprep.mubr.bf16.mxu0 0
      %6742 = vmatmul.mubr.bf16.gmra.mrb[0].mxu0 %v6652
      %v6743 = vpop.f32.mrb[0].mxu0
      %v6744 = vadd.f32 0.0, %v6743
      %v6745 = vpop.f32.mrb[0].mxu0
      %v6746 = vpop.f32.mrb[0].mxu0
      %v6747 = vadd.f32 0.0, %v6746
      %v6748 = vpop.f32.mrb[0].mxu0
      %6749 = vmatprep.mubr.bf16.mxu0 0
      %6750 = vmatmul.mubr.bf16.gmra.mrb[0].mxu0 %v6655
      %v6751 = vpop.f32.mrb[0].mxu0
      %v6752 = vadd.f32 0.0, %v6751
      %v6753 = vpop.f32.mrb[0].mxu0
      %v6754 = vpop.f32.mrb[0].mxu0
      %v6755 = vadd.f32 0.0, %v6754
      %v6756 = vpop.f32.mrb[0].mxu0
      %6757 = vmatprep.mubr.bf16.mxu0 0
      %6758 = vmatmul.mubr.bf16.gmra.mrb[0].mxu0 %v6658
      %v6759 = vpop.f32.mrb[0].mxu0
      %v6760 = vadd.f32 0.0, %v6759
      %v6761 = vpop.f32.mrb[0].mxu0
      %v6762 = vpop.f32.mrb[0].mxu0
      %v6763 = vadd.f32 0.0, %v6762
      %v6764 = vpop.f32.mrb[0].mxu0
      %6765 = vmatprep.mubr.bf16.mxu0 0
      %6766 = vmatmul.mubr.bf16.gmra.mrb[0].mxu0 %v6661
      %v6767 = vpop.f32.mrb[0].mxu0
      %v6768 = vadd.f32 0.0, %v6767
      %v6769 = vpop.f32.mrb[0].mxu0
      %v6770 = vpop.f32.mrb[0].mxu0
      %v6771 = vadd.f32 0.0, %v6770
      %v6772 = vpop.f32.mrb[0].mxu0
      %6773 = vmatprep.mubr.bf16.mxu0 0
      %6774 = vmatmul.mubr.bf16.gmra.mrb[0].mxu0 %v6664
      %v6775 = vpop.f32.mrb[0].mxu0
      %v6776 = vadd.f32 0.0, %v6775
      %v6777 = vpop.f32.mrb[0].mxu0
      %v6778 = vpop.f32.mrb[0].mxu0
      %v6779 = vadd.f32 0.0, %v6778
      %v6780 = vpop.f32.mrb[0].mxu0
      %6781 = vmatprep.mubr.bf16.mxu0 0
      %6782 = vmatmul.mubr.bf16.gmra.mrb[0].mxu0 %v6667
      %v6783 = vpop.f32.mrb[0].mxu0
      %v6784 = vadd.f32 0.0, %v6783
      %v6785 = vpop.f32.mrb[0].mxu0
      %v6786 = vpop.f32.mrb[0].mxu0
      %v6787 = vadd.f32 0.0, %v6786
      %v6788 = vpop.f32.mrb[0].mxu0
      %6789 = vmatprep.mubr.bf16.mxu0 0
      %6790 = vmatmul.mubr.bf16.gmra.mrb[0].mxu0 %v6670
      %v6791 = vpop.f32.mrb[0].mxu0
      %v6792 = vadd.f32 0.0, %v6791
      %v6793 = vpop.f32.mrb[0].mxu0
      %v6794 = vpop.f32.mrb[0].mxu0
      %v6795 = vadd.f32 0.0, %v6794
      %v6796 = vpop.f32.mrb[0].mxu0
      %6797 = vmatprep.mubr.bf16.mxu0 0
      %6798 = vmatmul.mubr.bf16.gmra.mrb[0].mxu0 %v6673
      %v6799 = vpop.f32.mrb[0].mxu0
      %v6800 = vadd.f32 0.0, %v6799
      %v6801 = vpop.f32.mrb[0].mxu0
      %v6802 = vpop.f32.mrb[0].mxu0
      %v6803 = vadd.f32 0.0, %v6802
      %v6804 = vpop.f32.mrb[0].mxu0
      %6805 = vmatprep.mubr.bf16.mxu0 0
      %6806 = vmatmul.mubr.bf16.gmra.mrb[0].mxu0 %v6676
      %v6807 = vpop.f32.mrb[0].mxu0
      %v6808 = vadd.f32 0.0, %v6807
      %v6809 = vpop.f32.mrb[0].mxu0
      %v6810 = vpop.f32.mrb[0].mxu0
      %v6811 = vadd.f32 0.0, %v6810
      %v6812 = vpop.f32.mrb[0].mxu0
      %6813 = vmatprep.mubr.bf16.mxu0 0
      %6814 = vmatmul.mubr.bf16.gmra.mrb[0].mxu0 %v6679
      %v6815 = vpop.f32.mrb[0].mxu0
      %v6816 = vadd.f32 0.0, %v6815
      %v6817 = vpop.f32.mrb[0].mxu0
      %v6818 = vpop.f32.mrb[0].mxu0
      %v6819 = vadd.f32 0.0, %v6818
      %v6820 = vpop.f32.mrb[0].mxu0
      %6821 = vmatprep.mubr.bf16.mxu0 0
      %6822 = vmatmul.mubr.bf16.gmra.mrb[0].mxu0 %v6682
      %v6823 = vpop.f32.mrb[0].mxu0
      %v6824 = vadd.f32 0.0, %v6823
      %v6825 = vpop.f32.mrb[0].mxu0
      %v6826 = vpop.f32.mrb[0].mxu0
      %v6827 = vadd.f32 0.0, %v6826
      %v6828 = vpop.f32.mrb[0].mxu0
      %6829 = vmatprep.mubr.bf16.mxu0 0
      %6830 = vmatmul.mubr.bf16.gmra.mrb[0].mxu0 %v6685
      %v6831 = vpop.f32.mrb[0].mxu0
      %v6832 = vadd.f32 0.0, %v6831
      %v6833 = vpop.f32.mrb[0].mxu0
      %v6834 = vpop.f32.mrb[0].mxu0
      %v6835 = vadd.f32 0.0, %v6834
      %v6836 = vpop.f32.mrb[0].mxu0
      %6837 = vmatprep.mubr.bf16.mxu0 0
      %6838 = vmatmul.mubr.bf16.gmra.mrb[0].mxu0 %v6688
      %v6839 = vpop.f32.mrb[0].mxu0
      %v6840 = vadd.f32 0.0, %v6839
      %v6841 = vpop.f32.mrb[0].mxu0
      %v6842 = vpop.f32.mrb[0].mxu0
      %v6843 = vadd.f32 0.0, %v6842
      %v6844 = vpop.f32.mrb[0].mxu0
      %6845 = vmatprep.mubr.bf16.mxu0 0
      %6846 = vmatmul.mubr.bf16.gmra.mrb[0].mxu0 %v6691
      %v6847 = vpop.f32.mrb[0].mxu0
      %v6848 = vadd.f32 0.0, %v6847
      %v6849 = vpop.f32.mrb[0].mxu0
      %v6850 = vpop.f32.mrb[0].mxu0
      %v6851 = vadd.f32 0.0, %v6850
      %v6852 = vpop.f32.mrb[0].mxu0
      %6853 = vdwg.mxu0
      %v6854 = vadd.f32 %v6557, %v6728
      %v6855 = vadd.f32 %v6558, %v6731
      %v6856 = vadd.f32 %v6559, %v6736
      %v6857 = vadd.f32 %v6560, %v6739
      %v6858 = vadd.f32 %v6561, %v6744
      %v6859 = vadd.f32 %v6562, %v6747
      %v6860 = vadd.f32 %v6563, %v6752
      %v6861 = vadd.f32 %v6564, %v6755
      %v6862 = vadd.f32 %v6565, %v6760
      %v6863 = vadd.f32 %v6566, %v6763
      %v6864 = vadd.f32 %v6567, %v6768
      %v6865 = vadd.f32 %v6568, %v6771
      %v6866 = vadd.f32 %v6569, %v6776
      %v6867 = vadd.f32 %v6570, %v6779
      %v6868 = vadd.f32 %v6571, %v6784
      %v6869 = vadd.f32 %v6572, %v6787
      %v6870 = vadd.f32 %v6573, %v6792
      %v6871 = vadd.f32 %v6574, %v6795
      %v6872 = vadd.f32 %v6575, %v6800
      %v6873 = vadd.f32 %v6576, %v6803
      %v6874 = vadd.f32 %v6577, %v6808
      %v6875 = vadd.f32 %v6578, %v6811
      %v6876 = vadd.f32 %v6579, %v6816
      %v6877 = vadd.f32 %v6580, %v6819
      %v6878 = vadd.f32 %v6581, %v6824
      %v6879 = vadd.f32 %v6582, %v6827
      %v6880 = vadd.f32 %v6583, %v6832
      %v6881 = vadd.f32 %v6584, %v6835
      %v6882 = vadd.f32 %v6585, %v6840
      %v6883 = vadd.f32 %v6586, %v6843
      %v6884 = vadd.f32 %v6587, %v6848
      %v6885 = vadd.f32 %v6588, %v6851
      %v6886 = vld [vmem:[%s3016 + $0x1] sm:$0xff]
      %v6887 = vld [vmem:[%s3016 + $0x9] sm:$0xff]
      %v6888 = vld [vmem:[%s3016 + $0x19] sm:$0xff]
      %v6889 = vld [vmem:[%s3016 + $0x21] sm:$0xff]
      %v6890 = vld [vmem:[%s3016 + $0x31] sm:$0xff]
      %v6891 = vld [vmem:[%s3016 + $0x39] sm:$0xff]
      %v6892 = vld [vmem:[%s3016 + $0x49] sm:$0xff]
      %v6893 = vld [vmem:[%s3016 + $0x51] sm:$0xff]
      %v6894 = vld [vmem:[%s3016 + $0x61] sm:$0xff]
      %v6895 = vld [vmem:[%s3016 + $0x69] sm:$0xff]
      %v6896 = vld [vmem:[%s3016 + $0x79] sm:$0xff]
      %v6897 = vld [vmem:[%s3016 + $0x81] sm:$0xff]
      %v6898 = vld [vmem:[%s3016 + $0x91] sm:$0xff]
      %v6899 = vld [vmem:[%s3016 + $0x99] sm:$0xff]
      %v6900 = vld [vmem:[%s3016 + $0xa9] sm:$0xff]
      %v6901 = vld [vmem:[%s3016 + $0xb1] sm:$0xff]
      %v6902 = vld [vmem:[%s3016 + $0xc1] sm:$0xff]
      %v6903 = vld [vmem:[%s3016 + $0xc9] sm:$0xff]
      %v6904 = vld [vmem:[%s3016 + $0xd9] sm:$0xff]
      %v6905 = vld [vmem:[%s3016 + $0xe1] sm:$0xff]
      %v6906 = vld [vmem:[%s3016 + $0xf1] sm:$0xff]
      %v6907 = vld [vmem:[%s3016 + $0xf9] sm:$0xff]
      %v6908 = vld [vmem:[%s3016 + $0x109] sm:$0xff]
      %v6909 = vld [vmem:[%s3016 + $0x111] sm:$0xff]
      %v6910 = vld [vmem:[%s3016 + $0x121] sm:$0xff]
      %v6911 = vld [vmem:[%s3016 + $0x129] sm:$0xff]
      %v6912 = vld [vmem:[%s3016 + $0x139] sm:$0xff]
      %v6913 = vld [vmem:[%s3016 + $0x141] sm:$0xff]
      %v6914 = vld [vmem:[%s3016 + $0x151] sm:$0xff]
      %v6915 = vld [vmem:[%s3016 + $0x159] sm:$0xff]
      %v6916 = vld [vmem:[%s3016 + $0x169] sm:$0xff]
      %v6917 = vld [vmem:[%s3016 + $0x171] sm:$0xff]
      %v6918 = vpack.c.bf16 %v6887, %v6886
      %v6919 = vpack.c.bf16 %v6889, %v6888
      %v6920 = vpack.c.bf16 %v6891, %v6890
      %v6921 = vpack.c.bf16 %v6893, %v6892
      %v6922 = vpack.c.bf16 %v6895, %v6894
      %v6923 = vpack.c.bf16 %v6897, %v6896
      %v6924 = vpack.c.bf16 %v6899, %v6898
      %v6925 = vpack.c.bf16 %v6901, %v6900
      %v6926 = vpack.c.bf16 %v6903, %v6902
      %v6927 = vpack.c.bf16 %v6905, %v6904
      %v6928 = vpack.c.bf16 %v6907, %v6906
      %v6929 = vpack.c.bf16 %v6909, %v6908
      %v6930 = vpack.c.bf16 %v6911, %v6910
      %v6931 = vpack.c.bf16 %v6913, %v6912
      %v6932 = vpack.c.bf16 %v6915, %v6914
      %v6933 = vpack.c.bf16 %v6917, %v6916
      %v6934 = vld [vmem:[%s5 + $0x20] sm:$0xf]
      %v6935 = vld [vmem:[%s5 + $0x24] sm:$0xf]
      %v6938 = vunpack.c.l.b16 %v6934
      %v6939 = vunpack.c.l.b16 %v6935
      %v6940 = vpack.c.b16 %v6939, %v6938
      %v6943 = vsel %vm2928, %v6918, 0
      %v6946 = vsel %vm2928, %v6919, 0
      %v6949 = vsel %vm2928, %v6920, 0
      %v6952 = vsel %vm2928, %v6921, 0
      %v6955 = vsel %vm2928, %v6922, 0
      %v6958 = vsel %vm2928, %v6923, 0
      %v6961 = vsel %vm2928, %v6924, 0
      %v6964 = vsel %vm2928, %v6925, 0
      %v6967 = vsel %vm2928, %v6926, 0
      %v6970 = vsel %vm2928, %v6927, 0
      %v6973 = vsel %vm2928, %v6928, 0
      %v6976 = vsel %vm2928, %v6929, 0
      %v6979 = vsel %vm2928, %v6930, 0
      %v6982 = vsel %vm2928, %v6931, 0
      %v6985 = vsel %vm2928, %v6932, 0
      %v6988 = vsel %vm2928, %v6933, 0
      %6990 = vmatprep.subr.bf16.mxu0 0
      %6991 = vmatpush1.bf16.msra.mxu0 %v6940
      %6992 = vmatprep.subr.bf16.mxu0 0
      %6993 = vmatpush1.bf16.msra.mxu0 0
      %6994 = vmatprep.subr.bf16.mxu0 0
      %6995 = vmatpush1.bf16.msra.mxu0 0
      %6996 = vmatprep.subr.bf16.mxu0 0
      %6997 = vmatpush1.bf16.msra.mxu0 0
      %6998 = vmatprep.subr.bf16.mxu0 0
      %6999 = vmatpush1.bf16.msra.mxu0 0
      %7000 = vmatprep.subr.bf16.mxu0 0
      %7001 = vmatpush1.bf16.msra.mxu0 0
      %7002 = vmatprep.subr.bf16.mxu0 0
      %7003 = vmatpush1.bf16.msra.mxu0 0
      %7004 = vmatprep.subr.bf16.mxu0 0
      %7005 = vmatpush1.bf16.msra.mxu0 0
      %7006 = vmatprep.subr.bf16.mxu0 0
      %7007 = vmatpush1.bf16.msra.mxu0 0
      %7008 = vmatprep.subr.bf16.mxu0 0
      %7009 = vmatpush1.bf16.msra.mxu0 0
      %7010 = vmatprep.subr.bf16.mxu0 0
      %7011 = vmatpush1.bf16.msra.mxu0 0
      %7012 = vmatprep.subr.bf16.mxu0 0
      %7013 = vmatpush1.bf16.msra.mxu0 0
      %7014 = vmatprep.subr.bf16.mxu0 0
      %7015 = vmatpush1.bf16.msra.mxu0 0
      %7016 = vmatprep.subr.bf16.mxu0 0
      %7017 = vmatpush1.bf16.msra.mxu0 0
      %7018 = vmatprep.subr.bf16.mxu0 0
      %7019 = vmatpush1.bf16.msra.mxu0 0
      %7020 = vmatprep.subr.bf16.mxu0 0
      %7021 = vmatpush1.bf16.msra.mxu0 0
      %7022 = vmatprep.mubr.bf16.mxu0 0
      %7023 = vmatmul.mubr.bf16.gmra.mrb[0].mxu0 %v6943
      %v7024 = vpop.f32.mrb[0].mxu0
      %v7025 = vadd.f32 0.0, %v7024
      %v7026 = vpop.f32.mrb[0].mxu0
      %v7027 = vpop.f32.mrb[0].mxu0
      %v7028 = vadd.f32 0.0, %v7027
      %v7029 = vpop.f32.mrb[0].mxu0
      %7030 = vmatprep.mubr.bf16.mxu0 0
      %7031 = vmatmul.mubr.bf16.gmra.mrb[0].mxu0 %v6946
      %v7032 = vpop.f32.mrb[0].mxu0
      %v7033 = vadd.f32 0.0, %v7032
      %v7034 = vpop.f32.mrb[0].mxu0
      %v7035 = vpop.f32.mrb[0].mxu0
      %v7036 = vadd.f32 0.0, %v7035
      %v7037 = vpop.f32.mrb[0].mxu0
      %7038 = vmatprep.mubr.bf16.mxu0 0
      %7039 = vmatmul.mubr.bf16.gmra.mrb[0].mxu0 %v6949
      %v7040 = vpop.f32.mrb[0].mxu0
      %v7041 = vadd.f32 0.0, %v7040
      %v7042 = vpop.f32.mrb[0].mxu0
      %v7043 = vpop.f32.mrb[0].mxu0
      %v7044 = vadd.f32 0.0, %v7043
      %v7045 = vpop.f32.mrb[0].mxu0
      %7046 = vmatprep.mubr.bf16.mxu0 0
      %7047 = vmatmul.mubr.bf16.gmra.mrb[0].mxu0 %v6952
      %v7048 = vpop.f32.mrb[0].mxu0
      %v7049 = vadd.f32 0.0, %v7048
      %v7050 = vpop.f32.mrb[0].mxu0
      %v7051 = vpop.f32.mrb[0].mxu0
      %v7052 = vadd.f32 0.0, %v7051
      %v7053 = vpop.f32.mrb[0].mxu0
      %7054 = vmatprep.mubr.bf16.mxu0 0
      %7055 = vmatmul.mubr.bf16.gmra.mrb[0].mxu0 %v6955
      %v7056 = vpop.f32.mrb[0].mxu0
      %v7057 = vadd.f32 0.0, %v7056
      %v7058 = vpop.f32.mrb[0].mxu0
      %v7059 = vpop.f32.mrb[0].mxu0
      %v7060 = vadd.f32 0.0, %v7059
      %v7061 = vpop.f32.mrb[0].mxu0
      %7062 = vmatprep.mubr.bf16.mxu0 0
      %7063 = vmatmul.mubr.bf16.gmra.mrb[0].mxu0 %v6958
      %v7064 = vpop.f32.mrb[0].mxu0
      %v7065 = vadd.f32 0.0, %v7064
      %v7066 = vpop.f32.mrb[0].mxu0
      %v7067 = vpop.f32.mrb[0].mxu0
      %v7068 = vadd.f32 0.0, %v7067
      %v7069 = vpop.f32.mrb[0].mxu0
      %7070 = vmatprep.mubr.bf16.mxu0 0
      %7071 = vmatmul.mubr.bf16.gmra.mrb[0].mxu0 %v6961
      %v7072 = vpop.f32.mrb[0].mxu0
      %v7073 = vadd.f32 0.0, %v7072
      %v7074 = vpop.f32.mrb[0].mxu0
      %v7075 = vpop.f32.mrb[0].mxu0
      %v7076 = vadd.f32 0.0, %v7075
      %v7077 = vpop.f32.mrb[0].mxu0
      %7078 = vmatprep.mubr.bf16.mxu0 0
      %7079 = vmatmul.mubr.bf16.gmra.mrb[0].mxu0 %v6964
      %v7080 = vpop.f32.mrb[0].mxu0
      %v7081 = vadd.f32 0.0, %v7080
      %v7082 = vpop.f32.mrb[0].mxu0
      %v7083 = vpop.f32.mrb[0].mxu0
      %v7084 = vadd.f32 0.0, %v7083
      %v7085 = vpop.f32.mrb[0].mxu0
      %7086 = vmatprep.mubr.bf16.mxu0 0
      %7087 = vmatmul.mubr.bf16.gmra.mrb[0].mxu0 %v6967
      %v7088 = vpop.f32.mrb[0].mxu0
      %v7089 = vadd.f32 0.0, %v7088
      %v7090 = vpop.f32.mrb[0].mxu0
      %v7091 = vpop.f32.mrb[0].mxu0
      %v7092 = vadd.f32 0.0, %v7091
      %v7093 = vpop.f32.mrb[0].mxu0
      %7094 = vmatprep.mubr.bf16.mxu0 0
      %7095 = vmatmul.mubr.bf16.gmra.mrb[0].mxu0 %v6970
      %v7096 = vpop.f32.mrb[0].mxu0
      %v7097 = vadd.f32 0.0, %v7096
      %v7098 = vpop.f32.mrb[0].mxu0
      %v7099 = vpop.f32.mrb[0].mxu0
      %v7100 = vadd.f32 0.0, %v7099
      %v7101 = vpop.f32.mrb[0].mxu0
      %7102 = vmatprep.mubr.bf16.mxu0 0
      %7103 = vmatmul.mubr.bf16.gmra.mrb[0].mxu0 %v6973
      %v7104 = vpop.f32.mrb[0].mxu0
      %v7105 = vadd.f32 0.0, %v7104
      %v7106 = vpop.f32.mrb[0].mxu0
      %v7107 = vpop.f32.mrb[0].mxu0
      %v7108 = vadd.f32 0.0, %v7107
      %v7109 = vpop.f32.mrb[0].mxu0
      %7110 = vmatprep.mubr.bf16.mxu0 0
      %7111 = vmatmul.mubr.bf16.gmra.mrb[0].mxu0 %v6976
      %v7112 = vpop.f32.mrb[0].mxu0
      %v7113 = vadd.f32 0.0, %v7112
      %v7114 = vpop.f32.mrb[0].mxu0
      %v7115 = vpop.f32.mrb[0].mxu0
      %v7116 = vadd.f32 0.0, %v7115
      %v7117 = vpop.f32.mrb[0].mxu0
      %7118 = vmatprep.mubr.bf16.mxu0 0
      %7119 = vmatmul.mubr.bf16.gmra.mrb[0].mxu0 %v6979
      %v7120 = vpop.f32.mrb[0].mxu0
      %v7121 = vadd.f32 0.0, %v7120
      %v7122 = vpop.f32.mrb[0].mxu0
      %v7123 = vpop.f32.mrb[0].mxu0
      %v7124 = vadd.f32 0.0, %v7123
      %v7125 = vpop.f32.mrb[0].mxu0
      %7126 = vmatprep.mubr.bf16.mxu0 0
      %7127 = vmatmul.mubr.bf16.gmra.mrb[0].mxu0 %v6982
      %v7128 = vpop.f32.mrb[0].mxu0
      %v7129 = vadd.f32 0.0, %v7128
      %v7130 = vpop.f32.mrb[0].mxu0
      %v7131 = vpop.f32.mrb[0].mxu0
      %v7132 = vadd.f32 0.0, %v7131
      %v7133 = vpop.f32.mrb[0].mxu0
      %7134 = vmatprep.mubr.bf16.mxu0 0
      %7135 = vmatmul.mubr.bf16.gmra.mrb[0].mxu0 %v6985
      %v7136 = vpop.f32.mrb[0].mxu0
      %v7137 = vadd.f32 0.0, %v7136
      %v7138 = vpop.f32.mrb[0].mxu0
      %v7139 = vpop.f32.mrb[0].mxu0
      %v7140 = vadd.f32 0.0, %v7139
      %v7141 = vpop.f32.mrb[0].mxu0
      %7142 = vmatprep.mubr.bf16.mxu0 0
      %7143 = vmatmul.mubr.bf16.gmra.mrb[0].mxu0 %v6988
      %v7144 = vpop.f32.mrb[0].mxu0
      %v7145 = vadd.f32 0.0, %v7144
      %v7146 = vpop.f32.mrb[0].mxu0
      %v7147 = vpop.f32.mrb[0].mxu0
      %v7148 = vadd.f32 0.0, %v7147
      %v7149 = vpop.f32.mrb[0].mxu0
      %7150 = vdwg.mxu0
      %v7151 = vadd.f32 %v6854, %v7025
      %v7152 = vadd.f32 %v6855, %v7028
      %v7153 = vadd.f32 %v6856, %v7033
      %v7154 = vadd.f32 %v6857, %v7036
      %v7155 = vadd.f32 %v6858, %v7041
      %v7156 = vadd.f32 %v6859, %v7044
      %v7157 = vadd.f32 %v6860, %v7049
      %v7158 = vadd.f32 %v6861, %v7052
      %v7159 = vadd.f32 %v6862, %v7057
      %v7160 = vadd.f32 %v6863, %v7060
      %v7161 = vadd.f32 %v6864, %v7065
      %v7162 = vadd.f32 %v6865, %v7068
      %v7163 = vadd.f32 %v6866, %v7073
      %v7164 = vadd.f32 %v6867, %v7076
      %v7165 = vadd.f32 %v6868, %v7081
      %v7166 = vadd.f32 %v6869, %v7084
      %v7167 = vadd.f32 %v6870, %v7089
      %v7168 = vadd.f32 %v6871, %v7092
      %v7169 = vadd.f32 %v6872, %v7097
      %v7170 = vadd.f32 %v6873, %v7100
      %v7171 = vadd.f32 %v6874, %v7105
      %v7172 = vadd.f32 %v6875, %v7108
      %v7173 = vadd.f32 %v6876, %v7113
      %v7174 = vadd.f32 %v6877, %v7116
      %v7175 = vadd.f32 %v6878, %v7121
      %v7176 = vadd.f32 %v6879, %v7124
      %v7177 = vadd.f32 %v6880, %v7129
      %v7178 = vadd.f32 %v6881, %v7132
      %v7179 = vadd.f32 %v6882, %v7137
      %v7180 = vadd.f32 %v6883, %v7140
      %v7181 = vadd.f32 %v6884, %v7145
      %v7182 = vadd.f32 %v6885, %v7148
      %v7183 = vld [vmem:[%s3016 + $0x2] sm:$0xff]
      %v7184 = vld [vmem:[%s3016 + $0xa] sm:$0xff]
      %v7185 = vld [vmem:[%s3016 + $0x1a] sm:$0xff]
      %v7186 = vld [vmem:[%s3016 + $0x22] sm:$0xff]
      %v7187 = vld [vmem:[%s3016 + $0x32] sm:$0xff]
      %v7188 = vld [vmem:[%s3016 + $0x3a] sm:$0xff]
      %v7189 = vld [vmem:[%s3016 + $0x4a] sm:$0xff]
      %v7190 = vld [vmem:[%s3016 + $0x52] sm:$0xff]
      %v7191 = vld [vmem:[%s3016 + $0x62] sm:$0xff]
      %v7192 = vld [vmem:[%s3016 + $0x6a] sm:$0xff]
      %v7193 = vld [vmem:[%s3016 + $0x7a] sm:$0xff]
      %v7194 = vld [vmem:[%s3016 + $0x82] sm:$0xff]
      %v7195 = vld [vmem:[%s3016 + $0x92] sm:$0xff]
      %v7196 = vld [vmem:[%s3016 + $0x9a] sm:$0xff]
      %v7197 = vld [vmem:[%s3016 + $0xaa] sm:$0xff]
      %v7198 = vld [vmem:[%s3016 + $0xb2] sm:$0xff]
      %v7199 = vld [vmem:[%s3016 + $0xc2] sm:$0xff]
      %v7200 = vld [vmem:[%s3016 + $0xca] sm:$0xff]
      %v7201 = vld [vmem:[%s3016 + $0xda] sm:$0xff]
      %v7202 = vld [vmem:[%s3016 + $0xe2] sm:$0xff]
      %v7203 = vld [vmem:[%s3016 + $0xf2] sm:$0xff]
      %v7204 = vld [vmem:[%s3016 + $0xfa] sm:$0xff]
      %v7205 = vld [vmem:[%s3016 + $0x10a] sm:$0xff]
      %v7206 = vld [vmem:[%s3016 + $0x112] sm:$0xff]
      %v7207 = vld [vmem:[%s3016 + $0x122] sm:$0xff]
      %v7208 = vld [vmem:[%s3016 + $0x12a] sm:$0xff]
      %v7209 = vld [vmem:[%s3016 + $0x13a] sm:$0xff]
      %v7210 = vld [vmem:[%s3016 + $0x142] sm:$0xff]
      %v7211 = vld [vmem:[%s3016 + $0x152] sm:$0xff]
      %v7212 = vld [vmem:[%s3016 + $0x15a] sm:$0xff]
      %v7213 = vld [vmem:[%s3016 + $0x16a] sm:$0xff]
      %v7214 = vld [vmem:[%s3016 + $0x172] sm:$0xff]
      %v7215 = vpack.c.bf16 %v7184, %v7183
      %v7216 = vpack.c.bf16 %v7186, %v7185
      %v7217 = vpack.c.bf16 %v7188, %v7187
      %v7218 = vpack.c.bf16 %v7190, %v7189
      %v7219 = vpack.c.bf16 %v7192, %v7191
      %v7220 = vpack.c.bf16 %v7194, %v7193
      %v7221 = vpack.c.bf16 %v7196, %v7195
      %v7222 = vpack.c.bf16 %v7198, %v7197
      %v7223 = vpack.c.bf16 %v7200, %v7199
      %v7224 = vpack.c.bf16 %v7202, %v7201
      %v7225 = vpack.c.bf16 %v7204, %v7203
      %v7226 = vpack.c.bf16 %v7206, %v7205
      %v7227 = vpack.c.bf16 %v7208, %v7207
      %v7228 = vpack.c.bf16 %v7210, %v7209
      %v7229 = vpack.c.bf16 %v7212, %v7211
      %v7230 = vpack.c.bf16 %v7214, %v7213
      %v7231 = vld [vmem:[%s5 + $0x28] sm:$0xf]
      %v7232 = vld [vmem:[%s5 + $0x2c] sm:$0xf]
      %v7235 = vunpack.c.l.b16 %v7231
      %v7236 = vunpack.c.l.b16 %v7232
      %v7237 = vpack.c.b16 %v7236, %v7235
      %v7240 = vsel %vm2928, %v7215, 0
      %v7243 = vsel %vm2928, %v7216, 0
      %v7246 = vsel %vm2928, %v7217, 0
      %v7249 = vsel %vm2928, %v7218, 0
      %v7252 = vsel %vm2928, %v7219, 0
      %v7255 = vsel %vm2928, %v7220, 0
      %v7258 = vsel %vm2928, %v7221, 0
      %v7261 = vsel %vm2928, %v7222, 0
      %v7264 = vsel %vm2928, %v7223, 0
      %v7267 = vsel %vm2928, %v7224, 0
      %v7270 = vsel %vm2928, %v7225, 0
      %v7273 = vsel %vm2928, %v7226, 0
      %v7276 = vsel %vm2928, %v7227, 0
      %v7279 = vsel %vm2928, %v7228, 0
      %v7282 = vsel %vm2928, %v7229, 0
      %v7285 = vsel %vm2928, %v7230, 0
      %7287 = vmatprep.subr.bf16.mxu0 0
      %7288 = vmatpush1.bf16.msra.mxu0 %v7237
      %7289 = vmatprep.subr.bf16.mxu0 0
      %7290 = vmatpush1.bf16.msra.mxu0 0
      %7291 = vmatprep.subr.bf16.mxu0 0
      %7292 = vmatpush1.bf16.msra.mxu0 0
      %7293 = vmatprep.subr.bf16.mxu0 0
      %7294 = vmatpush1.bf16.msra.mxu0 0
      %7295 = vmatprep.subr.bf16.mxu0 0
      %7296 = vmatpush1.bf16.msra.mxu0 0
      %7297 = vmatprep.subr.bf16.mxu0 0
      %7298 = vmatpush1.bf16.msra.mxu0 0
      %7299 = vmatprep.subr.bf16.mxu0 0
      %7300 = vmatpush1.bf16.msra.mxu0 0
      %7301 = vmatprep.subr.bf16.mxu0 0
      %7302 = vmatpush1.bf16.msra.mxu0 0
      %7303 = vmatprep.subr.bf16.mxu0 0
      %7304 = vmatpush1.bf16.msra.mxu0 0
      %7305 = vmatprep.subr.bf16.mxu0 0
      %7306 = vmatpush1.bf16.msra.mxu0 0
      %7307 = vmatprep.subr.bf16.mxu0 0
      %7308 = vmatpush1.bf16.msra.mxu0 0
      %7309 = vmatprep.subr.bf16.mxu0 0
      %7310 = vmatpush1.bf16.msra.mxu0 0
      %7311 = vmatprep.subr.bf16.mxu0 0
      %7312 = vmatpush1.bf16.msra.mxu0 0
      %7313 = vmatprep.subr.bf16.mxu0 0
      %7314 = vmatpush1.bf16.msra.mxu0 0
      %7315 = vmatprep.subr.bf16.mxu0 0
      %7316 = vmatpush1.bf16.msra.mxu0 0
      %7317 = vmatprep.subr.bf16.mxu0 0
      %7318 = vmatpush1.bf16.msra.mxu0 0
      %7319 = vmatprep.mubr.bf16.mxu0 0
      %7320 = vmatmul.mubr.bf16.gmra.mrb[0].mxu0 %v7240
      %v7321 = vpop.f32.mrb[0].mxu0
      %v7322 = vadd.f32 0.0, %v7321
      %v7323 = vpop.f32.mrb[0].mxu0
      %v7324 = vpop.f32.mrb[0].mxu0
      %v7325 = vadd.f32 0.0, %v7324
      %v7326 = vpop.f32.mrb[0].mxu0
      %7327 = vmatprep.mubr.bf16.mxu0 0
      %7328 = vmatmul.mubr.bf16.gmra.mrb[0].mxu0 %v7243
      %v7329 = vpop.f32.mrb[0].mxu0
      %v7330 = vadd.f32 0.0, %v7329
      %v7331 = vpop.f32.mrb[0].mxu0
      %v7332 = vpop.f32.mrb[0].mxu0
      %v7333 = vadd.f32 0.0, %v7332
      %v7334 = vpop.f32.mrb[0].mxu0
      %7335 = vmatprep.mubr.bf16.mxu0 0
      %7336 = vmatmul.mubr.bf16.gmra.mrb[0].mxu0 %v7246
      %v7337 = vpop.f32.mrb[0].mxu0
      %v7338 = vadd.f32 0.0, %v7337
      %v7339 = vpop.f32.mrb[0].mxu0
      %v7340 = vpop.f32.mrb[0].mxu0
      %v7341 = vadd.f32 0.0, %v7340
      %v7342 = vpop.f32.mrb[0].mxu0
      %7343 = vmatprep.mubr.bf16.mxu0 0
      %7344 = vmatmul.mubr.bf16.gmra.mrb[0].mxu0 %v7249
      %v7345 = vpop.f32.mrb[0].mxu0
      %v7346 = vadd.f32 0.0, %v7345
      %v7347 = vpop.f32.mrb[0].mxu0
      %v7348 = vpop.f32.mrb[0].mxu0
      %v7349 = vadd.f32 0.0, %v7348
      %v7350 = vpop.f32.mrb[0].mxu0
      %7351 = vmatprep.mubr.bf16.mxu0 0
      %7352 = vmatmul.mubr.bf16.gmra.mrb[0].mxu0 %v7252
      %v7353 = vpop.f32.mrb[0].mxu0
      %v7354 = vadd.f32 0.0, %v7353
      %v7355 = vpop.f32.mrb[0].mxu0
      %v7356 = vpop.f32.mrb[0].mxu0
      %v7357 = vadd.f32 0.0, %v7356
      %v7358 = vpop.f32.mrb[0].mxu0
      %7359 = vmatprep.mubr.bf16.mxu0 0
      %7360 = vmatmul.mubr.bf16.gmra.mrb[0].mxu0 %v7255
      %v7361 = vpop.f32.mrb[0].mxu0
      %v7362 = vadd.f32 0.0, %v7361
      %v7363 = vpop.f32.mrb[0].mxu0
      %v7364 = vpop.f32.mrb[0].mxu0
      %v7365 = vadd.f32 0.0, %v7364
      %v7366 = vpop.f32.mrb[0].mxu0
      %7367 = vmatprep.mubr.bf16.mxu0 0
      %7368 = vmatmul.mubr.bf16.gmra.mrb[0].mxu0 %v7258
      %v7369 = vpop.f32.mrb[0].mxu0
      %v7370 = vadd.f32 0.0, %v7369
      %v7371 = vpop.f32.mrb[0].mxu0
      %v7372 = vpop.f32.mrb[0].mxu0
      %v7373 = vadd.f32 0.0, %v7372
      %v7374 = vpop.f32.mrb[0].mxu0
      %7375 = vmatprep.mubr.bf16.mxu0 0
      %7376 = vmatmul.mubr.bf16.gmra.mrb[0].mxu0 %v7261
      %v7377 = vpop.f32.mrb[0].mxu0
      %v7378 = vadd.f32 0.0, %v7377
      %v7379 = vpop.f32.mrb[0].mxu0
      %v7380 = vpop.f32.mrb[0].mxu0
      %v7381 = vadd.f32 0.0, %v7380
      %v7382 = vpop.f32.mrb[0].mxu0
      %7383 = vmatprep.mubr.bf16.mxu0 0
      %7384 = vmatmul.mubr.bf16.gmra.mrb[0].mxu0 %v7264
      %v7385 = vpop.f32.mrb[0].mxu0
      %v7386 = vadd.f32 0.0, %v7385
      %v7387 = vpop.f32.mrb[0].mxu0
      %v7388 = vpop.f32.mrb[0].mxu0
      %v7389 = vadd.f32 0.0, %v7388
      %v7390 = vpop.f32.mrb[0].mxu0
      %7391 = vmatprep.mubr.bf16.mxu0 0
      %7392 = vmatmul.mubr.bf16.gmra.mrb[0].mxu0 %v7267
      %v7393 = vpop.f32.mrb[0].mxu0
      %v7394 = vadd.f32 0.0, %v7393
      %v7395 = vpop.f32.mrb[0].mxu0
      %v7396 = vpop.f32.mrb[0].mxu0
      %v7397 = vadd.f32 0.0, %v7396
      %v7398 = vpop.f32.mrb[0].mxu0
      %7399 = vmatprep.mubr.bf16.mxu0 0
      %7400 = vmatmul.mubr.bf16.gmra.mrb[0].mxu0 %v7270
      %v7401 = vpop.f32.mrb[0].mxu0
      %v7402 = vadd.f32 0.0, %v7401
      %v7403 = vpop.f32.mrb[0].mxu0
      %v7404 = vpop.f32.mrb[0].mxu0
      %v7405 = vadd.f32 0.0, %v7404
      %v7406 = vpop.f32.mrb[0].mxu0
      %7407 = vmatprep.mubr.bf16.mxu0 0
      %7408 = vmatmul.mubr.bf16.gmra.mrb[0].mxu0 %v7273
      %v7409 = vpop.f32.mrb[0].mxu0
      %v7410 = vadd.f32 0.0, %v7409
      %v7411 = vpop.f32.mrb[0].mxu0
      %v7412 = vpop.f32.mrb[0].mxu0
      %v7413 = vadd.f32 0.0, %v7412
      %v7414 = vpop.f32.mrb[0].mxu0
      %7415 = vmatprep.mubr.bf16.mxu0 0
      %7416 = vmatmul.mubr.bf16.gmra.mrb[0].mxu0 %v7276
      %v7417 = vpop.f32.mrb[0].mxu0
      %v7418 = vadd.f32 0.0, %v7417
      %v7419 = vpop.f32.mrb[0].mxu0
      %v7420 = vpop.f32.mrb[0].mxu0
      %v7421 = vadd.f32 0.0, %v7420
      %v7422 = vpop.f32.mrb[0].mxu0
      %7423 = vmatprep.mubr.bf16.mxu0 0
      %7424 = vmatmul.mubr.bf16.gmra.mrb[0].mxu0 %v7279
      %v7425 = vpop.f32.mrb[0].mxu0
      %v7426 = vadd.f32 0.0, %v7425
      %v7427 = vpop.f32.mrb[0].mxu0
      %v7428 = vpop.f32.mrb[0].mxu0
      %v7429 = vadd.f32 0.0, %v7428
      %v7430 = vpop.f32.mrb[0].mxu0
      %7431 = vmatprep.mubr.bf16.mxu0 0
      %7432 = vmatmul.mubr.bf16.gmra.mrb[0].mxu0 %v7282
      %v7433 = vpop.f32.mrb[0].mxu0
      %v7434 = vadd.f32 0.0, %v7433
      %v7435 = vpop.f32.mrb[0].mxu0
      %v7436 = vpop.f32.mrb[0].mxu0
      %v7437 = vadd.f32 0.0, %v7436
      %v7438 = vpop.f32.mrb[0].mxu0
      %7439 = vmatprep.mubr.bf16.mxu0 0
      %7440 = vmatmul.mubr.bf16.gmra.mrb[0].mxu0 %v7285
      %v7441 = vpop.f32.mrb[0].mxu0
      %v7442 = vadd.f32 0.0, %v7441
      %v7443 = vpop.f32.mrb[0].mxu0
      %v7444 = vpop.f32.mrb[0].mxu0
      %v7445 = vadd.f32 0.0, %v7444
      %v7446 = vpop.f32.mrb[0].mxu0
      %7447 = vdwg.mxu0
      %v7448 = vadd.f32 %v7151, %v7322
      %v7449 = vadd.f32 %v7152, %v7325
      %v7450 = vadd.f32 %v7153, %v7330
      %v7451 = vadd.f32 %v7154, %v7333
      %v7452 = vadd.f32 %v7155, %v7338
      %v7453 = vadd.f32 %v7156, %v7341
      %v7454 = vadd.f32 %v7157, %v7346
      %v7455 = vadd.f32 %v7158, %v7349
      %v7456 = vadd.f32 %v7159, %v7354
      %v7457 = vadd.f32 %v7160, %v7357
      %v7458 = vadd.f32 %v7161, %v7362
      %v7459 = vadd.f32 %v7162, %v7365
      %v7460 = vadd.f32 %v7163, %v7370
      %v7461 = vadd.f32 %v7164, %v7373
      %v7462 = vadd.f32 %v7165, %v7378
      %v7463 = vadd.f32 %v7166, %v7381
      %v7464 = vadd.f32 %v7167, %v7386
      %v7465 = vadd.f32 %v7168, %v7389
      %v7466 = vadd.f32 %v7169, %v7394
      %v7467 = vadd.f32 %v7170, %v7397
      %v7468 = vadd.f32 %v7171, %v7402
      %v7469 = vadd.f32 %v7172, %v7405
      %v7470 = vadd.f32 %v7173, %v7410
      %v7471 = vadd.f32 %v7174, %v7413
      %v7472 = vadd.f32 %v7175, %v7418
      %v7473 = vadd.f32 %v7176, %v7421
      %v7474 = vadd.f32 %v7177, %v7426
      %v7475 = vadd.f32 %v7178, %v7429
      %v7476 = vadd.f32 %v7179, %v7434
      %v7477 = vadd.f32 %v7180, %v7437
      %v7478 = vadd.f32 %v7181, %v7442
      %v7479 = vadd.f32 %v7182, %v7445
      %v7480 = vld [vmem:[%s4767] sm:$0xff]
      %v7481 = vld [vmem:[%s4767 + $0x8] sm:$0xff]
      %v7482 = vld [vmem:[%s4767 + $0x18] sm:$0xff]
      %v7483 = vld [vmem:[%s4767 + $0x20] sm:$0xff]
      %v7484 = vld [vmem:[%s4767 + $0x30] sm:$0xff]
      %v7485 = vld [vmem:[%s4767 + $0x38] sm:$0xff]
      %v7486 = vld [vmem:[%s4767 + $0x48] sm:$0xff]
      %v7487 = vld [vmem:[%s4767 + $0x50] sm:$0xff]
      %v7488 = vld [vmem:[%s4767 + $0x60] sm:$0xff]
      %v7489 = vld [vmem:[%s4767 + $0x68] sm:$0xff]
      %v7490 = vld [vmem:[%s4767 + $0x78] sm:$0xff]
      %v7491 = vld [vmem:[%s4767 + $0x80] sm:$0xff]
      %v7492 = vld [vmem:[%s4767 + $0x90] sm:$0xff]
      %v7493 = vld [vmem:[%s4767 + $0x98] sm:$0xff]
      %v7494 = vld [vmem:[%s4767 + $0xa8] sm:$0xff]
      %v7495 = vld [vmem:[%s4767 + $0xb0] sm:$0xff]
      %v7496 = vld [vmem:[%s4767 + $0xc0] sm:$0xff]
      %v7497 = vld [vmem:[%s4767 + $0xc8] sm:$0xff]
      %v7498 = vld [vmem:[%s4767 + $0xd8] sm:$0xff]
      %v7499 = vld [vmem:[%s4767 + $0xe0] sm:$0xff]
      %v7500 = vld [vmem:[%s4767 + $0xf0] sm:$0xff]
      %v7501 = vld [vmem:[%s4767 + $0xf8] sm:$0xff]
      %v7502 = vld [vmem:[%s4767 + $0x108] sm:$0xff]
      %v7503 = vld [vmem:[%s4767 + $0x110] sm:$0xff]
      %v7504 = vld [vmem:[%s4767 + $0x120] sm:$0xff]
      %v7505 = vld [vmem:[%s4767 + $0x128] sm:$0xff]
      %v7506 = vld [vmem:[%s4767 + $0x138] sm:$0xff]
      %v7507 = vld [vmem:[%s4767 + $0x140] sm:$0xff]
      %v7508 = vld [vmem:[%s4767 + $0x150] sm:$0xff]
      %v7509 = vld [vmem:[%s4767 + $0x158] sm:$0xff]
      %v7510 = vld [vmem:[%s4767 + $0x168] sm:$0xff]
      %v7511 = vld [vmem:[%s4767 + $0x170] sm:$0xff]
      %v7512 = vpack.c.bf16 %v7481, %v7480
      %v7513 = vpack.c.bf16 %v7483, %v7482
      %v7514 = vpack.c.bf16 %v7485, %v7484
      %v7515 = vpack.c.bf16 %v7487, %v7486
      %v7516 = vpack.c.bf16 %v7489, %v7488
      %v7517 = vpack.c.bf16 %v7491, %v7490
      %v7518 = vpack.c.bf16 %v7493, %v7492
      %v7519 = vpack.c.bf16 %v7495, %v7494
      %v7520 = vpack.c.bf16 %v7497, %v7496
      %v7521 = vpack.c.bf16 %v7499, %v7498
      %v7522 = vpack.c.bf16 %v7501, %v7500
      %v7523 = vpack.c.bf16 %v7503, %v7502
      %v7524 = vpack.c.bf16 %v7505, %v7504
      %v7525 = vpack.c.bf16 %v7507, %v7506
      %v7526 = vpack.c.bf16 %v7509, %v7508
      %v7527 = vpack.c.bf16 %v7511, %v7510
      %v7528 = vld [vmem:[%s5 + $0x30] sm:$0xf]
      %v7529 = vld [vmem:[%s5 + $0x34] sm:$0xf]
      %v7532 = vunpack.c.l.b16 %v7528
      %v7533 = vunpack.c.l.b16 %v7529
      %v7534 = vpack.c.b16 %v7533, %v7532
      %v7537 = vsel %vm2928, %v7512, 0
      %v7540 = vsel %vm2928, %v7513, 0
      %v7543 = vsel %vm2928, %v7514, 0
      %v7546 = vsel %vm2928, %v7515, 0
      %v7549 = vsel %vm2928, %v7516, 0
      %v7552 = vsel %vm2928, %v7517, 0
      %v7555 = vsel %vm2928, %v7518, 0
      %v7558 = vsel %vm2928, %v7519, 0
      %v7561 = vsel %vm2928, %v7520, 0
      %v7564 = vsel %vm2928, %v7521, 0
      %v7567 = vsel %vm2928, %v7522, 0
      %v7570 = vsel %vm2928, %v7523, 0
      %v7573 = vsel %vm2928, %v7524, 0
      %v7576 = vsel %vm2928, %v7525, 0
      %v7579 = vsel %vm2928, %v7526, 0
      %v7582 = vsel %vm2928, %v7527, 0
      %7584 = vmatprep.subr.bf16.mxu0 0
      %7585 = vmatpush1.bf16.msra.mxu0 %v7534
      %7586 = vmatprep.subr.bf16.mxu0 0
      %7587 = vmatpush1.bf16.msra.mxu0 0
      %7588 = vmatprep.subr.bf16.mxu0 0
      %7589 = vmatpush1.bf16.msra.mxu0 0
      %7590 = vmatprep.subr.bf16.mxu0 0
      %7591 = vmatpush1.bf16.msra.mxu0 0
      %7592 = vmatprep.subr.bf16.mxu0 0
      %7593 = vmatpush1.bf16.msra.mxu0 0
      %7594 = vmatprep.subr.bf16.mxu0 0
      %7595 = vmatpush1.bf16.msra.mxu0 0
      %7596 = vmatprep.subr.bf16.mxu0 0
      %7597 = vmatpush1.bf16.msra.mxu0 0
      %7598 = vmatprep.subr.bf16.mxu0 0
      %7599 = vmatpush1.bf16.msra.mxu0 0
      %7600 = vmatprep.subr.bf16.mxu0 0
      %7601 = vmatpush1.bf16.msra.mxu0 0
      %7602 = vmatprep.subr.bf16.mxu0 0
      %7603 = vmatpush1.bf16.msra.mxu0 0
      %7604 = vmatprep.subr.bf16.mxu0 0
      %7605 = vmatpush1.bf16.msra.mxu0 0
      %7606 = vmatprep.subr.bf16.mxu0 0
      %7607 = vmatpush1.bf16.msra.mxu0 0
      %7608 = vmatprep.subr.bf16.mxu0 0
      %7609 = vmatpush1.bf16.msra.mxu0 0
      %7610 = vmatprep.subr.bf16.mxu0 0
      %7611 = vmatpush1.bf16.msra.mxu0 0
      %7612 = vmatprep.subr.bf16.mxu0 0
      %7613 = vmatpush1.bf16.msra.mxu0 0
      %7614 = vmatprep.subr.bf16.mxu0 0
      %7615 = vmatpush1.bf16.msra.mxu0 0
      %7616 = vmatprep.mubr.bf16.mxu0 0
      %7617 = vmatmul.mubr.bf16.gmra.mrb[0].mxu0 %v7537
      %v7618 = vpop.f32.mrb[0].mxu0
      %v7619 = vadd.f32 0.0, %v7618
      %v7620 = vpop.f32.mrb[0].mxu0
      %v7621 = vpop.f32.mrb[0].mxu0
      %v7622 = vadd.f32 0.0, %v7621
      %v7623 = vpop.f32.mrb[0].mxu0
      %7624 = vmatprep.mubr.bf16.mxu0 0
      %7625 = vmatmul.mubr.bf16.gmra.mrb[0].mxu0 %v7540
      %v7626 = vpop.f32.mrb[0].mxu0
      %v7627 = vadd.f32 0.0, %v7626
      %v7628 = vpop.f32.mrb[0].mxu0
      %v7629 = vpop.f32.mrb[0].mxu0
      %v7630 = vadd.f32 0.0, %v7629
      %v7631 = vpop.f32.mrb[0].mxu0
      %7632 = vmatprep.mubr.bf16.mxu0 0
      %7633 = vmatmul.mubr.bf16.gmra.mrb[0].mxu0 %v7543
      %v7634 = vpop.f32.mrb[0].mxu0
      %v7635 = vadd.f32 0.0, %v7634
      %v7636 = vpop.f32.mrb[0].mxu0
      %v7637 = vpop.f32.mrb[0].mxu0
      %v7638 = vadd.f32 0.0, %v7637
      %v7639 = vpop.f32.mrb[0].mxu0
      %7640 = vmatprep.mubr.bf16.mxu0 0
      %7641 = vmatmul.mubr.bf16.gmra.mrb[0].mxu0 %v7546
      %v7642 = vpop.f32.mrb[0].mxu0
      %v7643 = vadd.f32 0.0, %v7642
      %v7644 = vpop.f32.mrb[0].mxu0
      %v7645 = vpop.f32.mrb[0].mxu0
      %v7646 = vadd.f32 0.0, %v7645
      %v7647 = vpop.f32.mrb[0].mxu0
      %7648 = vmatprep.mubr.bf16.mxu0 0
      %7649 = vmatmul.mubr.bf16.gmra.mrb[0].mxu0 %v7549
      %v7650 = vpop.f32.mrb[0].mxu0
      %v7651 = vadd.f32 0.0, %v7650
      %v7652 = vpop.f32.mrb[0].mxu0
      %v7653 = vpop.f32.mrb[0].mxu0
      %v7654 = vadd.f32 0.0, %v7653
      %v7655 = vpop.f32.mrb[0].mxu0
      %7656 = vmatprep.mubr.bf16.mxu0 0
      %7657 = vmatmul.mubr.bf16.gmra.mrb[0].mxu0 %v7552
      %v7658 = vpop.f32.mrb[0].mxu0
      %v7659 = vadd.f32 0.0, %v7658
      %v7660 = vpop.f32.mrb[0].mxu0
      %v7661 = vpop.f32.mrb[0].mxu0
      %v7662 = vadd.f32 0.0, %v7661
      %v7663 = vpop.f32.mrb[0].mxu0
      %7664 = vmatprep.mubr.bf16.mxu0 0
      %7665 = vmatmul.mubr.bf16.gmra.mrb[0].mxu0 %v7555
      %v7666 = vpop.f32.mrb[0].mxu0
      %v7667 = vadd.f32 0.0, %v7666
      %v7668 = vpop.f32.mrb[0].mxu0
      %v7669 = vpop.f32.mrb[0].mxu0
      %v7670 = vadd.f32 0.0, %v7669
      %v7671 = vpop.f32.mrb[0].mxu0
      %7672 = vmatprep.mubr.bf16.mxu0 0
      %7673 = vmatmul.mubr.bf16.gmra.mrb[0].mxu0 %v7558
      %v7674 = vpop.f32.mrb[0].mxu0
      %v7675 = vadd.f32 0.0, %v7674
      %v7676 = vpop.f32.mrb[0].mxu0
      %v7677 = vpop.f32.mrb[0].mxu0
      %v7678 = vadd.f32 0.0, %v7677
      %v7679 = vpop.f32.mrb[0].mxu0
      %7680 = vmatprep.mubr.bf16.mxu0 0
      %7681 = vmatmul.mubr.bf16.gmra.mrb[0].mxu0 %v7561
      %v7682 = vpop.f32.mrb[0].mxu0
      %v7683 = vadd.f32 0.0, %v7682
      %v7684 = vpop.f32.mrb[0].mxu0
      %v7685 = vpop.f32.mrb[0].mxu0
      %v7686 = vadd.f32 0.0, %v7685
      %v7687 = vpop.f32.mrb[0].mxu0
      %7688 = vmatprep.mubr.bf16.mxu0 0
      %7689 = vmatmul.mubr.bf16.gmra.mrb[0].mxu0 %v7564
      %v7690 = vpop.f32.mrb[0].mxu0
      %v7691 = vadd.f32 0.0, %v7690
      %v7692 = vpop.f32.mrb[0].mxu0
      %v7693 = vpop.f32.mrb[0].mxu0
      %v7694 = vadd.f32 0.0, %v7693
      %v7695 = vpop.f32.mrb[0].mxu0
      %7696 = vmatprep.mubr.bf16.mxu0 0
      %7697 = vmatmul.mubr.bf16.gmra.mrb[0].mxu0 %v7567
      %v7698 = vpop.f32.mrb[0].mxu0
      %v7699 = vadd.f32 0.0, %v7698
      %v7700 = vpop.f32.mrb[0].mxu0
      %v7701 = vpop.f32.mrb[0].mxu0
      %v7702 = vadd.f32 0.0, %v7701
      %v7703 = vpop.f32.mrb[0].mxu0
      %7704 = vmatprep.mubr.bf16.mxu0 0
      %7705 = vmatmul.mubr.bf16.gmra.mrb[0].mxu0 %v7570
      %v7706 = vpop.f32.mrb[0].mxu0
      %v7707 = vadd.f32 0.0, %v7706
      %v7708 = vpop.f32.mrb[0].mxu0
      %v7709 = vpop.f32.mrb[0].mxu0
      %v7710 = vadd.f32 0.0, %v7709
      %v7711 = vpop.f32.mrb[0].mxu0
      %7712 = vmatprep.mubr.bf16.mxu0 0
      %7713 = vmatmul.mubr.bf16.gmra.mrb[0].mxu0 %v7573
      %v7714 = vpop.f32.mrb[0].mxu0
      %v7715 = vadd.f32 0.0, %v7714
      %v7716 = vpop.f32.mrb[0].mxu0
      %v7717 = vpop.f32.mrb[0].mxu0
      %v7718 = vadd.f32 0.0, %v7717
      %v7719 = vpop.f32.mrb[0].mxu0
      %7720 = vmatprep.mubr.bf16.mxu0 0
      %7721 = vmatmul.mubr.bf16.gmra.mrb[0].mxu0 %v7576
      %v7722 = vpop.f32.mrb[0].mxu0
      %v7723 = vadd.f32 0.0, %v7722
      %v7724 = vpop.f32.mrb[0].mxu0
      %v7725 = vpop.f32.mrb[0].mxu0
      %v7726 = vadd.f32 0.0, %v7725
      %v7727 = vpop.f32.mrb[0].mxu0
      %7728 = vmatprep.mubr.bf16.mxu0 0
      %7729 = vmatmul.mubr.bf16.gmra.mrb[0].mxu0 %v7579
      %v7730 = vpop.f32.mrb[0].mxu0
      %v7731 = vadd.f32 0.0, %v7730
      %v7732 = vpop.f32.mrb[0].mxu0
      %v7733 = vpop.f32.mrb[0].mxu0
      %v7734 = vadd.f32 0.0, %v7733
      %v7735 = vpop.f32.mrb[0].mxu0
      %7736 = vmatprep.mubr.bf16.mxu0 0
      %7737 = vmatmul.mubr.bf16.gmra.mrb[0].mxu0 %v7582
      %v7738 = vpop.f32.mrb[0].mxu0
      %v7739 = vadd.f32 0.0, %v7738
      %v7740 = vpop.f32.mrb[0].mxu0
      %v7741 = vpop.f32.mrb[0].mxu0
      %v7742 = vadd.f32 0.0, %v7741
      %v7743 = vpop.f32.mrb[0].mxu0
      %7744 = vdwg.mxu0
      %v7745 = vadd.f32 %v7448, %v7619
      %v7746 = vadd.f32 %v7449, %v7622
      %v7747 = vadd.f32 %v7450, %v7627
      %v7748 = vadd.f32 %v7451, %v7630
      %v7749 = vadd.f32 %v7452, %v7635
      %v7750 = vadd.f32 %v7453, %v7638
      %v7751 = vadd.f32 %v7454, %v7643
      %v7752 = vadd.f32 %v7455, %v7646
      %v7753 = vadd.f32 %v7456, %v7651
      %v7754 = vadd.f32 %v7457, %v7654
      %v7755 = vadd.f32 %v7458, %v7659
      %v7756 = vadd.f32 %v7459, %v7662
      %v7757 = vadd.f32 %v7460, %v7667
      %v7758 = vadd.f32 %v7461, %v7670
      %v7759 = vadd.f32 %v7462, %v7675
      %v7760 = vadd.f32 %v7463, %v7678
      %v7761 = vadd.f32 %v7464, %v7683
      %v7762 = vadd.f32 %v7465, %v7686
      %v7763 = vadd.f32 %v7466, %v7691
      %v7764 = vadd.f32 %v7467, %v7694
      %v7765 = vadd.f32 %v7468, %v7699
      %v7766 = vadd.f32 %v7469, %v7702
      %v7767 = vadd.f32 %v7470, %v7707
      %v7768 = vadd.f32 %v7471, %v7710
      %v7769 = vadd.f32 %v7472, %v7715
      %v7770 = vadd.f32 %v7473, %v7718
      %v7771 = vadd.f32 %v7474, %v7723
      %v7772 = vadd.f32 %v7475, %v7726
      %v7773 = vadd.f32 %v7476, %v7731
      %v7774 = vadd.f32 %v7477, %v7734
      %v7775 = vadd.f32 %v7478, %v7739
      %v7776 = vadd.f32 %v7479, %v7742
      %v7777 = vld [vmem:[%s4767 + $0x1] sm:$0xff]
      %v7778 = vld [vmem:[%s4767 + $0x9] sm:$0xff]
      %v7779 = vld [vmem:[%s4767 + $0x19] sm:$0xff]
      %v7780 = vld [vmem:[%s4767 + $0x21] sm:$0xff]
      %v7781 = vld [vmem:[%s4767 + $0x31] sm:$0xff]
      %v7782 = vld [vmem:[%s4767 + $0x39] sm:$0xff]
      %v7783 = vld [vmem:[%s4767 + $0x49] sm:$0xff]
      %v7784 = vld [vmem:[%s4767 + $0x51] sm:$0xff]
      %v7785 = vld [vmem:[%s4767 + $0x61] sm:$0xff]
      %v7786 = vld [vmem:[%s4767 + $0x69] sm:$0xff]
      %v7787 = vld [vmem:[%s4767 + $0x79] sm:$0xff]
      %v7788 = vld [vmem:[%s4767 + $0x81] sm:$0xff]
      %v7789 = vld [vmem:[%s4767 + $0x91] sm:$0xff]
      %v7790 = vld [vmem:[%s4767 + $0x99] sm:$0xff]
      %v7791 = vld [vmem:[%s4767 + $0xa9] sm:$0xff]
      %v7792 = vld [vmem:[%s4767 + $0xb1] sm:$0xff]
      %v7793 = vld [vmem:[%s4767 + $0xc1] sm:$0xff]
      %v7794 = vld [vmem:[%s4767 + $0xc9] sm:$0xff]
      %v7795 = vld [vmem:[%s4767 + $0xd9] sm:$0xff]
      %v7796 = vld [vmem:[%s4767 + $0xe1] sm:$0xff]
      %v7797 = vld [vmem:[%s4767 + $0xf1] sm:$0xff]
      %v7798 = vld [vmem:[%s4767 + $0xf9] sm:$0xff]
      %v7799 = vld [vmem:[%s4767 + $0x109] sm:$0xff]
      %v7800 = vld [vmem:[%s4767 + $0x111] sm:$0xff]
      %v7801 = vld [vmem:[%s4767 + $0x121] sm:$0xff]
      %v7802 = vld [vmem:[%s4767 + $0x129] sm:$0xff]
      %v7803 = vld [vmem:[%s4767 + $0x139] sm:$0xff]
      %v7804 = vld [vmem:[%s4767 + $0x141] sm:$0xff]
      %v7805 = vld [vmem:[%s4767 + $0x151] sm:$0xff]
      %v7806 = vld [vmem:[%s4767 + $0x159] sm:$0xff]
      %v7807 = vld [vmem:[%s4767 + $0x169] sm:$0xff]
      %v7808 = vld [vmem:[%s4767 + $0x171] sm:$0xff]
      %v7809 = vpack.c.bf16 %v7778, %v7777
      %v7810 = vpack.c.bf16 %v7780, %v7779
      %v7811 = vpack.c.bf16 %v7782, %v7781
      %v7812 = vpack.c.bf16 %v7784, %v7783
      %v7813 = vpack.c.bf16 %v7786, %v7785
      %v7814 = vpack.c.bf16 %v7788, %v7787
      %v7815 = vpack.c.bf16 %v7790, %v7789
      %v7816 = vpack.c.bf16 %v7792, %v7791
      %v7817 = vpack.c.bf16 %v7794, %v7793
      %v7818 = vpack.c.bf16 %v7796, %v7795
      %v7819 = vpack.c.bf16 %v7798, %v7797
      %v7820 = vpack.c.bf16 %v7800, %v7799
      %v7821 = vpack.c.bf16 %v7802, %v7801
      %v7822 = vpack.c.bf16 %v7804, %v7803
      %v7823 = vpack.c.bf16 %v7806, %v7805
      %v7824 = vpack.c.bf16 %v7808, %v7807
      %v7825 = vld [vmem:[%s5 + $0x38] sm:$0xf]
      %v7826 = vld [vmem:[%s5 + $0x3c] sm:$0xf]
      %v7829 = vunpack.c.l.b16 %v7825
      %v7830 = vunpack.c.l.b16 %v7826
      %v7831 = vpack.c.b16 %v7830, %v7829
      %v7834 = vsel %vm2928, %v7809, 0
      %v7837 = vsel %vm2928, %v7810, 0
      %v7840 = vsel %vm2928, %v7811, 0
      %v7843 = vsel %vm2928, %v7812, 0
      %v7846 = vsel %vm2928, %v7813, 0
      %v7849 = vsel %vm2928, %v7814, 0
      %v7852 = vsel %vm2928, %v7815, 0
      %v7855 = vsel %vm2928, %v7816, 0
      %v7858 = vsel %vm2928, %v7817, 0
      %v7861 = vsel %vm2928, %v7818, 0
      %v7864 = vsel %vm2928, %v7819, 0
      %v7867 = vsel %vm2928, %v7820, 0
      %v7870 = vsel %vm2928, %v7821, 0
      %v7873 = vsel %vm2928, %v7822, 0
      %v7876 = vsel %vm2928, %v7823, 0
      %v7879 = vsel %vm2928, %v7824, 0
      %7881 = vmatprep.subr.bf16.mxu0 0
      %7882 = vmatpush1.bf16.msra.mxu0 %v7831
      %7883 = vmatprep.subr.bf16.mxu0 0
      %7884 = vmatpush1.bf16.msra.mxu0 0
      %7885 = vmatprep.subr.bf16.mxu0 0
      %7886 = vmatpush1.bf16.msra.mxu0 0
      %7887 = vmatprep.subr.bf16.mxu0 0
      %7888 = vmatpush1.bf16.msra.mxu0 0
      %7889 = vmatprep.subr.bf16.mxu0 0
      %7890 = vmatpush1.bf16.msra.mxu0 0
      %7891 = vmatprep.subr.bf16.mxu0 0
      %7892 = vmatpush1.bf16.msra.mxu0 0
      %7893 = vmatprep.subr.bf16.mxu0 0
      %7894 = vmatpush1.bf16.msra.mxu0 0
      %7895 = vmatprep.subr.bf16.mxu0 0
      %7896 = vmatpush1.bf16.msra.mxu0 0
      %7897 = vmatprep.subr.bf16.mxu0 0
      %7898 = vmatpush1.bf16.msra.mxu0 0
      %7899 = vmatprep.subr.bf16.mxu0 0
      %7900 = vmatpush1.bf16.msra.mxu0 0
      %7901 = vmatprep.subr.bf16.mxu0 0
      %7902 = vmatpush1.bf16.msra.mxu0 0
      %7903 = vmatprep.subr.bf16.mxu0 0
      %7904 = vmatpush1.bf16.msra.mxu0 0
      %7905 = vmatprep.subr.bf16.mxu0 0
      %7906 = vmatpush1.bf16.msra.mxu0 0
      %7907 = vmatprep.subr.bf16.mxu0 0
      %7908 = vmatpush1.bf16.msra.mxu0 0
      %7909 = vmatprep.subr.bf16.mxu0 0
      %7910 = vmatpush1.bf16.msra.mxu0 0
      %7911 = vmatprep.subr.bf16.mxu0 0
      %7912 = vmatpush1.bf16.msra.mxu0 0
      %7913 = vmatprep.mubr.bf16.mxu0 0
      %7914 = vmatmul.mubr.bf16.gmra.mrb[0].mxu0 %v7834
      %v7915 = vpop.f32.mrb[0].mxu0
      %v7916 = vadd.f32 0.0, %v7915
      %v7917 = vpop.f32.mrb[0].mxu0
      %v7918 = vpop.f32.mrb[0].mxu0
      %v7919 = vadd.f32 0.0, %v7918
      %v7920 = vpop.f32.mrb[0].mxu0
      %7921 = vmatprep.mubr.bf16.mxu0 0
      %7922 = vmatmul.mubr.bf16.gmra.mrb[0].mxu0 %v7837
      %v7923 = vpop.f32.mrb[0].mxu0
      %v7924 = vadd.f32 0.0, %v7923
      %v7925 = vpop.f32.mrb[0].mxu0
      %v7926 = vpop.f32.mrb[0].mxu0
      %v7927 = vadd.f32 0.0, %v7926
      %v7928 = vpop.f32.mrb[0].mxu0
      %7929 = vmatprep.mubr.bf16.mxu0 0
      %7930 = vmatmul.mubr.bf16.gmra.mrb[0].mxu0 %v7840
      %v7931 = vpop.f32.mrb[0].mxu0
      %v7932 = vadd.f32 0.0, %v7931
      %v7933 = vpop.f32.mrb[0].mxu0
      %v7934 = vpop.f32.mrb[0].mxu0
      %v7935 = vadd.f32 0.0, %v7934
      %v7936 = vpop.f32.mrb[0].mxu0
      %7937 = vmatprep.mubr.bf16.mxu0 0
      %7938 = vmatmul.mubr.bf16.gmra.mrb[0].mxu0 %v7843
      %v7939 = vpop.f32.mrb[0].mxu0
      %v7940 = vadd.f32 0.0, %v7939
      %v7941 = vpop.f32.mrb[0].mxu0
      %v7942 = vpop.f32.mrb[0].mxu0
      %v7943 = vadd.f32 0.0, %v7942
      %v7944 = vpop.f32.mrb[0].mxu0
      %7945 = vmatprep.mubr.bf16.mxu0 0
      %7946 = vmatmul.mubr.bf16.gmra.mrb[0].mxu0 %v7846
      %v7947 = vpop.f32.mrb[0].mxu0
      %v7948 = vadd.f32 0.0, %v7947
      %v7949 = vpop.f32.mrb[0].mxu0
      %v7950 = vpop.f32.mrb[0].mxu0
      %v7951 = vadd.f32 0.0, %v7950
      %v7952 = vpop.f32.mrb[0].mxu0
      %7953 = vmatprep.mubr.bf16.mxu0 0
      %7954 = vmatmul.mubr.bf16.gmra.mrb[0].mxu0 %v7849
      %v7955 = vpop.f32.mrb[0].mxu0
      %v7956 = vadd.f32 0.0, %v7955
      %v7957 = vpop.f32.mrb[0].mxu0
      %v7958 = vpop.f32.mrb[0].mxu0
      %v7959 = vadd.f32 0.0, %v7958
      %v7960 = vpop.f32.mrb[0].mxu0
      %7961 = vmatprep.mubr.bf16.mxu0 0
      %7962 = vmatmul.mubr.bf16.gmra.mrb[0].mxu0 %v7852
      %v7963 = vpop.f32.mrb[0].mxu0
      %v7964 = vadd.f32 0.0, %v7963
      %v7965 = vpop.f32.mrb[0].mxu0
      %v7966 = vpop.f32.mrb[0].mxu0
      %v7967 = vadd.f32 0.0, %v7966
      %v7968 = vpop.f32.mrb[0].mxu0
      %7969 = vmatprep.mubr.bf16.mxu0 0
      %7970 = vmatmul.mubr.bf16.gmra.mrb[0].mxu0 %v7855
      %v7971 = vpop.f32.mrb[0].mxu0
      %v7972 = vadd.f32 0.0, %v7971
      %v7973 = vpop.f32.mrb[0].mxu0
      %v7974 = vpop.f32.mrb[0].mxu0
      %v7975 = vadd.f32 0.0, %v7974
      %v7976 = vpop.f32.mrb[0].mxu0
      %7977 = vmatprep.mubr.bf16.mxu0 0
      %7978 = vmatmul.mubr.bf16.gmra.mrb[0].mxu0 %v7858
      %v7979 = vpop.f32.mrb[0].mxu0
      %v7980 = vadd.f32 0.0, %v7979
      %v7981 = vpop.f32.mrb[0].mxu0
      %v7982 = vpop.f32.mrb[0].mxu0
      %v7983 = vadd.f32 0.0, %v7982
      %v7984 = vpop.f32.mrb[0].mxu0
      %7985 = vmatprep.mubr.bf16.mxu0 0
      %7986 = vmatmul.mubr.bf16.gmra.mrb[0].mxu0 %v7861
      %v7987 = vpop.f32.mrb[0].mxu0
      %v7988 = vadd.f32 0.0, %v7987
      %v7989 = vpop.f32.mrb[0].mxu0
      %v7990 = vpop.f32.mrb[0].mxu0
      %v7991 = vadd.f32 0.0, %v7990
      %v7992 = vpop.f32.mrb[0].mxu0
      %7993 = vmatprep.mubr.bf16.mxu0 0
      %7994 = vmatmul.mubr.bf16.gmra.mrb[0].mxu0 %v7864
      %v7995 = vpop.f32.mrb[0].mxu0
      %v7996 = vadd.f32 0.0, %v7995
      %v7997 = vpop.f32.mrb[0].mxu0
      %v7998 = vpop.f32.mrb[0].mxu0
      %v7999 = vadd.f32 0.0, %v7998
      %v8000 = vpop.f32.mrb[0].mxu0
      %8001 = vmatprep.mubr.bf16.mxu0 0
      %8002 = vmatmul.mubr.bf16.gmra.mrb[0].mxu0 %v7867
      %v8003 = vpop.f32.mrb[0].mxu0
      %v8004 = vadd.f32 0.0, %v8003
      %v8005 = vpop.f32.mrb[0].mxu0
      %v8006 = vpop.f32.mrb[0].mxu0
      %v8007 = vadd.f32 0.0, %v8006
      %v8008 = vpop.f32.mrb[0].mxu0
      %8009 = vmatprep.mubr.bf16.mxu0 0
      %8010 = vmatmul.mubr.bf16.gmra.mrb[0].mxu0 %v7870
      %v8011 = vpop.f32.mrb[0].mxu0
      %v8012 = vadd.f32 0.0, %v8011
      %v8013 = vpop.f32.mrb[0].mxu0
      %v8014 = vpop.f32.mrb[0].mxu0
      %v8015 = vadd.f32 0.0, %v8014
      %v8016 = vpop.f32.mrb[0].mxu0
      %8017 = vmatprep.mubr.bf16.mxu0 0
      %8018 = vmatmul.mubr.bf16.gmra.mrb[0].mxu0 %v7873
      %v8019 = vpop.f32.mrb[0].mxu0
      %v8020 = vadd.f32 0.0, %v8019
      %v8021 = vpop.f32.mrb[0].mxu0
      %v8022 = vpop.f32.mrb[0].mxu0
      %v8023 = vadd.f32 0.0, %v8022
      %v8024 = vpop.f32.mrb[0].mxu0
      %8025 = vmatprep.mubr.bf16.mxu0 0
      %8026 = vmatmul.mubr.bf16.gmra.mrb[0].mxu0 %v7876
      %v8027 = vpop.f32.mrb[0].mxu0
      %v8028 = vadd.f32 0.0, %v8027
      %v8029 = vpop.f32.mrb[0].mxu0
      %v8030 = vpop.f32.mrb[0].mxu0
      %v8031 = vadd.f32 0.0, %v8030
      %v8032 = vpop.f32.mrb[0].mxu0
      %8033 = vmatprep.mubr.bf16.mxu0 0
      %8034 = vmatmul.mubr.bf16.gmra.mrb[0].mxu0 %v7879
      %v8035 = vpop.f32.mrb[0].mxu0
      %v8036 = vadd.f32 0.0, %v8035
      %v8037 = vpop.f32.mrb[0].mxu0
      %v8038 = vpop.f32.mrb[0].mxu0
      %v8039 = vadd.f32 0.0, %v8038
      %v8040 = vpop.f32.mrb[0].mxu0
      %8041 = vdwg.mxu0
      %v8042 = vadd.f32 %v7745, %v7916
      %v8043 = vadd.f32 %v7746, %v7919
      %v8044 = vadd.f32 %v7747, %v7924
      %v8045 = vadd.f32 %v7748, %v7927
      %v8046 = vadd.f32 %v7749, %v7932
      %v8047 = vadd.f32 %v7750, %v7935
      %v8048 = vadd.f32 %v7751, %v7940
      %v8049 = vadd.f32 %v7752, %v7943
      %v8050 = vadd.f32 %v7753, %v7948
      %v8051 = vadd.f32 %v7754, %v7951
      %v8052 = vadd.f32 %v7755, %v7956
      %v8053 = vadd.f32 %v7756, %v7959
      %v8054 = vadd.f32 %v7757, %v7964
      %v8055 = vadd.f32 %v7758, %v7967
      %v8056 = vadd.f32 %v7759, %v7972
      %v8057 = vadd.f32 %v7760, %v7975
      %v8058 = vadd.f32 %v7761, %v7980
      %v8059 = vadd.f32 %v7762, %v7983
      %v8060 = vadd.f32 %v7763, %v7988
      %v8061 = vadd.f32 %v7764, %v7991
      %v8062 = vadd.f32 %v7765, %v7996
      %v8063 = vadd.f32 %v7766, %v7999
      %v8064 = vadd.f32 %v7767, %v8004
      %v8065 = vadd.f32 %v7768, %v8007
      %v8066 = vadd.f32 %v7769, %v8012
      %v8067 = vadd.f32 %v7770, %v8015
      %v8068 = vadd.f32 %v7771, %v8020
      %v8069 = vadd.f32 %v7772, %v8023
      %v8070 = vadd.f32 %v7773, %v8028
      %v8071 = vadd.f32 %v7774, %v8031
      %v8072 = vadd.f32 %v7775, %v8036
      %v8073 = vadd.f32 %v7776, %v8039
      %v8074 = vld [vmem:[%s4767 + $0x2] sm:$0xff]
      %v8075 = vld [vmem:[%s4767 + $0xa] sm:$0xff]
      %v8076 = vld [vmem:[%s4767 + $0x1a] sm:$0xff]
      %v8077 = vld [vmem:[%s4767 + $0x22] sm:$0xff]
      %v8078 = vld [vmem:[%s4767 + $0x32] sm:$0xff]
      %v8079 = vld [vmem:[%s4767 + $0x3a] sm:$0xff]
      %v8080 = vld [vmem:[%s4767 + $0x4a] sm:$0xff]
      %v8081 = vld [vmem:[%s4767 + $0x52] sm:$0xff]
      %v8082 = vld [vmem:[%s4767 + $0x62] sm:$0xff]
      %v8083 = vld [vmem:[%s4767 + $0x6a] sm:$0xff]
      %v8084 = vld [vmem:[%s4767 + $0x7a] sm:$0xff]
      %v8085 = vld [vmem:[%s4767 + $0x82] sm:$0xff]
      %v8086 = vld [vmem:[%s4767 + $0x92] sm:$0xff]
      %v8087 = vld [vmem:[%s4767 + $0x9a] sm:$0xff]
      %v8088 = vld [vmem:[%s4767 + $0xaa] sm:$0xff]
      %v8089 = vld [vmem:[%s4767 + $0xb2] sm:$0xff]
      %v8090 = vld [vmem:[%s4767 + $0xc2] sm:$0xff]
      %v8091 = vld [vmem:[%s4767 + $0xca] sm:$0xff]
      %v8092 = vld [vmem:[%s4767 + $0xda] sm:$0xff]
      %v8093 = vld [vmem:[%s4767 + $0xe2] sm:$0xff]
      %v8094 = vld [vmem:[%s4767 + $0xf2] sm:$0xff]
      %v8095 = vld [vmem:[%s4767 + $0xfa] sm:$0xff]
      %v8096 = vld [vmem:[%s4767 + $0x10a] sm:$0xff]
      %v8097 = vld [vmem:[%s4767 + $0x112] sm:$0xff]
      %v8098 = vld [vmem:[%s4767 + $0x122] sm:$0xff]
      %v8099 = vld [vmem:[%s4767 + $0x12a] sm:$0xff]
      %v8100 = vld [vmem:[%s4767 + $0x13a] sm:$0xff]
      %v8101 = vld [vmem:[%s4767 + $0x142] sm:$0xff]
      %v8102 = vld [vmem:[%s4767 + $0x152] sm:$0xff]
      %v8103 = vld [vmem:[%s4767 + $0x15a] sm:$0xff]
      %v8104 = vld [vmem:[%s4767 + $0x16a] sm:$0xff]
      %v8105 = vld [vmem:[%s4767 + $0x172] sm:$0xff]
      %v8106 = vpack.c.bf16 %v8075, %v8074
      %v8107 = vpack.c.bf16 %v8077, %v8076
      %v8108 = vpack.c.bf16 %v8079, %v8078
      %v8109 = vpack.c.bf16 %v8081, %v8080
      %v8110 = vpack.c.bf16 %v8083, %v8082
      %v8111 = vpack.c.bf16 %v8085, %v8084
      %v8112 = vpack.c.bf16 %v8087, %v8086
      %v8113 = vpack.c.bf16 %v8089, %v8088
      %v8114 = vpack.c.bf16 %v8091, %v8090
      %v8115 = vpack.c.bf16 %v8093, %v8092
      %v8116 = vpack.c.bf16 %v8095, %v8094
      %v8117 = vpack.c.bf16 %v8097, %v8096
      %v8118 = vpack.c.bf16 %v8099, %v8098
      %v8119 = vpack.c.bf16 %v8101, %v8100
      %v8120 = vpack.c.bf16 %v8103, %v8102
      %v8121 = vpack.c.bf16 %v8105, %v8104
      %v8122 = vld [vmem:[%s5 + $0x40] sm:$0xf]
      %v8123 = vld [vmem:[%s5 + $0x44] sm:$0xf]
      %v8126 = vunpack.c.l.b16 %v8122
      %v8127 = vunpack.c.l.b16 %v8123
      %v8128 = vpack.c.b16 %v8127, %v8126
      %v8131 = vsel %vm2928, %v8106, 0
      %v8134 = vsel %vm2928, %v8107, 0
      %v8137 = vsel %vm2928, %v8108, 0
      %v8140 = vsel %vm2928, %v8109, 0
      %v8143 = vsel %vm2928, %v8110, 0
      %v8146 = vsel %vm2928, %v8111, 0
      %v8149 = vsel %vm2928, %v8112, 0
      %v8152 = vsel %vm2928, %v8113, 0
      %v8155 = vsel %vm2928, %v8114, 0
      %v8158 = vsel %vm2928, %v8115, 0
      %v8161 = vsel %vm2928, %v8116, 0
      %v8164 = vsel %vm2928, %v8117, 0
      %v8167 = vsel %vm2928, %v8118, 0
      %v8170 = vsel %vm2928, %v8119, 0
      %v8173 = vsel %vm2928, %v8120, 0
      %v8176 = vsel %vm2928, %v8121, 0
      %8178 = vmatprep.subr.bf16.mxu0 0
      %8179 = vmatpush1.bf16.msra.mxu0 %v8128
      %8180 = vmatprep.subr.bf16.mxu0 0
      %8181 = vmatpush1.bf16.msra.mxu0 0
      %8182 = vmatprep.subr.bf16.mxu0 0
      %8183 = vmatpush1.bf16.msra.mxu0 0
      %8184 = vmatprep.subr.bf16.mxu0 0
      %8185 = vmatpush1.bf16.msra.mxu0 0
      %8186 = vmatprep.subr.bf16.mxu0 0
      %8187 = vmatpush1.bf16.msra.mxu0 0
      %8188 = vmatprep.subr.bf16.mxu0 0
      %8189 = vmatpush1.bf16.msra.mxu0 0
      %8190 = vmatprep.subr.bf16.mxu0 0
      %8191 = vmatpush1.bf16.msra.mxu0 0
      %8192 = vmatprep.subr.bf16.mxu0 0
      %8193 = vmatpush1.bf16.msra.mxu0 0
      %8194 = vmatprep.subr.bf16.mxu0 0
      %8195 = vmatpush1.bf16.msra.mxu0 0
      %8196 = vmatprep.subr.bf16.mxu0 0
      %8197 = vmatpush1.bf16.msra.mxu0 0
      %8198 = vmatprep.subr.bf16.mxu0 0
      %8199 = vmatpush1.bf16.msra.mxu0 0
      %8200 = vmatprep.subr.bf16.mxu0 0
      %8201 = vmatpush1.bf16.msra.mxu0 0
      %8202 = vmatprep.subr.bf16.mxu0 0
      %8203 = vmatpush1.bf16.msra.mxu0 0
      %8204 = vmatprep.subr.bf16.mxu0 0
      %8205 = vmatpush1.bf16.msra.mxu0 0
      %8206 = vmatprep.subr.bf16.mxu0 0
      %8207 = vmatpush1.bf16.msra.mxu0 0
      %8208 = vmatprep.subr.bf16.mxu0 0
      %8209 = vmatpush1.bf16.msra.mxu0 0
      %8210 = vmatprep.mubr.bf16.mxu0 0
      %8211 = vmatmul.mubr.bf16.gmra.mrb[0].mxu0 %v8131
      %v8212 = vpop.f32.mrb[0].mxu0
      %v8213 = vadd.f32 0.0, %v8212
      %v8214 = vpop.f32.mrb[0].mxu0
      %v8215 = vpop.f32.mrb[0].mxu0
      %v8216 = vadd.f32 0.0, %v8215
      %v8217 = vpop.f32.mrb[0].mxu0
      %8218 = vmatprep.mubr.bf16.mxu0 0
      %8219 = vmatmul.mubr.bf16.gmra.mrb[0].mxu0 %v8134
      %v8220 = vpop.f32.mrb[0].mxu0
      %v8221 = vadd.f32 0.0, %v8220
      %v8222 = vpop.f32.mrb[0].mxu0
      %v8223 = vpop.f32.mrb[0].mxu0
      %v8224 = vadd.f32 0.0, %v8223
      %v8225 = vpop.f32.mrb[0].mxu0
      %8226 = vmatprep.mubr.bf16.mxu0 0
      %8227 = vmatmul.mubr.bf16.gmra.mrb[0].mxu0 %v8137
      %v8228 = vpop.f32.mrb[0].mxu0
      %v8229 = vadd.f32 0.0, %v8228
      %v8230 = vpop.f32.mrb[0].mxu0
      %v8231 = vpop.f32.mrb[0].mxu0
      %v8232 = vadd.f32 0.0, %v8231
      %v8233 = vpop.f32.mrb[0].mxu0
      %8234 = vmatprep.mubr.bf16.mxu0 0
      %8235 = vmatmul.mubr.bf16.gmra.mrb[0].mxu0 %v8140
      %v8236 = vpop.f32.mrb[0].mxu0
      %v8237 = vadd.f32 0.0, %v8236
      %v8238 = vpop.f32.mrb[0].mxu0
      %v8239 = vpop.f32.mrb[0].mxu0
      %v8240 = vadd.f32 0.0, %v8239
      %v8241 = vpop.f32.mrb[0].mxu0
      %8242 = vmatprep.mubr.bf16.mxu0 0
      %8243 = vmatmul.mubr.bf16.gmra.mrb[0].mxu0 %v8143
      %v8244 = vpop.f32.mrb[0].mxu0
      %v8245 = vadd.f32 0.0, %v8244
      %v8246 = vpop.f32.mrb[0].mxu0
      %v8247 = vpop.f32.mrb[0].mxu0
      %v8248 = vadd.f32 0.0, %v8247
      %v8249 = vpop.f32.mrb[0].mxu0
      %8250 = vmatprep.mubr.bf16.mxu0 0
      %8251 = vmatmul.mubr.bf16.gmra.mrb[0].mxu0 %v8146
      %v8252 = vpop.f32.mrb[0].mxu0
      %v8253 = vadd.f32 0.0, %v8252
      %v8254 = vpop.f32.mrb[0].mxu0
      %v8255 = vpop.f32.mrb[0].mxu0
      %v8256 = vadd.f32 0.0, %v8255
      %v8257 = vpop.f32.mrb[0].mxu0
      %8258 = vmatprep.mubr.bf16.mxu0 0
      %8259 = vmatmul.mubr.bf16.gmra.mrb[0].mxu0 %v8149
      %v8260 = vpop.f32.mrb[0].mxu0
      %v8261 = vadd.f32 0.0, %v8260
      %v8262 = vpop.f32.mrb[0].mxu0
      %v8263 = vpop.f32.mrb[0].mxu0
      %v8264 = vadd.f32 0.0, %v8263
      %v8265 = vpop.f32.mrb[0].mxu0
      %8266 = vmatprep.mubr.bf16.mxu0 0
      %8267 = vmatmul.mubr.bf16.gmra.mrb[0].mxu0 %v8152
      %v8268 = vpop.f32.mrb[0].mxu0
      %v8269 = vadd.f32 0.0, %v8268
      %v8270 = vpop.f32.mrb[0].mxu0
      %v8271 = vpop.f32.mrb[0].mxu0
      %v8272 = vadd.f32 0.0, %v8271
      %v8273 = vpop.f32.mrb[0].mxu0
      %8274 = vmatprep.mubr.bf16.mxu0 0
      %8275 = vmatmul.mubr.bf16.gmra.mrb[0].mxu0 %v8155
      %v8276 = vpop.f32.mrb[0].mxu0
      %v8277 = vadd.f32 0.0, %v8276
      %v8278 = vpop.f32.mrb[0].mxu0
      %v8279 = vpop.f32.mrb[0].mxu0
      %v8280 = vadd.f32 0.0, %v8279
      %v8281 = vpop.f32.mrb[0].mxu0
      %8282 = vmatprep.mubr.bf16.mxu0 0
      %8283 = vmatmul.mubr.bf16.gmra.mrb[0].mxu0 %v8158
      %v8284 = vpop.f32.mrb[0].mxu0
      %v8285 = vadd.f32 0.0, %v8284
      %v8286 = vpop.f32.mrb[0].mxu0
      %v8287 = vpop.f32.mrb[0].mxu0
      %v8288 = vadd.f32 0.0, %v8287
      %v8289 = vpop.f32.mrb[0].mxu0
      %8290 = vmatprep.mubr.bf16.mxu0 0
      %8291 = vmatmul.mubr.bf16.gmra.mrb[0].mxu0 %v8161
      %v8292 = vpop.f32.mrb[0].mxu0
      %v8293 = vadd.f32 0.0, %v8292
      %v8294 = vpop.f32.mrb[0].mxu0
      %v8295 = vpop.f32.mrb[0].mxu0
      %v8296 = vadd.f32 0.0, %v8295
      %v8297 = vpop.f32.mrb[0].mxu0
      %8298 = vmatprep.mubr.bf16.mxu0 0
      %8299 = vmatmul.mubr.bf16.gmra.mrb[0].mxu0 %v8164
      %v8300 = vpop.f32.mrb[0].mxu0
      %v8301 = vadd.f32 0.0, %v8300
      %v8302 = vpop.f32.mrb[0].mxu0
      %v8303 = vpop.f32.mrb[0].mxu0
      %v8304 = vadd.f32 0.0, %v8303
      %v8305 = vpop.f32.mrb[0].mxu0
      %8306 = vmatprep.mubr.bf16.mxu0 0
      %8307 = vmatmul.mubr.bf16.gmra.mrb[0].mxu0 %v8167
      %v8308 = vpop.f32.mrb[0].mxu0
      %v8309 = vadd.f32 0.0, %v8308
      %v8310 = vpop.f32.mrb[0].mxu0
      %v8311 = vpop.f32.mrb[0].mxu0
      %v8312 = vadd.f32 0.0, %v8311
      %v8313 = vpop.f32.mrb[0].mxu0
      %8314 = vmatprep.mubr.bf16.mxu0 0
      %8315 = vmatmul.mubr.bf16.gmra.mrb[0].mxu0 %v8170
      %v8316 = vpop.f32.mrb[0].mxu0
      %v8317 = vadd.f32 0.0, %v8316
      %v8318 = vpop.f32.mrb[0].mxu0
      %v8319 = vpop.f32.mrb[0].mxu0
      %v8320 = vadd.f32 0.0, %v8319
      %v8321 = vpop.f32.mrb[0].mxu0
      %8322 = vmatprep.mubr.bf16.mxu0 0
      %8323 = vmatmul.mubr.bf16.gmra.mrb[0].mxu0 %v8173
      %v8324 = vpop.f32.mrb[0].mxu0
      %v8325 = vadd.f32 0.0, %v8324
      %v8326 = vpop.f32.mrb[0].mxu0
      %v8327 = vpop.f32.mrb[0].mxu0
      %v8328 = vadd.f32 0.0, %v8327
      %v8329 = vpop.f32.mrb[0].mxu0
      %8330 = vmatprep.mubr.bf16.mxu0 0
      %8331 = vmatmul.mubr.bf16.gmra.mrb[0].mxu0 %v8176
      %v8332 = vpop.f32.mrb[0].mxu0
      %v8333 = vadd.f32 0.0, %v8332
      %v8334 = vpop.f32.mrb[0].mxu0
      %v8335 = vpop.f32.mrb[0].mxu0
      %v8336 = vadd.f32 0.0, %v8335
      %v8337 = vpop.f32.mrb[0].mxu0
      %8338 = vdwg.mxu0
      %v8339 = vadd.f32 %v8042, %v8213
      %v8340 = vadd.f32 %v8043, %v8216
      %v8341 = vadd.f32 %v8044, %v8221
      %v8342 = vadd.f32 %v8045, %v8224
      %v8343 = vadd.f32 %v8046, %v8229
      %v8344 = vadd.f32 %v8047, %v8232
      %v8345 = vadd.f32 %v8048, %v8237
      %v8346 = vadd.f32 %v8049, %v8240
      %v8347 = vadd.f32 %v8050, %v8245
      %v8348 = vadd.f32 %v8051, %v8248
      %v8349 = vadd.f32 %v8052, %v8253
      %v8350 = vadd.f32 %v8053, %v8256
      %v8351 = vadd.f32 %v8054, %v8261
      %v8352 = vadd.f32 %v8055, %v8264
      %v8353 = vadd.f32 %v8056, %v8269
      %v8354 = vadd.f32 %v8057, %v8272
      %v8355 = vadd.f32 %v8058, %v8277
      %v8356 = vadd.f32 %v8059, %v8280
      %v8357 = vadd.f32 %v8060, %v8285
      %v8358 = vadd.f32 %v8061, %v8288
      %v8359 = vadd.f32 %v8062, %v8293
      %v8360 = vadd.f32 %v8063, %v8296
      %v8361 = vadd.f32 %v8064, %v8301
      %v8362 = vadd.f32 %v8065, %v8304
      %v8363 = vadd.f32 %v8066, %v8309
      %v8364 = vadd.f32 %v8067, %v8312
      %v8365 = vadd.f32 %v8068, %v8317
      %v8366 = vadd.f32 %v8069, %v8320
      %v8367 = vadd.f32 %v8070, %v8325
      %v8368 = vadd.f32 %v8071, %v8328
      %v8369 = vadd.f32 %v8072, %v8333
      %v8370 = vadd.f32 %v8073, %v8336
      %v8371 = vld [vmem:[%s6] sm:$0x1]
      %v8373 = vlaneseq
      %v8374 = vshrl.u32 %v8373, 7
      %v8375 = vsub.s32 0, %v8374
      %v8376 = vrot.slane %v8371, %v8375
      %v8378 = vadd.f32 %v8339, %v8376
      %v8379 = vadd.f32 %v8340, %v8376
      %v8380 = vadd.f32 %v8341, %v8376
      %v8381 = vadd.f32 %v8342, %v8376
      %v8382 = vadd.f32 %v8343, %v8376
      %v8383 = vadd.f32 %v8344, %v8376
      %v8384 = vadd.f32 %v8345, %v8376
      %v8385 = vadd.f32 %v8346, %v8376
      %v8386 = vadd.f32 %v8347, %v8376
      %v8387 = vadd.f32 %v8348, %v8376
      %v8388 = vadd.f32 %v8349, %v8376
      %v8389 = vadd.f32 %v8350, %v8376
      %v8390 = vadd.f32 %v8351, %v8376
      %v8391 = vadd.f32 %v8352, %v8376
      %v8392 = vadd.f32 %v8353, %v8376
      %v8393 = vadd.f32 %v8354, %v8376
      %v8394 = vadd.f32 %v8355, %v8376
      %v8395 = vadd.f32 %v8356, %v8376
      %v8396 = vadd.f32 %v8357, %v8376
      %v8397 = vadd.f32 %v8358, %v8376
      %v8398 = vadd.f32 %v8359, %v8376
      %v8399 = vadd.f32 %v8360, %v8376
      %v8400 = vadd.f32 %v8361, %v8376
      %v8401 = vadd.f32 %v8362, %v8376
      %v8402 = vadd.f32 %v8363, %v8376
      %v8403 = vadd.f32 %v8364, %v8376
      %v8404 = vadd.f32 %v8365, %v8376
      %v8405 = vadd.f32 %v8366, %v8376
      %v8406 = vadd.f32 %v8367, %v8376
      %v8407 = vadd.f32 %v8368, %v8376
      %v8408 = vadd.f32 %v8369, %v8376
      %v8409 = vadd.f32 %v8370, %v8376
      %v8410 = vld [vmem:[#allocation3] sm:$0xff]
      %v8411 = vld [vmem:[#allocation3 + $0x8] sm:$0xff]
      %v8412 = vld [vmem:[#allocation3 + $0x10] sm:$0xff]
      %v8413 = vld [vmem:[#allocation3 + $0x18] sm:$0xff]
      %v8414 = vld [vmem:[#allocation3 + $0x20] sm:$0xff]
      %v8415 = vld [vmem:[#allocation3 + $0x28] sm:$0xff]
      %v8416 = vld [vmem:[#allocation3 + $0x30] sm:$0xff]
      %v8417 = vld [vmem:[#allocation3 + $0x38] sm:$0xff]
      %v8418 = vld [vmem:[#allocation3 + $0x40] sm:$0xff]
      %v8419 = vld [vmem:[#allocation3 + $0x48] sm:$0xff]
      %v8420 = vld [vmem:[#allocation3 + $0x50] sm:$0xff]
      %v8421 = vld [vmem:[#allocation3 + $0x58] sm:$0xff]
      %v8422 = vld [vmem:[#allocation3 + $0x60] sm:$0xff]
      %v8423 = vld [vmem:[#allocation3 + $0x68] sm:$0xff]
      %v8424 = vld [vmem:[#allocation3 + $0x70] sm:$0xff]
      %v8425 = vld [vmem:[#allocation3 + $0x78] sm:$0xff]
      %v8426 = vld [vmem:[#allocation3 + $0x80] sm:$0xff]
      %v8427 = vld [vmem:[#allocation3 + $0x88] sm:$0xff]
      %v8428 = vld [vmem:[#allocation3 + $0x90] sm:$0xff]
      %v8429 = vld [vmem:[#allocation3 + $0x98] sm:$0xff]
      %v8430 = vld [vmem:[#allocation3 + $0xa0] sm:$0xff]
      %v8431 = vld [vmem:[#allocation3 + $0xa8] sm:$0xff]
      %v8432 = vld [vmem:[#allocation3 + $0xb0] sm:$0xff]
      %v8433 = vld [vmem:[#allocation3 + $0xb8] sm:$0xff]
      %v8434 = vld [vmem:[#allocation3 + $0xc0] sm:$0xff]
      %v8435 = vld [vmem:[#allocation3 + $0xc8] sm:$0xff]
      %v8436 = vld [vmem:[#allocation3 + $0xd0] sm:$0xff]
      %v8437 = vld [vmem:[#allocation3 + $0xd8] sm:$0xff]
      %v8438 = vld [vmem:[#allocation3 + $0xe0] sm:$0xff]
      %v8439 = vld [vmem:[#allocation3 + $0xe8] sm:$0xff]
      %v8440 = vld [vmem:[#allocation3 + $0xf0] sm:$0xff]
      %v8441 = vld [vmem:[#allocation3 + $0xf8] sm:$0xff]
      %v8442 = vadd.f32 %v8378, %v8410
      %v8443 = vadd.f32 %v8379, %v8411
      %v8444 = vadd.f32 %v8380, %v8412
      %v8445 = vadd.f32 %v8381, %v8413
      %v8446 = vadd.f32 %v8382, %v8414
      %v8447 = vadd.f32 %v8383, %v8415
      %v8448 = vadd.f32 %v8384, %v8416
      %v8449 = vadd.f32 %v8385, %v8417
      %v8450 = vadd.f32 %v8386, %v8418
      %v8451 = vadd.f32 %v8387, %v8419
      %v8452 = vadd.f32 %v8388, %v8420
      %v8453 = vadd.f32 %v8389, %v8421
      %v8454 = vadd.f32 %v8390, %v8422
      %v8455 = vadd.f32 %v8391, %v8423
      %v8456 = vadd.f32 %v8392, %v8424
      %v8457 = vadd.f32 %v8393, %v8425
      %v8458 = vadd.f32 %v8394, %v8426
      %v8459 = vadd.f32 %v8395, %v8427
      %v8460 = vadd.f32 %v8396, %v8428
      %v8461 = vadd.f32 %v8397, %v8429
      %v8462 = vadd.f32 %v8398, %v8430
      %v8463 = vadd.f32 %v8399, %v8431
      %v8464 = vadd.f32 %v8400, %v8432
      %v8465 = vadd.f32 %v8401, %v8433
      %v8466 = vadd.f32 %v8402, %v8434
      %v8467 = vadd.f32 %v8403, %v8435
      %v8468 = vadd.f32 %v8404, %v8436
      %v8469 = vadd.f32 %v8405, %v8437
      %v8470 = vadd.f32 %v8406, %v8438
      %v8471 = vadd.f32 %v8407, %v8439
      %v8472 = vadd.f32 %v8408, %v8440
      %v8473 = vadd.f32 %v8409, %v8441
      %v8474 = vmax.f32 %v8442, 0.0
      %v8475 = vmax.f32 %v8443, 0.0
      %v8476 = vmax.f32 %v8444, 0.0
      %v8477 = vmax.f32 %v8445, 0.0
      %v8478 = vmax.f32 %v8446, 0.0
      %v8479 = vmax.f32 %v8447, 0.0
      %v8480 = vmax.f32 %v8448, 0.0
      %v8481 = vmax.f32 %v8449, 0.0
      %v8482 = vmax.f32 %v8450, 0.0
      %v8483 = vmax.f32 %v8451, 0.0
      %v8484 = vmax.f32 %v8452, 0.0
      %v8485 = vmax.f32 %v8453, 0.0
      %v8486 = vmax.f32 %v8454, 0.0
      %v8487 = vmax.f32 %v8455, 0.0
      %v8488 = vmax.f32 %v8456, 0.0
      %v8489 = vmax.f32 %v8457, 0.0
      %v8490 = vmax.f32 %v8458, 0.0
      %v8491 = vmax.f32 %v8459, 0.0
      %v8492 = vmax.f32 %v8460, 0.0
      %v8493 = vmax.f32 %v8461, 0.0
      %v8494 = vmax.f32 %v8462, 0.0
      %v8495 = vmax.f32 %v8463, 0.0
      %v8496 = vmax.f32 %v8464, 0.0
      %v8497 = vmax.f32 %v8465, 0.0
      %v8498 = vmax.f32 %v8466, 0.0
      %v8499 = vmax.f32 %v8467, 0.0
      %v8500 = vmax.f32 %v8468, 0.0
      %v8501 = vmax.f32 %v8469, 0.0
      %v8502 = vmax.f32 %v8470, 0.0
      %v8503 = vmax.f32 %v8471, 0.0
      %v8504 = vmax.f32 %v8472, 0.0
      %v8505 = vmax.f32 %v8473, 0.0
      %v8506 = vpack.c.bf16 %v8475, %v8474
      %v8507 = vpack.c.bf16 %v8477, %v8476
      %v8508 = vpack.c.bf16 %v8479, %v8478
      %v8509 = vpack.c.bf16 %v8481, %v8480
      %v8510 = vpack.c.bf16 %v8483, %v8482
      %v8511 = vpack.c.bf16 %v8485, %v8484
      %v8512 = vpack.c.bf16 %v8487, %v8486
      %v8513 = vpack.c.bf16 %v8489, %v8488
      %v8514 = vpack.c.bf16 %v8491, %v8490
      %v8515 = vpack.c.bf16 %v8493, %v8492
      %v8516 = vpack.c.bf16 %v8495, %v8494
      %v8517 = vpack.c.bf16 %v8497, %v8496
      %v8518 = vpack.c.bf16 %v8499, %v8498
      %v8519 = vpack.c.bf16 %v8501, %v8500
      %v8520 = vpack.c.bf16 %v8503, %v8502
      %v8521 = vpack.c.bf16 %v8505, %v8504
      %v8538 = vunpack.c.l.b16 %v8506
      %v8539 = vunpack.c.h.b16 %v8506
      %v8540 = vunpack.c.l.b16 %v8507
      %v8541 = vunpack.c.h.b16 %v8507
      %v8542 = vunpack.c.l.b16 %v8508
      %v8543 = vunpack.c.h.b16 %v8508
      %v8544 = vunpack.c.l.b16 %v8509
      %v8545 = vunpack.c.h.b16 %v8509
      %v8546 = vunpack.c.l.b16 %v8510
      %v8547 = vunpack.c.h.b16 %v8510
      %v8548 = vunpack.c.l.b16 %v8511
      %v8549 = vunpack.c.h.b16 %v8511
      %v8550 = vunpack.c.l.b16 %v8512
      %v8551 = vunpack.c.h.b16 %v8512
      %v8552 = vunpack.c.l.b16 %v8513
      %v8553 = vunpack.c.h.b16 %v8513
      %v8554 = vunpack.c.l.b16 %v8514
      %v8555 = vunpack.c.h.b16 %v8514
      %v8556 = vunpack.c.l.b16 %v8515
      %v8557 = vunpack.c.h.b16 %v8515
      %v8558 = vunpack.c.l.b16 %v8516
      %v8559 = vunpack.c.h.b16 %v8516
      %v8560 = vunpack.c.l.b16 %v8517
      %v8561 = vunpack.c.h.b16 %v8517
      %v8562 = vunpack.c.l.b16 %v8518
      %v8563 = vunpack.c.h.b16 %v8518
      %v8564 = vunpack.c.l.b16 %v8519
      %v8565 = vunpack.c.h.b16 %v8519
      %v8566 = vunpack.c.l.b16 %v8520
      %v8567 = vunpack.c.h.b16 %v8520
      %v8568 = vunpack.c.l.b16 %v8521
      %v8569 = vunpack.c.h.b16 %v8521
      %v8570 = vpack.c.b16 %v8538, %v8538
      %v8571 = vpack.c.b16 %v8539, %v8539
      %v8572 = vpack.c.b16 %v8540, %v8540
      %v8573 = vpack.c.b16 %v8541, %v8541
      %v8574 = vpack.c.b16 %v8542, %v8542
      %v8575 = vpack.c.b16 %v8543, %v8543
      %v8576 = vpack.c.b16 %v8544, %v8544
      %v8577 = vpack.c.b16 %v8545, %v8545
      %v8578 = vpack.c.b16 %v8546, %v8546
      %v8579 = vpack.c.b16 %v8547, %v8547
      %v8580 = vpack.c.b16 %v8548, %v8548
      %v8581 = vpack.c.b16 %v8549, %v8549
      %v8582 = vpack.c.b16 %v8550, %v8550
      %v8583 = vpack.c.b16 %v8551, %v8551
      %v8584 = vpack.c.b16 %v8552, %v8552
      %v8585 = vpack.c.b16 %v8553, %v8553
      %v8586 = vpack.c.b16 %v8554, %v8554
      %v8587 = vpack.c.b16 %v8555, %v8555
      %v8588 = vpack.c.b16 %v8556, %v8556
      %v8589 = vpack.c.b16 %v8557, %v8557
      %v8590 = vpack.c.b16 %v8558, %v8558
      %v8591 = vpack.c.b16 %v8559, %v8559
      %v8592 = vpack.c.b16 %v8560, %v8560
      %v8593 = vpack.c.b16 %v8561, %v8561
      %v8594 = vpack.c.b16 %v8562, %v8562
      %v8595 = vpack.c.b16 %v8563, %v8563
      %v8596 = vpack.c.b16 %v8564, %v8564
      %v8597 = vpack.c.b16 %v8565, %v8565
      %v8598 = vpack.c.b16 %v8566, %v8566
      %v8599 = vpack.c.b16 %v8567, %v8567
      %v8600 = vpack.c.b16 %v8568, %v8568
      %v8601 = vpack.c.b16 %v8569, %v8569
      %vm8634 = vcmask 125952
      %8635 = vst.msk [vmem:[%s278] sm:$0xf] %vm8634, %v8570
      %8636 = vst.msk [vmem:[%s278 + $0x4] sm:$0xf] %vm8634, %v8571
      %8637 = vst.msk [vmem:[%s278 + $0x8] sm:$0xf] %vm8634, %v8572
      %8638 = vst.msk [vmem:[%s278 + $0xc] sm:$0xf] %vm8634, %v8573
      %8639 = vst.msk [vmem:[%s278 + $0x10] sm:$0xf] %vm8634, %v8574
      %8640 = vst.msk [vmem:[%s278 + $0x14] sm:$0xf] %vm8634, %v8575
      %8641 = vst.msk [vmem:[%s278 + $0x18] sm:$0xf] %vm8634, %v8576
      %8642 = vst.msk [vmem:[%s278 + $0x1c] sm:$0xf] %vm8634, %v8577
      %8643 = vst.msk [vmem:[%s278 + $0x20] sm:$0xf] %vm8634, %v8578
      %8644 = vst.msk [vmem:[%s278 + $0x24] sm:$0xf] %vm8634, %v8579
      %8645 = vst.msk [vmem:[%s278 + $0x28] sm:$0xf] %vm8634, %v8580
      %8646 = vst.msk [vmem:[%s278 + $0x2c] sm:$0xf] %vm8634, %v8581
      %8647 = vst.msk [vmem:[%s278 + $0x30] sm:$0xf] %vm8634, %v8582
      %8648 = vst.msk [vmem:[%s278 + $0x34] sm:$0xf] %vm8634, %v8583
      %8649 = vst.msk [vmem:[%s278 + $0x38] sm:$0xf] %vm8634, %v8584
      %8650 = vst.msk [vmem:[%s278 + $0x3c] sm:$0xf] %vm8634, %v8585
      %8651 = vst.msk [vmem:[%s278 + $0x40] sm:$0xf] %vm8634, %v8586
      %8652 = vst.msk [vmem:[%s278 + $0x44] sm:$0xf] %vm8634, %v8587
      %8653 = vst.msk [vmem:[%s278 + $0x48] sm:$0xf] %vm8634, %v8588
      %8654 = vst.msk [vmem:[%s278 + $0x4c] sm:$0xf] %vm8634, %v8589
      %8655 = vst.msk [vmem:[%s278 + $0x50] sm:$0xf] %vm8634, %v8590
      %8656 = vst.msk [vmem:[%s278 + $0x54] sm:$0xf] %vm8634, %v8591
      %8657 = vst.msk [vmem:[%s278 + $0x58] sm:$0xf] %vm8634, %v8592
      %8658 = vst.msk [vmem:[%s278 + $0x5c] sm:$0xf] %vm8634, %v8593
      %8659 = vst.msk [vmem:[%s278 + $0x60] sm:$0xf] %vm8634, %v8594
      %8660 = vst.msk [vmem:[%s278 + $0x64] sm:$0xf] %vm8634, %v8595
      %8661 = vst.msk [vmem:[%s278 + $0x68] sm:$0xf] %vm8634, %v8596
      %8662 = vst.msk [vmem:[%s278 + $0x6c] sm:$0xf] %vm8634, %v8597
      %8663 = vst.msk [vmem:[%s278 + $0x70] sm:$0xf] %vm8634, %v8598
      %8664 = vst.msk [vmem:[%s278 + $0x74] sm:$0xf] %vm8634, %v8599
      %8665 = vst.msk [vmem:[%s278 + $0x78] sm:$0xf] %vm8634, %v8600
      %8666 = vst.msk [vmem:[%s278 + $0x7c] sm:$0xf] %vm8634, %v8601
      %p8667 = scmp.lt.s32.totalorder %s18, 1
      %s8668 = scalar_select %p8667, %s18, 1
      %s8669 = smul.addr %s8668, 32
      %s8670 = smul.addr %s8669, 4
      %s8671 = scalar_lea.vmem %s7, %s8670
      // Predicated region
      $region49: #{resnet_forward.2} parent=47 // pred_check
        %p8672 = pneg %p188
      $region50: #{resnet_forward.2} parent=47 // pred_check_branch
        %8674 = sbr.rel (%p8672) target = $region52
      $region51: #{resnet_forward.2} parent=47 // pred_region
        _
      $region52: #{resnet_forward.2} parent=47 // pred_fallthru
        _
    $region48: #{resnet_forward.2} parent=5 // pred_fallthru
      _
    %p8675 = scmp.le.s32.totalorder 2, %s13
    // Predicated region
    $region53: #{resnet_forward.2} parent=5 // pred_check
      %p8676 = pneg %p8675
    $region54: #{resnet_forward.2} parent=5 // pred_check_branch
      %8678 = sbr.rel (%p8676) target = $region56
    $region55: #{resnet_forward.2} parent=5 // pred_region
      %s8679 = ssub.s32 %s13, 2
      // Predicated region
      $region57: #{resnet_forward.2} parent=55 // pred_check
        %p8680 = pneg %p194
      $region58: #{resnet_forward.2} parent=55 // pred_check_branch
        %8682 = sbr.rel (%p8680) target = $region60
      $region59: #{resnet_forward.2} parent=55 // pred_region
        %p8683 = scmp.lt.s32.totalorder %s19, 1
        %s8684 = scalar_select %p8683, %s19, 1
        %s8685 = smul.addr %s8684, 32
        %s8686 = smul.addr %s8685, 4
        %s8687 = scalar_lea.vmem %s7, %s8686
      $region60: #{resnet_forward.2} parent=55 // pred_fallthru
        _
    $region56: #{resnet_forward.2} parent=5 // pred_fallthru
      _
  $region6: #{resnet_forward.2} parent=0 // loop_footer
    %s17 = sadd.s32 1, %s13
  $region7: #{resnet_forward.2} parent=0 // loop_footer_branch
    %12 = sbr.rel target = $region3
  $region8: #{resnet_forward.2} parent=0 // loop_exit
    _

</llo_original>
